<compile_context>
chip_gen: v5e
topology: v5e:2x2
jax: 0.10.0
libtpu: 0.0.40
codegen_flags: <defaults>
</compile_context>

<pallas_src>
import math

import numpy as np
import jax
import jax.numpy as jnp
from jax.experimental import pallas as pl
from jax.experimental.pallas import tpu as pltpu


# ----------------------------------------------------------------------------
# Fused kernel: one grid step == one batch tile of Bt elements.
# ----------------------------------------------------------------------------
def _fused_pointnetfeat_kernel(
    x_ref,
    # fused x-consumer weight: [STN conv1 (3,64) | wq/sqrt(d), wk, wv (3,9)]
    wx_ref, sb1_ref,
    # STN3d (BN folded): conv2/3, fc1..3
    sw2_ref, sb2_ref, sw3_ref, sb3_ref,
    fw1_ref, fb1_ref, fw2_ref, fb2_ref, fw3_ref, fb3_ref,
    # PointNetfeat conv stack (BN folded): conv1..3
    cw1_ref, cb1_ref, cw2_ref, cb2_ref, cw3_ref, cb3_ref,
    # outputs
    trans_ref, glob_ref):
    bt, n, _ = x_ref.shape
    x = x_ref[...].reshape(bt * n, 3)                        # (Bt*N, 3) f32

    def dense(h, w_ref, b_ref):
        # bf16 MXU matmul, f32 accumulation, f32 bias.
        return jnp.dot(h.astype(jnp.bfloat16), w_ref[...],
                       preferred_element_type=jnp.float32) + b_ref[...]

    # -------- fused x projection: STN conv1 + attention q/k/v in one dot ----
    xw = jnp.dot(x.astype(jnp.bfloat16), wx_ref[...],
                 preferred_element_type=jnp.float32)         # (Bt*N, 73)
    h = jnp.maximum(xw[:, :64] + sb1_ref[...], 0.0)          # relu(bn1(conv1))
    qkv = xw[:, 64:73].reshape(bt, n, 9)                     # q pre-scaled by 1/sqrt(d)

    # ---------------- STN3d ----------------
    h = jnp.maximum(dense(h, sw2_ref, sb2_ref), 0.0)         # (Bt*N, 128)
    h = jnp.maximum(dense(h, sw3_ref, sb3_ref), 0.0)         # (Bt*N, 1024)
    g = jnp.max(h.reshape(bt, n, 1024), axis=1)              # per-batch max -> (Bt, 1024)
    g = jnp.maximum(dense(g, fw1_ref, fb1_ref), 0.0)         # relu(bn4(fc1))
    g = jnp.maximum(dense(g, fw2_ref, fb2_ref), 0.0)         # relu(bn5(fc2))
    t = dense(g, fw3_ref, fb3_ref)                           # fc3 -> (Bt, 9)
    # flattened 3x3 identity: columns 0, 4, 8
    iden = jnp.where(
        jax.lax.broadcasted_iota(jnp.int32, t.shape, 1) % 4 == 0, 1.0, 0.0)
    trans_ref[...] = (t + iden)[None]                        # (1, Bt, 9)

    # ---------------- SelfAttention(3, 3) ----------------
    q = qkv[..., 0:3]
    k = qkv[..., 3:6]
    v = qkv[..., 6:9]
    logits = jnp.einsum('bnd,bmd->bnm', q, k,
                        preferred_element_type=jnp.float32)  # (Bt, N, N)
    logits = logits - jnp.max(logits, axis=-1, keepdims=True)
    p = jnp.exp(logits)
    attn = p * pl.reciprocal(jnp.sum(p, axis=-1, keepdims=True), approx=True)
    # TODO(synk): nn.Dropout(0.1) after softmax is identity in eval mode.
    y = jnp.einsum('bnm,bmd->bnd',
                   attn.astype(jnp.bfloat16), v.astype(jnp.bfloat16),
                   preferred_element_type=jnp.float32)       # (Bt, N, 3)

    # ---------------- main feat conv stack + global max ----------------
    # NOTE: torch.bmm(x^T, trans) in the reference forward is dead code (its
    # result is immediately overwritten by `x = attentions`), so it is skipped.
    y = y.reshape(bt * n, 3)
    h = jnp.maximum(dense(y, cw1_ref, cb1_ref), 0.0)         # relu(bn1(conv1))
    h = jnp.maximum(dense(h, cw2_ref, cb2_ref), 0.0)         # relu(bn2(conv2))
    h = dense(h, cw3_ref, cb3_ref)                           # bn3(conv3), no relu
    glob_ref[...] = jnp.max(h.reshape(bt, n, 1024), axis=1)[None]  # (1, Bt, 1024)


def _default_num_batch_blocks(batch):
    """Grid size along batch: 1 on single-TC chips (v5e/v6e), 2 on dual-TC v7x."""
    try:
        kind = jax.devices()[0].device_kind.lower()
    except Exception:
        kind = ""
    blocks = 2 if ("v7" in kind or "7x" in kind) else 1
    if batch % blocks != 0:
        blocks = 1
    return max(1, min(blocks, batch))


def pointnetfeat_forward(x_bcn, params, num_batch_blocks=None):
    """PyTorch-layout input (B, 3, N) -> (global_feat (B,1024), trans (B,3,3), None)."""
    B, _, N = x_bcn.shape
    x_bnc = jnp.transpose(x_bcn, (0, 2, 1))                  # (B, N, 3), points-major

    G = (num_batch_blocks if num_batch_blocks is not None
         else _default_num_batch_blocks(B))
    assert B % G == 0, "batch must divide evenly into batch blocks"
    Bt = B // G
    if Bt > 1:
        # In-kernel (Bt, N, C) <-> (Bt*N, C) flattening is a no-op relayout
        # only when N is a multiple of the f32 sublane tile (8).
        assert N % 8 == 0, "N must be a multiple of 8 when batching > 1 per step"

    s, f = params['stn'], params['feat']
    weights = [
        params['fused']['wx'], s['b1'],
        s['w2'], s['b2'], s['w3'], s['b3'],
        s['fw1'], s['fb1'], s['fw2'], s['fb2'], s['fw3'], s['fb3'],
        f['w1'], f['b1'], f['w2'], f['b2'], f['w3'], f['b3'],
    ]

    def w_spec(arr):
        # Full-array block with constant index -> never re-fetched across grid
        # steps; single-buffered so the ~1.9 MB of weights is not doubled.
        return pl.BlockSpec(tuple(arr.shape), lambda g: (0, 0),
                            pipeline_mode=pl.Buffered(1))

    trans9, glob = pl.pallas_call(
        _fused_pointnetfeat_kernel,
        out_shape=(
            jax.ShapeDtypeStruct((G, Bt, 9), jnp.float32),
            jax.ShapeDtypeStruct((G, Bt, 1024), jnp.float32),
        ),
        grid=(G,),
        in_specs=[pl.BlockSpec((Bt, N, 3), lambda g: (g, 0, 0))]
                 + [w_spec(w) for w in weights],
        out_specs=(
            pl.BlockSpec((1, Bt, 9), lambda g: (g, 0, 0)),
            pl.BlockSpec((1, Bt, 1024), lambda g: (g, 0, 0)),
        ),
        compiler_params=pltpu.CompilerParams(
            dimension_semantics=("parallel",)),
    )(x_bnc, *weights)

    trans = trans9.reshape(B, 3, 3)
    return glob.reshape(B, 1024), trans, None


# ----------------------------------------------------------------------------
# Parameter initialization (deterministic, synthetic) + BN / temperature
# folding.  Matmul weights stored bf16; biases in f32.
# ----------------------------------------------------------------------------
def _fold_bn(w, b, gamma, beta, mean, var, eps=1e-5):
    scale = gamma / jnp.sqrt(var + eps)
    return w * scale[None, :], (b - mean) * scale + beta


def _init_linear(key, fan_in, fan_out):
    kw, kb = jax.random.split(key)
    w = jax.random.normal(kw, (fan_in, fan_out), jnp.float32) / np.sqrt(fan_in)
    b = 0.05 * jax.random.normal(kb, (fan_out,), jnp.float32)
    return w, b


def _init_bn(key, c):
    kg, kb = jax.random.split(key)
    gamma = 1.0 + 0.1 * jax.random.normal(kg, (c,), jnp.float32)
    beta = 0.05 * jax.random.normal(kb, (c,), jnp.float32)
    return gamma, beta, jnp.zeros((c,), jnp.float32), jnp.ones((c,), jnp.float32)


def make_params(key):
    keys = iter(jax.random.split(key, 40))

    def conv_bn(fan_in, fan_out):
        w, b = _init_linear(next(keys), fan_in, fan_out)
        g, be, m, v = _init_bn(next(keys), fan_out)
        w, b = _fold_bn(w, b, g, be, m, v)
        return w.astype(jnp.bfloat16), b.reshape(1, -1)

    def linear(fan_in, fan_out):
        w, b = _init_linear(next(keys), fan_in, fan_out)
        return w.astype(jnp.bfloat16), b.reshape(1, -1)

    stn = {}
    stn['w1'], stn['b1'] = conv_bn(3, 64)
    stn['w2'], stn['b2'] = conv_bn(64, 128)
    stn['w3'], stn['b3'] = conv_bn(128, 1024)
    stn['fw1'], stn['fb1'] = conv_bn(1024, 512)
    stn['fw2'], stn['fb2'] = conv_bn(512, 256)
    stn['fw3'], stn['fb3'] = linear(256, 9)

    # SelfAttention(3, 3): 1/temperature folded into wq; stored bf16 so the
    # q/k/v projection rides the same bf16 MXU path as every other matmul.
    out_channel = 3
    inv_temp = 1.0 / math.sqrt(float(out_channel))
    wq = jax.random.normal(next(keys), (3, 3), jnp.float32) / np.sqrt(3.0)
    wk = jax.random.normal(next(keys), (3, 3), jnp.float32) / np.sqrt(3.0)
    wv = jax.random.normal(next(keys), (3, 3), jnp.float32) / np.sqrt(3.0)
    attn = {'wqkv': jnp.concatenate([wq * inv_temp, wk, wv],
                                    axis=1).astype(jnp.bfloat16)}  # (3, 9)

    feat = {}
    feat['w1'], feat['b1'] = conv_bn(3, 64)
    feat['w2'], feat['b2'] = conv_bn(64, 128)
    feat['w3'], feat['b3'] = conv_bn(128, 1024)

    # Fuse the two matmuls that consume x (STN conv1 + q/k/v projection) into
    # a single (3, 73) bf16 weight.
    fused = {'wx': jnp.concatenate([stn['w1'], attn['wqkv']], axis=1)}

    return {'stn': stn, 'attn': attn, 'feat': feat, 'fused': fused}


# ----------------------------------------------------------------------------
# Pure-JAX reference (same bf16 matmul-operand convention) for sanity check.
# ----------------------------------------------------------------------------
def reference_forward(x_bcn, params):
    x = jnp.transpose(x_bcn, (0, 2, 1))                      # (B, N, 3)

    def dense(h, w, b):
        return jnp.dot(h.astype(jnp.bfloat16), w,
                       preferred_element_type=jnp.float32) + b

    def stack(h, p, final_relu):
        h = jax.nn.relu(dense(h, p['w1'], p['b1']))
        h = jax.nn.relu(dense(h, p['w2'], p['b2']))
        h = dense(h, p['w3'], p['b3'])
        if final_relu:
            h = jax.nn.relu(h)
        return jnp.max(h, axis=1)                            # (B, C)

    s = params['stn']
    g = stack(x, s, True)
    g = jax.nn.relu(dense(g, s['fw1'], s['fb1']))
    g = jax.nn.relu(dense(g, s['fw2'], s['fb2']))
    t9 = dense(g, s['fw3'], s['fb3']) + jnp.eye(3, dtype=jnp.float32).reshape(1, 9)
    trans = t9.reshape(-1, 3, 3)

    wqkv = params['attn']['wqkv']                            # bf16, q pre-scaled
    qkv = jnp.dot(x.astype(jnp.bfloat16), wqkv,
                  preferred_element_type=jnp.float32)
    q, k, v = qkv[..., 0:3], qkv[..., 3:6], qkv[..., 6:9]
    logits = jnp.einsum('bnd,bmd->bnm', q, k)
    attn = jax.nn.softmax(logits, axis=-1)
    y = jnp.einsum('bnm,bmd->bnd',
                   attn.astype(jnp.bfloat16), v.astype(jnp.bfloat16),
                   preferred_element_type=jnp.float32)

    x_global = stack(y, params['feat'], False)
    return x_global, trans


if __name__ == "__main__":
    key = jax.random.PRNGKey(0)
    kx, kp = jax.random.split(key)

    B, N = 2, 128
    x = jax.random.normal(kx, (B, 3, N), jnp.float32)        # PyTorch layout (B, C=3, N)
    params = make_params(kp)

    fwd = jax.jit(pointnetfeat_forward, static_argnames=("num_batch_blocks",))
    x_global, trans, trans_feat = fwd(x, params)
    jax.block_until_ready((x_global, trans))

    assert x_global.shape == (B, 1024)
    assert trans.shape == (B, 3, 3)
    assert trans_feat is None

    ref_global, ref_trans = reference_forward(x, params)
    np.testing.assert_allclose(np.asarray(x_global), np.asarray(ref_global),
                               rtol=2e-2, atol=2e-2)
    np.testing.assert_allclose(np.asarray(trans), np.asarray(ref_trans),
                               rtol=2e-2, atol=2e-2)

    print("KERNEL_OK")
</pallas_src>

<mosaic_0001>
module attributes {stable_mosaic.version = 11 : i64} {
  func.func @_fused_pointnetfeat_kernel(%arg0: i32, %arg1: memref<2x128x3xf32, #tpu.memory_space<vmem>>, %arg2: memref<3x73xbf16, #tpu.memory_space<vmem>>, %arg3: memref<1x64xf32, #tpu.memory_space<vmem>>, %arg4: memref<64x128xbf16, #tpu.memory_space<vmem>>, %arg5: memref<1x128xf32, #tpu.memory_space<vmem>>, %arg6: memref<128x1024xbf16, #tpu.memory_space<vmem>>, %arg7: memref<1x1024xf32, #tpu.memory_space<vmem>>, %arg8: memref<1024x512xbf16, #tpu.memory_space<vmem>>, %arg9: memref<1x512xf32, #tpu.memory_space<vmem>>, %arg10: memref<512x256xbf16, #tpu.memory_space<vmem>>, %arg11: memref<1x256xf32, #tpu.memory_space<vmem>>, %arg12: memref<256x9xbf16, #tpu.memory_space<vmem>>, %arg13: memref<1x9xf32, #tpu.memory_space<vmem>>, %arg14: memref<3x64xbf16, #tpu.memory_space<vmem>>, %arg15: memref<1x64xf32, #tpu.memory_space<vmem>>, %arg16: memref<64x128xbf16, #tpu.memory_space<vmem>>, %arg17: memref<1x128xf32, #tpu.memory_space<vmem>>, %arg18: memref<128x1024xbf16, #tpu.memory_space<vmem>>, %arg19: memref<1x1024xf32, #tpu.memory_space<vmem>>, %arg20: memref<1x2x9xf32, #tpu.memory_space<vmem>>, %arg21: memref<1x2x1024xf32, #tpu.memory_space<vmem>>) attributes {dimension_semantics = [#tpu.dimension_semantics<parallel>], iteration_bounds = array<i64: 1>, scalar_prefetch = 0 : i64, scratch_operands = 0 : i64, tpu.core_type = #tpu.core_type<tc>, window_params = [{transform_indices = @transform_0, window_bounds = array<i64: 2, 128, 3>}, {pipeline_mode = #tpu.pipeline_mode<synchronous>, transform_indices = @transform_1, window_bounds = array<i64: 3, 73>}, {pipeline_mode = #tpu.pipeline_mode<synchronous>, transform_indices = @transform_2, window_bounds = array<i64: 1, 64>}, {pipeline_mode = #tpu.pipeline_mode<synchronous>, transform_indices = @transform_3, window_bounds = array<i64: 64, 128>}, {pipeline_mode = #tpu.pipeline_mode<synchronous>, transform_indices = @transform_4, window_bounds = array<i64: 1, 128>}, {pipeline_mode = #tpu.pipeline_mode<synchronous>, transform_indices = @transform_5, window_bounds = array<i64: 128, 1024>}, {pipeline_mode = #tpu.pipeline_mode<synchronous>, transform_indices = @transform_6, window_bounds = array<i64: 1, 1024>}, {pipeline_mode = #tpu.pipeline_mode<synchronous>, transform_indices = @transform_7, window_bounds = array<i64: 1024, 512>}, {pipeline_mode = #tpu.pipeline_mode<synchronous>, transform_indices = @transform_8, window_bounds = array<i64: 1, 512>}, {pipeline_mode = #tpu.pipeline_mode<synchronous>, transform_indices = @transform_9, window_bounds = array<i64: 512, 256>}, {pipeline_mode = #tpu.pipeline_mode<synchronous>, transform_indices = @transform_10, window_bounds = array<i64: 1, 256>}, {pipeline_mode = #tpu.pipeline_mode<synchronous>, transform_indices = @transform_11, window_bounds = array<i64: 256, 9>}, {pipeline_mode = #tpu.pipeline_mode<synchronous>, transform_indices = @transform_12, window_bounds = array<i64: 1, 9>}, {pipeline_mode = #tpu.pipeline_mode<synchronous>, transform_indices = @transform_13, window_bounds = array<i64: 3, 64>}, {pipeline_mode = #tpu.pipeline_mode<synchronous>, transform_indices = @transform_14, window_bounds = array<i64: 1, 64>}, {pipeline_mode = #tpu.pipeline_mode<synchronous>, transform_indices = @transform_15, window_bounds = array<i64: 64, 128>}, {pipeline_mode = #tpu.pipeline_mode<synchronous>, transform_indices = @transform_16, window_bounds = array<i64: 1, 128>}, {pipeline_mode = #tpu.pipeline_mode<synchronous>, transform_indices = @transform_17, window_bounds = array<i64: 128, 1024>}, {pipeline_mode = #tpu.pipeline_mode<synchronous>, transform_indices = @transform_18, window_bounds = array<i64: 1, 1024>}, {transform_indices = @transform_19, window_bounds = array<i64: 1, 2, 9>}, {transform_indices = @transform_20, window_bounds = array<i64: 1, 2, 1024>}]} {
    %c0 = arith.constant 0 : index
    %c0_0 = arith.constant 0 : index
    %c0_1 = arith.constant 0 : index
    %0 = vector.load %arg1[%c0, %c0_0, %c0_1] : memref<2x128x3xf32, #tpu.memory_space<vmem>>, vector<2x128x3xf32>
    %1 = vector.shape_cast %0 : vector<2x128x3xf32> to vector<256x3xf32>
    %2 = arith.truncf %1 : vector<256x3xf32> to vector<256x3xbf16>
    %c0_2 = arith.constant 0 : index
    %c0_3 = arith.constant 0 : index
    %3 = vector.load %arg2[%c0_2, %c0_3] : memref<3x73xbf16, #tpu.memory_space<vmem>>, vector<3x73xbf16>
    %cst = arith.constant dense<0.000000e+00> : vector<256x73xf32>
    %4 = tpu.matmul %2, %3, %cst {dimension_numbers = #tpu.dot_dimension_numbers<[1], [0], [0], [1], [0, 0, 1, 1], [], []>} : vector<256x3xbf16>, vector<3x73xbf16>, vector<256x73xf32> -> vector<256x73xf32>
    %5 = vector.extract_strided_slice %4 {offsets = [0, 0], sizes = [256, 64], strides = [1, 1]} : vector<256x73xf32> to vector<256x64xf32>
    %c0_4 = arith.constant 0 : index
    %c0_5 = arith.constant 0 : index
    %6 = vector.load %arg3[%c0_4, %c0_5] : memref<1x64xf32, #tpu.memory_space<vmem>>, vector<1x64xf32>
    %7 = vector.broadcast %6 : vector<1x64xf32> to vector<256x64xf32>
    %8 = arith.addf %5, %7 : vector<256x64xf32>
    %cst_6 = arith.constant 0.000000e+00 : f32
    %9 = vector.broadcast %cst_6 : f32 to vector<256x64xf32>
    %10 = arith.maximumf %8, %9 : vector<256x64xf32>
    %11 = vector.extract_strided_slice %4 {offsets = [0, 64], sizes = [256, 9], strides = [1, 1]} : vector<256x73xf32> to vector<256x9xf32>
    %12 = vector.shape_cast %11 : vector<256x9xf32> to vector<2x128x9xf32>
    %13 = arith.truncf %10 : vector<256x64xf32> to vector<256x64xbf16>
    %c0_7 = arith.constant 0 : index
    %c0_8 = arith.constant 0 : index
    %14 = vector.load %arg4[%c0_7, %c0_8] : memref<64x128xbf16, #tpu.memory_space<vmem>>, vector<64x128xbf16>
    %cst_9 = arith.constant dense<0.000000e+00> : vector<256x128xf32>
    %15 = tpu.matmul %13, %14, %cst_9 {dimension_numbers = #tpu.dot_dimension_numbers<[1], [0], [0], [1], [0, 0, 1, 1], [], []>} : vector<256x64xbf16>, vector<64x128xbf16>, vector<256x128xf32> -> vector<256x128xf32>
    %c0_10 = arith.constant 0 : index
    %c0_11 = arith.constant 0 : index
    %16 = vector.load %arg5[%c0_10, %c0_11] : memref<1x128xf32, #tpu.memory_space<vmem>>, vector<1x128xf32>
    %17 = vector.broadcast %16 : vector<1x128xf32> to vector<256x128xf32>
    %18 = arith.addf %15, %17 : vector<256x128xf32>
    %cst_12 = arith.constant 0.000000e+00 : f32
    %19 = vector.broadcast %cst_12 : f32 to vector<256x128xf32>
    %20 = arith.maximumf %18, %19 : vector<256x128xf32>
    %21 = arith.truncf %20 : vector<256x128xf32> to vector<256x128xbf16>
    %c0_13 = arith.constant 0 : index
    %c0_14 = arith.constant 0 : index
    %22 = vector.load %arg6[%c0_13, %c0_14] : memref<128x1024xbf16, #tpu.memory_space<vmem>>, vector<128x1024xbf16>
    %cst_15 = arith.constant dense<0.000000e+00> : vector<256x1024xf32>
    %23 = tpu.matmul %21, %22, %cst_15 {dimension_numbers = #tpu.dot_dimension_numbers<[1], [0], [0], [1], [0, 0, 1, 1], [], []>} : vector<256x128xbf16>, vector<128x1024xbf16>, vector<256x1024xf32> -> vector<256x1024xf32>
    %c0_16 = arith.constant 0 : index
    %c0_17 = arith.constant 0 : index
    %24 = vector.load %arg7[%c0_16, %c0_17] : memref<1x1024xf32, #tpu.memory_space<vmem>>, vector<1x1024xf32>
    %25 = vector.broadcast %24 : vector<1x1024xf32> to vector<256x1024xf32>
    %26 = arith.addf %23, %25 : vector<256x1024xf32>
    %cst_18 = arith.constant 0.000000e+00 : f32
    %27 = vector.broadcast %cst_18 : f32 to vector<256x1024xf32>
    %28 = arith.maximumf %26, %27 : vector<256x1024xf32>
    %29 = vector.shape_cast %28 : vector<256x1024xf32> to vector<2x128x1024xf32>
    %cst_19 = arith.constant dense<0xFF800000> : vector<2x1024xf32>
    %30 = vector.multi_reduction <maximumf>, %29, %cst_19 [1] : vector<2x128x1024xf32> to vector<2x1024xf32>
    %31 = arith.truncf %30 : vector<2x1024xf32> to vector<2x1024xbf16>
    %c0_20 = arith.constant 0 : index
    %c0_21 = arith.constant 0 : index
    %32 = vector.load %arg8[%c0_20, %c0_21] : memref<1024x512xbf16, #tpu.memory_space<vmem>>, vector<1024x512xbf16>
    %cst_22 = arith.constant dense<0.000000e+00> : vector<2x512xf32>
    %33 = tpu.matmul %31, %32, %cst_22 {dimension_numbers = #tpu.dot_dimension_numbers<[1], [0], [0], [1], [0, 0, 1, 1], [], []>} : vector<2x1024xbf16>, vector<1024x512xbf16>, vector<2x512xf32> -> vector<2x512xf32>
    %c0_23 = arith.constant 0 : index
    %c0_24 = arith.constant 0 : index
    %34 = vector.load %arg9[%c0_23, %c0_24] : memref<1x512xf32, #tpu.memory_space<vmem>>, vector<1x512xf32>
    %35 = vector.broadcast %34 : vector<1x512xf32> to vector<2x512xf32>
    %36 = arith.addf %33, %35 : vector<2x512xf32>
    %cst_25 = arith.constant 0.000000e+00 : f32
    %37 = vector.broadcast %cst_25 : f32 to vector<2x512xf32>
    %38 = arith.maximumf %36, %37 : vector<2x512xf32>
    %39 = arith.truncf %38 : vector<2x512xf32> to vector<2x512xbf16>
    %c0_26 = arith.constant 0 : index
    %c0_27 = arith.constant 0 : index
    %40 = vector.load %arg10[%c0_26, %c0_27] : memref<512x256xbf16, #tpu.memory_space<vmem>>, vector<512x256xbf16>
    %cst_28 = arith.constant dense<0.000000e+00> : vector<2x256xf32>
    %41 = tpu.matmul %39, %40, %cst_28 {dimension_numbers = #tpu.dot_dimension_numbers<[1], [0], [0], [1], [0, 0, 1, 1], [], []>} : vector<2x512xbf16>, vector<512x256xbf16>, vector<2x256xf32> -> vector<2x256xf32>
    %c0_29 = arith.constant 0 : index
    %c0_30 = arith.constant 0 : index
    %42 = vector.load %arg11[%c0_29, %c0_30] : memref<1x256xf32, #tpu.memory_space<vmem>>, vector<1x256xf32>
    %43 = vector.broadcast %42 : vector<1x256xf32> to vector<2x256xf32>
    %44 = arith.addf %41, %43 : vector<2x256xf32>
    %cst_31 = arith.constant 0.000000e+00 : f32
    %45 = vector.broadcast %cst_31 : f32 to vector<2x256xf32>
    %46 = arith.maximumf %44, %45 : vector<2x256xf32>
    %47 = arith.truncf %46 : vector<2x256xf32> to vector<2x256xbf16>
    %c0_32 = arith.constant 0 : index
    %c0_33 = arith.constant 0 : index
    %48 = vector.load %arg12[%c0_32, %c0_33] : memref<256x9xbf16, #tpu.memory_space<vmem>>, vector<256x9xbf16>
    %cst_34 = arith.constant dense<0.000000e+00> : vector<2x9xf32>
    %49 = tpu.matmul %47, %48, %cst_34 {dimension_numbers = #tpu.dot_dimension_numbers<[1], [0], [0], [1], [0, 0, 1, 1], [], []>} : vector<2x256xbf16>, vector<256x9xbf16>, vector<2x9xf32> -> vector<2x9xf32>
    %c0_35 = arith.constant 0 : index
    %c0_36 = arith.constant 0 : index
    %50 = vector.load %arg13[%c0_35, %c0_36] : memref<1x9xf32, #tpu.memory_space<vmem>>, vector<1x9xf32>
    %51 = vector.broadcast %50 : vector<1x9xf32> to vector<2x9xf32>
    %52 = arith.addf %49, %51 : vector<2x9xf32>
    %53 = tpu.iota {dimensions = array<i32: 1>} : vector<2x9xi32>
    %c4_i32 = arith.constant 4 : i32
    %c0_i32 = arith.constant 0 : i32
    %54 = arith.cmpi eq, %c4_i32, %c0_i32 : i32
    %c1_i32 = arith.constant 1 : i32
    %55 = arith.select %54, %c1_i32, %c4_i32 : i32
    %56 = vector.broadcast %55 : i32 to vector<2x9xi32>
    %57 = arith.remsi %53, %56 : vector<2x9xi32>
    %c0_i32_37 = arith.constant 0 : i32
    %58 = vector.broadcast %c0_i32_37 : i32 to vector<2x9xi32>
    %59 = arith.cmpi ne, %57, %58 : vector<2x9xi32>
    %c0_i32_38 = arith.constant 0 : i32
    %60 = vector.broadcast %c0_i32_38 : i32 to vector<2x9xi32>
    %61 = arith.cmpi slt, %57, %60 : vector<2x9xi32>
    %c0_i32_39 = arith.constant 0 : i32
    %62 = arith.cmpi slt, %55, %c0_i32_39 : i32
    %63 = vector.broadcast %62 : i1 to vector<2x9xi1>
    %64 = vector.broadcast %63 : vector<2x9xi1> to vector<2x9xi1>
    %65 = arith.xori %61, %64 : vector<2x9xi1>
    %66 = arith.andi %65, %59 : vector<2x9xi1>
    %67 = vector.broadcast %55 : i32 to vector<2x9xi32>
    %68 = arith.addi %57, %67 : vector<2x9xi32>
    %69 = arith.select %66, %68, %57 : vector<2x9xi1>, vector<2x9xi32>
    %c0_i32_40 = arith.constant 0 : i32
    %70 = vector.broadcast %c0_i32_40 : i32 to vector<2x9xi32>
    %71 = arith.cmpi eq, %69, %70 : vector<2x9xi32>
    %cst_41 = arith.constant 1.000000e+00 : f32
    %cst_42 = arith.constant 0.000000e+00 : f32
    %72 = vector.broadcast %cst_41 : f32 to vector<2x9xf32>
    %73 = vector.broadcast %cst_42 : f32 to vector<2x9xf32>
    %74 = arith.select %71, %72, %73 : vector<2x9xi1>, vector<2x9xf32>
    %75 = arith.addf %52, %74 : vector<2x9xf32>
    %76 = vector.shape_cast %75 : vector<2x9xf32> to vector<1x2x9xf32>
    %c0_43 = arith.constant 0 : index
    %c0_44 = arith.constant 0 : index
    %c0_45 = arith.constant 0 : index
    %77 = vector.load %arg20[%c0_43, %c0_44, %c0_45] : memref<1x2x9xf32, #tpu.memory_space<vmem>>, vector<1x2x9xf32>
    tpu.vector_store %arg20[%c0_43, %c0_44, %c0_45], %76 {strides = array<i32>} : memref<1x2x9xf32, #tpu.memory_space<vmem>>, vector<1x2x9xf32>,
    %78 = vector.extract_strided_slice %12 {offsets = [0, 0, 0], sizes = [2, 128, 3], strides = [1, 1, 1]} : vector<2x128x9xf32> to vector<2x128x3xf32>
    %79 = vector.extract_strided_slice %12 {offsets = [0, 0, 3], sizes = [2, 128, 3], strides = [1, 1, 1]} : vector<2x128x9xf32> to vector<2x128x3xf32>
    %80 = vector.extract_strided_slice %12 {offsets = [0, 0, 6], sizes = [2, 128, 3], strides = [1, 1, 1]} : vector<2x128x9xf32> to vector<2x128x3xf32>
    "tpu.trace_start"() <{level = 10 : i32, message = "bnd,bmd->bnm"}> : () -> ()
    %cst_46 = arith.constant dense<0.000000e+00> : vector<2x128x128xf32>
    %81 = tpu.matmul %78, %79, %cst_46 {dimension_numbers = #tpu.dot_dimension_numbers<[2], [2], [1], [1], [0, 0, 0, 1, 1, 1], [0], [0]>} : vector<2x128x3xf32>, vector<2x128x3xf32>, vector<2x128x128xf32> -> vector<2x128x128xf32>
    "tpu.trace_stop"() : () -> ()
    %cst_47 = arith.constant dense<0xFF800000> : vector<2x128xf32>
    %82 = vector.multi_reduction <maximumf>, %81, %cst_47 [2] : vector<2x128x128xf32> to vector<2x128xf32>
    %83 = vector.shape_cast %82 : vector<2x128xf32> to vector<2x128x1xf32>
    %84 = vector.broadcast %83 : vector<2x128x1xf32> to vector<2x128x128xf32>
    %85 = arith.subf %81, %84 : vector<2x128x128xf32>
    %86 = math.exp %85 : vector<2x128x128xf32>
    %cst_48 = arith.constant dense<0.000000e+00> : vector<2x128xf32>
    %87 = vector.multi_reduction <add>, %86, %cst_48 [2] : vector<2x128x128xf32> to vector<2x128xf32>
    %88 = vector.shape_cast %87 : vector<2x128xf32> to vector<2x128x1xf32>
    %89 = tpu.reciprocal %88 {approx = true} : vector<2x128x1xf32> -> vector<2x128x1xf32>
    %90 = vector.broadcast %89 : vector<2x128x1xf32> to vector<2x128x128xf32>
    %91 = arith.mulf %86, %90 : vector<2x128x128xf32>
    %92 = arith.truncf %91 : vector<2x128x128xf32> to vector<2x128x128xbf16>
    %93 = arith.truncf %80 : vector<2x128x3xf32> to vector<2x128x3xbf16>
    "tpu.trace_start"() <{level = 10 : i32, message = "bnm,bmd->bnd"}> : () -> ()
    %cst_49 = arith.constant dense<0.000000e+00> : vector<2x128x3xf32>
    %94 = tpu.matmul %92, %93, %cst_49 {dimension_numbers = #tpu.dot_dimension_numbers<[2], [1], [1], [2], [0, 0, 0, 1, 1, 2], [0], [0]>} : vector<2x128x128xbf16>, vector<2x128x3xbf16>, vector<2x128x3xf32> -> vector<2x128x3xf32>
    "tpu.trace_stop"() : () -> ()
    %95 = vector.shape_cast %94 : vector<2x128x3xf32> to vector<256x3xf32>
    %96 = arith.truncf %95 : vector<256x3xf32> to vector<256x3xbf16>
    %c0_50 = arith.constant 0 : index
    %c0_51 = arith.constant 0 : index
    %97 = vector.load %arg14[%c0_50, %c0_51] : memref<3x64xbf16, #tpu.memory_space<vmem>>, vector<3x64xbf16>
    %cst_52 = arith.constant dense<0.000000e+00> : vector<256x64xf32>
    %98 = tpu.matmul %96, %97, %cst_52 {dimension_numbers = #tpu.dot_dimension_numbers<[1], [0], [0], [1], [0, 0, 1, 1], [], []>} : vector<256x3xbf16>, vector<3x64xbf16>, vector<256x64xf32> -> vector<256x64xf32>
    %c0_53 = arith.constant 0 : index
    %c0_54 = arith.constant 0 : index
    %99 = vector.load %arg15[%c0_53, %c0_54] : memref<1x64xf32, #tpu.memory_space<vmem>>, vector<1x64xf32>
    %100 = vector.broadcast %99 : vector<1x64xf32> to vector<256x64xf32>
    %101 = arith.addf %98, %100 : vector<256x64xf32>
    %cst_55 = arith.constant 0.000000e+00 : f32
    %102 = vector.broadcast %cst_55 : f32 to vector<256x64xf32>
    %103 = arith.maximumf %101, %102 : vector<256x64xf32>
    %104 = arith.truncf %103 : vector<256x64xf32> to vector<256x64xbf16>
    %c0_56 = arith.constant 0 : index
    %c0_57 = arith.constant 0 : index
    %105 = vector.load %arg16[%c0_56, %c0_57] : memref<64x128xbf16, #tpu.memory_space<vmem>>, vector<64x128xbf16>
    %cst_58 = arith.constant dense<0.000000e+00> : vector<256x128xf32>
    %106 = tpu.matmul %104, %105, %cst_58 {dimension_numbers = #tpu.dot_dimension_numbers<[1], [0], [0], [1], [0, 0, 1, 1], [], []>} : vector<256x64xbf16>, vector<64x128xbf16>, vector<256x128xf32> -> vector<256x128xf32>
    %c0_59 = arith.constant 0 : index
    %c0_60 = arith.constant 0 : index
    %107 = vector.load %arg17[%c0_59, %c0_60] : memref<1x128xf32, #tpu.memory_space<vmem>>, vector<1x128xf32>
    %108 = vector.broadcast %107 : vector<1x128xf32> to vector<256x128xf32>
    %109 = arith.addf %106, %108 : vector<256x128xf32>
    %cst_61 = arith.constant 0.000000e+00 : f32
    %110 = vector.broadcast %cst_61 : f32 to vector<256x128xf32>
    %111 = arith.maximumf %109, %110 : vector<256x128xf32>
    %112 = arith.truncf %111 : vector<256x128xf32> to vector<256x128xbf16>
    %c0_62 = arith.constant 0 : index
    %c0_63 = arith.constant 0 : index
    %113 = vector.load %arg18[%c0_62, %c0_63] : memref<128x1024xbf16, #tpu.memory_space<vmem>>, vector<128x1024xbf16>
    %cst_64 = arith.constant dense<0.000000e+00> : vector<256x1024xf32>
    %114 = tpu.matmul %112, %113, %cst_64 {dimension_numbers = #tpu.dot_dimension_numbers<[1], [0], [0], [1], [0, 0, 1, 1], [], []>} : vector<256x128xbf16>, vector<128x1024xbf16>, vector<256x1024xf32> -> vector<256x1024xf32>
    %c0_65 = arith.constant 0 : index
    %c0_66 = arith.constant 0 : index
    %115 = vector.load %arg19[%c0_65, %c0_66] : memref<1x1024xf32, #tpu.memory_space<vmem>>, vector<1x1024xf32>
    %116 = vector.broadcast %115 : vector<1x1024xf32> to vector<256x1024xf32>
    %117 = arith.addf %114, %116 : vector<256x1024xf32>
    %118 = vector.shape_cast %117 : vector<256x1024xf32> to vector<2x128x1024xf32>
    %cst_67 = arith.constant dense<0xFF800000> : vector<2x1024xf32>
    %119 = vector.multi_reduction <maximumf>, %118, %cst_67 [1] : vector<2x128x1024xf32> to vector<2x1024xf32>
    %120 = vector.shape_cast %119 : vector<2x1024xf32> to vector<1x2x1024xf32>
    %c0_68 = arith.constant 0 : index
    %c0_69 = arith.constant 0 : index
    %c0_70 = arith.constant 0 : index
    %121 = vector.load %arg21[%c0_68, %c0_69, %c0_70] : memref<1x2x1024xf32, #tpu.memory_space<vmem>>, vector<1x2x1024xf32>
    tpu.vector_store %arg21[%c0_68, %c0_69, %c0_70], %120 {strides = array<i32>} : memref<1x2x1024xf32, #tpu.memory_space<vmem>>, vector<1x2x1024xf32>,
    return
  }
  func.func @transform_0(%arg0: i32) -> (i32, i32, i32) {
    %c0_i32 = arith.constant 0 : i32
    %c0_i32_0 = arith.constant 0 : i32
    %c0_i32_1 = arith.constant 0 : i32
    return %arg0, %c0_i32, %c0_i32_0 : i32, i32, i32
  }
  func.func @transform_1(%arg0: i32) -> (i32, i32) {
    %c0_i32 = arith.constant 0 : i32
    %c0_i32_0 = arith.constant 0 : i32
    %c0_i32_1 = arith.constant 0 : i32
    return %c0_i32, %c0_i32_0 : i32, i32
  }
  func.func @transform_2(%arg0: i32) -> (i32, i32) {
    %c0_i32 = arith.constant 0 : i32
    %c0_i32_0 = arith.constant 0 : i32
    %c0_i32_1 = arith.constant 0 : i32
    return %c0_i32, %c0_i32_0 : i32, i32
  }
  func.func @transform_3(%arg0: i32) -> (i32, i32) {
    %c0_i32 = arith.constant 0 : i32
    %c0_i32_0 = arith.constant 0 : i32
    %c0_i32_1 = arith.constant 0 : i32
    return %c0_i32, %c0_i32_0 : i32, i32
  }
  func.func @transform_4(%arg0: i32) -> (i32, i32) {
    %c0_i32 = arith.constant 0 : i32
    %c0_i32_0 = arith.constant 0 : i32
    %c0_i32_1 = arith.constant 0 : i32
    return %c0_i32, %c0_i32_0 : i32, i32
  }
  func.func @transform_5(%arg0: i32) -> (i32, i32) {
    %c0_i32 = arith.constant 0 : i32
    %c0_i32_0 = arith.constant 0 : i32
    %c0_i32_1 = arith.constant 0 : i32
    return %c0_i32, %c0_i32_0 : i32, i32
  }
  func.func @transform_6(%arg0: i32) -> (i32, i32) {
    %c0_i32 = arith.constant 0 : i32
    %c0_i32_0 = arith.constant 0 : i32
    %c0_i32_1 = arith.constant 0 : i32
    return %c0_i32, %c0_i32_0 : i32, i32
  }
  func.func @transform_7(%arg0: i32) -> (i32, i32) {
    %c0_i32 = arith.constant 0 : i32
    %c0_i32_0 = arith.constant 0 : i32
    %c0_i32_1 = arith.constant 0 : i32
    return %c0_i32, %c0_i32_0 : i32, i32
  }
  func.func @transform_8(%arg0: i32) -> (i32, i32) {
    %c0_i32 = arith.constant 0 : i32
    %c0_i32_0 = arith.constant 0 : i32
    %c0_i32_1 = arith.constant 0 : i32
    return %c0_i32, %c0_i32_0 : i32, i32
  }
  func.func @transform_9(%arg0: i32) -> (i32, i32) {
    %c0_i32 = arith.constant 0 : i32
    %c0_i32_0 = arith.constant 0 : i32
    %c0_i32_1 = arith.constant 0 : i32
    return %c0_i32, %c0_i32_0 : i32, i32
  }
  func.func @transform_10(%arg0: i32) -> (i32, i32) {
    %c0_i32 = arith.constant 0 : i32
    %c0_i32_0 = arith.constant 0 : i32
    %c0_i32_1 = arith.constant 0 : i32
    return %c0_i32, %c0_i32_0 : i32, i32
  }
  func.func @transform_11(%arg0: i32) -> (i32, i32) {
    %c0_i32 = arith.constant 0 : i32
    %c0_i32_0 = arith.constant 0 : i32
    %c0_i32_1 = arith.constant 0 : i32
    return %c0_i32, %c0_i32_0 : i32, i32
  }
  func.func @transform_12(%arg0: i32) -> (i32, i32) {
    %c0_i32 = arith.constant 0 : i32
    %c0_i32_0 = arith.constant 0 : i32
    %c0_i32_1 = arith.constant 0 : i32
    return %c0_i32, %c0_i32_0 : i32, i32
  }
  func.func @transform_13(%arg0: i32) -> (i32, i32) {
    %c0_i32 = arith.constant 0 : i32
    %c0_i32_0 = arith.constant 0 : i32
    %c0_i32_1 = arith.constant 0 : i32
    return %c0_i32, %c0_i32_0 : i32, i32
  }
  func.func @transform_14(%arg0: i32) -> (i32, i32) {
    %c0_i32 = arith.constant 0 : i32
    %c0_i32_0 = arith.constant 0 : i32
    %c0_i32_1 = arith.constant 0 : i32
    return %c0_i32, %c0_i32_0 : i32, i32
  }
  func.func @transform_15(%arg0: i32) -> (i32, i32) {
    %c0_i32 = arith.constant 0 : i32
    %c0_i32_0 = arith.constant 0 : i32
    %c0_i32_1 = arith.constant 0 : i32
    return %c0_i32, %c0_i32_0 : i32, i32
  }
  func.func @transform_16(%arg0: i32) -> (i32, i32) {
    %c0_i32 = arith.constant 0 : i32
    %c0_i32_0 = arith.constant 0 : i32
    %c0_i32_1 = arith.constant 0 : i32
    return %c0_i32, %c0_i32_0 : i32, i32
  }
  func.func @transform_17(%arg0: i32) -> (i32, i32) {
    %c0_i32 = arith.constant 0 : i32
    %c0_i32_0 = arith.constant 0 : i32
    %c0_i32_1 = arith.constant 0 : i32
    return %c0_i32, %c0_i32_0 : i32, i32
  }
  func.func @transform_18(%arg0: i32) -> (i32, i32) {
    %c0_i32 = arith.constant 0 : i32
    %c0_i32_0 = arith.constant 0 : i32
    %c0_i32_1 = arith.constant 0 : i32
    return %c0_i32, %c0_i32_0 : i32, i32
  }
  func.func @transform_19(%arg0: i32) -> (i32, i32, i32) {
    %c0_i32 = arith.constant 0 : i32
    %c0_i32_0 = arith.constant 0 : i32
    %c0_i32_1 = arith.constant 0 : i32
    return %arg0, %c0_i32, %c0_i32_0 : i32, i32, i32
  }
  func.func @transform_20(%arg0: i32) -> (i32, i32, i32) {
    %c0_i32 = arith.constant 0 : i32
    %c0_i32_0 = arith.constant 0 : i32
    %c0_i32_1 = arith.constant 0 : i32
    return %arg0, %c0_i32, %c0_i32_0 : i32, i32, i32
  }
}

</mosaic_0001>

<llo_original>
// kernel: pointnetfeat_forward.1
$region0: #{pointnetfeat_forward.1}
  #allocation0 [shape = 'u32[]', space=smem, size = 0x4, offset = 0x4, fixed_abs, tag = 'smem constant byte address 0x4 - core index']
  #allocation1 [shape = 'u32[72,128]{1,0:T(1,128)}', space=vmem, size = 0x9000, scoped, tag = 'internal scratch']
  %s0 = inlined_call_operand.vmem [shape: f32[2,128,3], index: 0, kind: input, shape index: {}]
  %s1 = inlined_call_operand.vmem [shape: bf16[3,73], index: 1, kind: input, shape index: {}]
  %s2 = inlined_call_operand.vmem [shape: f32[1,64], index: 2, kind: input, shape index: {}]
  %s3 = inlined_call_operand.vmem [shape: bf16[64,128], index: 3, kind: input, shape index: {}]
  %s4 = inlined_call_operand.vmem [shape: f32[1,128], index: 4, kind: input, shape index: {}]
  %s5 = inlined_call_operand.hbm [shape: bf16[128,1024], index: 5, kind: input, shape index: {}]
  %s6 = inlined_call_operand.vmem [shape: f32[1,1024], index: 6, kind: input, shape index: {}]
  %s7 = inlined_call_operand.hbm [shape: bf16[1024,512], index: 7, kind: input, shape index: {}]
  %s8 = inlined_call_operand.vmem [shape: f32[1,512], index: 8, kind: input, shape index: {}]
  %s9 = inlined_call_operand.hbm [shape: bf16[512,256], index: 9, kind: input, shape index: {}]
  %s10 = inlined_call_operand.vmem [shape: f32[1,256], index: 10, kind: input, shape index: {}]
  %s11 = inlined_call_operand.vmem [shape: bf16[256,9], index: 11, kind: input, shape index: {}]
  %s12 = inlined_call_operand.vmem [shape: f32[1,9], index: 12, kind: input, shape index: {}]
  %s13 = inlined_call_operand.vmem [shape: bf16[3,64], index: 13, kind: input, shape index: {}]
  %s14 = inlined_call_operand.vmem [shape: f32[1,64], index: 14, kind: input, shape index: {}]
  %s15 = inlined_call_operand.vmem [shape: bf16[64,128], index: 15, kind: input, shape index: {}]
  %s16 = inlined_call_operand.vmem [shape: f32[1,128], index: 16, kind: input, shape index: {}]
  %s17 = inlined_call_operand.hbm [shape: bf16[128,1024], index: 17, kind: input, shape index: {}]
  %s18 = inlined_call_operand.vmem [shape: f32[1,1024], index: 18, kind: input, shape index: {}]
  %s19 = inlined_call_operand.vmem [shape: f32[1,2,9], index: 19, kind: output, shape index: {0}]
  %s20 = inlined_call_operand.hbm [shape: f32[1,2,1024], index: 20, kind: output, shape index: {1}]
  %21 = xla_tuple %s19, %s20
  %s22 = sld [smem:[#allocation0]]
  $region110: #{pointnetfeat_forward.1} parent=0
    _
  %s24 = ssub.s32 1, %s22
  %s25 = scalar_select 0, %s24, %s22
  $region1: #{pointnetfeat_forward.1} parent=0
    #allocation2 [shape = 'u8[262144]{0}', space=vmem, size = 0x40000, scoped, tag = 'input window, operand 5, single buffered']
    #allocation3 [shape = 's32[1]{0}', space=sflag, size = 0x4, scoped, tag = 'scoped memory for pointnetfeat_forward.1']
    #allocation4 [shape = 's32[1]{0}', space=sflag, size = 0x4, scoped, tag = 'scoped memory for pointnetfeat_forward.1']
    #allocation5 [shape = 'u8[1048576]{0}', space=vmem, size = 0x100000, scoped, tag = 'input window, operand 7, single buffered']
    #allocation6 [shape = 's32[1]{0}', space=sflag, size = 0x4, scoped, tag = 'scoped memory for pointnetfeat_forward.1']
    #allocation7 [shape = 'u8[262144]{0}', space=vmem, size = 0x40000, scoped, tag = 'input window, operand 9, single buffered']
    #allocation8 [shape = 'u8[262144]{0}', space=vmem, size = 0x40000, scoped, tag = 'input window, operand 17, single buffered']
    #allocation9 [shape = 's32[1]{0}', space=sflag, size = 0x4, scoped, tag = 'scoped memory for pointnetfeat_forward.1']
    #allocation10 [shape = 'u8[8192]{0}', space=vmem, size = 0x2000, scoped, tag = 'output window, operand 1, single buffered']
    %26 = vsyncpa [#allocation3], 0
    %27 = vsyncpa [#allocation6], 0
    %28 = vsyncpa [#allocation9], 0
    %29 = vsyncpa [#allocation4], 0
    // Predicated region
    $region2: #{pointnetfeat_forward.1} parent=1 // pred_check
      _
    $region3: #{pointnetfeat_forward.1} parent=1 // pred_check_branch
      %31 = sbr.rel (0) target = $region5
    $region4: #{pointnetfeat_forward.1} parent=1 // pred_region
      _
    $region5: #{pointnetfeat_forward.1} parent=1 // pred_fallthru
      _
    // Predicated region
    $region6: #{pointnetfeat_forward.1} parent=1 // pred_check
      _
    $region7: #{pointnetfeat_forward.1} parent=1 // pred_check_branch
      %33 = sbr.rel (0) target = $region9
    $region8: #{pointnetfeat_forward.1} parent=1 // pred_region
      _
    $region9: #{pointnetfeat_forward.1} parent=1 // pred_fallthru
      _
    // Predicated region
    $region10: #{pointnetfeat_forward.1} parent=1 // pred_check
      _
    $region11: #{pointnetfeat_forward.1} parent=1 // pred_check_branch
      %35 = sbr.rel (0) target = $region13
    $region12: #{pointnetfeat_forward.1} parent=1 // pred_region
      _
    $region13: #{pointnetfeat_forward.1} parent=1 // pred_fallthru
      _
    // Predicated region
    $region14: #{pointnetfeat_forward.1} parent=1 // pred_check
      _
    $region15: #{pointnetfeat_forward.1} parent=1 // pred_check_branch
      %37 = sbr.rel (0) target = $region17
    $region16: #{pointnetfeat_forward.1} parent=1 // pred_region
      _
    $region17: #{pointnetfeat_forward.1} parent=1 // pred_fallthru
      _
    // Predicated region
    $region18: #{pointnetfeat_forward.1} parent=1 // pred_check
      _
    $region19: #{pointnetfeat_forward.1} parent=1 // pred_check_branch
      %39 = sbr.rel (0) target = $region21
    $region20: #{pointnetfeat_forward.1} parent=1 // pred_region
      _
    $region21: #{pointnetfeat_forward.1} parent=1 // pred_fallthru
      _
    // Predicated region
    $region22: #{pointnetfeat_forward.1} parent=1 // pred_check
      _
    $region23: #{pointnetfeat_forward.1} parent=1 // pred_check_branch
      %41 = sbr.rel (0) target = $region25
    $region24: #{pointnetfeat_forward.1} parent=1 // pred_region
      %43 = vsyncadd [#allocation3], 0
      %s44 = sshll.u32 %s5, 4
      %s45 = int_to_ptr.hbm [resolvable:$true] %s44
      %s46 = sshll.u32 [#allocation2], 4
      %s47 = int_to_ptr.vmem [resolvable:$true] %s46
      %52 = dma.hbm_to_vmem [thread:$0]  %s45, 8192, %s47, [#allocation3], 512, 512, 32
    $region25: #{pointnetfeat_forward.1} parent=1 // pred_fallthru
      _
    // Predicated region
    $region26: #{pointnetfeat_forward.1} parent=1 // pred_check
      _
    $region27: #{pointnetfeat_forward.1} parent=1 // pred_check_branch
      %54 = sbr.rel (0) target = $region29
    $region28: #{pointnetfeat_forward.1} parent=1 // pred_region
      _
    $region29: #{pointnetfeat_forward.1} parent=1 // pred_fallthru
      _
    // Predicated region
    $region30: #{pointnetfeat_forward.1} parent=1 // pred_check
      _
    $region31: #{pointnetfeat_forward.1} parent=1 // pred_check_branch
      %56 = sbr.rel (0) target = $region33
    $region32: #{pointnetfeat_forward.1} parent=1 // pred_region
      %58 = vsyncadd [#allocation6], 0
      %s59 = sshll.u32 %s7, 4
      %s60 = int_to_ptr.hbm [resolvable:$true] %s59
      %s61 = sshll.u32 [#allocation5], 4
      %s62 = int_to_ptr.vmem [resolvable:$true] %s61
      %67 = dma.hbm_to_vmem [thread:$0]  %s60, 32768, %s62, [#allocation6], 256, 256, 16
    $region33: #{pointnetfeat_forward.1} parent=1 // pred_fallthru
      _
    // Predicated region
    $region34: #{pointnetfeat_forward.1} parent=1 // pred_check
      _
    $region35: #{pointnetfeat_forward.1} parent=1 // pred_check_branch
      %69 = sbr.rel (0) target = $region37
    $region36: #{pointnetfeat_forward.1} parent=1 // pred_region
      _
    $region37: #{pointnetfeat_forward.1} parent=1 // pred_fallthru
      _
    // Predicated region
    $region38: #{pointnetfeat_forward.1} parent=1 // pred_check
      _
    $region39: #{pointnetfeat_forward.1} parent=1 // pred_check_branch
      %71 = sbr.rel (0) target = $region41
    $region40: #{pointnetfeat_forward.1} parent=1 // pred_region
      %73 = vsyncadd [#allocation6], 0
      %s74 = sshll.u32 %s9, 4
      %s75 = int_to_ptr.hbm [resolvable:$true] %s74
      %s76 = sshll.u32 [#allocation7], 4
      %s77 = int_to_ptr.vmem [resolvable:$true] %s76
      %82 = dma.hbm_to_vmem [thread:$0]  %s75, 8192, %s77, [#allocation6], 128, 128, 8
    $region41: #{pointnetfeat_forward.1} parent=1 // pred_fallthru
      _
    // Predicated region
    $region42: #{pointnetfeat_forward.1} parent=1 // pred_check
      _
    $region43: #{pointnetfeat_forward.1} parent=1 // pred_check_branch
      %84 = sbr.rel (0) target = $region45
    $region44: #{pointnetfeat_forward.1} parent=1 // pred_region
      _
    $region45: #{pointnetfeat_forward.1} parent=1 // pred_fallthru
      _
    // Predicated region
    $region46: #{pointnetfeat_forward.1} parent=1 // pred_check
      _
    $region47: #{pointnetfeat_forward.1} parent=1 // pred_check_branch
      %86 = sbr.rel (0) target = $region49
    $region48: #{pointnetfeat_forward.1} parent=1 // pred_region
      _
    $region49: #{pointnetfeat_forward.1} parent=1 // pred_fallthru
      _
    // Predicated region
    $region50: #{pointnetfeat_forward.1} parent=1 // pred_check
      _
    $region51: #{pointnetfeat_forward.1} parent=1 // pred_check_branch
      %88 = sbr.rel (0) target = $region53
    $region52: #{pointnetfeat_forward.1} parent=1 // pred_region
      _
    $region53: #{pointnetfeat_forward.1} parent=1 // pred_fallthru
      _
    // Predicated region
    $region54: #{pointnetfeat_forward.1} parent=1 // pred_check
      _
    $region55: #{pointnetfeat_forward.1} parent=1 // pred_check_branch
      %90 = sbr.rel (0) target = $region57
    $region56: #{pointnetfeat_forward.1} parent=1 // pred_region
      _
    $region57: #{pointnetfeat_forward.1} parent=1 // pred_fallthru
      _
    // Predicated region
    $region58: #{pointnetfeat_forward.1} parent=1 // pred_check
      _
    $region59: #{pointnetfeat_forward.1} parent=1 // pred_check_branch
      %92 = sbr.rel (0) target = $region61
    $region60: #{pointnetfeat_forward.1} parent=1 // pred_region
      _
    $region61: #{pointnetfeat_forward.1} parent=1 // pred_fallthru
      _
    // Predicated region
    $region62: #{pointnetfeat_forward.1} parent=1 // pred_check
      _
    $region63: #{pointnetfeat_forward.1} parent=1 // pred_check_branch
      %94 = sbr.rel (0) target = $region65
    $region64: #{pointnetfeat_forward.1} parent=1 // pred_region
      _
    $region65: #{pointnetfeat_forward.1} parent=1 // pred_fallthru
      _
    // Predicated region
    $region66: #{pointnetfeat_forward.1} parent=1 // pred_check
      _
    $region67: #{pointnetfeat_forward.1} parent=1 // pred_check_branch
      %96 = sbr.rel (0) target = $region69
    $region68: #{pointnetfeat_forward.1} parent=1 // pred_region
      _
    $region69: #{pointnetfeat_forward.1} parent=1 // pred_fallthru
      _
    // Predicated region
    $region70: #{pointnetfeat_forward.1} parent=1 // pred_check
      _
    $region71: #{pointnetfeat_forward.1} parent=1 // pred_check_branch
      %98 = sbr.rel (0) target = $region73
    $region72: #{pointnetfeat_forward.1} parent=1 // pred_region
      %100 = vsyncadd [#allocation9], 0
      %s101 = sshll.u32 %s17, 4
      %s102 = int_to_ptr.hbm [resolvable:$true] %s101
      %s103 = sshll.u32 [#allocation8], 4
      %s104 = int_to_ptr.vmem [resolvable:$true] %s103
      %109 = dma.hbm_to_vmem [thread:$0]  %s102, 8192, %s104, [#allocation9], 512, 512, 32
    $region73: #{pointnetfeat_forward.1} parent=1 // pred_fallthru
      _
    // Predicated region
    $region74: #{pointnetfeat_forward.1} parent=1 // pred_check
      _
    $region75: #{pointnetfeat_forward.1} parent=1 // pred_check_branch
      %111 = sbr.rel (0) target = $region77
    $region76: #{pointnetfeat_forward.1} parent=1 // pred_region
      _
    $region77: #{pointnetfeat_forward.1} parent=1 // pred_fallthru
      _
    // Predicated region
    $region78: #{pointnetfeat_forward.1} parent=1 // pred_check
      _
    $region79: #{pointnetfeat_forward.1} parent=1 // pred_check_branch
      %113 = sbr.rel (0) target = $region81
    $region80: #{pointnetfeat_forward.1} parent=1 // pred_region
      %115 = dma.done [#allocation3], 8192
    $region81: #{pointnetfeat_forward.1} parent=1 // pred_fallthru
      _
    // Predicated region
    $region82: #{pointnetfeat_forward.1} parent=1 // pred_check
      _
    $region83: #{pointnetfeat_forward.1} parent=1 // pred_check_branch
      %117 = sbr.rel (0) target = $region85
    $region84: #{pointnetfeat_forward.1} parent=1 // pred_region
      %119 = dma.done [#allocation6], 32768
    $region85: #{pointnetfeat_forward.1} parent=1 // pred_fallthru
      _
    // Predicated region
    $region86: #{pointnetfeat_forward.1} parent=1 // pred_check
      _
    $region87: #{pointnetfeat_forward.1} parent=1 // pred_check_branch
      %121 = sbr.rel (0) target = $region89
    $region88: #{pointnetfeat_forward.1} parent=1 // pred_region
      %123 = dma.done [#allocation6], 8192
    $region89: #{pointnetfeat_forward.1} parent=1 // pred_fallthru
      _
    // Predicated region
    $region90: #{pointnetfeat_forward.1} parent=1 // pred_check
      _
    $region91: #{pointnetfeat_forward.1} parent=1 // pred_check_branch
      %125 = sbr.rel (0) target = $region93
    $region92: #{pointnetfeat_forward.1} parent=1 // pred_region
      %127 = dma.done [#allocation9], 8192
    $region93: #{pointnetfeat_forward.1} parent=1 // pred_fallthru
      _
    %v129 = vld [vmem:[%s0] sm:$0xff]
    %v130 = vld [vmem:[%s0 + $0x8] sm:$0xff]
    %v131 = vld [vmem:[%s0 + $0x10] sm:$0xff]
    %v132 = vld [vmem:[%s0 + $0x18] sm:$0xff]
    %v133 = vld [vmem:[%s0 + $0x20] sm:$0xff]
    %v134 = vld [vmem:[%s0 + $0x28] sm:$0xff]
    %v135 = vld [vmem:[%s0 + $0x30] sm:$0xff]
    %v136 = vld [vmem:[%s0 + $0x38] sm:$0xff]
    %v137 = vld [vmem:[%s0 + $0x40] sm:$0xff]
    %v138 = vld [vmem:[%s0 + $0x48] sm:$0xff]
    %v139 = vld [vmem:[%s0 + $0x50] sm:$0xff]
    %v140 = vld [vmem:[%s0 + $0x58] sm:$0xff]
    %v141 = vld [vmem:[%s0 + $0x60] sm:$0xff]
    %v142 = vld [vmem:[%s0 + $0x68] sm:$0xff]
    %v143 = vld [vmem:[%s0 + $0x70] sm:$0xff]
    %v144 = vld [vmem:[%s0 + $0x78] sm:$0xff]
    %v145 = vld [vmem:[%s0 + $0x80] sm:$0xff]
    %v146 = vld [vmem:[%s0 + $0x88] sm:$0xff]
    %v147 = vld [vmem:[%s0 + $0x90] sm:$0xff]
    %v148 = vld [vmem:[%s0 + $0x98] sm:$0xff]
    %v149 = vld [vmem:[%s0 + $0xa0] sm:$0xff]
    %v150 = vld [vmem:[%s0 + $0xa8] sm:$0xff]
    %v151 = vld [vmem:[%s0 + $0xb0] sm:$0xff]
    %v152 = vld [vmem:[%s0 + $0xb8] sm:$0xff]
    %v153 = vld [vmem:[%s0 + $0xc0] sm:$0xff]
    %v154 = vld [vmem:[%s0 + $0xc8] sm:$0xff]
    %v155 = vld [vmem:[%s0 + $0xd0] sm:$0xff]
    %v156 = vld [vmem:[%s0 + $0xd8] sm:$0xff]
    %v157 = vld [vmem:[%s0 + $0xe0] sm:$0xff]
    %v158 = vld [vmem:[%s0 + $0xe8] sm:$0xff]
    %v159 = vld [vmem:[%s0 + $0xf0] sm:$0xff]
    %v160 = vld [vmem:[%s0 + $0xf8] sm:$0xff]
    %v161 = vpack.c.bf16 %v130, %v129
    %v162 = vpack.c.bf16 %v132, %v131
    %v163 = vpack.c.bf16 %v134, %v133
    %v164 = vpack.c.bf16 %v136, %v135
    %v165 = vpack.c.bf16 %v138, %v137
    %v166 = vpack.c.bf16 %v140, %v139
    %v167 = vpack.c.bf16 %v142, %v141
    %v168 = vpack.c.bf16 %v144, %v143
    %v169 = vpack.c.bf16 %v146, %v145
    %v170 = vpack.c.bf16 %v148, %v147
    %v171 = vpack.c.bf16 %v150, %v149
    %v172 = vpack.c.bf16 %v152, %v151
    %v173 = vpack.c.bf16 %v154, %v153
    %v174 = vpack.c.bf16 %v156, %v155
    %v175 = vpack.c.bf16 %v158, %v157
    %v176 = vpack.c.bf16 %v160, %v159
    %v177 = vld [vmem:[%s1] sm:$0x3]
    %vm178 = vcmask 23552
    %v180 = vsel %vm178, %v161, 0
    %v183 = vsel %vm178, %v162, 0
    %v186 = vsel %vm178, %v163, 0
    %v189 = vsel %vm178, %v164, 0
    %v192 = vsel %vm178, %v165, 0
    %v195 = vsel %vm178, %v166, 0
    %v198 = vsel %vm178, %v167, 0
    %v201 = vsel %vm178, %v168, 0
    %v204 = vsel %vm178, %v169, 0
    %v207 = vsel %vm178, %v170, 0
    %v210 = vsel %vm178, %v171, 0
    %v213 = vsel %vm178, %v172, 0
    %v216 = vsel %vm178, %v173, 0
    %v219 = vsel %vm178, %v174, 0
    %v222 = vsel %vm178, %v175, 0
    %v225 = vsel %vm178, %v176, 0
    %vm227 = vcmask 1040384
    %vm228 = vcmask 1041408
    %v229 = vsel %vm227, 4294967295, 65535
    %v230 = vsel %vm228, %v229, 0
    %v232 = vand.u32 %v177, %v230
    %234 = vmatpush.bf16.msra.mxu0 0
    %235 = vmatpush.bf16.msra.mxu0 0
    %236 = vmatpush.bf16.msra.mxu0 0
    %237 = vmatpush.bf16.msra.mxu0 0
    %238 = vmatpush.bf16.msra.mxu0 0
    %239 = vmatpush.bf16.msra.mxu0 0
    %240 = vmatpush.bf16.msra.mxu0 0
    %241 = vmatpush.bf16.msra.mxu0 %v232
    %242 = vmatmul.bf16.gmra.mxu0 %v180
    %v243 = vpop.f32.mrf.mxu0
    %v244 = vadd.f32 0.0, %v243
    %v245 = vpop.f32.mrf.mxu0
    %v246 = vadd.f32 0.0, %v245
    %247 = vmatmul.bf16.gmra.mxu0 %v183
    %v248 = vpop.f32.mrf.mxu0
    %v249 = vadd.f32 0.0, %v248
    %v250 = vpop.f32.mrf.mxu0
    %v251 = vadd.f32 0.0, %v250
    %252 = vmatmul.bf16.gmra.mxu0 %v186
    %v253 = vpop.f32.mrf.mxu0
    %v254 = vadd.f32 0.0, %v253
    %v255 = vpop.f32.mrf.mxu0
    %v256 = vadd.f32 0.0, %v255
    %257 = vmatmul.bf16.gmra.mxu0 %v189
    %v258 = vpop.f32.mrf.mxu0
    %v259 = vadd.f32 0.0, %v258
    %v260 = vpop.f32.mrf.mxu0
    %v261 = vadd.f32 0.0, %v260
    %262 = vmatmul.bf16.gmra.mxu0 %v192
    %v263 = vpop.f32.mrf.mxu0
    %v264 = vadd.f32 0.0, %v263
    %v265 = vpop.f32.mrf.mxu0
    %v266 = vadd.f32 0.0, %v265
    %267 = vmatmul.bf16.gmra.mxu0 %v195
    %v268 = vpop.f32.mrf.mxu0
    %v269 = vadd.f32 0.0, %v268
    %v270 = vpop.f32.mrf.mxu0
    %v271 = vadd.f32 0.0, %v270
    %272 = vmatmul.bf16.gmra.mxu0 %v198
    %v273 = vpop.f32.mrf.mxu0
    %v274 = vadd.f32 0.0, %v273
    %v275 = vpop.f32.mrf.mxu0
    %v276 = vadd.f32 0.0, %v275
    %277 = vmatmul.bf16.gmra.mxu0 %v201
    %v278 = vpop.f32.mrf.mxu0
    %v279 = vadd.f32 0.0, %v278
    %v280 = vpop.f32.mrf.mxu0
    %v281 = vadd.f32 0.0, %v280
    %282 = vmatmul.bf16.gmra.mxu0 %v204
    %v283 = vpop.f32.mrf.mxu0
    %v284 = vadd.f32 0.0, %v283
    %v285 = vpop.f32.mrf.mxu0
    %v286 = vadd.f32 0.0, %v285
    %287 = vmatmul.bf16.gmra.mxu0 %v207
    %v288 = vpop.f32.mrf.mxu0
    %v289 = vadd.f32 0.0, %v288
    %v290 = vpop.f32.mrf.mxu0
    %v291 = vadd.f32 0.0, %v290
    %292 = vmatmul.bf16.gmra.mxu0 %v210
    %v293 = vpop.f32.mrf.mxu0
    %v294 = vadd.f32 0.0, %v293
    %v295 = vpop.f32.mrf.mxu0
    %v296 = vadd.f32 0.0, %v295
    %297 = vmatmul.bf16.gmra.mxu0 %v213
    %v298 = vpop.f32.mrf.mxu0
    %v299 = vadd.f32 0.0, %v298
    %v300 = vpop.f32.mrf.mxu0
    %v301 = vadd.f32 0.0, %v300
    %302 = vmatmul.bf16.gmra.mxu0 %v216
    %v303 = vpop.f32.mrf.mxu0
    %v304 = vadd.f32 0.0, %v303
    %v305 = vpop.f32.mrf.mxu0
    %v306 = vadd.f32 0.0, %v305
    %307 = vmatmul.bf16.gmra.mxu0 %v219
    %v308 = vpop.f32.mrf.mxu0
    %v309 = vadd.f32 0.0, %v308
    %v310 = vpop.f32.mrf.mxu0
    %v311 = vadd.f32 0.0, %v310
    %312 = vmatmul.bf16.gmra.mxu0 %v222
    %v313 = vpop.f32.mrf.mxu0
    %v314 = vadd.f32 0.0, %v313
    %v315 = vpop.f32.mrf.mxu0
    %v316 = vadd.f32 0.0, %v315
    %317 = vmatmul.bf16.gmra.mxu0 %v225
    %v318 = vpop.f32.mrf.mxu0
    %v319 = vadd.f32 0.0, %v318
    %v320 = vpop.f32.mrf.mxu0
    %v321 = vadd.f32 0.0, %v320
    %322 = vdwg.mxu0
    %v323 = vld [vmem:[%s2] sm:$0x1]
    %v325 = vperm.slane %v323, 0
    %v327 = vadd.f32 %v244, %v325
    %v328 = vadd.f32 %v246, %v325
    %v329 = vadd.f32 %v249, %v325
    %v330 = vadd.f32 %v251, %v325
    %v331 = vadd.f32 %v254, %v325
    %v332 = vadd.f32 %v256, %v325
    %v333 = vadd.f32 %v259, %v325
    %v334 = vadd.f32 %v261, %v325
    %v335 = vadd.f32 %v264, %v325
    %v336 = vadd.f32 %v266, %v325
    %v337 = vadd.f32 %v269, %v325
    %v338 = vadd.f32 %v271, %v325
    %v339 = vadd.f32 %v274, %v325
    %v340 = vadd.f32 %v276, %v325
    %v341 = vadd.f32 %v279, %v325
    %v342 = vadd.f32 %v281, %v325
    %v343 = vadd.f32 %v284, %v325
    %v344 = vadd.f32 %v286, %v325
    %v345 = vadd.f32 %v289, %v325
    %v346 = vadd.f32 %v291, %v325
    %v347 = vadd.f32 %v294, %v325
    %v348 = vadd.f32 %v296, %v325
    %v349 = vadd.f32 %v299, %v325
    %v350 = vadd.f32 %v301, %v325
    %v351 = vadd.f32 %v304, %v325
    %v352 = vadd.f32 %v306, %v325
    %v353 = vadd.f32 %v309, %v325
    %v354 = vadd.f32 %v311, %v325
    %v355 = vadd.f32 %v314, %v325
    %v356 = vadd.f32 %v316, %v325
    %v357 = vadd.f32 %v319, %v325
    %v358 = vadd.f32 %v321, %v325
    %v359 = vmax.f32 %v327, 0.0
    %v360 = vmax.f32 %v328, 0.0
    %v361 = vmax.f32 %v329, 0.0
    %v362 = vmax.f32 %v330, 0.0
    %v363 = vmax.f32 %v331, 0.0
    %v364 = vmax.f32 %v332, 0.0
    %v365 = vmax.f32 %v333, 0.0
    %v366 = vmax.f32 %v334, 0.0
    %v367 = vmax.f32 %v335, 0.0
    %v368 = vmax.f32 %v336, 0.0
    %v369 = vmax.f32 %v337, 0.0
    %v370 = vmax.f32 %v338, 0.0
    %v371 = vmax.f32 %v339, 0.0
    %v372 = vmax.f32 %v340, 0.0
    %v373 = vmax.f32 %v341, 0.0
    %v374 = vmax.f32 %v342, 0.0
    %v375 = vmax.f32 %v343, 0.0
    %v376 = vmax.f32 %v344, 0.0
    %v377 = vmax.f32 %v345, 0.0
    %v378 = vmax.f32 %v346, 0.0
    %v379 = vmax.f32 %v347, 0.0
    %v380 = vmax.f32 %v348, 0.0
    %v381 = vmax.f32 %v349, 0.0
    %v382 = vmax.f32 %v350, 0.0
    %v383 = vmax.f32 %v351, 0.0
    %v384 = vmax.f32 %v352, 0.0
    %v385 = vmax.f32 %v353, 0.0
    %v386 = vmax.f32 %v354, 0.0
    %v387 = vmax.f32 %v355, 0.0
    %v388 = vmax.f32 %v356, 0.0
    %v389 = vmax.f32 %v357, 0.0
    %v390 = vmax.f32 %v358, 0.0
    %v391 = vpack.c.bf16 %v360, %v359
    %v392 = vpack.c.bf16 %v362, %v361
    %v393 = vpack.c.bf16 %v364, %v363
    %v394 = vpack.c.bf16 %v366, %v365
    %v395 = vpack.c.bf16 %v368, %v367
    %v396 = vpack.c.bf16 %v370, %v369
    %v397 = vpack.c.bf16 %v372, %v371
    %v398 = vpack.c.bf16 %v374, %v373
    %v399 = vpack.c.bf16 %v376, %v375
    %v400 = vpack.c.bf16 %v378, %v377
    %v401 = vpack.c.bf16 %v380, %v379
    %v402 = vpack.c.bf16 %v382, %v381
    %v403 = vpack.c.bf16 %v384, %v383
    %v404 = vpack.c.bf16 %v386, %v385
    %v405 = vpack.c.bf16 %v388, %v387
    %v406 = vpack.c.bf16 %v390, %v389
    %v407 = vld [vmem:[%s3] sm:$0xf]
    %v408 = vld [vmem:[%s3 + $0x4] sm:$0xf]
    %v409 = vld [vmem:[%s3 + $0x8] sm:$0xf]
    %v410 = vld [vmem:[%s3 + $0xc] sm:$0xf]
    %v411 = vld [vmem:[%s3 + $0x10] sm:$0xf]
    %v412 = vld [vmem:[%s3 + $0x14] sm:$0xf]
    %v413 = vld [vmem:[%s3 + $0x18] sm:$0xf]
    %v414 = vld [vmem:[%s3 + $0x1c] sm:$0xf]
    %v415 = vld [vmem:[%s4] sm:$0x1]
    %v417 = vperm.slane %v415, 0
    %v427 = vunpack.c.l.b16 %v407
    %v428 = vunpack.c.l.b16 %v408
    %v429 = vunpack.c.l.b16 %v409
    %v430 = vunpack.c.l.b16 %v410
    %v431 = vunpack.c.l.b16 %v411
    %v432 = vunpack.c.l.b16 %v412
    %v433 = vunpack.c.l.b16 %v413
    %v434 = vunpack.c.l.b16 %v414
    %v435 = vpack.c.b16 %v428, %v427
    %v436 = vpack.c.b16 %v430, %v429
    %v437 = vpack.c.b16 %v432, %v431
    %v438 = vpack.c.b16 %v434, %v433
    %vm443 = vcmask 523264
    %v445 = vsel %vm443, %v391, 0
    %v448 = vsel %vm443, %v392, 0
    %v451 = vsel %vm443, %v393, 0
    %v454 = vsel %vm443, %v394, 0
    %v457 = vsel %vm443, %v395, 0
    %v460 = vsel %vm443, %v396, 0
    %v463 = vsel %vm443, %v397, 0
    %v466 = vsel %vm443, %v398, 0
    %v469 = vsel %vm443, %v399, 0
    %v472 = vsel %vm443, %v400, 0
    %v475 = vsel %vm443, %v401, 0
    %v478 = vsel %vm443, %v402, 0
    %v481 = vsel %vm443, %v403, 0
    %v484 = vsel %vm443, %v404, 0
    %v487 = vsel %vm443, %v405, 0
    %v490 = vsel %vm443, %v406, 0
    %492 = vmatpush.bf16.msra.mxu0 0
    %493 = vmatpush.bf16.msra.mxu0 0
    %494 = vmatpush.bf16.msra.mxu0 0
    %495 = vmatpush.bf16.msra.mxu0 0
    %496 = vmatpush.bf16.msra.mxu0 %v438
    %497 = vmatpush.bf16.msra.mxu0 %v437
    %498 = vmatpush.bf16.msra.mxu0 %v436
    %499 = vmatpush.bf16.msra.mxu0 %v435
    %500 = vmatmul.bf16.gmra.mxu0 %v445
    %v501 = vpop.f32.mrf.mxu0
    %v502 = vadd.f32 %v417, %v501
    %v503 = vpop.f32.mrf.mxu0
    %v504 = vadd.f32 %v417, %v503
    %505 = vmatmul.bf16.gmra.mxu0 %v448
    %v506 = vpop.f32.mrf.mxu0
    %v507 = vadd.f32 %v417, %v506
    %v508 = vpop.f32.mrf.mxu0
    %v509 = vadd.f32 %v417, %v508
    %510 = vmatmul.bf16.gmra.mxu0 %v451
    %v511 = vpop.f32.mrf.mxu0
    %v512 = vadd.f32 %v417, %v511
    %v513 = vpop.f32.mrf.mxu0
    %v514 = vadd.f32 %v417, %v513
    %515 = vmatmul.bf16.gmra.mxu0 %v454
    %v516 = vpop.f32.mrf.mxu0
    %v517 = vadd.f32 %v417, %v516
    %v518 = vpop.f32.mrf.mxu0
    %v519 = vadd.f32 %v417, %v518
    %520 = vmatmul.bf16.gmra.mxu0 %v457
    %v521 = vpop.f32.mrf.mxu0
    %v522 = vadd.f32 %v417, %v521
    %v523 = vpop.f32.mrf.mxu0
    %v524 = vadd.f32 %v417, %v523
    %525 = vmatmul.bf16.gmra.mxu0 %v460
    %v526 = vpop.f32.mrf.mxu0
    %v527 = vadd.f32 %v417, %v526
    %v528 = vpop.f32.mrf.mxu0
    %v529 = vadd.f32 %v417, %v528
    %530 = vmatmul.bf16.gmra.mxu0 %v463
    %v531 = vpop.f32.mrf.mxu0
    %v532 = vadd.f32 %v417, %v531
    %v533 = vpop.f32.mrf.mxu0
    %v534 = vadd.f32 %v417, %v533
    %535 = vmatmul.bf16.gmra.mxu0 %v466
    %v536 = vpop.f32.mrf.mxu0
    %v537 = vadd.f32 %v417, %v536
    %v538 = vpop.f32.mrf.mxu0
    %v539 = vadd.f32 %v417, %v538
    %540 = vmatmul.bf16.gmra.mxu0 %v469
    %v541 = vpop.f32.mrf.mxu0
    %v542 = vadd.f32 %v417, %v541
    %v543 = vpop.f32.mrf.mxu0
    %v544 = vadd.f32 %v417, %v543
    %545 = vmatmul.bf16.gmra.mxu0 %v472
    %v546 = vpop.f32.mrf.mxu0
    %v547 = vadd.f32 %v417, %v546
    %v548 = vpop.f32.mrf.mxu0
    %v549 = vadd.f32 %v417, %v548
    %550 = vmatmul.bf16.gmra.mxu0 %v475
    %v551 = vpop.f32.mrf.mxu0
    %v552 = vadd.f32 %v417, %v551
    %v553 = vpop.f32.mrf.mxu0
    %v554 = vadd.f32 %v417, %v553
    %555 = vmatmul.bf16.gmra.mxu0 %v478
    %v556 = vpop.f32.mrf.mxu0
    %v557 = vadd.f32 %v417, %v556
    %v558 = vpop.f32.mrf.mxu0
    %v559 = vadd.f32 %v417, %v558
    %560 = vmatmul.bf16.gmra.mxu0 %v481
    %v561 = vpop.f32.mrf.mxu0
    %v562 = vadd.f32 %v417, %v561
    %v563 = vpop.f32.mrf.mxu0
    %v564 = vadd.f32 %v417, %v563
    %565 = vmatmul.bf16.gmra.mxu0 %v484
    %v566 = vpop.f32.mrf.mxu0
    %v567 = vadd.f32 %v417, %v566
    %v568 = vpop.f32.mrf.mxu0
    %v569 = vadd.f32 %v417, %v568
    %570 = vmatmul.bf16.gmra.mxu0 %v487
    %v571 = vpop.f32.mrf.mxu0
    %v572 = vadd.f32 %v417, %v571
    %v573 = vpop.f32.mrf.mxu0
    %v574 = vadd.f32 %v417, %v573
    %575 = vmatmul.bf16.gmra.mxu0 %v490
    %v576 = vpop.f32.mrf.mxu0
    %v577 = vadd.f32 %v417, %v576
    %v578 = vpop.f32.mrf.mxu0
    %v579 = vadd.f32 %v417, %v578
    %580 = vdwg.mxu0
    %v581 = vmax.f32 %v502, 0.0
    %v582 = vmax.f32 %v504, 0.0
    %v583 = vmax.f32 %v507, 0.0
    %v584 = vmax.f32 %v509, 0.0
    %v585 = vmax.f32 %v512, 0.0
    %v586 = vmax.f32 %v514, 0.0
    %v587 = vmax.f32 %v517, 0.0
    %v588 = vmax.f32 %v519, 0.0
    %v589 = vmax.f32 %v522, 0.0
    %v590 = vmax.f32 %v524, 0.0
    %v591 = vmax.f32 %v527, 0.0
    %v592 = vmax.f32 %v529, 0.0
    %v593 = vmax.f32 %v532, 0.0
    %v594 = vmax.f32 %v534, 0.0
    %v595 = vmax.f32 %v537, 0.0
    %v596 = vmax.f32 %v539, 0.0
    %v597 = vmax.f32 %v542, 0.0
    %v598 = vmax.f32 %v544, 0.0
    %v599 = vmax.f32 %v547, 0.0
    %v600 = vmax.f32 %v549, 0.0
    %v601 = vmax.f32 %v552, 0.0
    %v602 = vmax.f32 %v554, 0.0
    %v603 = vmax.f32 %v557, 0.0
    %v604 = vmax.f32 %v559, 0.0
    %v605 = vmax.f32 %v562, 0.0
    %v606 = vmax.f32 %v564, 0.0
    %v607 = vmax.f32 %v567, 0.0
    %v608 = vmax.f32 %v569, 0.0
    %v609 = vmax.f32 %v572, 0.0
    %v610 = vmax.f32 %v574, 0.0
    %v611 = vmax.f32 %v577, 0.0
    %v612 = vmax.f32 %v579, 0.0
    %v613 = vpack.c.bf16 %v582, %v581
    %v614 = vpack.c.bf16 %v584, %v583
    %v615 = vpack.c.bf16 %v586, %v585
    %v616 = vpack.c.bf16 %v588, %v587
    %v617 = vpack.c.bf16 %v590, %v589
    %v618 = vpack.c.bf16 %v592, %v591
    %v619 = vpack.c.bf16 %v594, %v593
    %v620 = vpack.c.bf16 %v596, %v595
    %v621 = vpack.c.bf16 %v598, %v597
    %v622 = vpack.c.bf16 %v600, %v599
    %v623 = vpack.c.bf16 %v602, %v601
    %v624 = vpack.c.bf16 %v604, %v603
    %v625 = vpack.c.bf16 %v606, %v605
    %v626 = vpack.c.bf16 %v608, %v607
    %v627 = vpack.c.bf16 %v610, %v609
    %v628 = vpack.c.bf16 %v612, %v611
    %v629 = vld [vmem:[#allocation2] sm:$0xff]
    %v630 = vld [vmem:[#allocation2 + $0x8] sm:$0xff]
    %v631 = vld [vmem:[#allocation2 + $0x10] sm:$0xff]
    %v632 = vld [vmem:[#allocation2 + $0x18] sm:$0xff]
    %v633 = vld [vmem:[#allocation2 + $0x20] sm:$0xff]
    %v634 = vld [vmem:[#allocation2 + $0x28] sm:$0xff]
    %v635 = vld [vmem:[#allocation2 + $0x30] sm:$0xff]
    %v636 = vld [vmem:[#allocation2 + $0x38] sm:$0xff]
    %v637 = vld [vmem:[#allocation2 + $0x40] sm:$0xff]
    %v638 = vld [vmem:[#allocation2 + $0x48] sm:$0xff]
    %v639 = vld [vmem:[#allocation2 + $0x50] sm:$0xff]
    %v640 = vld [vmem:[#allocation2 + $0x58] sm:$0xff]
    %v641 = vld [vmem:[#allocation2 + $0x60] sm:$0xff]
    %v642 = vld [vmem:[#allocation2 + $0x68] sm:$0xff]
    %v643 = vld [vmem:[#allocation2 + $0x70] sm:$0xff]
    %v644 = vld [vmem:[#allocation2 + $0x78] sm:$0xff]
    %v645 = vld [vmem:[#allocation2 + $0x80] sm:$0xff]
    %v646 = vld [vmem:[#allocation2 + $0x88] sm:$0xff]
    %v647 = vld [vmem:[#allocation2 + $0x90] sm:$0xff]
    %v648 = vld [vmem:[#allocation2 + $0x98] sm:$0xff]
    %v649 = vld [vmem:[#allocation2 + $0xa0] sm:$0xff]
    %v650 = vld [vmem:[#allocation2 + $0xa8] sm:$0xff]
    %v651 = vld [vmem:[#allocation2 + $0xb0] sm:$0xff]
    %v652 = vld [vmem:[#allocation2 + $0xb8] sm:$0xff]
    %v653 = vld [vmem:[#allocation2 + $0xc0] sm:$0xff]
    %v654 = vld [vmem:[#allocation2 + $0xc8] sm:$0xff]
    %v655 = vld [vmem:[#allocation2 + $0xd0] sm:$0xff]
    %v656 = vld [vmem:[#allocation2 + $0xd8] sm:$0xff]
    %v657 = vld [vmem:[#allocation2 + $0xe0] sm:$0xff]
    %v658 = vld [vmem:[#allocation2 + $0xe8] sm:$0xff]
    %v659 = vld [vmem:[#allocation2 + $0xf0] sm:$0xff]
    %v660 = vld [vmem:[#allocation2 + $0xf8] sm:$0xff]
    %v661 = vld [vmem:[#allocation2 + $0x100] sm:$0xff]
    %v662 = vld [vmem:[#allocation2 + $0x108] sm:$0xff]
    %v663 = vld [vmem:[#allocation2 + $0x110] sm:$0xff]
    %v664 = vld [vmem:[#allocation2 + $0x118] sm:$0xff]
    %v665 = vld [vmem:[#allocation2 + $0x120] sm:$0xff]
    %v666 = vld [vmem:[#allocation2 + $0x128] sm:$0xff]
    %v667 = vld [vmem:[#allocation2 + $0x130] sm:$0xff]
    %v668 = vld [vmem:[#allocation2 + $0x138] sm:$0xff]
    %v669 = vld [vmem:[#allocation2 + $0x140] sm:$0xff]
    %v670 = vld [vmem:[#allocation2 + $0x148] sm:$0xff]
    %v671 = vld [vmem:[#allocation2 + $0x150] sm:$0xff]
    %v672 = vld [vmem:[#allocation2 + $0x158] sm:$0xff]
    %v673 = vld [vmem:[#allocation2 + $0x160] sm:$0xff]
    %v674 = vld [vmem:[#allocation2 + $0x168] sm:$0xff]
    %v675 = vld [vmem:[#allocation2 + $0x170] sm:$0xff]
    %v676 = vld [vmem:[#allocation2 + $0x178] sm:$0xff]
    %v677 = vld [vmem:[#allocation2 + $0x180] sm:$0xff]
    %v678 = vld [vmem:[#allocation2 + $0x188] sm:$0xff]
    %v679 = vld [vmem:[#allocation2 + $0x190] sm:$0xff]
    %v680 = vld [vmem:[#allocation2 + $0x198] sm:$0xff]
    %v681 = vld [vmem:[#allocation2 + $0x1a0] sm:$0xff]
    %v682 = vld [vmem:[#allocation2 + $0x1a8] sm:$0xff]
    %v683 = vld [vmem:[#allocation2 + $0x1b0] sm:$0xff]
    %v684 = vld [vmem:[#allocation2 + $0x1b8] sm:$0xff]
    %v685 = vld [vmem:[#allocation2 + $0x1c0] sm:$0xff]
    %v686 = vld [vmem:[#allocation2 + $0x1c8] sm:$0xff]
    %v687 = vld [vmem:[#allocation2 + $0x1d0] sm:$0xff]
    %v688 = vld [vmem:[#allocation2 + $0x1d8] sm:$0xff]
    %v689 = vld [vmem:[#allocation2 + $0x1e0] sm:$0xff]
    %v690 = vld [vmem:[#allocation2 + $0x1e8] sm:$0xff]
    %v691 = vld [vmem:[#allocation2 + $0x1f0] sm:$0xff]
    %v692 = vld [vmem:[#allocation2 + $0x1f8] sm:$0xff]
    %v693 = vld [vmem:[%s6] sm:$0xff]
    %v695 = vperm.slane %v693, 0
    %v696 = vperm.slane %v693, 1
    %v697 = vperm.slane %v693, 2
    %v698 = vperm.slane %v693, 3
    %v699 = vperm.slane %v693, 4
    %v700 = vperm.slane %v693, 5
    %v701 = vperm.slane %v693, 6
    %v702 = vperm.slane %v693, 7
    %v775 = vunpack.c.l.b16 %v629
    %v776 = vunpack.c.h.b16 %v629
    %v777 = vunpack.c.l.b16 %v630
    %v778 = vunpack.c.h.b16 %v630
    %v779 = vunpack.c.l.b16 %v631
    %v780 = vunpack.c.h.b16 %v631
    %v781 = vunpack.c.l.b16 %v632
    %v782 = vunpack.c.h.b16 %v632
    %v783 = vunpack.c.l.b16 %v633
    %v784 = vunpack.c.h.b16 %v633
    %v785 = vunpack.c.l.b16 %v634
    %v786 = vunpack.c.h.b16 %v634
    %v787 = vunpack.c.l.b16 %v635
    %v788 = vunpack.c.h.b16 %v635
    %v789 = vunpack.c.l.b16 %v636
    %v790 = vunpack.c.h.b16 %v636
    %v791 = vunpack.c.l.b16 %v637
    %v792 = vunpack.c.h.b16 %v637
    %v793 = vunpack.c.l.b16 %v638
    %v794 = vunpack.c.h.b16 %v638
    %v795 = vunpack.c.l.b16 %v639
    %v796 = vunpack.c.h.b16 %v639
    %v797 = vunpack.c.l.b16 %v640
    %v798 = vunpack.c.h.b16 %v640
    %v799 = vunpack.c.l.b16 %v641
    %v800 = vunpack.c.h.b16 %v641
    %v801 = vunpack.c.l.b16 %v642
    %v802 = vunpack.c.h.b16 %v642
    %v803 = vunpack.c.l.b16 %v643
    %v804 = vunpack.c.h.b16 %v643
    %v805 = vunpack.c.l.b16 %v644
    %v806 = vunpack.c.h.b16 %v644
    %v807 = vunpack.c.l.b16 %v645
    %v808 = vunpack.c.h.b16 %v645
    %v809 = vunpack.c.l.b16 %v646
    %v810 = vunpack.c.h.b16 %v646
    %v811 = vunpack.c.l.b16 %v647
    %v812 = vunpack.c.h.b16 %v647
    %v813 = vunpack.c.l.b16 %v648
    %v814 = vunpack.c.h.b16 %v648
    %v815 = vunpack.c.l.b16 %v649
    %v816 = vunpack.c.h.b16 %v649
    %v817 = vunpack.c.l.b16 %v650
    %v818 = vunpack.c.h.b16 %v650
    %v819 = vunpack.c.l.b16 %v651
    %v820 = vunpack.c.h.b16 %v651
    %v821 = vunpack.c.l.b16 %v652
    %v822 = vunpack.c.h.b16 %v652
    %v823 = vunpack.c.l.b16 %v653
    %v824 = vunpack.c.h.b16 %v653
    %v825 = vunpack.c.l.b16 %v654
    %v826 = vunpack.c.h.b16 %v654
    %v827 = vunpack.c.l.b16 %v655
    %v828 = vunpack.c.h.b16 %v655
    %v829 = vunpack.c.l.b16 %v656
    %v830 = vunpack.c.h.b16 %v656
    %v831 = vunpack.c.l.b16 %v657
    %v832 = vunpack.c.h.b16 %v657
    %v833 = vunpack.c.l.b16 %v658
    %v834 = vunpack.c.h.b16 %v658
    %v835 = vunpack.c.l.b16 %v659
    %v836 = vunpack.c.h.b16 %v659
    %v837 = vunpack.c.l.b16 %v660
    %v838 = vunpack.c.h.b16 %v660
    %v839 = vunpack.c.l.b16 %v661
    %v840 = vunpack.c.h.b16 %v661
    %v841 = vunpack.c.l.b16 %v662
    %v842 = vunpack.c.h.b16 %v662
    %v843 = vunpack.c.l.b16 %v663
    %v844 = vunpack.c.h.b16 %v663
    %v845 = vunpack.c.l.b16 %v664
    %v846 = vunpack.c.h.b16 %v664
    %v847 = vunpack.c.l.b16 %v665
    %v848 = vunpack.c.h.b16 %v665
    %v849 = vunpack.c.l.b16 %v666
    %v850 = vunpack.c.h.b16 %v666
    %v851 = vunpack.c.l.b16 %v667
    %v852 = vunpack.c.h.b16 %v667
    %v853 = vunpack.c.l.b16 %v668
    %v854 = vunpack.c.h.b16 %v668
    %v855 = vunpack.c.l.b16 %v669
    %v856 = vunpack.c.h.b16 %v669
    %v857 = vunpack.c.l.b16 %v670
    %v858 = vunpack.c.h.b16 %v670
    %v859 = vunpack.c.l.b16 %v671
    %v860 = vunpack.c.h.b16 %v671
    %v861 = vunpack.c.l.b16 %v672
    %v862 = vunpack.c.h.b16 %v672
    %v863 = vunpack.c.l.b16 %v673
    %v864 = vunpack.c.h.b16 %v673
    %v865 = vunpack.c.l.b16 %v674
    %v866 = vunpack.c.h.b16 %v674
    %v867 = vunpack.c.l.b16 %v675
    %v868 = vunpack.c.h.b16 %v675
    %v869 = vunpack.c.l.b16 %v676
    %v870 = vunpack.c.h.b16 %v676
    %v871 = vunpack.c.l.b16 %v677
    %v872 = vunpack.c.h.b16 %v677
    %v873 = vunpack.c.l.b16 %v678
    %v874 = vunpack.c.h.b16 %v678
    %v875 = vunpack.c.l.b16 %v679
    %v876 = vunpack.c.h.b16 %v679
    %v877 = vunpack.c.l.b16 %v680
    %v878 = vunpack.c.h.b16 %v680
    %v879 = vunpack.c.l.b16 %v681
    %v880 = vunpack.c.h.b16 %v681
    %v881 = vunpack.c.l.b16 %v682
    %v882 = vunpack.c.h.b16 %v682
    %v883 = vunpack.c.l.b16 %v683
    %v884 = vunpack.c.h.b16 %v683
    %v885 = vunpack.c.l.b16 %v684
    %v886 = vunpack.c.h.b16 %v684
    %v887 = vunpack.c.l.b16 %v685
    %v888 = vunpack.c.h.b16 %v685
    %v889 = vunpack.c.l.b16 %v686
    %v890 = vunpack.c.h.b16 %v686
    %v891 = vunpack.c.l.b16 %v687
    %v892 = vunpack.c.h.b16 %v687
    %v893 = vunpack.c.l.b16 %v688
    %v894 = vunpack.c.h.b16 %v688
    %v895 = vunpack.c.l.b16 %v689
    %v896 = vunpack.c.h.b16 %v689
    %v897 = vunpack.c.l.b16 %v690
    %v898 = vunpack.c.h.b16 %v690
    %v899 = vunpack.c.l.b16 %v691
    %v900 = vunpack.c.h.b16 %v691
    %v901 = vunpack.c.l.b16 %v692
    %v902 = vunpack.c.h.b16 %v692
    %v903 = vpack.c.b16 %v783, %v775
    %v904 = vpack.c.b16 %v784, %v776
    %v905 = vpack.c.b16 %v785, %v777
    %v906 = vpack.c.b16 %v786, %v778
    %v907 = vpack.c.b16 %v787, %v779
    %v908 = vpack.c.b16 %v788, %v780
    %v909 = vpack.c.b16 %v789, %v781
    %v910 = vpack.c.b16 %v790, %v782
    %v911 = vpack.c.b16 %v799, %v791
    %v912 = vpack.c.b16 %v800, %v792
    %v913 = vpack.c.b16 %v801, %v793
    %v914 = vpack.c.b16 %v802, %v794
    %v915 = vpack.c.b16 %v803, %v795
    %v916 = vpack.c.b16 %v804, %v796
    %v917 = vpack.c.b16 %v805, %v797
    %v918 = vpack.c.b16 %v806, %v798
    %v919 = vpack.c.b16 %v815, %v807
    %v920 = vpack.c.b16 %v816, %v808
    %v921 = vpack.c.b16 %v817, %v809
    %v922 = vpack.c.b16 %v818, %v810
    %v923 = vpack.c.b16 %v819, %v811
    %v924 = vpack.c.b16 %v820, %v812
    %v925 = vpack.c.b16 %v821, %v813
    %v926 = vpack.c.b16 %v822, %v814
    %v927 = vpack.c.b16 %v831, %v823
    %v928 = vpack.c.b16 %v832, %v824
    %v929 = vpack.c.b16 %v833, %v825
    %v930 = vpack.c.b16 %v834, %v826
    %v931 = vpack.c.b16 %v835, %v827
    %v932 = vpack.c.b16 %v836, %v828
    %v933 = vpack.c.b16 %v837, %v829
    %v934 = vpack.c.b16 %v838, %v830
    %v935 = vpack.c.b16 %v847, %v839
    %v936 = vpack.c.b16 %v848, %v840
    %v937 = vpack.c.b16 %v849, %v841
    %v938 = vpack.c.b16 %v850, %v842
    %v939 = vpack.c.b16 %v851, %v843
    %v940 = vpack.c.b16 %v852, %v844
    %v941 = vpack.c.b16 %v853, %v845
    %v942 = vpack.c.b16 %v854, %v846
    %v943 = vpack.c.b16 %v863, %v855
    %v944 = vpack.c.b16 %v864, %v856
    %v945 = vpack.c.b16 %v865, %v857
    %v946 = vpack.c.b16 %v866, %v858
    %v947 = vpack.c.b16 %v867, %v859
    %v948 = vpack.c.b16 %v868, %v860
    %v949 = vpack.c.b16 %v869, %v861
    %v950 = vpack.c.b16 %v870, %v862
    %v951 = vpack.c.b16 %v879, %v871
    %v952 = vpack.c.b16 %v880, %v872
    %v953 = vpack.c.b16 %v881, %v873
    %v954 = vpack.c.b16 %v882, %v874
    %v955 = vpack.c.b16 %v883, %v875
    %v956 = vpack.c.b16 %v884, %v876
    %v957 = vpack.c.b16 %v885, %v877
    %v958 = vpack.c.b16 %v886, %v878
    %v959 = vpack.c.b16 %v895, %v887
    %v960 = vpack.c.b16 %v896, %v888
    %v961 = vpack.c.b16 %v897, %v889
    %v962 = vpack.c.b16 %v898, %v890
    %v963 = vpack.c.b16 %v899, %v891
    %v964 = vpack.c.b16 %v900, %v892
    %v965 = vpack.c.b16 %v901, %v893
    %v966 = vpack.c.b16 %v902, %v894
    %1031 = vmatpush.bf16.msra.mxu0 %v959
    %1032 = vmatpush.bf16.msra.mxu0 %v951
    %1033 = vmatpush.bf16.msra.mxu0 %v943
    %1034 = vmatpush.bf16.msra.mxu0 %v935
    %1035 = vmatpush.bf16.msra.mxu0 %v927
    %1036 = vmatpush.bf16.msra.mxu0 %v919
    %1037 = vmatpush.bf16.msra.mxu0 %v911
    %1038 = vmatpush.bf16.msra.mxu0 %v903
    %1039 = vmatmul.bf16.gmra.mxu0 %v613
    %v1040 = vpop.f32.mrf.mxu0
    %v1041 = vadd.f32 %v695, %v1040
    %v1042 = vpop.f32.mrf.mxu0
    %v1043 = vadd.f32 %v695, %v1042
    %1044 = vmatmul.bf16.gmra.mxu0 %v614
    %v1045 = vpop.f32.mrf.mxu0
    %v1046 = vadd.f32 %v695, %v1045
    %v1047 = vpop.f32.mrf.mxu0
    %v1048 = vadd.f32 %v695, %v1047
    %1049 = vmatmul.bf16.gmra.mxu0 %v615
    %v1050 = vpop.f32.mrf.mxu0
    %v1051 = vadd.f32 %v695, %v1050
    %v1052 = vpop.f32.mrf.mxu0
    %v1053 = vadd.f32 %v695, %v1052
    %1054 = vmatmul.bf16.gmra.mxu0 %v616
    %v1055 = vpop.f32.mrf.mxu0
    %v1056 = vadd.f32 %v695, %v1055
    %v1057 = vpop.f32.mrf.mxu0
    %v1058 = vadd.f32 %v695, %v1057
    %1059 = vmatmul.bf16.gmra.mxu0 %v617
    %v1060 = vpop.f32.mrf.mxu0
    %v1061 = vadd.f32 %v695, %v1060
    %v1062 = vpop.f32.mrf.mxu0
    %v1063 = vadd.f32 %v695, %v1062
    %1064 = vmatmul.bf16.gmra.mxu0 %v618
    %v1065 = vpop.f32.mrf.mxu0
    %v1066 = vadd.f32 %v695, %v1065
    %v1067 = vpop.f32.mrf.mxu0
    %v1068 = vadd.f32 %v695, %v1067
    %1069 = vmatmul.bf16.gmra.mxu0 %v619
    %v1070 = vpop.f32.mrf.mxu0
    %v1071 = vadd.f32 %v695, %v1070
    %v1072 = vpop.f32.mrf.mxu0
    %v1073 = vadd.f32 %v695, %v1072
    %1074 = vmatmul.bf16.gmra.mxu0 %v620
    %v1075 = vpop.f32.mrf.mxu0
    %v1076 = vadd.f32 %v695, %v1075
    %v1077 = vpop.f32.mrf.mxu0
    %v1078 = vadd.f32 %v695, %v1077
    %1079 = vmatmul.bf16.gmra.mxu0 %v621
    %v1080 = vpop.f32.mrf.mxu0
    %v1081 = vadd.f32 %v695, %v1080
    %v1082 = vpop.f32.mrf.mxu0
    %v1083 = vadd.f32 %v695, %v1082
    %1084 = vmatmul.bf16.gmra.mxu0 %v622
    %v1085 = vpop.f32.mrf.mxu0
    %v1086 = vadd.f32 %v695, %v1085
    %v1087 = vpop.f32.mrf.mxu0
    %v1088 = vadd.f32 %v695, %v1087
    %1089 = vmatmul.bf16.gmra.mxu0 %v623
    %v1090 = vpop.f32.mrf.mxu0
    %v1091 = vadd.f32 %v695, %v1090
    %v1092 = vpop.f32.mrf.mxu0
    %v1093 = vadd.f32 %v695, %v1092
    %1094 = vmatmul.bf16.gmra.mxu0 %v624
    %v1095 = vpop.f32.mrf.mxu0
    %v1096 = vadd.f32 %v695, %v1095
    %v1097 = vpop.f32.mrf.mxu0
    %v1098 = vadd.f32 %v695, %v1097
    %1099 = vmatmul.bf16.gmra.mxu0 %v625
    %v1100 = vpop.f32.mrf.mxu0
    %v1101 = vadd.f32 %v695, %v1100
    %v1102 = vpop.f32.mrf.mxu0
    %v1103 = vadd.f32 %v695, %v1102
    %1104 = vmatmul.bf16.gmra.mxu0 %v626
    %v1105 = vpop.f32.mrf.mxu0
    %v1106 = vadd.f32 %v695, %v1105
    %v1107 = vpop.f32.mrf.mxu0
    %v1108 = vadd.f32 %v695, %v1107
    %1109 = vmatmul.bf16.gmra.mxu0 %v627
    %v1110 = vpop.f32.mrf.mxu0
    %v1111 = vadd.f32 %v695, %v1110
    %v1112 = vpop.f32.mrf.mxu0
    %v1113 = vadd.f32 %v695, %v1112
    %1114 = vmatmul.bf16.gmra.mxu0 %v628
    %v1115 = vpop.f32.mrf.mxu0
    %v1116 = vadd.f32 %v695, %v1115
    %v1117 = vpop.f32.mrf.mxu0
    %v1118 = vadd.f32 %v695, %v1117
    %1119 = vdwg.mxu0
    %1120 = vmatpush.bf16.msra.mxu0 %v960
    %1121 = vmatpush.bf16.msra.mxu0 %v952
    %1122 = vmatpush.bf16.msra.mxu0 %v944
    %1123 = vmatpush.bf16.msra.mxu0 %v936
    %1124 = vmatpush.bf16.msra.mxu0 %v928
    %1125 = vmatpush.bf16.msra.mxu0 %v920
    %1126 = vmatpush.bf16.msra.mxu0 %v912
    %1127 = vmatpush.bf16.msra.mxu0 %v904
    %1128 = vmatmul.bf16.gmra.mxu0 %v613
    %v1129 = vpop.f32.mrf.mxu0
    %v1130 = vadd.f32 %v696, %v1129
    %v1131 = vpop.f32.mrf.mxu0
    %v1132 = vadd.f32 %v696, %v1131
    %1133 = vmatmul.bf16.gmra.mxu0 %v614
    %v1134 = vpop.f32.mrf.mxu0
    %v1135 = vadd.f32 %v696, %v1134
    %v1136 = vpop.f32.mrf.mxu0
    %v1137 = vadd.f32 %v696, %v1136
    %1138 = vmatmul.bf16.gmra.mxu0 %v615
    %v1139 = vpop.f32.mrf.mxu0
    %v1140 = vadd.f32 %v696, %v1139
    %v1141 = vpop.f32.mrf.mxu0
    %v1142 = vadd.f32 %v696, %v1141
    %1143 = vmatmul.bf16.gmra.mxu0 %v616
    %v1144 = vpop.f32.mrf.mxu0
    %v1145 = vadd.f32 %v696, %v1144
    %v1146 = vpop.f32.mrf.mxu0
    %v1147 = vadd.f32 %v696, %v1146
    %1148 = vmatmul.bf16.gmra.mxu0 %v617
    %v1149 = vpop.f32.mrf.mxu0
    %v1150 = vadd.f32 %v696, %v1149
    %v1151 = vpop.f32.mrf.mxu0
    %v1152 = vadd.f32 %v696, %v1151
    %1153 = vmatmul.bf16.gmra.mxu0 %v618
    %v1154 = vpop.f32.mrf.mxu0
    %v1155 = vadd.f32 %v696, %v1154
    %v1156 = vpop.f32.mrf.mxu0
    %v1157 = vadd.f32 %v696, %v1156
    %1158 = vmatmul.bf16.gmra.mxu0 %v619
    %v1159 = vpop.f32.mrf.mxu0
    %v1160 = vadd.f32 %v696, %v1159
    %v1161 = vpop.f32.mrf.mxu0
    %v1162 = vadd.f32 %v696, %v1161
    %1163 = vmatmul.bf16.gmra.mxu0 %v620
    %v1164 = vpop.f32.mrf.mxu0
    %v1165 = vadd.f32 %v696, %v1164
    %v1166 = vpop.f32.mrf.mxu0
    %v1167 = vadd.f32 %v696, %v1166
    %1168 = vmatmul.bf16.gmra.mxu0 %v621
    %v1169 = vpop.f32.mrf.mxu0
    %v1170 = vadd.f32 %v696, %v1169
    %v1171 = vpop.f32.mrf.mxu0
    %v1172 = vadd.f32 %v696, %v1171
    %1173 = vmatmul.bf16.gmra.mxu0 %v622
    %v1174 = vpop.f32.mrf.mxu0
    %v1175 = vadd.f32 %v696, %v1174
    %v1176 = vpop.f32.mrf.mxu0
    %v1177 = vadd.f32 %v696, %v1176
    %1178 = vmatmul.bf16.gmra.mxu0 %v623
    %v1179 = vpop.f32.mrf.mxu0
    %v1180 = vadd.f32 %v696, %v1179
    %v1181 = vpop.f32.mrf.mxu0
    %v1182 = vadd.f32 %v696, %v1181
    %1183 = vmatmul.bf16.gmra.mxu0 %v624
    %v1184 = vpop.f32.mrf.mxu0
    %v1185 = vadd.f32 %v696, %v1184
    %v1186 = vpop.f32.mrf.mxu0
    %v1187 = vadd.f32 %v696, %v1186
    %1188 = vmatmul.bf16.gmra.mxu0 %v625
    %v1189 = vpop.f32.mrf.mxu0
    %v1190 = vadd.f32 %v696, %v1189
    %v1191 = vpop.f32.mrf.mxu0
    %v1192 = vadd.f32 %v696, %v1191
    %1193 = vmatmul.bf16.gmra.mxu0 %v626
    %v1194 = vpop.f32.mrf.mxu0
    %v1195 = vadd.f32 %v696, %v1194
    %v1196 = vpop.f32.mrf.mxu0
    %v1197 = vadd.f32 %v696, %v1196
    %1198 = vmatmul.bf16.gmra.mxu0 %v627
    %v1199 = vpop.f32.mrf.mxu0
    %v1200 = vadd.f32 %v696, %v1199
    %v1201 = vpop.f32.mrf.mxu0
    %v1202 = vadd.f32 %v696, %v1201
    %1203 = vmatmul.bf16.gmra.mxu0 %v628
    %v1204 = vpop.f32.mrf.mxu0
    %v1205 = vadd.f32 %v696, %v1204
    %v1206 = vpop.f32.mrf.mxu0
    %v1207 = vadd.f32 %v696, %v1206
    %1208 = vdwg.mxu0
    %1209 = vmatpush.bf16.msra.mxu0 %v961
    %1210 = vmatpush.bf16.msra.mxu0 %v953
    %1211 = vmatpush.bf16.msra.mxu0 %v945
    %1212 = vmatpush.bf16.msra.mxu0 %v937
    %1213 = vmatpush.bf16.msra.mxu0 %v929
    %1214 = vmatpush.bf16.msra.mxu0 %v921
    %1215 = vmatpush.bf16.msra.mxu0 %v913
    %1216 = vmatpush.bf16.msra.mxu0 %v905
    %1217 = vmatmul.bf16.gmra.mxu0 %v613
    %v1218 = vpop.f32.mrf.mxu0
    %v1219 = vadd.f32 %v697, %v1218
    %v1220 = vpop.f32.mrf.mxu0
    %v1221 = vadd.f32 %v697, %v1220
    %1222 = vmatmul.bf16.gmra.mxu0 %v614
    %v1223 = vpop.f32.mrf.mxu0
    %v1224 = vadd.f32 %v697, %v1223
    %v1225 = vpop.f32.mrf.mxu0
    %v1226 = vadd.f32 %v697, %v1225
    %1227 = vmatmul.bf16.gmra.mxu0 %v615
    %v1228 = vpop.f32.mrf.mxu0
    %v1229 = vadd.f32 %v697, %v1228
    %v1230 = vpop.f32.mrf.mxu0
    %v1231 = vadd.f32 %v697, %v1230
    %1232 = vmatmul.bf16.gmra.mxu0 %v616
    %v1233 = vpop.f32.mrf.mxu0
    %v1234 = vadd.f32 %v697, %v1233
    %v1235 = vpop.f32.mrf.mxu0
    %v1236 = vadd.f32 %v697, %v1235
    %1237 = vmatmul.bf16.gmra.mxu0 %v617
    %v1238 = vpop.f32.mrf.mxu0
    %v1239 = vadd.f32 %v697, %v1238
    %v1240 = vpop.f32.mrf.mxu0
    %v1241 = vadd.f32 %v697, %v1240
    %1242 = vmatmul.bf16.gmra.mxu0 %v618
    %v1243 = vpop.f32.mrf.mxu0
    %v1244 = vadd.f32 %v697, %v1243
    %v1245 = vpop.f32.mrf.mxu0
    %v1246 = vadd.f32 %v697, %v1245
    %1247 = vmatmul.bf16.gmra.mxu0 %v619
    %v1248 = vpop.f32.mrf.mxu0
    %v1249 = vadd.f32 %v697, %v1248
    %v1250 = vpop.f32.mrf.mxu0
    %v1251 = vadd.f32 %v697, %v1250
    %1252 = vmatmul.bf16.gmra.mxu0 %v620
    %v1253 = vpop.f32.mrf.mxu0
    %v1254 = vadd.f32 %v697, %v1253
    %v1255 = vpop.f32.mrf.mxu0
    %v1256 = vadd.f32 %v697, %v1255
    %1257 = vmatmul.bf16.gmra.mxu0 %v621
    %v1258 = vpop.f32.mrf.mxu0
    %v1259 = vadd.f32 %v697, %v1258
    %v1260 = vpop.f32.mrf.mxu0
    %v1261 = vadd.f32 %v697, %v1260
    %1262 = vmatmul.bf16.gmra.mxu0 %v622
    %v1263 = vpop.f32.mrf.mxu0
    %v1264 = vadd.f32 %v697, %v1263
    %v1265 = vpop.f32.mrf.mxu0
    %v1266 = vadd.f32 %v697, %v1265
    %1267 = vmatmul.bf16.gmra.mxu0 %v623
    %v1268 = vpop.f32.mrf.mxu0
    %v1269 = vadd.f32 %v697, %v1268
    %v1270 = vpop.f32.mrf.mxu0
    %v1271 = vadd.f32 %v697, %v1270
    %1272 = vmatmul.bf16.gmra.mxu0 %v624
    %v1273 = vpop.f32.mrf.mxu0
    %v1274 = vadd.f32 %v697, %v1273
    %v1275 = vpop.f32.mrf.mxu0
    %v1276 = vadd.f32 %v697, %v1275
    %1277 = vmatmul.bf16.gmra.mxu0 %v625
    %v1278 = vpop.f32.mrf.mxu0
    %v1279 = vadd.f32 %v697, %v1278
    %v1280 = vpop.f32.mrf.mxu0
    %v1281 = vadd.f32 %v697, %v1280
    %1282 = vmatmul.bf16.gmra.mxu0 %v626
    %v1283 = vpop.f32.mrf.mxu0
    %v1284 = vadd.f32 %v697, %v1283
    %v1285 = vpop.f32.mrf.mxu0
    %v1286 = vadd.f32 %v697, %v1285
    %1287 = vmatmul.bf16.gmra.mxu0 %v627
    %v1288 = vpop.f32.mrf.mxu0
    %v1289 = vadd.f32 %v697, %v1288
    %v1290 = vpop.f32.mrf.mxu0
    %v1291 = vadd.f32 %v697, %v1290
    %1292 = vmatmul.bf16.gmra.mxu0 %v628
    %v1293 = vpop.f32.mrf.mxu0
    %v1294 = vadd.f32 %v697, %v1293
    %v1295 = vpop.f32.mrf.mxu0
    %v1296 = vadd.f32 %v697, %v1295
    %1297 = vdwg.mxu0
    %1298 = vmatpush.bf16.msra.mxu0 %v962
    %1299 = vmatpush.bf16.msra.mxu0 %v954
    %1300 = vmatpush.bf16.msra.mxu0 %v946
    %1301 = vmatpush.bf16.msra.mxu0 %v938
    %1302 = vmatpush.bf16.msra.mxu0 %v930
    %1303 = vmatpush.bf16.msra.mxu0 %v922
    %1304 = vmatpush.bf16.msra.mxu0 %v914
    %1305 = vmatpush.bf16.msra.mxu0 %v906
    %1306 = vmatmul.bf16.gmra.mxu0 %v613
    %v1307 = vpop.f32.mrf.mxu0
    %v1308 = vadd.f32 %v698, %v1307
    %v1309 = vpop.f32.mrf.mxu0
    %v1310 = vadd.f32 %v698, %v1309
    %1311 = vmatmul.bf16.gmra.mxu0 %v614
    %v1312 = vpop.f32.mrf.mxu0
    %v1313 = vadd.f32 %v698, %v1312
    %v1314 = vpop.f32.mrf.mxu0
    %v1315 = vadd.f32 %v698, %v1314
    %1316 = vmatmul.bf16.gmra.mxu0 %v615
    %v1317 = vpop.f32.mrf.mxu0
    %v1318 = vadd.f32 %v698, %v1317
    %v1319 = vpop.f32.mrf.mxu0
    %v1320 = vadd.f32 %v698, %v1319
    %1321 = vmatmul.bf16.gmra.mxu0 %v616
    %v1322 = vpop.f32.mrf.mxu0
    %v1323 = vadd.f32 %v698, %v1322
    %v1324 = vpop.f32.mrf.mxu0
    %v1325 = vadd.f32 %v698, %v1324
    %1326 = vmatmul.bf16.gmra.mxu0 %v617
    %v1327 = vpop.f32.mrf.mxu0
    %v1328 = vadd.f32 %v698, %v1327
    %v1329 = vpop.f32.mrf.mxu0
    %v1330 = vadd.f32 %v698, %v1329
    %1331 = vmatmul.bf16.gmra.mxu0 %v618
    %v1332 = vpop.f32.mrf.mxu0
    %v1333 = vadd.f32 %v698, %v1332
    %v1334 = vpop.f32.mrf.mxu0
    %v1335 = vadd.f32 %v698, %v1334
    %1336 = vmatmul.bf16.gmra.mxu0 %v619
    %v1337 = vpop.f32.mrf.mxu0
    %v1338 = vadd.f32 %v698, %v1337
    %v1339 = vpop.f32.mrf.mxu0
    %v1340 = vadd.f32 %v698, %v1339
    %1341 = vmatmul.bf16.gmra.mxu0 %v620
    %v1342 = vpop.f32.mrf.mxu0
    %v1343 = vadd.f32 %v698, %v1342
    %v1344 = vpop.f32.mrf.mxu0
    %v1345 = vadd.f32 %v698, %v1344
    %1346 = vmatmul.bf16.gmra.mxu0 %v621
    %v1347 = vpop.f32.mrf.mxu0
    %v1348 = vadd.f32 %v698, %v1347
    %v1349 = vpop.f32.mrf.mxu0
    %v1350 = vadd.f32 %v698, %v1349
    %1351 = vmatmul.bf16.gmra.mxu0 %v622
    %v1352 = vpop.f32.mrf.mxu0
    %v1353 = vadd.f32 %v698, %v1352
    %v1354 = vpop.f32.mrf.mxu0
    %v1355 = vadd.f32 %v698, %v1354
    %1356 = vmatmul.bf16.gmra.mxu0 %v623
    %v1357 = vpop.f32.mrf.mxu0
    %v1358 = vadd.f32 %v698, %v1357
    %v1359 = vpop.f32.mrf.mxu0
    %v1360 = vadd.f32 %v698, %v1359
    %1361 = vmatmul.bf16.gmra.mxu0 %v624
    %v1362 = vpop.f32.mrf.mxu0
    %v1363 = vadd.f32 %v698, %v1362
    %v1364 = vpop.f32.mrf.mxu0
    %v1365 = vadd.f32 %v698, %v1364
    %1366 = vmatmul.bf16.gmra.mxu0 %v625
    %v1367 = vpop.f32.mrf.mxu0
    %v1368 = vadd.f32 %v698, %v1367
    %v1369 = vpop.f32.mrf.mxu0
    %v1370 = vadd.f32 %v698, %v1369
    %1371 = vmatmul.bf16.gmra.mxu0 %v626
    %v1372 = vpop.f32.mrf.mxu0
    %v1373 = vadd.f32 %v698, %v1372
    %v1374 = vpop.f32.mrf.mxu0
    %v1375 = vadd.f32 %v698, %v1374
    %1376 = vmatmul.bf16.gmra.mxu0 %v627
    %v1377 = vpop.f32.mrf.mxu0
    %v1378 = vadd.f32 %v698, %v1377
    %v1379 = vpop.f32.mrf.mxu0
    %v1380 = vadd.f32 %v698, %v1379
    %1381 = vmatmul.bf16.gmra.mxu0 %v628
    %v1382 = vpop.f32.mrf.mxu0
    %v1383 = vadd.f32 %v698, %v1382
    %v1384 = vpop.f32.mrf.mxu0
    %v1385 = vadd.f32 %v698, %v1384
    %1386 = vdwg.mxu0
    %1387 = vmatpush.bf16.msra.mxu0 %v963
    %1388 = vmatpush.bf16.msra.mxu0 %v955
    %1389 = vmatpush.bf16.msra.mxu0 %v947
    %1390 = vmatpush.bf16.msra.mxu0 %v939
    %1391 = vmatpush.bf16.msra.mxu0 %v931
    %1392 = vmatpush.bf16.msra.mxu0 %v923
    %1393 = vmatpush.bf16.msra.mxu0 %v915
    %1394 = vmatpush.bf16.msra.mxu0 %v907
    %1395 = vmatmul.bf16.gmra.mxu0 %v613
    %v1396 = vpop.f32.mrf.mxu0
    %v1397 = vadd.f32 %v699, %v1396
    %v1398 = vpop.f32.mrf.mxu0
    %v1399 = vadd.f32 %v699, %v1398
    %1400 = vmatmul.bf16.gmra.mxu0 %v614
    %v1401 = vpop.f32.mrf.mxu0
    %v1402 = vadd.f32 %v699, %v1401
    %v1403 = vpop.f32.mrf.mxu0
    %v1404 = vadd.f32 %v699, %v1403
    %1405 = vmatmul.bf16.gmra.mxu0 %v615
    %v1406 = vpop.f32.mrf.mxu0
    %v1407 = vadd.f32 %v699, %v1406
    %v1408 = vpop.f32.mrf.mxu0
    %v1409 = vadd.f32 %v699, %v1408
    %1410 = vmatmul.bf16.gmra.mxu0 %v616
    %v1411 = vpop.f32.mrf.mxu0
    %v1412 = vadd.f32 %v699, %v1411
    %v1413 = vpop.f32.mrf.mxu0
    %v1414 = vadd.f32 %v699, %v1413
    %1415 = vmatmul.bf16.gmra.mxu0 %v617
    %v1416 = vpop.f32.mrf.mxu0
    %v1417 = vadd.f32 %v699, %v1416
    %v1418 = vpop.f32.mrf.mxu0
    %v1419 = vadd.f32 %v699, %v1418
    %1420 = vmatmul.bf16.gmra.mxu0 %v618
    %v1421 = vpop.f32.mrf.mxu0
    %v1422 = vadd.f32 %v699, %v1421
    %v1423 = vpop.f32.mrf.mxu0
    %v1424 = vadd.f32 %v699, %v1423
    %1425 = vmatmul.bf16.gmra.mxu0 %v619
    %v1426 = vpop.f32.mrf.mxu0
    %v1427 = vadd.f32 %v699, %v1426
    %v1428 = vpop.f32.mrf.mxu0
    %v1429 = vadd.f32 %v699, %v1428
    %1430 = vmatmul.bf16.gmra.mxu0 %v620
    %v1431 = vpop.f32.mrf.mxu0
    %v1432 = vadd.f32 %v699, %v1431
    %v1433 = vpop.f32.mrf.mxu0
    %v1434 = vadd.f32 %v699, %v1433
    %1435 = vmatmul.bf16.gmra.mxu0 %v621
    %v1436 = vpop.f32.mrf.mxu0
    %v1437 = vadd.f32 %v699, %v1436
    %v1438 = vpop.f32.mrf.mxu0
    %v1439 = vadd.f32 %v699, %v1438
    %1440 = vmatmul.bf16.gmra.mxu0 %v622
    %v1441 = vpop.f32.mrf.mxu0
    %v1442 = vadd.f32 %v699, %v1441
    %v1443 = vpop.f32.mrf.mxu0
    %v1444 = vadd.f32 %v699, %v1443
    %1445 = vmatmul.bf16.gmra.mxu0 %v623
    %v1446 = vpop.f32.mrf.mxu0
    %v1447 = vadd.f32 %v699, %v1446
    %v1448 = vpop.f32.mrf.mxu0
    %v1449 = vadd.f32 %v699, %v1448
    %1450 = vmatmul.bf16.gmra.mxu0 %v624
    %v1451 = vpop.f32.mrf.mxu0
    %v1452 = vadd.f32 %v699, %v1451
    %v1453 = vpop.f32.mrf.mxu0
    %v1454 = vadd.f32 %v699, %v1453
    %1455 = vmatmul.bf16.gmra.mxu0 %v625
    %v1456 = vpop.f32.mrf.mxu0
    %v1457 = vadd.f32 %v699, %v1456
    %v1458 = vpop.f32.mrf.mxu0
    %v1459 = vadd.f32 %v699, %v1458
    %1460 = vmatmul.bf16.gmra.mxu0 %v626
    %v1461 = vpop.f32.mrf.mxu0
    %v1462 = vadd.f32 %v699, %v1461
    %v1463 = vpop.f32.mrf.mxu0
    %v1464 = vadd.f32 %v699, %v1463
    %1465 = vmatmul.bf16.gmra.mxu0 %v627
    %v1466 = vpop.f32.mrf.mxu0
    %v1467 = vadd.f32 %v699, %v1466
    %v1468 = vpop.f32.mrf.mxu0
    %v1469 = vadd.f32 %v699, %v1468
    %1470 = vmatmul.bf16.gmra.mxu0 %v628
    %v1471 = vpop.f32.mrf.mxu0
    %v1472 = vadd.f32 %v699, %v1471
    %v1473 = vpop.f32.mrf.mxu0
    %v1474 = vadd.f32 %v699, %v1473
    %1475 = vdwg.mxu0
    %1476 = vmatpush.bf16.msra.mxu0 %v964
    %1477 = vmatpush.bf16.msra.mxu0 %v956
    %1478 = vmatpush.bf16.msra.mxu0 %v948
    %1479 = vmatpush.bf16.msra.mxu0 %v940
    %1480 = vmatpush.bf16.msra.mxu0 %v932
    %1481 = vmatpush.bf16.msra.mxu0 %v924
    %1482 = vmatpush.bf16.msra.mxu0 %v916
    %1483 = vmatpush.bf16.msra.mxu0 %v908
    %1484 = vmatmul.bf16.gmra.mxu0 %v613
    %v1485 = vpop.f32.mrf.mxu0
    %v1486 = vadd.f32 %v700, %v1485
    %v1487 = vpop.f32.mrf.mxu0
    %v1488 = vadd.f32 %v700, %v1487
    %1489 = vmatmul.bf16.gmra.mxu0 %v614
    %v1490 = vpop.f32.mrf.mxu0
    %v1491 = vadd.f32 %v700, %v1490
    %v1492 = vpop.f32.mrf.mxu0
    %v1493 = vadd.f32 %v700, %v1492
    %1494 = vmatmul.bf16.gmra.mxu0 %v615
    %v1495 = vpop.f32.mrf.mxu0
    %v1496 = vadd.f32 %v700, %v1495
    %v1497 = vpop.f32.mrf.mxu0
    %v1498 = vadd.f32 %v700, %v1497
    %1499 = vmatmul.bf16.gmra.mxu0 %v616
    %v1500 = vpop.f32.mrf.mxu0
    %v1501 = vadd.f32 %v700, %v1500
    %v1502 = vpop.f32.mrf.mxu0
    %v1503 = vadd.f32 %v700, %v1502
    %1504 = vmatmul.bf16.gmra.mxu0 %v617
    %v1505 = vpop.f32.mrf.mxu0
    %v1506 = vadd.f32 %v700, %v1505
    %v1507 = vpop.f32.mrf.mxu0
    %v1508 = vadd.f32 %v700, %v1507
    %1509 = vmatmul.bf16.gmra.mxu0 %v618
    %v1510 = vpop.f32.mrf.mxu0
    %v1511 = vadd.f32 %v700, %v1510
    %v1512 = vpop.f32.mrf.mxu0
    %v1513 = vadd.f32 %v700, %v1512
    %1514 = vmatmul.bf16.gmra.mxu0 %v619
    %v1515 = vpop.f32.mrf.mxu0
    %v1516 = vadd.f32 %v700, %v1515
    %v1517 = vpop.f32.mrf.mxu0
    %v1518 = vadd.f32 %v700, %v1517
    %1519 = vmatmul.bf16.gmra.mxu0 %v620
    %v1520 = vpop.f32.mrf.mxu0
    %v1521 = vadd.f32 %v700, %v1520
    %v1522 = vpop.f32.mrf.mxu0
    %v1523 = vadd.f32 %v700, %v1522
    %1524 = vmatmul.bf16.gmra.mxu0 %v621
    %v1525 = vpop.f32.mrf.mxu0
    %v1526 = vadd.f32 %v700, %v1525
    %v1527 = vpop.f32.mrf.mxu0
    %v1528 = vadd.f32 %v700, %v1527
    %1529 = vmatmul.bf16.gmra.mxu0 %v622
    %v1530 = vpop.f32.mrf.mxu0
    %v1531 = vadd.f32 %v700, %v1530
    %v1532 = vpop.f32.mrf.mxu0
    %v1533 = vadd.f32 %v700, %v1532
    %1534 = vmatmul.bf16.gmra.mxu0 %v623
    %v1535 = vpop.f32.mrf.mxu0
    %v1536 = vadd.f32 %v700, %v1535
    %v1537 = vpop.f32.mrf.mxu0
    %v1538 = vadd.f32 %v700, %v1537
    %1539 = vmatmul.bf16.gmra.mxu0 %v624
    %v1540 = vpop.f32.mrf.mxu0
    %v1541 = vadd.f32 %v700, %v1540
    %v1542 = vpop.f32.mrf.mxu0
    %v1543 = vadd.f32 %v700, %v1542
    %1544 = vmatmul.bf16.gmra.mxu0 %v625
    %v1545 = vpop.f32.mrf.mxu0
    %v1546 = vadd.f32 %v700, %v1545
    %v1547 = vpop.f32.mrf.mxu0
    %v1548 = vadd.f32 %v700, %v1547
    %1549 = vmatmul.bf16.gmra.mxu0 %v626
    %v1550 = vpop.f32.mrf.mxu0
    %v1551 = vadd.f32 %v700, %v1550
    %v1552 = vpop.f32.mrf.mxu0
    %v1553 = vadd.f32 %v700, %v1552
    %1554 = vmatmul.bf16.gmra.mxu0 %v627
    %v1555 = vpop.f32.mrf.mxu0
    %v1556 = vadd.f32 %v700, %v1555
    %v1557 = vpop.f32.mrf.mxu0
    %v1558 = vadd.f32 %v700, %v1557
    %1559 = vmatmul.bf16.gmra.mxu0 %v628
    %v1560 = vpop.f32.mrf.mxu0
    %v1561 = vadd.f32 %v700, %v1560
    %v1562 = vpop.f32.mrf.mxu0
    %v1563 = vadd.f32 %v700, %v1562
    %1564 = vdwg.mxu0
    %1565 = vmatpush.bf16.msra.mxu0 %v965
    %1566 = vmatpush.bf16.msra.mxu0 %v957
    %1567 = vmatpush.bf16.msra.mxu0 %v949
    %1568 = vmatpush.bf16.msra.mxu0 %v941
    %1569 = vmatpush.bf16.msra.mxu0 %v933
    %1570 = vmatpush.bf16.msra.mxu0 %v925
    %1571 = vmatpush.bf16.msra.mxu0 %v917
    %1572 = vmatpush.bf16.msra.mxu0 %v909
    %1573 = vmatmul.bf16.gmra.mxu0 %v613
    %v1574 = vpop.f32.mrf.mxu0
    %v1575 = vadd.f32 %v701, %v1574
    %v1576 = vpop.f32.mrf.mxu0
    %v1577 = vadd.f32 %v701, %v1576
    %1578 = vmatmul.bf16.gmra.mxu0 %v614
    %v1579 = vpop.f32.mrf.mxu0
    %v1580 = vadd.f32 %v701, %v1579
    %v1581 = vpop.f32.mrf.mxu0
    %v1582 = vadd.f32 %v701, %v1581
    %1583 = vmatmul.bf16.gmra.mxu0 %v615
    %v1584 = vpop.f32.mrf.mxu0
    %v1585 = vadd.f32 %v701, %v1584
    %v1586 = vpop.f32.mrf.mxu0
    %v1587 = vadd.f32 %v701, %v1586
    %1588 = vmatmul.bf16.gmra.mxu0 %v616
    %v1589 = vpop.f32.mrf.mxu0
    %v1590 = vadd.f32 %v701, %v1589
    %v1591 = vpop.f32.mrf.mxu0
    %v1592 = vadd.f32 %v701, %v1591
    %1593 = vmatmul.bf16.gmra.mxu0 %v617
    %v1594 = vpop.f32.mrf.mxu0
    %v1595 = vadd.f32 %v701, %v1594
    %v1596 = vpop.f32.mrf.mxu0
    %v1597 = vadd.f32 %v701, %v1596
    %1598 = vmatmul.bf16.gmra.mxu0 %v618
    %v1599 = vpop.f32.mrf.mxu0
    %v1600 = vadd.f32 %v701, %v1599
    %v1601 = vpop.f32.mrf.mxu0
    %v1602 = vadd.f32 %v701, %v1601
    %1603 = vmatmul.bf16.gmra.mxu0 %v619
    %v1604 = vpop.f32.mrf.mxu0
    %v1605 = vadd.f32 %v701, %v1604
    %v1606 = vpop.f32.mrf.mxu0
    %v1607 = vadd.f32 %v701, %v1606
    %1608 = vmatmul.bf16.gmra.mxu0 %v620
    %v1609 = vpop.f32.mrf.mxu0
    %v1610 = vadd.f32 %v701, %v1609
    %v1611 = vpop.f32.mrf.mxu0
    %v1612 = vadd.f32 %v701, %v1611
    %1613 = vmatmul.bf16.gmra.mxu0 %v621
    %v1614 = vpop.f32.mrf.mxu0
    %v1615 = vadd.f32 %v701, %v1614
    %v1616 = vpop.f32.mrf.mxu0
    %v1617 = vadd.f32 %v701, %v1616
    %1618 = vmatmul.bf16.gmra.mxu0 %v622
    %v1619 = vpop.f32.mrf.mxu0
    %v1620 = vadd.f32 %v701, %v1619
    %v1621 = vpop.f32.mrf.mxu0
    %v1622 = vadd.f32 %v701, %v1621
    %1623 = vmatmul.bf16.gmra.mxu0 %v623
    %v1624 = vpop.f32.mrf.mxu0
    %v1625 = vadd.f32 %v701, %v1624
    %v1626 = vpop.f32.mrf.mxu0
    %v1627 = vadd.f32 %v701, %v1626
    %1628 = vmatmul.bf16.gmra.mxu0 %v624
    %v1629 = vpop.f32.mrf.mxu0
    %v1630 = vadd.f32 %v701, %v1629
    %v1631 = vpop.f32.mrf.mxu0
    %v1632 = vadd.f32 %v701, %v1631
    %1633 = vmatmul.bf16.gmra.mxu0 %v625
    %v1634 = vpop.f32.mrf.mxu0
    %v1635 = vadd.f32 %v701, %v1634
    %v1636 = vpop.f32.mrf.mxu0
    %v1637 = vadd.f32 %v701, %v1636
    %1638 = vmatmul.bf16.gmra.mxu0 %v626
    %v1639 = vpop.f32.mrf.mxu0
    %v1640 = vadd.f32 %v701, %v1639
    %v1641 = vpop.f32.mrf.mxu0
    %v1642 = vadd.f32 %v701, %v1641
    %1643 = vmatmul.bf16.gmra.mxu0 %v627
    %v1644 = vpop.f32.mrf.mxu0
    %v1645 = vadd.f32 %v701, %v1644
    %v1646 = vpop.f32.mrf.mxu0
    %v1647 = vadd.f32 %v701, %v1646
    %1648 = vmatmul.bf16.gmra.mxu0 %v628
    %v1649 = vpop.f32.mrf.mxu0
    %v1650 = vadd.f32 %v701, %v1649
    %v1651 = vpop.f32.mrf.mxu0
    %v1652 = vadd.f32 %v701, %v1651
    %1653 = vdwg.mxu0
    %1654 = vmatpush.bf16.msra.mxu0 %v966
    %1655 = vmatpush.bf16.msra.mxu0 %v958
    %1656 = vmatpush.bf16.msra.mxu0 %v950
    %1657 = vmatpush.bf16.msra.mxu0 %v942
    %1658 = vmatpush.bf16.msra.mxu0 %v934
    %1659 = vmatpush.bf16.msra.mxu0 %v926
    %1660 = vmatpush.bf16.msra.mxu0 %v918
    %1661 = vmatpush.bf16.msra.mxu0 %v910
    %1662 = vmatmul.bf16.gmra.mxu0 %v613
    %v1663 = vpop.f32.mrf.mxu0
    %v1664 = vadd.f32 %v702, %v1663
    %v1665 = vpop.f32.mrf.mxu0
    %v1666 = vadd.f32 %v702, %v1665
    %1667 = vmatmul.bf16.gmra.mxu0 %v614
    %v1668 = vpop.f32.mrf.mxu0
    %v1669 = vadd.f32 %v702, %v1668
    %v1670 = vpop.f32.mrf.mxu0
    %v1671 = vadd.f32 %v702, %v1670
    %1672 = vmatmul.bf16.gmra.mxu0 %v615
    %v1673 = vpop.f32.mrf.mxu0
    %v1674 = vadd.f32 %v702, %v1673
    %v1675 = vpop.f32.mrf.mxu0
    %v1676 = vadd.f32 %v702, %v1675
    %1677 = vmatmul.bf16.gmra.mxu0 %v616
    %v1678 = vpop.f32.mrf.mxu0
    %v1679 = vadd.f32 %v702, %v1678
    %v1680 = vpop.f32.mrf.mxu0
    %v1681 = vadd.f32 %v702, %v1680
    %1682 = vmatmul.bf16.gmra.mxu0 %v617
    %v1683 = vpop.f32.mrf.mxu0
    %v1684 = vadd.f32 %v702, %v1683
    %v1685 = vpop.f32.mrf.mxu0
    %v1686 = vadd.f32 %v702, %v1685
    %1687 = vmatmul.bf16.gmra.mxu0 %v618
    %v1688 = vpop.f32.mrf.mxu0
    %v1689 = vadd.f32 %v702, %v1688
    %v1690 = vpop.f32.mrf.mxu0
    %v1691 = vadd.f32 %v702, %v1690
    %1692 = vmatmul.bf16.gmra.mxu0 %v619
    %v1693 = vpop.f32.mrf.mxu0
    %v1694 = vadd.f32 %v702, %v1693
    %v1695 = vpop.f32.mrf.mxu0
    %v1696 = vadd.f32 %v702, %v1695
    %1697 = vmatmul.bf16.gmra.mxu0 %v620
    %v1698 = vpop.f32.mrf.mxu0
    %v1699 = vadd.f32 %v702, %v1698
    %v1700 = vpop.f32.mrf.mxu0
    %v1701 = vadd.f32 %v702, %v1700
    %1702 = vmatmul.bf16.gmra.mxu0 %v621
    %v1703 = vpop.f32.mrf.mxu0
    %v1704 = vadd.f32 %v702, %v1703
    %v1705 = vpop.f32.mrf.mxu0
    %v1706 = vadd.f32 %v702, %v1705
    %1707 = vmatmul.bf16.gmra.mxu0 %v622
    %v1708 = vpop.f32.mrf.mxu0
    %v1709 = vadd.f32 %v702, %v1708
    %v1710 = vpop.f32.mrf.mxu0
    %v1711 = vadd.f32 %v702, %v1710
    %1712 = vmatmul.bf16.gmra.mxu0 %v623
    %v1713 = vpop.f32.mrf.mxu0
    %v1714 = vadd.f32 %v702, %v1713
    %v1715 = vpop.f32.mrf.mxu0
    %v1716 = vadd.f32 %v702, %v1715
    %1717 = vmatmul.bf16.gmra.mxu0 %v624
    %v1718 = vpop.f32.mrf.mxu0
    %v1719 = vadd.f32 %v702, %v1718
    %v1720 = vpop.f32.mrf.mxu0
    %v1721 = vadd.f32 %v702, %v1720
    %1722 = vmatmul.bf16.gmra.mxu0 %v625
    %v1723 = vpop.f32.mrf.mxu0
    %v1724 = vadd.f32 %v702, %v1723
    %v1725 = vpop.f32.mrf.mxu0
    %v1726 = vadd.f32 %v702, %v1725
    %1727 = vmatmul.bf16.gmra.mxu0 %v626
    %v1728 = vpop.f32.mrf.mxu0
    %v1729 = vadd.f32 %v702, %v1728
    %v1730 = vpop.f32.mrf.mxu0
    %v1731 = vadd.f32 %v702, %v1730
    %1732 = vmatmul.bf16.gmra.mxu0 %v627
    %v1733 = vpop.f32.mrf.mxu0
    %v1734 = vadd.f32 %v702, %v1733
    %v1735 = vpop.f32.mrf.mxu0
    %v1736 = vadd.f32 %v702, %v1735
    %1737 = vmatmul.bf16.gmra.mxu0 %v628
    %v1738 = vpop.f32.mrf.mxu0
    %v1739 = vadd.f32 %v702, %v1738
    %v1740 = vpop.f32.mrf.mxu0
    %v1741 = vadd.f32 %v702, %v1740
    %1742 = vdwg.mxu0
    %v1743 = vmax.f32 %v1041, 0.0
    %v1744 = vmax.f32 %v1130, 0.0
    %v1745 = vmax.f32 %v1219, 0.0
    %v1746 = vmax.f32 %v1308, 0.0
    %v1747 = vmax.f32 %v1397, 0.0
    %v1748 = vmax.f32 %v1486, 0.0
    %v1749 = vmax.f32 %v1575, 0.0
    %v1750 = vmax.f32 %v1664, 0.0
    %v1751 = vmax.f32 %v1043, 0.0
    %v1752 = vmax.f32 %v1132, 0.0
    %v1753 = vmax.f32 %v1221, 0.0
    %v1754 = vmax.f32 %v1310, 0.0
    %v1755 = vmax.f32 %v1399, 0.0
    %v1756 = vmax.f32 %v1488, 0.0
    %v1757 = vmax.f32 %v1577, 0.0
    %v1758 = vmax.f32 %v1666, 0.0
    %v1759 = vmax.f32 %v1046, 0.0
    %v1760 = vmax.f32 %v1135, 0.0
    %v1761 = vmax.f32 %v1224, 0.0
    %v1762 = vmax.f32 %v1313, 0.0
    %v1763 = vmax.f32 %v1402, 0.0
    %v1764 = vmax.f32 %v1491, 0.0
    %v1765 = vmax.f32 %v1580, 0.0
    %v1766 = vmax.f32 %v1669, 0.0
    %v1767 = vmax.f32 %v1048, 0.0
    %v1768 = vmax.f32 %v1137, 0.0
    %v1769 = vmax.f32 %v1226, 0.0
    %v1770 = vmax.f32 %v1315, 0.0
    %v1771 = vmax.f32 %v1404, 0.0
    %v1772 = vmax.f32 %v1493, 0.0
    %v1773 = vmax.f32 %v1582, 0.0
    %v1774 = vmax.f32 %v1671, 0.0
    %v1775 = vmax.f32 %v1051, 0.0
    %v1776 = vmax.f32 %v1140, 0.0
    %v1777 = vmax.f32 %v1229, 0.0
    %v1778 = vmax.f32 %v1318, 0.0
    %v1779 = vmax.f32 %v1407, 0.0
    %v1780 = vmax.f32 %v1496, 0.0
    %v1781 = vmax.f32 %v1585, 0.0
    %v1782 = vmax.f32 %v1674, 0.0
    %v1783 = vmax.f32 %v1053, 0.0
    %v1784 = vmax.f32 %v1142, 0.0
    %v1785 = vmax.f32 %v1231, 0.0
    %v1786 = vmax.f32 %v1320, 0.0
    %v1787 = vmax.f32 %v1409, 0.0
    %v1788 = vmax.f32 %v1498, 0.0
    %v1789 = vmax.f32 %v1587, 0.0
    %v1790 = vmax.f32 %v1676, 0.0
    %v1791 = vmax.f32 %v1056, 0.0
    %v1792 = vmax.f32 %v1145, 0.0
    %v1793 = vmax.f32 %v1234, 0.0
    %v1794 = vmax.f32 %v1323, 0.0
    %v1795 = vmax.f32 %v1412, 0.0
    %v1796 = vmax.f32 %v1501, 0.0
    %v1797 = vmax.f32 %v1590, 0.0
    %v1798 = vmax.f32 %v1679, 0.0
    %v1799 = vmax.f32 %v1058, 0.0
    %v1800 = vmax.f32 %v1147, 0.0
    %v1801 = vmax.f32 %v1236, 0.0
    %v1802 = vmax.f32 %v1325, 0.0
    %v1803 = vmax.f32 %v1414, 0.0
    %v1804 = vmax.f32 %v1503, 0.0
    %v1805 = vmax.f32 %v1592, 0.0
    %v1806 = vmax.f32 %v1681, 0.0
    %v1807 = vmax.f32 %v1061, 0.0
    %v1808 = vmax.f32 %v1150, 0.0
    %v1809 = vmax.f32 %v1239, 0.0
    %v1810 = vmax.f32 %v1328, 0.0
    %v1811 = vmax.f32 %v1417, 0.0
    %v1812 = vmax.f32 %v1506, 0.0
    %v1813 = vmax.f32 %v1595, 0.0
    %v1814 = vmax.f32 %v1684, 0.0
    %v1815 = vmax.f32 %v1063, 0.0
    %v1816 = vmax.f32 %v1152, 0.0
    %v1817 = vmax.f32 %v1241, 0.0
    %v1818 = vmax.f32 %v1330, 0.0
    %v1819 = vmax.f32 %v1419, 0.0
    %v1820 = vmax.f32 %v1508, 0.0
    %v1821 = vmax.f32 %v1597, 0.0
    %v1822 = vmax.f32 %v1686, 0.0
    %v1823 = vmax.f32 %v1066, 0.0
    %v1824 = vmax.f32 %v1155, 0.0
    %v1825 = vmax.f32 %v1244, 0.0
    %v1826 = vmax.f32 %v1333, 0.0
    %v1827 = vmax.f32 %v1422, 0.0
    %v1828 = vmax.f32 %v1511, 0.0
    %v1829 = vmax.f32 %v1600, 0.0
    %v1830 = vmax.f32 %v1689, 0.0
    %v1831 = vmax.f32 %v1068, 0.0
    %v1832 = vmax.f32 %v1157, 0.0
    %v1833 = vmax.f32 %v1246, 0.0
    %v1834 = vmax.f32 %v1335, 0.0
    %v1835 = vmax.f32 %v1424, 0.0
    %v1836 = vmax.f32 %v1513, 0.0
    %v1837 = vmax.f32 %v1602, 0.0
    %v1838 = vmax.f32 %v1691, 0.0
    %v1839 = vmax.f32 %v1071, 0.0
    %v1840 = vmax.f32 %v1160, 0.0
    %v1841 = vmax.f32 %v1249, 0.0
    %v1842 = vmax.f32 %v1338, 0.0
    %v1843 = vmax.f32 %v1427, 0.0
    %v1844 = vmax.f32 %v1516, 0.0
    %v1845 = vmax.f32 %v1605, 0.0
    %v1846 = vmax.f32 %v1694, 0.0
    %v1847 = vmax.f32 %v1073, 0.0
    %v1848 = vmax.f32 %v1162, 0.0
    %v1849 = vmax.f32 %v1251, 0.0
    %v1850 = vmax.f32 %v1340, 0.0
    %v1851 = vmax.f32 %v1429, 0.0
    %v1852 = vmax.f32 %v1518, 0.0
    %v1853 = vmax.f32 %v1607, 0.0
    %v1854 = vmax.f32 %v1696, 0.0
    %v1855 = vmax.f32 %v1076, 0.0
    %v1856 = vmax.f32 %v1165, 0.0
    %v1857 = vmax.f32 %v1254, 0.0
    %v1858 = vmax.f32 %v1343, 0.0
    %v1859 = vmax.f32 %v1432, 0.0
    %v1860 = vmax.f32 %v1521, 0.0
    %v1861 = vmax.f32 %v1610, 0.0
    %v1862 = vmax.f32 %v1699, 0.0
    %v1863 = vmax.f32 %v1078, 0.0
    %v1864 = vmax.f32 %v1167, 0.0
    %v1865 = vmax.f32 %v1256, 0.0
    %v1866 = vmax.f32 %v1345, 0.0
    %v1867 = vmax.f32 %v1434, 0.0
    %v1868 = vmax.f32 %v1523, 0.0
    %v1869 = vmax.f32 %v1612, 0.0
    %v1870 = vmax.f32 %v1701, 0.0
    %v1871 = vmax.f32 %v1081, 0.0
    %v1872 = vmax.f32 %v1170, 0.0
    %v1873 = vmax.f32 %v1259, 0.0
    %v1874 = vmax.f32 %v1348, 0.0
    %v1875 = vmax.f32 %v1437, 0.0
    %v1876 = vmax.f32 %v1526, 0.0
    %v1877 = vmax.f32 %v1615, 0.0
    %v1878 = vmax.f32 %v1704, 0.0
    %v1879 = vmax.f32 %v1083, 0.0
    %v1880 = vmax.f32 %v1172, 0.0
    %v1881 = vmax.f32 %v1261, 0.0
    %v1882 = vmax.f32 %v1350, 0.0
    %v1883 = vmax.f32 %v1439, 0.0
    %v1884 = vmax.f32 %v1528, 0.0
    %v1885 = vmax.f32 %v1617, 0.0
    %v1886 = vmax.f32 %v1706, 0.0
    %v1887 = vmax.f32 %v1086, 0.0
    %v1888 = vmax.f32 %v1175, 0.0
    %v1889 = vmax.f32 %v1264, 0.0
    %v1890 = vmax.f32 %v1353, 0.0
    %v1891 = vmax.f32 %v1442, 0.0
    %v1892 = vmax.f32 %v1531, 0.0
    %v1893 = vmax.f32 %v1620, 0.0
    %v1894 = vmax.f32 %v1709, 0.0
    %v1895 = vmax.f32 %v1088, 0.0
    %v1896 = vmax.f32 %v1177, 0.0
    %v1897 = vmax.f32 %v1266, 0.0
    %v1898 = vmax.f32 %v1355, 0.0
    %v1899 = vmax.f32 %v1444, 0.0
    %v1900 = vmax.f32 %v1533, 0.0
    %v1901 = vmax.f32 %v1622, 0.0
    %v1902 = vmax.f32 %v1711, 0.0
    %v1903 = vmax.f32 %v1091, 0.0
    %v1904 = vmax.f32 %v1180, 0.0
    %v1905 = vmax.f32 %v1269, 0.0
    %v1906 = vmax.f32 %v1358, 0.0
    %v1907 = vmax.f32 %v1447, 0.0
    %v1908 = vmax.f32 %v1536, 0.0
    %v1909 = vmax.f32 %v1625, 0.0
    %v1910 = vmax.f32 %v1714, 0.0
    %v1911 = vmax.f32 %v1093, 0.0
    %v1912 = vmax.f32 %v1182, 0.0
    %v1913 = vmax.f32 %v1271, 0.0
    %v1914 = vmax.f32 %v1360, 0.0
    %v1915 = vmax.f32 %v1449, 0.0
    %v1916 = vmax.f32 %v1538, 0.0
    %v1917 = vmax.f32 %v1627, 0.0
    %v1918 = vmax.f32 %v1716, 0.0
    %v1919 = vmax.f32 %v1096, 0.0
    %v1920 = vmax.f32 %v1185, 0.0
    %v1921 = vmax.f32 %v1274, 0.0
    %v1922 = vmax.f32 %v1363, 0.0
    %v1923 = vmax.f32 %v1452, 0.0
    %v1924 = vmax.f32 %v1541, 0.0
    %v1925 = vmax.f32 %v1630, 0.0
    %v1926 = vmax.f32 %v1719, 0.0
    %v1927 = vmax.f32 %v1098, 0.0
    %v1928 = vmax.f32 %v1187, 0.0
    %v1929 = vmax.f32 %v1276, 0.0
    %v1930 = vmax.f32 %v1365, 0.0
    %v1931 = vmax.f32 %v1454, 0.0
    %v1932 = vmax.f32 %v1543, 0.0
    %v1933 = vmax.f32 %v1632, 0.0
    %v1934 = vmax.f32 %v1721, 0.0
    %v1935 = vmax.f32 %v1101, 0.0
    %v1936 = vmax.f32 %v1190, 0.0
    %v1937 = vmax.f32 %v1279, 0.0
    %v1938 = vmax.f32 %v1368, 0.0
    %v1939 = vmax.f32 %v1457, 0.0
    %v1940 = vmax.f32 %v1546, 0.0
    %v1941 = vmax.f32 %v1635, 0.0
    %v1942 = vmax.f32 %v1724, 0.0
    %v1943 = vmax.f32 %v1103, 0.0
    %v1944 = vmax.f32 %v1192, 0.0
    %v1945 = vmax.f32 %v1281, 0.0
    %v1946 = vmax.f32 %v1370, 0.0
    %v1947 = vmax.f32 %v1459, 0.0
    %v1948 = vmax.f32 %v1548, 0.0
    %v1949 = vmax.f32 %v1637, 0.0
    %v1950 = vmax.f32 %v1726, 0.0
    %v1951 = vmax.f32 %v1106, 0.0
    %v1952 = vmax.f32 %v1195, 0.0
    %v1953 = vmax.f32 %v1284, 0.0
    %v1954 = vmax.f32 %v1373, 0.0
    %v1955 = vmax.f32 %v1462, 0.0
    %v1956 = vmax.f32 %v1551, 0.0
    %v1957 = vmax.f32 %v1640, 0.0
    %v1958 = vmax.f32 %v1729, 0.0
    %v1959 = vmax.f32 %v1108, 0.0
    %v1960 = vmax.f32 %v1197, 0.0
    %v1961 = vmax.f32 %v1286, 0.0
    %v1962 = vmax.f32 %v1375, 0.0
    %v1963 = vmax.f32 %v1464, 0.0
    %v1964 = vmax.f32 %v1553, 0.0
    %v1965 = vmax.f32 %v1642, 0.0
    %v1966 = vmax.f32 %v1731, 0.0
    %v1967 = vmax.f32 %v1111, 0.0
    %v1968 = vmax.f32 %v1200, 0.0
    %v1969 = vmax.f32 %v1289, 0.0
    %v1970 = vmax.f32 %v1378, 0.0
    %v1971 = vmax.f32 %v1467, 0.0
    %v1972 = vmax.f32 %v1556, 0.0
    %v1973 = vmax.f32 %v1645, 0.0
    %v1974 = vmax.f32 %v1734, 0.0
    %v1975 = vmax.f32 %v1113, 0.0
    %v1976 = vmax.f32 %v1202, 0.0
    %v1977 = vmax.f32 %v1291, 0.0
    %v1978 = vmax.f32 %v1380, 0.0
    %v1979 = vmax.f32 %v1469, 0.0
    %v1980 = vmax.f32 %v1558, 0.0
    %v1981 = vmax.f32 %v1647, 0.0
    %v1982 = vmax.f32 %v1736, 0.0
    %v1983 = vmax.f32 %v1116, 0.0
    %v1984 = vmax.f32 %v1205, 0.0
    %v1985 = vmax.f32 %v1294, 0.0
    %v1986 = vmax.f32 %v1383, 0.0
    %v1987 = vmax.f32 %v1472, 0.0
    %v1988 = vmax.f32 %v1561, 0.0
    %v1989 = vmax.f32 %v1650, 0.0
    %v1990 = vmax.f32 %v1739, 0.0
    %v1991 = vmax.f32 %v1118, 0.0
    %v1992 = vmax.f32 %v1207, 0.0
    %v1993 = vmax.f32 %v1296, 0.0
    %v1994 = vmax.f32 %v1385, 0.0
    %v1995 = vmax.f32 %v1474, 0.0
    %v1996 = vmax.f32 %v1563, 0.0
    %v1997 = vmax.f32 %v1652, 0.0
    %v1998 = vmax.f32 %v1741, 0.0
    %v1999 = vmax.f32 %v1743, %v1751
    %v2000 = vmax.f32 %v1999, %v1759
    %v2001 = vmax.f32 %v2000, %v1767
    %v2002 = vmax.f32 %v2001, %v1775
    %v2003 = vmax.f32 %v2002, %v1783
    %v2004 = vmax.f32 %v2003, %v1791
    %v2005 = vmax.f32 %v2004, %v1799
    %v2006 = vmax.f32 %v2005, %v1807
    %v2007 = vmax.f32 %v2006, %v1815
    %v2008 = vmax.f32 %v2007, %v1823
    %v2009 = vmax.f32 %v2008, %v1831
    %v2010 = vmax.f32 %v2009, %v1839
    %v2011 = vmax.f32 %v2010, %v1847
    %v2012 = vmax.f32 %v2011, %v1855
    %v2013 = vmax.f32 %v2012, %v1863
    %v2014 = vrot.slane %v2013, 4
    %v2015 = vmax.f32 %v2013, %v2014
    %v2016 = vrot.slane %v2015, 2
    %v2017 = vmax.f32 %v2015, %v2016
    %v2018 = vrot.slane %v2017, 1
    %v2019 = vmax.f32 %v2017, %v2018
    %v2020 = vmax.f32 %v1744, %v1752
    %v2021 = vmax.f32 %v2020, %v1760
    %v2022 = vmax.f32 %v2021, %v1768
    %v2023 = vmax.f32 %v2022, %v1776
    %v2024 = vmax.f32 %v2023, %v1784
    %v2025 = vmax.f32 %v2024, %v1792
    %v2026 = vmax.f32 %v2025, %v1800
    %v2027 = vmax.f32 %v2026, %v1808
    %v2028 = vmax.f32 %v2027, %v1816
    %v2029 = vmax.f32 %v2028, %v1824
    %v2030 = vmax.f32 %v2029, %v1832
    %v2031 = vmax.f32 %v2030, %v1840
    %v2032 = vmax.f32 %v2031, %v1848
    %v2033 = vmax.f32 %v2032, %v1856
    %v2034 = vmax.f32 %v2033, %v1864
    %v2035 = vrot.slane %v2034, 4
    %v2036 = vmax.f32 %v2034, %v2035
    %v2037 = vrot.slane %v2036, 2
    %v2038 = vmax.f32 %v2036, %v2037
    %v2039 = vrot.slane %v2038, 1
    %v2040 = vmax.f32 %v2038, %v2039
    %v2041 = vmax.f32 %v1745, %v1753
    %v2042 = vmax.f32 %v2041, %v1761
    %v2043 = vmax.f32 %v2042, %v1769
    %v2044 = vmax.f32 %v2043, %v1777
    %v2045 = vmax.f32 %v2044, %v1785
    %v2046 = vmax.f32 %v2045, %v1793
    %v2047 = vmax.f32 %v2046, %v1801
    %v2048 = vmax.f32 %v2047, %v1809
    %v2049 = vmax.f32 %v2048, %v1817
    %v2050 = vmax.f32 %v2049, %v1825
    %v2051 = vmax.f32 %v2050, %v1833
    %v2052 = vmax.f32 %v2051, %v1841
    %v2053 = vmax.f32 %v2052, %v1849
    %v2054 = vmax.f32 %v2053, %v1857
    %v2055 = vmax.f32 %v2054, %v1865
    %v2056 = vrot.slane %v2055, 4
    %v2057 = vmax.f32 %v2055, %v2056
    %v2058 = vrot.slane %v2057, 2
    %v2059 = vmax.f32 %v2057, %v2058
    %v2060 = vrot.slane %v2059, 1
    %v2061 = vmax.f32 %v2059, %v2060
    %v2062 = vmax.f32 %v1746, %v1754
    %v2063 = vmax.f32 %v2062, %v1762
    %v2064 = vmax.f32 %v2063, %v1770
    %v2065 = vmax.f32 %v2064, %v1778
    %v2066 = vmax.f32 %v2065, %v1786
    %v2067 = vmax.f32 %v2066, %v1794
    %v2068 = vmax.f32 %v2067, %v1802
    %v2069 = vmax.f32 %v2068, %v1810
    %v2070 = vmax.f32 %v2069, %v1818
    %v2071 = vmax.f32 %v2070, %v1826
    %v2072 = vmax.f32 %v2071, %v1834
    %v2073 = vmax.f32 %v2072, %v1842
    %v2074 = vmax.f32 %v2073, %v1850
    %v2075 = vmax.f32 %v2074, %v1858
    %v2076 = vmax.f32 %v2075, %v1866
    %v2077 = vrot.slane %v2076, 4
    %v2078 = vmax.f32 %v2076, %v2077
    %v2079 = vrot.slane %v2078, 2
    %v2080 = vmax.f32 %v2078, %v2079
    %v2081 = vrot.slane %v2080, 1
    %v2082 = vmax.f32 %v2080, %v2081
    %v2083 = vmax.f32 %v1747, %v1755
    %v2084 = vmax.f32 %v2083, %v1763
    %v2085 = vmax.f32 %v2084, %v1771
    %v2086 = vmax.f32 %v2085, %v1779
    %v2087 = vmax.f32 %v2086, %v1787
    %v2088 = vmax.f32 %v2087, %v1795
    %v2089 = vmax.f32 %v2088, %v1803
    %v2090 = vmax.f32 %v2089, %v1811
    %v2091 = vmax.f32 %v2090, %v1819
    %v2092 = vmax.f32 %v2091, %v1827
    %v2093 = vmax.f32 %v2092, %v1835
    %v2094 = vmax.f32 %v2093, %v1843
    %v2095 = vmax.f32 %v2094, %v1851
    %v2096 = vmax.f32 %v2095, %v1859
    %v2097 = vmax.f32 %v2096, %v1867
    %v2098 = vrot.slane %v2097, 4
    %v2099 = vmax.f32 %v2097, %v2098
    %v2100 = vrot.slane %v2099, 2
    %v2101 = vmax.f32 %v2099, %v2100
    %v2102 = vrot.slane %v2101, 1
    %v2103 = vmax.f32 %v2101, %v2102
    %v2104 = vmax.f32 %v1748, %v1756
    %v2105 = vmax.f32 %v2104, %v1764
    %v2106 = vmax.f32 %v2105, %v1772
    %v2107 = vmax.f32 %v2106, %v1780
    %v2108 = vmax.f32 %v2107, %v1788
    %v2109 = vmax.f32 %v2108, %v1796
    %v2110 = vmax.f32 %v2109, %v1804
    %v2111 = vmax.f32 %v2110, %v1812
    %v2112 = vmax.f32 %v2111, %v1820
    %v2113 = vmax.f32 %v2112, %v1828
    %v2114 = vmax.f32 %v2113, %v1836
    %v2115 = vmax.f32 %v2114, %v1844
    %v2116 = vmax.f32 %v2115, %v1852
    %v2117 = vmax.f32 %v2116, %v1860
    %v2118 = vmax.f32 %v2117, %v1868
    %v2119 = vrot.slane %v2118, 4
    %v2120 = vmax.f32 %v2118, %v2119
    %v2121 = vrot.slane %v2120, 2
    %v2122 = vmax.f32 %v2120, %v2121
    %v2123 = vrot.slane %v2122, 1
    %v2124 = vmax.f32 %v2122, %v2123
    %v2125 = vmax.f32 %v1749, %v1757
    %v2126 = vmax.f32 %v2125, %v1765
    %v2127 = vmax.f32 %v2126, %v1773
    %v2128 = vmax.f32 %v2127, %v1781
    %v2129 = vmax.f32 %v2128, %v1789
    %v2130 = vmax.f32 %v2129, %v1797
    %v2131 = vmax.f32 %v2130, %v1805
    %v2132 = vmax.f32 %v2131, %v1813
    %v2133 = vmax.f32 %v2132, %v1821
    %v2134 = vmax.f32 %v2133, %v1829
    %v2135 = vmax.f32 %v2134, %v1837
    %v2136 = vmax.f32 %v2135, %v1845
    %v2137 = vmax.f32 %v2136, %v1853
    %v2138 = vmax.f32 %v2137, %v1861
    %v2139 = vmax.f32 %v2138, %v1869
    %v2140 = vrot.slane %v2139, 4
    %v2141 = vmax.f32 %v2139, %v2140
    %v2142 = vrot.slane %v2141, 2
    %v2143 = vmax.f32 %v2141, %v2142
    %v2144 = vrot.slane %v2143, 1
    %v2145 = vmax.f32 %v2143, %v2144
    %v2146 = vmax.f32 %v1750, %v1758
    %v2147 = vmax.f32 %v2146, %v1766
    %v2148 = vmax.f32 %v2147, %v1774
    %v2149 = vmax.f32 %v2148, %v1782
    %v2150 = vmax.f32 %v2149, %v1790
    %v2151 = vmax.f32 %v2150, %v1798
    %v2152 = vmax.f32 %v2151, %v1806
    %v2153 = vmax.f32 %v2152, %v1814
    %v2154 = vmax.f32 %v2153, %v1822
    %v2155 = vmax.f32 %v2154, %v1830
    %v2156 = vmax.f32 %v2155, %v1838
    %v2157 = vmax.f32 %v2156, %v1846
    %v2158 = vmax.f32 %v2157, %v1854
    %v2159 = vmax.f32 %v2158, %v1862
    %v2160 = vmax.f32 %v2159, %v1870
    %v2161 = vrot.slane %v2160, 4
    %v2162 = vmax.f32 %v2160, %v2161
    %v2163 = vrot.slane %v2162, 2
    %v2164 = vmax.f32 %v2162, %v2163
    %v2165 = vrot.slane %v2164, 1
    %v2166 = vmax.f32 %v2164, %v2165
    %v2167 = vmax.f32 %v1871, %v1879
    %v2168 = vmax.f32 %v2167, %v1887
    %v2169 = vmax.f32 %v2168, %v1895
    %v2170 = vmax.f32 %v2169, %v1903
    %v2171 = vmax.f32 %v2170, %v1911
    %v2172 = vmax.f32 %v2171, %v1919
    %v2173 = vmax.f32 %v2172, %v1927
    %v2174 = vmax.f32 %v2173, %v1935
    %v2175 = vmax.f32 %v2174, %v1943
    %v2176 = vmax.f32 %v2175, %v1951
    %v2177 = vmax.f32 %v2176, %v1959
    %v2178 = vmax.f32 %v2177, %v1967
    %v2179 = vmax.f32 %v2178, %v1975
    %v2180 = vmax.f32 %v2179, %v1983
    %v2181 = vmax.f32 %v2180, %v1991
    %v2182 = vrot.slane %v2181, 4
    %v2183 = vmax.f32 %v2181, %v2182
    %v2184 = vrot.slane %v2183, 2
    %v2185 = vmax.f32 %v2183, %v2184
    %v2186 = vrot.slane %v2185, 1
    %v2187 = vmax.f32 %v2185, %v2186
    %v2188 = vmax.f32 %v1872, %v1880
    %v2189 = vmax.f32 %v2188, %v1888
    %v2190 = vmax.f32 %v2189, %v1896
    %v2191 = vmax.f32 %v2190, %v1904
    %v2192 = vmax.f32 %v2191, %v1912
    %v2193 = vmax.f32 %v2192, %v1920
    %v2194 = vmax.f32 %v2193, %v1928
    %v2195 = vmax.f32 %v2194, %v1936
    %v2196 = vmax.f32 %v2195, %v1944
    %v2197 = vmax.f32 %v2196, %v1952
    %v2198 = vmax.f32 %v2197, %v1960
    %v2199 = vmax.f32 %v2198, %v1968
    %v2200 = vmax.f32 %v2199, %v1976
    %v2201 = vmax.f32 %v2200, %v1984
    %v2202 = vmax.f32 %v2201, %v1992
    %v2203 = vrot.slane %v2202, 4
    %v2204 = vmax.f32 %v2202, %v2203
    %v2205 = vrot.slane %v2204, 2
    %v2206 = vmax.f32 %v2204, %v2205
    %v2207 = vrot.slane %v2206, 1
    %v2208 = vmax.f32 %v2206, %v2207
    %v2209 = vmax.f32 %v1873, %v1881
    %v2210 = vmax.f32 %v2209, %v1889
    %v2211 = vmax.f32 %v2210, %v1897
    %v2212 = vmax.f32 %v2211, %v1905
    %v2213 = vmax.f32 %v2212, %v1913
    %v2214 = vmax.f32 %v2213, %v1921
    %v2215 = vmax.f32 %v2214, %v1929
    %v2216 = vmax.f32 %v2215, %v1937
    %v2217 = vmax.f32 %v2216, %v1945
    %v2218 = vmax.f32 %v2217, %v1953
    %v2219 = vmax.f32 %v2218, %v1961
    %v2220 = vmax.f32 %v2219, %v1969
    %v2221 = vmax.f32 %v2220, %v1977
    %v2222 = vmax.f32 %v2221, %v1985
    %v2223 = vmax.f32 %v2222, %v1993
    %v2224 = vrot.slane %v2223, 4
    %v2225 = vmax.f32 %v2223, %v2224
    %v2226 = vrot.slane %v2225, 2
    %v2227 = vmax.f32 %v2225, %v2226
    %v2228 = vrot.slane %v2227, 1
    %v2229 = vmax.f32 %v2227, %v2228
    %v2230 = vmax.f32 %v1874, %v1882
    %v2231 = vmax.f32 %v2230, %v1890
    %v2232 = vmax.f32 %v2231, %v1898
    %v2233 = vmax.f32 %v2232, %v1906
    %v2234 = vmax.f32 %v2233, %v1914
    %v2235 = vmax.f32 %v2234, %v1922
    %v2236 = vmax.f32 %v2235, %v1930
    %v2237 = vmax.f32 %v2236, %v1938
    %v2238 = vmax.f32 %v2237, %v1946
    %v2239 = vmax.f32 %v2238, %v1954
    %v2240 = vmax.f32 %v2239, %v1962
    %v2241 = vmax.f32 %v2240, %v1970
    %v2242 = vmax.f32 %v2241, %v1978
    %v2243 = vmax.f32 %v2242, %v1986
    %v2244 = vmax.f32 %v2243, %v1994
    %v2245 = vrot.slane %v2244, 4
    %v2246 = vmax.f32 %v2244, %v2245
    %v2247 = vrot.slane %v2246, 2
    %v2248 = vmax.f32 %v2246, %v2247
    %v2249 = vrot.slane %v2248, 1
    %v2250 = vmax.f32 %v2248, %v2249
    %v2251 = vmax.f32 %v1875, %v1883
    %v2252 = vmax.f32 %v2251, %v1891
    %v2253 = vmax.f32 %v2252, %v1899
    %v2254 = vmax.f32 %v2253, %v1907
    %v2255 = vmax.f32 %v2254, %v1915
    %v2256 = vmax.f32 %v2255, %v1923
    %v2257 = vmax.f32 %v2256, %v1931
    %v2258 = vmax.f32 %v2257, %v1939
    %v2259 = vmax.f32 %v2258, %v1947
    %v2260 = vmax.f32 %v2259, %v1955
    %v2261 = vmax.f32 %v2260, %v1963
    %v2262 = vmax.f32 %v2261, %v1971
    %v2263 = vmax.f32 %v2262, %v1979
    %v2264 = vmax.f32 %v2263, %v1987
    %v2265 = vmax.f32 %v2264, %v1995
    %v2266 = vrot.slane %v2265, 4
    %v2267 = vmax.f32 %v2265, %v2266
    %v2268 = vrot.slane %v2267, 2
    %v2269 = vmax.f32 %v2267, %v2268
    %v2270 = vrot.slane %v2269, 1
    %v2271 = vmax.f32 %v2269, %v2270
    %v2272 = vmax.f32 %v1876, %v1884
    %v2273 = vmax.f32 %v2272, %v1892
    %v2274 = vmax.f32 %v2273, %v1900
    %v2275 = vmax.f32 %v2274, %v1908
    %v2276 = vmax.f32 %v2275, %v1916
    %v2277 = vmax.f32 %v2276, %v1924
    %v2278 = vmax.f32 %v2277, %v1932
    %v2279 = vmax.f32 %v2278, %v1940
    %v2280 = vmax.f32 %v2279, %v1948
    %v2281 = vmax.f32 %v2280, %v1956
    %v2282 = vmax.f32 %v2281, %v1964
    %v2283 = vmax.f32 %v2282, %v1972
    %v2284 = vmax.f32 %v2283, %v1980
    %v2285 = vmax.f32 %v2284, %v1988
    %v2286 = vmax.f32 %v2285, %v1996
    %v2287 = vrot.slane %v2286, 4
    %v2288 = vmax.f32 %v2286, %v2287
    %v2289 = vrot.slane %v2288, 2
    %v2290 = vmax.f32 %v2288, %v2289
    %v2291 = vrot.slane %v2290, 1
    %v2292 = vmax.f32 %v2290, %v2291
    %v2293 = vmax.f32 %v1877, %v1885
    %v2294 = vmax.f32 %v2293, %v1893
    %v2295 = vmax.f32 %v2294, %v1901
    %v2296 = vmax.f32 %v2295, %v1909
    %v2297 = vmax.f32 %v2296, %v1917
    %v2298 = vmax.f32 %v2297, %v1925
    %v2299 = vmax.f32 %v2298, %v1933
    %v2300 = vmax.f32 %v2299, %v1941
    %v2301 = vmax.f32 %v2300, %v1949
    %v2302 = vmax.f32 %v2301, %v1957
    %v2303 = vmax.f32 %v2302, %v1965
    %v2304 = vmax.f32 %v2303, %v1973
    %v2305 = vmax.f32 %v2304, %v1981
    %v2306 = vmax.f32 %v2305, %v1989
    %v2307 = vmax.f32 %v2306, %v1997
    %v2308 = vrot.slane %v2307, 4
    %v2309 = vmax.f32 %v2307, %v2308
    %v2310 = vrot.slane %v2309, 2
    %v2311 = vmax.f32 %v2309, %v2310
    %v2312 = vrot.slane %v2311, 1
    %v2313 = vmax.f32 %v2311, %v2312
    %v2314 = vmax.f32 %v1878, %v1886
    %v2315 = vmax.f32 %v2314, %v1894
    %v2316 = vmax.f32 %v2315, %v1902
    %v2317 = vmax.f32 %v2316, %v1910
    %v2318 = vmax.f32 %v2317, %v1918
    %v2319 = vmax.f32 %v2318, %v1926
    %v2320 = vmax.f32 %v2319, %v1934
    %v2321 = vmax.f32 %v2320, %v1942
    %v2322 = vmax.f32 %v2321, %v1950
    %v2323 = vmax.f32 %v2322, %v1958
    %v2324 = vmax.f32 %v2323, %v1966
    %v2325 = vmax.f32 %v2324, %v1974
    %v2326 = vmax.f32 %v2325, %v1982
    %v2327 = vmax.f32 %v2326, %v1990
    %v2328 = vmax.f32 %v2327, %v1998
    %v2329 = vrot.slane %v2328, 4
    %v2330 = vmax.f32 %v2328, %v2329
    %v2331 = vrot.slane %v2330, 2
    %v2332 = vmax.f32 %v2330, %v2331
    %v2333 = vrot.slane %v2332, 1
    %v2334 = vmax.f32 %v2332, %v2333
    %v2335 = vpack.c.bf16 %v2019, %v2019
    %v2336 = vpack.c.bf16 %v2040, %v2040
    %v2337 = vpack.c.bf16 %v2061, %v2061
    %v2338 = vpack.c.bf16 %v2082, %v2082
    %v2339 = vpack.c.bf16 %v2103, %v2103
    %v2340 = vpack.c.bf16 %v2124, %v2124
    %v2341 = vpack.c.bf16 %v2145, %v2145
    %v2342 = vpack.c.bf16 %v2166, %v2166
    %v2343 = vpack.c.bf16 %v2187, %v2187
    %v2344 = vpack.c.bf16 %v2208, %v2208
    %v2345 = vpack.c.bf16 %v2229, %v2229
    %v2346 = vpack.c.bf16 %v2250, %v2250
    %v2347 = vpack.c.bf16 %v2271, %v2271
    %v2348 = vpack.c.bf16 %v2292, %v2292
    %v2349 = vpack.c.bf16 %v2313, %v2313
    %v2350 = vpack.c.bf16 %v2334, %v2334
    %v2351 = vld [vmem:[#allocation5] sm:$0xff]
    %v2352 = vld [vmem:[#allocation5 + $0x8] sm:$0xff]
    %v2353 = vld [vmem:[#allocation5 + $0x10] sm:$0xff]
    %v2354 = vld [vmem:[#allocation5 + $0x18] sm:$0xff]
    %v2355 = vld [vmem:[#allocation5 + $0x20] sm:$0xff]
    %v2356 = vld [vmem:[#allocation5 + $0x28] sm:$0xff]
    %v2357 = vld [vmem:[#allocation5 + $0x30] sm:$0xff]
    %v2358 = vld [vmem:[#allocation5 + $0x38] sm:$0xff]
    %v2359 = vld [vmem:[#allocation5 + $0x40] sm:$0xff]
    %v2360 = vld [vmem:[#allocation5 + $0x48] sm:$0xff]
    %v2361 = vld [vmem:[#allocation5 + $0x50] sm:$0xff]
    %v2362 = vld [vmem:[#allocation5 + $0x58] sm:$0xff]
    %v2363 = vld [vmem:[#allocation5 + $0x60] sm:$0xff]
    %v2364 = vld [vmem:[#allocation5 + $0x68] sm:$0xff]
    %v2365 = vld [vmem:[#allocation5 + $0x70] sm:$0xff]
    %v2366 = vld [vmem:[#allocation5 + $0x78] sm:$0xff]
    %v2367 = vld [vmem:[#allocation5 + $0x80] sm:$0xff]
    %v2368 = vld [vmem:[#allocation5 + $0x88] sm:$0xff]
    %v2369 = vld [vmem:[#allocation5 + $0x90] sm:$0xff]
    %v2370 = vld [vmem:[#allocation5 + $0x98] sm:$0xff]
    %v2371 = vld [vmem:[#allocation5 + $0xa0] sm:$0xff]
    %v2372 = vld [vmem:[#allocation5 + $0xa8] sm:$0xff]
    %v2373 = vld [vmem:[#allocation5 + $0xb0] sm:$0xff]
    %v2374 = vld [vmem:[#allocation5 + $0xb8] sm:$0xff]
    %v2375 = vld [vmem:[#allocation5 + $0xc0] sm:$0xff]
    %v2376 = vld [vmem:[#allocation5 + $0xc8] sm:$0xff]
    %v2377 = vld [vmem:[#allocation5 + $0xd0] sm:$0xff]
    %v2378 = vld [vmem:[#allocation5 + $0xd8] sm:$0xff]
    %v2379 = vld [vmem:[#allocation5 + $0xe0] sm:$0xff]
    %v2380 = vld [vmem:[#allocation5 + $0xe8] sm:$0xff]
    %v2381 = vld [vmem:[#allocation5 + $0xf0] sm:$0xff]
    %v2382 = vld [vmem:[#allocation5 + $0xf8] sm:$0xff]
    %v2383 = vld [vmem:[#allocation5 + $0x100] sm:$0xff]
    %v2384 = vld [vmem:[#allocation5 + $0x108] sm:$0xff]
    %v2385 = vld [vmem:[#allocation5 + $0x110] sm:$0xff]
    %v2386 = vld [vmem:[#allocation5 + $0x118] sm:$0xff]
    %v2387 = vld [vmem:[#allocation5 + $0x120] sm:$0xff]
    %v2388 = vld [vmem:[#allocation5 + $0x128] sm:$0xff]
    %v2389 = vld [vmem:[#allocation5 + $0x130] sm:$0xff]
    %v2390 = vld [vmem:[#allocation5 + $0x138] sm:$0xff]
    %v2391 = vld [vmem:[#allocation5 + $0x140] sm:$0xff]
    %v2392 = vld [vmem:[#allocation5 + $0x148] sm:$0xff]
    %v2393 = vld [vmem:[#allocation5 + $0x150] sm:$0xff]
    %v2394 = vld [vmem:[#allocation5 + $0x158] sm:$0xff]
    %v2395 = vld [vmem:[#allocation5 + $0x160] sm:$0xff]
    %v2396 = vld [vmem:[#allocation5 + $0x168] sm:$0xff]
    %v2397 = vld [vmem:[#allocation5 + $0x170] sm:$0xff]
    %v2398 = vld [vmem:[#allocation5 + $0x178] sm:$0xff]
    %v2399 = vld [vmem:[#allocation5 + $0x180] sm:$0xff]
    %v2400 = vld [vmem:[#allocation5 + $0x188] sm:$0xff]
    %v2401 = vld [vmem:[#allocation5 + $0x190] sm:$0xff]
    %v2402 = vld [vmem:[#allocation5 + $0x198] sm:$0xff]
    %v2403 = vld [vmem:[#allocation5 + $0x1a0] sm:$0xff]
    %v2404 = vld [vmem:[#allocation5 + $0x1a8] sm:$0xff]
    %v2405 = vld [vmem:[#allocation5 + $0x1b0] sm:$0xff]
    %v2406 = vld [vmem:[#allocation5 + $0x1b8] sm:$0xff]
    %v2407 = vld [vmem:[#allocation5 + $0x1c0] sm:$0xff]
    %v2408 = vld [vmem:[#allocation5 + $0x1c8] sm:$0xff]
    %v2409 = vld [vmem:[#allocation5 + $0x1d0] sm:$0xff]
    %v2410 = vld [vmem:[#allocation5 + $0x1d8] sm:$0xff]
    %v2411 = vld [vmem:[#allocation5 + $0x1e0] sm:$0xff]
    %v2412 = vld [vmem:[#allocation5 + $0x1e8] sm:$0xff]
    %v2413 = vld [vmem:[#allocation5 + $0x1f0] sm:$0xff]
    %v2414 = vld [vmem:[#allocation5 + $0x1f8] sm:$0xff]
    %v2415 = vld [vmem:[#allocation5 + $0x200] sm:$0xff]
    %v2416 = vld [vmem:[#allocation5 + $0x208] sm:$0xff]
    %v2417 = vld [vmem:[#allocation5 + $0x210] sm:$0xff]
    %v2418 = vld [vmem:[#allocation5 + $0x218] sm:$0xff]
    %v2419 = vld [vmem:[#allocation5 + $0x220] sm:$0xff]
    %v2420 = vld [vmem:[#allocation5 + $0x228] sm:$0xff]
    %v2421 = vld [vmem:[#allocation5 + $0x230] sm:$0xff]
    %v2422 = vld [vmem:[#allocation5 + $0x238] sm:$0xff]
    %v2423 = vld [vmem:[#allocation5 + $0x240] sm:$0xff]
    %v2424 = vld [vmem:[#allocation5 + $0x248] sm:$0xff]
    %v2425 = vld [vmem:[#allocation5 + $0x250] sm:$0xff]
    %v2426 = vld [vmem:[#allocation5 + $0x258] sm:$0xff]
    %v2427 = vld [vmem:[#allocation5 + $0x260] sm:$0xff]
    %v2428 = vld [vmem:[#allocation5 + $0x268] sm:$0xff]
    %v2429 = vld [vmem:[#allocation5 + $0x270] sm:$0xff]
    %v2430 = vld [vmem:[#allocation5 + $0x278] sm:$0xff]
    %v2431 = vld [vmem:[#allocation5 + $0x280] sm:$0xff]
    %v2432 = vld [vmem:[#allocation5 + $0x288] sm:$0xff]
    %v2433 = vld [vmem:[#allocation5 + $0x290] sm:$0xff]
    %v2434 = vld [vmem:[#allocation5 + $0x298] sm:$0xff]
    %v2435 = vld [vmem:[#allocation5 + $0x2a0] sm:$0xff]
    %v2436 = vld [vmem:[#allocation5 + $0x2a8] sm:$0xff]
    %v2437 = vld [vmem:[#allocation5 + $0x2b0] sm:$0xff]
    %v2438 = vld [vmem:[#allocation5 + $0x2b8] sm:$0xff]
    %v2439 = vld [vmem:[#allocation5 + $0x2c0] sm:$0xff]
    %v2440 = vld [vmem:[#allocation5 + $0x2c8] sm:$0xff]
    %v2441 = vld [vmem:[#allocation5 + $0x2d0] sm:$0xff]
    %v2442 = vld [vmem:[#allocation5 + $0x2d8] sm:$0xff]
    %v2443 = vld [vmem:[#allocation5 + $0x2e0] sm:$0xff]
    %v2444 = vld [vmem:[#allocation5 + $0x2e8] sm:$0xff]
    %v2445 = vld [vmem:[#allocation5 + $0x2f0] sm:$0xff]
    %v2446 = vld [vmem:[#allocation5 + $0x2f8] sm:$0xff]
    %v2447 = vld [vmem:[#allocation5 + $0x300] sm:$0xff]
    %v2448 = vld [vmem:[#allocation5 + $0x308] sm:$0xff]
    %v2449 = vld [vmem:[#allocation5 + $0x310] sm:$0xff]
    %v2450 = vld [vmem:[#allocation5 + $0x318] sm:$0xff]
    %v2451 = vld [vmem:[#allocation5 + $0x320] sm:$0xff]
    %v2452 = vld [vmem:[#allocation5 + $0x328] sm:$0xff]
    %v2453 = vld [vmem:[#allocation5 + $0x330] sm:$0xff]
    %v2454 = vld [vmem:[#allocation5 + $0x338] sm:$0xff]
    %v2455 = vld [vmem:[#allocation5 + $0x340] sm:$0xff]
    %v2456 = vld [vmem:[#allocation5 + $0x348] sm:$0xff]
    %v2457 = vld [vmem:[#allocation5 + $0x350] sm:$0xff]
    %v2458 = vld [vmem:[#allocation5 + $0x358] sm:$0xff]
    %v2459 = vld [vmem:[#allocation5 + $0x360] sm:$0xff]
    %v2460 = vld [vmem:[#allocation5 + $0x368] sm:$0xff]
    %v2461 = vld [vmem:[#allocation5 + $0x370] sm:$0xff]
    %v2462 = vld [vmem:[#allocation5 + $0x378] sm:$0xff]
    %v2463 = vld [vmem:[#allocation5 + $0x380] sm:$0xff]
    %v2464 = vld [vmem:[#allocation5 + $0x388] sm:$0xff]
    %v2465 = vld [vmem:[#allocation5 + $0x390] sm:$0xff]
    %v2466 = vld [vmem:[#allocation5 + $0x398] sm:$0xff]
    %v2467 = vld [vmem:[#allocation5 + $0x3a0] sm:$0xff]
    %v2468 = vld [vmem:[#allocation5 + $0x3a8] sm:$0xff]
    %v2469 = vld [vmem:[#allocation5 + $0x3b0] sm:$0xff]
    %v2470 = vld [vmem:[#allocation5 + $0x3b8] sm:$0xff]
    %v2471 = vld [vmem:[#allocation5 + $0x3c0] sm:$0xff]
    %v2472 = vld [vmem:[#allocation5 + $0x3c8] sm:$0xff]
    %v2473 = vld [vmem:[#allocation5 + $0x3d0] sm:$0xff]
    %v2474 = vld [vmem:[#allocation5 + $0x3d8] sm:$0xff]
    %v2475 = vld [vmem:[#allocation5 + $0x3e0] sm:$0xff]
    %v2476 = vld [vmem:[#allocation5 + $0x3e8] sm:$0xff]
    %v2477 = vld [vmem:[#allocation5 + $0x3f0] sm:$0xff]
    %v2478 = vld [vmem:[#allocation5 + $0x3f8] sm:$0xff]
    %v2479 = vld [vmem:[#allocation5 + $0x400] sm:$0xff]
    %v2480 = vld [vmem:[#allocation5 + $0x408] sm:$0xff]
    %v2481 = vld [vmem:[#allocation5 + $0x410] sm:$0xff]
    %v2482 = vld [vmem:[#allocation5 + $0x418] sm:$0xff]
    %v2483 = vld [vmem:[#allocation5 + $0x420] sm:$0xff]
    %v2484 = vld [vmem:[#allocation5 + $0x428] sm:$0xff]
    %v2485 = vld [vmem:[#allocation5 + $0x430] sm:$0xff]
    %v2486 = vld [vmem:[#allocation5 + $0x438] sm:$0xff]
    %v2487 = vld [vmem:[#allocation5 + $0x440] sm:$0xff]
    %v2488 = vld [vmem:[#allocation5 + $0x448] sm:$0xff]
    %v2489 = vld [vmem:[#allocation5 + $0x450] sm:$0xff]
    %v2490 = vld [vmem:[#allocation5 + $0x458] sm:$0xff]
    %v2491 = vld [vmem:[#allocation5 + $0x460] sm:$0xff]
    %v2492 = vld [vmem:[#allocation5 + $0x468] sm:$0xff]
    %v2493 = vld [vmem:[#allocation5 + $0x470] sm:$0xff]
    %v2494 = vld [vmem:[#allocation5 + $0x478] sm:$0xff]
    %v2495 = vld [vmem:[#allocation5 + $0x480] sm:$0xff]
    %v2496 = vld [vmem:[#allocation5 + $0x488] sm:$0xff]
    %v2497 = vld [vmem:[#allocation5 + $0x490] sm:$0xff]
    %v2498 = vld [vmem:[#allocation5 + $0x498] sm:$0xff]
    %v2499 = vld [vmem:[#allocation5 + $0x4a0] sm:$0xff]
    %v2500 = vld [vmem:[#allocation5 + $0x4a8] sm:$0xff]
    %v2501 = vld [vmem:[#allocation5 + $0x4b0] sm:$0xff]
    %v2502 = vld [vmem:[#allocation5 + $0x4b8] sm:$0xff]
    %v2503 = vld [vmem:[#allocation5 + $0x4c0] sm:$0xff]
    %v2504 = vld [vmem:[#allocation5 + $0x4c8] sm:$0xff]
    %v2505 = vld [vmem:[#allocation5 + $0x4d0] sm:$0xff]
    %v2506 = vld [vmem:[#allocation5 + $0x4d8] sm:$0xff]
    %v2507 = vld [vmem:[#allocation5 + $0x4e0] sm:$0xff]
    %v2508 = vld [vmem:[#allocation5 + $0x4e8] sm:$0xff]
    %v2509 = vld [vmem:[#allocation5 + $0x4f0] sm:$0xff]
    %v2510 = vld [vmem:[#allocation5 + $0x4f8] sm:$0xff]
    %v2511 = vld [vmem:[#allocation5 + $0x500] sm:$0xff]
    %v2512 = vld [vmem:[#allocation5 + $0x508] sm:$0xff]
    %v2513 = vld [vmem:[#allocation5 + $0x510] sm:$0xff]
    %v2514 = vld [vmem:[#allocation5 + $0x518] sm:$0xff]
    %v2515 = vld [vmem:[#allocation5 + $0x520] sm:$0xff]
    %v2516 = vld [vmem:[#allocation5 + $0x528] sm:$0xff]
    %v2517 = vld [vmem:[#allocation5 + $0x530] sm:$0xff]
    %v2518 = vld [vmem:[#allocation5 + $0x538] sm:$0xff]
    %v2519 = vld [vmem:[#allocation5 + $0x540] sm:$0xff]
    %v2520 = vld [vmem:[#allocation5 + $0x548] sm:$0xff]
    %v2521 = vld [vmem:[#allocation5 + $0x550] sm:$0xff]
    %v2522 = vld [vmem:[#allocation5 + $0x558] sm:$0xff]
    %v2523 = vld [vmem:[#allocation5 + $0x560] sm:$0xff]
    %v2524 = vld [vmem:[#allocation5 + $0x568] sm:$0xff]
    %v2525 = vld [vmem:[#allocation5 + $0x570] sm:$0xff]
    %v2526 = vld [vmem:[#allocation5 + $0x578] sm:$0xff]
    %v2527 = vld [vmem:[#allocation5 + $0x580] sm:$0xff]
    %v2528 = vld [vmem:[#allocation5 + $0x588] sm:$0xff]
    %v2529 = vld [vmem:[#allocation5 + $0x590] sm:$0xff]
    %v2530 = vld [vmem:[#allocation5 + $0x598] sm:$0xff]
    %v2531 = vld [vmem:[#allocation5 + $0x5a0] sm:$0xff]
    %v2532 = vld [vmem:[#allocation5 + $0x5a8] sm:$0xff]
    %v2533 = vld [vmem:[#allocation5 + $0x5b0] sm:$0xff]
    %v2534 = vld [vmem:[#allocation5 + $0x5b8] sm:$0xff]
    %v2535 = vld [vmem:[#allocation5 + $0x5c0] sm:$0xff]
    %v2536 = vld [vmem:[#allocation5 + $0x5c8] sm:$0xff]
    %v2537 = vld [vmem:[#allocation5 + $0x5d0] sm:$0xff]
    %v2538 = vld [vmem:[#allocation5 + $0x5d8] sm:$0xff]
    %v2539 = vld [vmem:[#allocation5 + $0x5e0] sm:$0xff]
    %v2540 = vld [vmem:[#allocation5 + $0x5e8] sm:$0xff]
    %v2541 = vld [vmem:[#allocation5 + $0x5f0] sm:$0xff]
    %v2542 = vld [vmem:[#allocation5 + $0x5f8] sm:$0xff]
    %v2543 = vld [vmem:[#allocation5 + $0x600] sm:$0xff]
    %v2544 = vld [vmem:[#allocation5 + $0x608] sm:$0xff]
    %v2545 = vld [vmem:[#allocation5 + $0x610] sm:$0xff]
    %v2546 = vld [vmem:[#allocation5 + $0x618] sm:$0xff]
    %v2547 = vld [vmem:[#allocation5 + $0x620] sm:$0xff]
    %v2548 = vld [vmem:[#allocation5 + $0x628] sm:$0xff]
    %v2549 = vld [vmem:[#allocation5 + $0x630] sm:$0xff]
    %v2550 = vld [vmem:[#allocation5 + $0x638] sm:$0xff]
    %v2551 = vld [vmem:[#allocation5 + $0x640] sm:$0xff]
    %v2552 = vld [vmem:[#allocation5 + $0x648] sm:$0xff]
    %v2553 = vld [vmem:[#allocation5 + $0x650] sm:$0xff]
    %v2554 = vld [vmem:[#allocation5 + $0x658] sm:$0xff]
    %v2555 = vld [vmem:[#allocation5 + $0x660] sm:$0xff]
    %v2556 = vld [vmem:[#allocation5 + $0x668] sm:$0xff]
    %v2557 = vld [vmem:[#allocation5 + $0x670] sm:$0xff]
    %v2558 = vld [vmem:[#allocation5 + $0x678] sm:$0xff]
    %v2559 = vld [vmem:[#allocation5 + $0x680] sm:$0xff]
    %v2560 = vld [vmem:[#allocation5 + $0x688] sm:$0xff]
    %v2561 = vld [vmem:[#allocation5 + $0x690] sm:$0xff]
    %v2562 = vld [vmem:[#allocation5 + $0x698] sm:$0xff]
    %v2563 = vld [vmem:[#allocation5 + $0x6a0] sm:$0xff]
    %v2564 = vld [vmem:[#allocation5 + $0x6a8] sm:$0xff]
    %v2565 = vld [vmem:[#allocation5 + $0x6b0] sm:$0xff]
    %v2566 = vld [vmem:[#allocation5 + $0x6b8] sm:$0xff]
    %v2567 = vld [vmem:[#allocation5 + $0x6c0] sm:$0xff]
    %v2568 = vld [vmem:[#allocation5 + $0x6c8] sm:$0xff]
    %v2569 = vld [vmem:[#allocation5 + $0x6d0] sm:$0xff]
    %v2570 = vld [vmem:[#allocation5 + $0x6d8] sm:$0xff]
    %v2571 = vld [vmem:[#allocation5 + $0x6e0] sm:$0xff]
    %v2572 = vld [vmem:[#allocation5 + $0x6e8] sm:$0xff]
    %v2573 = vld [vmem:[#allocation5 + $0x6f0] sm:$0xff]
    %v2574 = vld [vmem:[#allocation5 + $0x6f8] sm:$0xff]
    %v2575 = vld [vmem:[#allocation5 + $0x700] sm:$0xff]
    %v2576 = vld [vmem:[#allocation5 + $0x708] sm:$0xff]
    %v2577 = vld [vmem:[#allocation5 + $0x710] sm:$0xff]
    %v2578 = vld [vmem:[#allocation5 + $0x718] sm:$0xff]
    %v2579 = vld [vmem:[#allocation5 + $0x720] sm:$0xff]
    %v2580 = vld [vmem:[#allocation5 + $0x728] sm:$0xff]
    %v2581 = vld [vmem:[#allocation5 + $0x730] sm:$0xff]
    %v2582 = vld [vmem:[#allocation5 + $0x738] sm:$0xff]
    %v2583 = vld [vmem:[#allocation5 + $0x740] sm:$0xff]
    %v2584 = vld [vmem:[#allocation5 + $0x748] sm:$0xff]
    %v2585 = vld [vmem:[#allocation5 + $0x750] sm:$0xff]
    %v2586 = vld [vmem:[#allocation5 + $0x758] sm:$0xff]
    %v2587 = vld [vmem:[#allocation5 + $0x760] sm:$0xff]
    %v2588 = vld [vmem:[#allocation5 + $0x768] sm:$0xff]
    %v2589 = vld [vmem:[#allocation5 + $0x770] sm:$0xff]
    %v2590 = vld [vmem:[#allocation5 + $0x778] sm:$0xff]
    %v2591 = vld [vmem:[#allocation5 + $0x780] sm:$0xff]
    %v2592 = vld [vmem:[#allocation5 + $0x788] sm:$0xff]
    %v2593 = vld [vmem:[#allocation5 + $0x790] sm:$0xff]
    %v2594 = vld [vmem:[#allocation5 + $0x798] sm:$0xff]
    %v2595 = vld [vmem:[#allocation5 + $0x7a0] sm:$0xff]
    %v2596 = vld [vmem:[#allocation5 + $0x7a8] sm:$0xff]
    %v2597 = vld [vmem:[#allocation5 + $0x7b0] sm:$0xff]
    %v2598 = vld [vmem:[#allocation5 + $0x7b8] sm:$0xff]
    %v2599 = vld [vmem:[#allocation5 + $0x7c0] sm:$0xff]
    %v2600 = vld [vmem:[#allocation5 + $0x7c8] sm:$0xff]
    %v2601 = vld [vmem:[#allocation5 + $0x7d0] sm:$0xff]
    %v2602 = vld [vmem:[#allocation5 + $0x7d8] sm:$0xff]
    %v2603 = vld [vmem:[#allocation5 + $0x7e0] sm:$0xff]
    %v2604 = vld [vmem:[#allocation5 + $0x7e8] sm:$0xff]
    %v2605 = vld [vmem:[#allocation5 + $0x7f0] sm:$0xff]
    %v2606 = vld [vmem:[#allocation5 + $0x7f8] sm:$0xff]
    %v2607 = vld [vmem:[%s8] sm:$0xf]
    %v2609 = vperm.slane %v2607, 0
    %v2610 = vperm.slane %v2607, 1
    %v2611 = vperm.slane %v2607, 2
    %v2612 = vperm.slane %v2607, 3
    %v2633 = vunpack.c.l.b16 %v2335
    %v2634 = vunpack.c.l.b16 %v2336
    %v2635 = vunpack.c.l.b16 %v2337
    %v2636 = vunpack.c.l.b16 %v2338
    %v2637 = vunpack.c.l.b16 %v2339
    %v2638 = vunpack.c.l.b16 %v2340
    %v2639 = vunpack.c.l.b16 %v2341
    %v2640 = vunpack.c.l.b16 %v2342
    %v2641 = vunpack.c.l.b16 %v2343
    %v2642 = vunpack.c.l.b16 %v2344
    %v2643 = vunpack.c.l.b16 %v2345
    %v2644 = vunpack.c.l.b16 %v2346
    %v2645 = vunpack.c.l.b16 %v2347
    %v2646 = vunpack.c.l.b16 %v2348
    %v2647 = vunpack.c.l.b16 %v2349
    %v2648 = vunpack.c.l.b16 %v2350
    %vm2649 = vcmask 1041409
    %v2650 = vsel %vm2649, %v2641, %v2633
    %v2651 = vsel %vm2649, %v2642, %v2634
    %v2652 = vsel %vm2649, %v2643, %v2635
    %v2653 = vsel %vm2649, %v2644, %v2636
    %v2654 = vsel %vm2649, %v2645, %v2637
    %v2655 = vsel %vm2649, %v2646, %v2638
    %v2656 = vsel %vm2649, %v2647, %v2639
    %v2657 = vsel %vm2649, %v2648, %v2640
    %v2658 = vpack.c.b16 %v2650, %v2650
    %v2659 = vpack.c.b16 %v2651, %v2651
    %v2660 = vpack.c.b16 %v2652, %v2652
    %v2661 = vpack.c.b16 %v2653, %v2653
    %v2662 = vpack.c.b16 %v2654, %v2654
    %v2663 = vpack.c.b16 %v2655, %v2655
    %v2664 = vpack.c.b16 %v2656, %v2656
    %v2665 = vpack.c.b16 %v2657, %v2657
    %v2930 = vunpack.c.l.b16 %v2351
    %v2931 = vunpack.c.h.b16 %v2351
    %v2932 = vunpack.c.l.b16 %v2352
    %v2933 = vunpack.c.h.b16 %v2352
    %v2934 = vunpack.c.l.b16 %v2353
    %v2935 = vunpack.c.h.b16 %v2353
    %v2936 = vunpack.c.l.b16 %v2354
    %v2937 = vunpack.c.h.b16 %v2354
    %v2938 = vunpack.c.l.b16 %v2355
    %v2939 = vunpack.c.h.b16 %v2355
    %v2940 = vunpack.c.l.b16 %v2356
    %v2941 = vunpack.c.h.b16 %v2356
    %v2942 = vunpack.c.l.b16 %v2357
    %v2943 = vunpack.c.h.b16 %v2357
    %v2944 = vunpack.c.l.b16 %v2358
    %v2945 = vunpack.c.h.b16 %v2358
    %v2946 = vunpack.c.l.b16 %v2359
    %v2947 = vunpack.c.h.b16 %v2359
    %v2948 = vunpack.c.l.b16 %v2360
    %v2949 = vunpack.c.h.b16 %v2360
    %v2950 = vunpack.c.l.b16 %v2361
    %v2951 = vunpack.c.h.b16 %v2361
    %v2952 = vunpack.c.l.b16 %v2362
    %v2953 = vunpack.c.h.b16 %v2362
    %v2954 = vunpack.c.l.b16 %v2363
    %v2955 = vunpack.c.h.b16 %v2363
    %v2956 = vunpack.c.l.b16 %v2364
    %v2957 = vunpack.c.h.b16 %v2364
    %v2958 = vunpack.c.l.b16 %v2365
    %v2959 = vunpack.c.h.b16 %v2365
    %v2960 = vunpack.c.l.b16 %v2366
    %v2961 = vunpack.c.h.b16 %v2366
    %v2962 = vunpack.c.l.b16 %v2367
    %v2963 = vunpack.c.h.b16 %v2367
    %v2964 = vunpack.c.l.b16 %v2368
    %v2965 = vunpack.c.h.b16 %v2368
    %v2966 = vunpack.c.l.b16 %v2369
    %v2967 = vunpack.c.h.b16 %v2369
    %v2968 = vunpack.c.l.b16 %v2370
    %v2969 = vunpack.c.h.b16 %v2370
    %v2970 = vunpack.c.l.b16 %v2371
    %v2971 = vunpack.c.h.b16 %v2371
    %v2972 = vunpack.c.l.b16 %v2372
    %v2973 = vunpack.c.h.b16 %v2372
    %v2974 = vunpack.c.l.b16 %v2373
    %v2975 = vunpack.c.h.b16 %v2373
    %v2976 = vunpack.c.l.b16 %v2374
    %v2977 = vunpack.c.h.b16 %v2374
    %v2978 = vunpack.c.l.b16 %v2375
    %v2979 = vunpack.c.h.b16 %v2375
    %v2980 = vunpack.c.l.b16 %v2376
    %v2981 = vunpack.c.h.b16 %v2376
    %v2982 = vunpack.c.l.b16 %v2377
    %v2983 = vunpack.c.h.b16 %v2377
    %v2984 = vunpack.c.l.b16 %v2378
    %v2985 = vunpack.c.h.b16 %v2378
    %v2986 = vunpack.c.l.b16 %v2379
    %v2987 = vunpack.c.h.b16 %v2379
    %v2988 = vunpack.c.l.b16 %v2380
    %v2989 = vunpack.c.h.b16 %v2380
    %v2990 = vunpack.c.l.b16 %v2381
    %v2991 = vunpack.c.h.b16 %v2381
    %v2992 = vunpack.c.l.b16 %v2382
    %v2993 = vunpack.c.h.b16 %v2382
    %v2994 = vunpack.c.l.b16 %v2383
    %v2995 = vunpack.c.h.b16 %v2383
    %v2996 = vunpack.c.l.b16 %v2384
    %v2997 = vunpack.c.h.b16 %v2384
    %v2998 = vunpack.c.l.b16 %v2385
    %v2999 = vunpack.c.h.b16 %v2385
    %v3000 = vunpack.c.l.b16 %v2386
    %v3001 = vunpack.c.h.b16 %v2386
    %v3002 = vunpack.c.l.b16 %v2387
    %v3003 = vunpack.c.h.b16 %v2387
    %v3004 = vunpack.c.l.b16 %v2388
    %v3005 = vunpack.c.h.b16 %v2388
    %v3006 = vunpack.c.l.b16 %v2389
    %v3007 = vunpack.c.h.b16 %v2389
    %v3008 = vunpack.c.l.b16 %v2390
    %v3009 = vunpack.c.h.b16 %v2390
    %v3010 = vunpack.c.l.b16 %v2391
    %v3011 = vunpack.c.h.b16 %v2391
    %v3012 = vunpack.c.l.b16 %v2392
    %v3013 = vunpack.c.h.b16 %v2392
    %v3014 = vunpack.c.l.b16 %v2393
    %v3015 = vunpack.c.h.b16 %v2393
    %v3016 = vunpack.c.l.b16 %v2394
    %v3017 = vunpack.c.h.b16 %v2394
    %v3018 = vunpack.c.l.b16 %v2395
    %v3019 = vunpack.c.h.b16 %v2395
    %v3020 = vunpack.c.l.b16 %v2396
    %v3021 = vunpack.c.h.b16 %v2396
    %v3022 = vunpack.c.l.b16 %v2397
    %v3023 = vunpack.c.h.b16 %v2397
    %v3024 = vunpack.c.l.b16 %v2398
    %v3025 = vunpack.c.h.b16 %v2398
    %v3026 = vunpack.c.l.b16 %v2399
    %v3027 = vunpack.c.h.b16 %v2399
    %v3028 = vunpack.c.l.b16 %v2400
    %v3029 = vunpack.c.h.b16 %v2400
    %v3030 = vunpack.c.l.b16 %v2401
    %v3031 = vunpack.c.h.b16 %v2401
    %v3032 = vunpack.c.l.b16 %v2402
    %v3033 = vunpack.c.h.b16 %v2402
    %v3034 = vunpack.c.l.b16 %v2403
    %v3035 = vunpack.c.h.b16 %v2403
    %v3036 = vunpack.c.l.b16 %v2404
    %v3037 = vunpack.c.h.b16 %v2404
    %v3038 = vunpack.c.l.b16 %v2405
    %v3039 = vunpack.c.h.b16 %v2405
    %v3040 = vunpack.c.l.b16 %v2406
    %v3041 = vunpack.c.h.b16 %v2406
    %v3042 = vunpack.c.l.b16 %v2407
    %v3043 = vunpack.c.h.b16 %v2407
    %v3044 = vunpack.c.l.b16 %v2408
    %v3045 = vunpack.c.h.b16 %v2408
    %v3046 = vunpack.c.l.b16 %v2409
    %v3047 = vunpack.c.h.b16 %v2409
    %v3048 = vunpack.c.l.b16 %v2410
    %v3049 = vunpack.c.h.b16 %v2410
    %v3050 = vunpack.c.l.b16 %v2411
    %v3051 = vunpack.c.h.b16 %v2411
    %v3052 = vunpack.c.l.b16 %v2412
    %v3053 = vunpack.c.h.b16 %v2412
    %v3054 = vunpack.c.l.b16 %v2413
    %v3055 = vunpack.c.h.b16 %v2413
    %v3056 = vunpack.c.l.b16 %v2414
    %v3057 = vunpack.c.h.b16 %v2414
    %v3058 = vunpack.c.l.b16 %v2415
    %v3059 = vunpack.c.h.b16 %v2415
    %v3060 = vunpack.c.l.b16 %v2416
    %v3061 = vunpack.c.h.b16 %v2416
    %v3062 = vunpack.c.l.b16 %v2417
    %v3063 = vunpack.c.h.b16 %v2417
    %v3064 = vunpack.c.l.b16 %v2418
    %v3065 = vunpack.c.h.b16 %v2418
    %v3066 = vunpack.c.l.b16 %v2419
    %v3067 = vunpack.c.h.b16 %v2419
    %v3068 = vunpack.c.l.b16 %v2420
    %v3069 = vunpack.c.h.b16 %v2420
    %v3070 = vunpack.c.l.b16 %v2421
    %v3071 = vunpack.c.h.b16 %v2421
    %v3072 = vunpack.c.l.b16 %v2422
    %v3073 = vunpack.c.h.b16 %v2422
    %v3074 = vunpack.c.l.b16 %v2423
    %v3075 = vunpack.c.h.b16 %v2423
    %v3076 = vunpack.c.l.b16 %v2424
    %v3077 = vunpack.c.h.b16 %v2424
    %v3078 = vunpack.c.l.b16 %v2425
    %v3079 = vunpack.c.h.b16 %v2425
    %v3080 = vunpack.c.l.b16 %v2426
    %v3081 = vunpack.c.h.b16 %v2426
    %v3082 = vunpack.c.l.b16 %v2427
    %v3083 = vunpack.c.h.b16 %v2427
    %v3084 = vunpack.c.l.b16 %v2428
    %v3085 = vunpack.c.h.b16 %v2428
    %v3086 = vunpack.c.l.b16 %v2429
    %v3087 = vunpack.c.h.b16 %v2429
    %v3088 = vunpack.c.l.b16 %v2430
    %v3089 = vunpack.c.h.b16 %v2430
    %v3090 = vunpack.c.l.b16 %v2431
    %v3091 = vunpack.c.h.b16 %v2431
    %v3092 = vunpack.c.l.b16 %v2432
    %v3093 = vunpack.c.h.b16 %v2432
    %v3094 = vunpack.c.l.b16 %v2433
    %v3095 = vunpack.c.h.b16 %v2433
    %v3096 = vunpack.c.l.b16 %v2434
    %v3097 = vunpack.c.h.b16 %v2434
    %v3098 = vunpack.c.l.b16 %v2435
    %v3099 = vunpack.c.h.b16 %v2435
    %v3100 = vunpack.c.l.b16 %v2436
    %v3101 = vunpack.c.h.b16 %v2436
    %v3102 = vunpack.c.l.b16 %v2437
    %v3103 = vunpack.c.h.b16 %v2437
    %v3104 = vunpack.c.l.b16 %v2438
    %v3105 = vunpack.c.h.b16 %v2438
    %v3106 = vunpack.c.l.b16 %v2439
    %v3107 = vunpack.c.h.b16 %v2439
    %v3108 = vunpack.c.l.b16 %v2440
    %v3109 = vunpack.c.h.b16 %v2440
    %v3110 = vunpack.c.l.b16 %v2441
    %v3111 = vunpack.c.h.b16 %v2441
    %v3112 = vunpack.c.l.b16 %v2442
    %v3113 = vunpack.c.h.b16 %v2442
    %v3114 = vunpack.c.l.b16 %v2443
    %v3115 = vunpack.c.h.b16 %v2443
    %v3116 = vunpack.c.l.b16 %v2444
    %v3117 = vunpack.c.h.b16 %v2444
    %v3118 = vunpack.c.l.b16 %v2445
    %v3119 = vunpack.c.h.b16 %v2445
    %v3120 = vunpack.c.l.b16 %v2446
    %v3121 = vunpack.c.h.b16 %v2446
    %v3122 = vunpack.c.l.b16 %v2447
    %v3123 = vunpack.c.h.b16 %v2447
    %v3124 = vunpack.c.l.b16 %v2448
    %v3125 = vunpack.c.h.b16 %v2448
    %v3126 = vunpack.c.l.b16 %v2449
    %v3127 = vunpack.c.h.b16 %v2449
    %v3128 = vunpack.c.l.b16 %v2450
    %v3129 = vunpack.c.h.b16 %v2450
    %v3130 = vunpack.c.l.b16 %v2451
    %v3131 = vunpack.c.h.b16 %v2451
    %v3132 = vunpack.c.l.b16 %v2452
    %v3133 = vunpack.c.h.b16 %v2452
    %v3134 = vunpack.c.l.b16 %v2453
    %v3135 = vunpack.c.h.b16 %v2453
    %v3136 = vunpack.c.l.b16 %v2454
    %v3137 = vunpack.c.h.b16 %v2454
    %v3138 = vunpack.c.l.b16 %v2455
    %v3139 = vunpack.c.h.b16 %v2455
    %v3140 = vunpack.c.l.b16 %v2456
    %v3141 = vunpack.c.h.b16 %v2456
    %v3142 = vunpack.c.l.b16 %v2457
    %v3143 = vunpack.c.h.b16 %v2457
    %v3144 = vunpack.c.l.b16 %v2458
    %v3145 = vunpack.c.h.b16 %v2458
    %v3146 = vunpack.c.l.b16 %v2459
    %v3147 = vunpack.c.h.b16 %v2459
    %v3148 = vunpack.c.l.b16 %v2460
    %v3149 = vunpack.c.h.b16 %v2460
    %v3150 = vunpack.c.l.b16 %v2461
    %v3151 = vunpack.c.h.b16 %v2461
    %v3152 = vunpack.c.l.b16 %v2462
    %v3153 = vunpack.c.h.b16 %v2462
    %v3154 = vunpack.c.l.b16 %v2463
    %v3155 = vunpack.c.h.b16 %v2463
    %v3156 = vunpack.c.l.b16 %v2464
    %v3157 = vunpack.c.h.b16 %v2464
    %v3158 = vunpack.c.l.b16 %v2465
    %v3159 = vunpack.c.h.b16 %v2465
    %v3160 = vunpack.c.l.b16 %v2466
    %v3161 = vunpack.c.h.b16 %v2466
    %v3162 = vunpack.c.l.b16 %v2467
    %v3163 = vunpack.c.h.b16 %v2467
    %v3164 = vunpack.c.l.b16 %v2468
    %v3165 = vunpack.c.h.b16 %v2468
    %v3166 = vunpack.c.l.b16 %v2469
    %v3167 = vunpack.c.h.b16 %v2469
    %v3168 = vunpack.c.l.b16 %v2470
    %v3169 = vunpack.c.h.b16 %v2470
    %v3170 = vunpack.c.l.b16 %v2471
    %v3171 = vunpack.c.h.b16 %v2471
    %v3172 = vunpack.c.l.b16 %v2472
    %v3173 = vunpack.c.h.b16 %v2472
    %v3174 = vunpack.c.l.b16 %v2473
    %v3175 = vunpack.c.h.b16 %v2473
    %v3176 = vunpack.c.l.b16 %v2474
    %v3177 = vunpack.c.h.b16 %v2474
    %v3178 = vunpack.c.l.b16 %v2475
    %v3179 = vunpack.c.h.b16 %v2475
    %v3180 = vunpack.c.l.b16 %v2476
    %v3181 = vunpack.c.h.b16 %v2476
    %v3182 = vunpack.c.l.b16 %v2477
    %v3183 = vunpack.c.h.b16 %v2477
    %v3184 = vunpack.c.l.b16 %v2478
    %v3185 = vunpack.c.h.b16 %v2478
    %v3186 = vunpack.c.l.b16 %v2479
    %v3187 = vunpack.c.h.b16 %v2479
    %v3188 = vunpack.c.l.b16 %v2480
    %v3189 = vunpack.c.h.b16 %v2480
    %v3190 = vunpack.c.l.b16 %v2481
    %v3191 = vunpack.c.h.b16 %v2481
    %v3192 = vunpack.c.l.b16 %v2482
    %v3193 = vunpack.c.h.b16 %v2482
    %v3194 = vunpack.c.l.b16 %v2483
    %v3195 = vunpack.c.h.b16 %v2483
    %v3196 = vunpack.c.l.b16 %v2484
    %v3197 = vunpack.c.h.b16 %v2484
    %v3198 = vunpack.c.l.b16 %v2485
    %v3199 = vunpack.c.h.b16 %v2485
    %v3200 = vunpack.c.l.b16 %v2486
    %v3201 = vunpack.c.h.b16 %v2486
    %v3202 = vunpack.c.l.b16 %v2487
    %v3203 = vunpack.c.h.b16 %v2487
    %v3204 = vunpack.c.l.b16 %v2488
    %v3205 = vunpack.c.h.b16 %v2488
    %v3206 = vunpack.c.l.b16 %v2489
    %v3207 = vunpack.c.h.b16 %v2489
    %v3208 = vunpack.c.l.b16 %v2490
    %v3209 = vunpack.c.h.b16 %v2490
    %v3210 = vunpack.c.l.b16 %v2491
    %v3211 = vunpack.c.h.b16 %v2491
    %v3212 = vunpack.c.l.b16 %v2492
    %v3213 = vunpack.c.h.b16 %v2492
    %v3214 = vunpack.c.l.b16 %v2493
    %v3215 = vunpack.c.h.b16 %v2493
    %v3216 = vunpack.c.l.b16 %v2494
    %v3217 = vunpack.c.h.b16 %v2494
    %v3218 = vunpack.c.l.b16 %v2495
    %v3219 = vunpack.c.h.b16 %v2495
    %v3220 = vunpack.c.l.b16 %v2496
    %v3221 = vunpack.c.h.b16 %v2496
    %v3222 = vunpack.c.l.b16 %v2497
    %v3223 = vunpack.c.h.b16 %v2497
    %v3224 = vunpack.c.l.b16 %v2498
    %v3225 = vunpack.c.h.b16 %v2498
    %v3226 = vunpack.c.l.b16 %v2499
    %v3227 = vunpack.c.h.b16 %v2499
    %v3228 = vunpack.c.l.b16 %v2500
    %v3229 = vunpack.c.h.b16 %v2500
    %v3230 = vunpack.c.l.b16 %v2501
    %v3231 = vunpack.c.h.b16 %v2501
    %v3232 = vunpack.c.l.b16 %v2502
    %v3233 = vunpack.c.h.b16 %v2502
    %v3234 = vunpack.c.l.b16 %v2503
    %v3235 = vunpack.c.h.b16 %v2503
    %v3236 = vunpack.c.l.b16 %v2504
    %v3237 = vunpack.c.h.b16 %v2504
    %v3238 = vunpack.c.l.b16 %v2505
    %v3239 = vunpack.c.h.b16 %v2505
    %v3240 = vunpack.c.l.b16 %v2506
    %v3241 = vunpack.c.h.b16 %v2506
    %v3242 = vunpack.c.l.b16 %v2507
    %v3243 = vunpack.c.h.b16 %v2507
    %v3244 = vunpack.c.l.b16 %v2508
    %v3245 = vunpack.c.h.b16 %v2508
    %v3246 = vunpack.c.l.b16 %v2509
    %v3247 = vunpack.c.h.b16 %v2509
    %v3248 = vunpack.c.l.b16 %v2510
    %v3249 = vunpack.c.h.b16 %v2510
    %v3250 = vunpack.c.l.b16 %v2511
    %v3251 = vunpack.c.h.b16 %v2511
    %v3252 = vunpack.c.l.b16 %v2512
    %v3253 = vunpack.c.h.b16 %v2512
    %v3254 = vunpack.c.l.b16 %v2513
    %v3255 = vunpack.c.h.b16 %v2513
    %v3256 = vunpack.c.l.b16 %v2514
    %v3257 = vunpack.c.h.b16 %v2514
    %v3258 = vunpack.c.l.b16 %v2515
    %v3259 = vunpack.c.h.b16 %v2515
    %v3260 = vunpack.c.l.b16 %v2516
    %v3261 = vunpack.c.h.b16 %v2516
    %v3262 = vunpack.c.l.b16 %v2517
    %v3263 = vunpack.c.h.b16 %v2517
    %v3264 = vunpack.c.l.b16 %v2518
    %v3265 = vunpack.c.h.b16 %v2518
    %v3266 = vunpack.c.l.b16 %v2519
    %v3267 = vunpack.c.h.b16 %v2519
    %v3268 = vunpack.c.l.b16 %v2520
    %v3269 = vunpack.c.h.b16 %v2520
    %v3270 = vunpack.c.l.b16 %v2521
    %v3271 = vunpack.c.h.b16 %v2521
    %v3272 = vunpack.c.l.b16 %v2522
    %v3273 = vunpack.c.h.b16 %v2522
    %v3274 = vunpack.c.l.b16 %v2523
    %v3275 = vunpack.c.h.b16 %v2523
    %v3276 = vunpack.c.l.b16 %v2524
    %v3277 = vunpack.c.h.b16 %v2524
    %v3278 = vunpack.c.l.b16 %v2525
    %v3279 = vunpack.c.h.b16 %v2525
    %v3280 = vunpack.c.l.b16 %v2526
    %v3281 = vunpack.c.h.b16 %v2526
    %v3282 = vunpack.c.l.b16 %v2527
    %v3283 = vunpack.c.h.b16 %v2527
    %v3284 = vunpack.c.l.b16 %v2528
    %v3285 = vunpack.c.h.b16 %v2528
    %v3286 = vunpack.c.l.b16 %v2529
    %v3287 = vunpack.c.h.b16 %v2529
    %v3288 = vunpack.c.l.b16 %v2530
    %v3289 = vunpack.c.h.b16 %v2530
    %v3290 = vunpack.c.l.b16 %v2531
    %v3291 = vunpack.c.h.b16 %v2531
    %v3292 = vunpack.c.l.b16 %v2532
    %v3293 = vunpack.c.h.b16 %v2532
    %v3294 = vunpack.c.l.b16 %v2533
    %v3295 = vunpack.c.h.b16 %v2533
    %v3296 = vunpack.c.l.b16 %v2534
    %v3297 = vunpack.c.h.b16 %v2534
    %v3298 = vunpack.c.l.b16 %v2535
    %v3299 = vunpack.c.h.b16 %v2535
    %v3300 = vunpack.c.l.b16 %v2536
    %v3301 = vunpack.c.h.b16 %v2536
    %v3302 = vunpack.c.l.b16 %v2537
    %v3303 = vunpack.c.h.b16 %v2537
    %v3304 = vunpack.c.l.b16 %v2538
    %v3305 = vunpack.c.h.b16 %v2538
    %v3306 = vunpack.c.l.b16 %v2539
    %v3307 = vunpack.c.h.b16 %v2539
    %v3308 = vunpack.c.l.b16 %v2540
    %v3309 = vunpack.c.h.b16 %v2540
    %v3310 = vunpack.c.l.b16 %v2541
    %v3311 = vunpack.c.h.b16 %v2541
    %v3312 = vunpack.c.l.b16 %v2542
    %v3313 = vunpack.c.h.b16 %v2542
    %v3314 = vunpack.c.l.b16 %v2543
    %v3315 = vunpack.c.h.b16 %v2543
    %v3316 = vunpack.c.l.b16 %v2544
    %v3317 = vunpack.c.h.b16 %v2544
    %v3318 = vunpack.c.l.b16 %v2545
    %v3319 = vunpack.c.h.b16 %v2545
    %v3320 = vunpack.c.l.b16 %v2546
    %v3321 = vunpack.c.h.b16 %v2546
    %v3322 = vunpack.c.l.b16 %v2547
    %v3323 = vunpack.c.h.b16 %v2547
    %v3324 = vunpack.c.l.b16 %v2548
    %v3325 = vunpack.c.h.b16 %v2548
    %v3326 = vunpack.c.l.b16 %v2549
    %v3327 = vunpack.c.h.b16 %v2549
    %v3328 = vunpack.c.l.b16 %v2550
    %v3329 = vunpack.c.h.b16 %v2550
    %v3330 = vunpack.c.l.b16 %v2551
    %v3331 = vunpack.c.h.b16 %v2551
    %v3332 = vunpack.c.l.b16 %v2552
    %v3333 = vunpack.c.h.b16 %v2552
    %v3334 = vunpack.c.l.b16 %v2553
    %v3335 = vunpack.c.h.b16 %v2553
    %v3336 = vunpack.c.l.b16 %v2554
    %v3337 = vunpack.c.h.b16 %v2554
    %v3338 = vunpack.c.l.b16 %v2555
    %v3339 = vunpack.c.h.b16 %v2555
    %v3340 = vunpack.c.l.b16 %v2556
    %v3341 = vunpack.c.h.b16 %v2556
    %v3342 = vunpack.c.l.b16 %v2557
    %v3343 = vunpack.c.h.b16 %v2557
    %v3344 = vunpack.c.l.b16 %v2558
    %v3345 = vunpack.c.h.b16 %v2558
    %v3346 = vunpack.c.l.b16 %v2559
    %v3347 = vunpack.c.h.b16 %v2559
    %v3348 = vunpack.c.l.b16 %v2560
    %v3349 = vunpack.c.h.b16 %v2560
    %v3350 = vunpack.c.l.b16 %v2561
    %v3351 = vunpack.c.h.b16 %v2561
    %v3352 = vunpack.c.l.b16 %v2562
    %v3353 = vunpack.c.h.b16 %v2562
    %v3354 = vunpack.c.l.b16 %v2563
    %v3355 = vunpack.c.h.b16 %v2563
    %v3356 = vunpack.c.l.b16 %v2564
    %v3357 = vunpack.c.h.b16 %v2564
    %v3358 = vunpack.c.l.b16 %v2565
    %v3359 = vunpack.c.h.b16 %v2565
    %v3360 = vunpack.c.l.b16 %v2566
    %v3361 = vunpack.c.h.b16 %v2566
    %v3362 = vunpack.c.l.b16 %v2567
    %v3363 = vunpack.c.h.b16 %v2567
    %v3364 = vunpack.c.l.b16 %v2568
    %v3365 = vunpack.c.h.b16 %v2568
    %v3366 = vunpack.c.l.b16 %v2569
    %v3367 = vunpack.c.h.b16 %v2569
    %v3368 = vunpack.c.l.b16 %v2570
    %v3369 = vunpack.c.h.b16 %v2570
    %v3370 = vunpack.c.l.b16 %v2571
    %v3371 = vunpack.c.h.b16 %v2571
    %v3372 = vunpack.c.l.b16 %v2572
    %v3373 = vunpack.c.h.b16 %v2572
    %v3374 = vunpack.c.l.b16 %v2573
    %v3375 = vunpack.c.h.b16 %v2573
    %v3376 = vunpack.c.l.b16 %v2574
    %v3377 = vunpack.c.h.b16 %v2574
    %v3378 = vunpack.c.l.b16 %v2575
    %v3379 = vunpack.c.h.b16 %v2575
    %v3380 = vunpack.c.l.b16 %v2576
    %v3381 = vunpack.c.h.b16 %v2576
    %v3382 = vunpack.c.l.b16 %v2577
    %v3383 = vunpack.c.h.b16 %v2577
    %v3384 = vunpack.c.l.b16 %v2578
    %v3385 = vunpack.c.h.b16 %v2578
    %v3386 = vunpack.c.l.b16 %v2579
    %v3387 = vunpack.c.h.b16 %v2579
    %v3388 = vunpack.c.l.b16 %v2580
    %v3389 = vunpack.c.h.b16 %v2580
    %v3390 = vunpack.c.l.b16 %v2581
    %v3391 = vunpack.c.h.b16 %v2581
    %v3392 = vunpack.c.l.b16 %v2582
    %v3393 = vunpack.c.h.b16 %v2582
    %v3394 = vunpack.c.l.b16 %v2583
    %v3395 = vunpack.c.h.b16 %v2583
    %v3396 = vunpack.c.l.b16 %v2584
    %v3397 = vunpack.c.h.b16 %v2584
    %v3398 = vunpack.c.l.b16 %v2585
    %v3399 = vunpack.c.h.b16 %v2585
    %v3400 = vunpack.c.l.b16 %v2586
    %v3401 = vunpack.c.h.b16 %v2586
    %v3402 = vunpack.c.l.b16 %v2587
    %v3403 = vunpack.c.h.b16 %v2587
    %v3404 = vunpack.c.l.b16 %v2588
    %v3405 = vunpack.c.h.b16 %v2588
    %v3406 = vunpack.c.l.b16 %v2589
    %v3407 = vunpack.c.h.b16 %v2589
    %v3408 = vunpack.c.l.b16 %v2590
    %v3409 = vunpack.c.h.b16 %v2590
    %v3410 = vunpack.c.l.b16 %v2591
    %v3411 = vunpack.c.h.b16 %v2591
    %v3412 = vunpack.c.l.b16 %v2592
    %v3413 = vunpack.c.h.b16 %v2592
    %v3414 = vunpack.c.l.b16 %v2593
    %v3415 = vunpack.c.h.b16 %v2593
    %v3416 = vunpack.c.l.b16 %v2594
    %v3417 = vunpack.c.h.b16 %v2594
    %v3418 = vunpack.c.l.b16 %v2595
    %v3419 = vunpack.c.h.b16 %v2595
    %v3420 = vunpack.c.l.b16 %v2596
    %v3421 = vunpack.c.h.b16 %v2596
    %v3422 = vunpack.c.l.b16 %v2597
    %v3423 = vunpack.c.h.b16 %v2597
    %v3424 = vunpack.c.l.b16 %v2598
    %v3425 = vunpack.c.h.b16 %v2598
    %v3426 = vunpack.c.l.b16 %v2599
    %v3427 = vunpack.c.h.b16 %v2599
    %v3428 = vunpack.c.l.b16 %v2600
    %v3429 = vunpack.c.h.b16 %v2600
    %v3430 = vunpack.c.l.b16 %v2601
    %v3431 = vunpack.c.h.b16 %v2601
    %v3432 = vunpack.c.l.b16 %v2602
    %v3433 = vunpack.c.h.b16 %v2602
    %v3434 = vunpack.c.l.b16 %v2603
    %v3435 = vunpack.c.h.b16 %v2603
    %v3436 = vunpack.c.l.b16 %v2604
    %v3437 = vunpack.c.h.b16 %v2604
    %v3438 = vunpack.c.l.b16 %v2605
    %v3439 = vunpack.c.h.b16 %v2605
    %v3440 = vunpack.c.l.b16 %v2606
    %v3441 = vunpack.c.h.b16 %v2606
    %v3442 = vpack.c.b16 %v2934, %v2930
    %v3443 = vpack.c.b16 %v2935, %v2931
    %v3444 = vpack.c.b16 %v2936, %v2932
    %v3445 = vpack.c.b16 %v2937, %v2933
    %v3446 = vpack.c.b16 %v2942, %v2938
    %v3447 = vpack.c.b16 %v2943, %v2939
    %v3448 = vpack.c.b16 %v2944, %v2940
    %v3449 = vpack.c.b16 %v2945, %v2941
    %v3450 = vpack.c.b16 %v2950, %v2946
    %v3451 = vpack.c.b16 %v2951, %v2947
    %v3452 = vpack.c.b16 %v2952, %v2948
    %v3453 = vpack.c.b16 %v2953, %v2949
    %v3454 = vpack.c.b16 %v2958, %v2954
    %v3455 = vpack.c.b16 %v2959, %v2955
    %v3456 = vpack.c.b16 %v2960, %v2956
    %v3457 = vpack.c.b16 %v2961, %v2957
    %v3458 = vpack.c.b16 %v2966, %v2962
    %v3459 = vpack.c.b16 %v2967, %v2963
    %v3460 = vpack.c.b16 %v2968, %v2964
    %v3461 = vpack.c.b16 %v2969, %v2965
    %v3462 = vpack.c.b16 %v2974, %v2970
    %v3463 = vpack.c.b16 %v2975, %v2971
    %v3464 = vpack.c.b16 %v2976, %v2972
    %v3465 = vpack.c.b16 %v2977, %v2973
    %v3466 = vpack.c.b16 %v2982, %v2978
    %v3467 = vpack.c.b16 %v2983, %v2979
    %v3468 = vpack.c.b16 %v2984, %v2980
    %v3469 = vpack.c.b16 %v2985, %v2981
    %v3470 = vpack.c.b16 %v2990, %v2986
    %v3471 = vpack.c.b16 %v2991, %v2987
    %v3472 = vpack.c.b16 %v2992, %v2988
    %v3473 = vpack.c.b16 %v2993, %v2989
    %v3474 = vpack.c.b16 %v2998, %v2994
    %v3475 = vpack.c.b16 %v2999, %v2995
    %v3476 = vpack.c.b16 %v3000, %v2996
    %v3477 = vpack.c.b16 %v3001, %v2997
    %v3478 = vpack.c.b16 %v3006, %v3002
    %v3479 = vpack.c.b16 %v3007, %v3003
    %v3480 = vpack.c.b16 %v3008, %v3004
    %v3481 = vpack.c.b16 %v3009, %v3005
    %v3482 = vpack.c.b16 %v3014, %v3010
    %v3483 = vpack.c.b16 %v3015, %v3011
    %v3484 = vpack.c.b16 %v3016, %v3012
    %v3485 = vpack.c.b16 %v3017, %v3013
    %v3486 = vpack.c.b16 %v3022, %v3018
    %v3487 = vpack.c.b16 %v3023, %v3019
    %v3488 = vpack.c.b16 %v3024, %v3020
    %v3489 = vpack.c.b16 %v3025, %v3021
    %v3490 = vpack.c.b16 %v3030, %v3026
    %v3491 = vpack.c.b16 %v3031, %v3027
    %v3492 = vpack.c.b16 %v3032, %v3028
    %v3493 = vpack.c.b16 %v3033, %v3029
    %v3494 = vpack.c.b16 %v3038, %v3034
    %v3495 = vpack.c.b16 %v3039, %v3035
    %v3496 = vpack.c.b16 %v3040, %v3036
    %v3497 = vpack.c.b16 %v3041, %v3037
    %v3498 = vpack.c.b16 %v3046, %v3042
    %v3499 = vpack.c.b16 %v3047, %v3043
    %v3500 = vpack.c.b16 %v3048, %v3044
    %v3501 = vpack.c.b16 %v3049, %v3045
    %v3502 = vpack.c.b16 %v3054, %v3050
    %v3503 = vpack.c.b16 %v3055, %v3051
    %v3504 = vpack.c.b16 %v3056, %v3052
    %v3505 = vpack.c.b16 %v3057, %v3053
    %v3506 = vpack.c.b16 %v3062, %v3058
    %v3507 = vpack.c.b16 %v3063, %v3059
    %v3508 = vpack.c.b16 %v3064, %v3060
    %v3509 = vpack.c.b16 %v3065, %v3061
    %v3510 = vpack.c.b16 %v3070, %v3066
    %v3511 = vpack.c.b16 %v3071, %v3067
    %v3512 = vpack.c.b16 %v3072, %v3068
    %v3513 = vpack.c.b16 %v3073, %v3069
    %v3514 = vpack.c.b16 %v3078, %v3074
    %v3515 = vpack.c.b16 %v3079, %v3075
    %v3516 = vpack.c.b16 %v3080, %v3076
    %v3517 = vpack.c.b16 %v3081, %v3077
    %v3518 = vpack.c.b16 %v3086, %v3082
    %v3519 = vpack.c.b16 %v3087, %v3083
    %v3520 = vpack.c.b16 %v3088, %v3084
    %v3521 = vpack.c.b16 %v3089, %v3085
    %v3522 = vpack.c.b16 %v3094, %v3090
    %v3523 = vpack.c.b16 %v3095, %v3091
    %v3524 = vpack.c.b16 %v3096, %v3092
    %v3525 = vpack.c.b16 %v3097, %v3093
    %v3526 = vpack.c.b16 %v3102, %v3098
    %v3527 = vpack.c.b16 %v3103, %v3099
    %v3528 = vpack.c.b16 %v3104, %v3100
    %v3529 = vpack.c.b16 %v3105, %v3101
    %v3530 = vpack.c.b16 %v3110, %v3106
    %v3531 = vpack.c.b16 %v3111, %v3107
    %v3532 = vpack.c.b16 %v3112, %v3108
    %v3533 = vpack.c.b16 %v3113, %v3109
    %v3534 = vpack.c.b16 %v3118, %v3114
    %v3535 = vpack.c.b16 %v3119, %v3115
    %v3536 = vpack.c.b16 %v3120, %v3116
    %v3537 = vpack.c.b16 %v3121, %v3117
    %v3538 = vpack.c.b16 %v3126, %v3122
    %v3539 = vpack.c.b16 %v3127, %v3123
    %v3540 = vpack.c.b16 %v3128, %v3124
    %v3541 = vpack.c.b16 %v3129, %v3125
    %v3542 = vpack.c.b16 %v3134, %v3130
    %v3543 = vpack.c.b16 %v3135, %v3131
    %v3544 = vpack.c.b16 %v3136, %v3132
    %v3545 = vpack.c.b16 %v3137, %v3133
    %v3546 = vpack.c.b16 %v3142, %v3138
    %v3547 = vpack.c.b16 %v3143, %v3139
    %v3548 = vpack.c.b16 %v3144, %v3140
    %v3549 = vpack.c.b16 %v3145, %v3141
    %v3550 = vpack.c.b16 %v3150, %v3146
    %v3551 = vpack.c.b16 %v3151, %v3147
    %v3552 = vpack.c.b16 %v3152, %v3148
    %v3553 = vpack.c.b16 %v3153, %v3149
    %v3554 = vpack.c.b16 %v3158, %v3154
    %v3555 = vpack.c.b16 %v3159, %v3155
    %v3556 = vpack.c.b16 %v3160, %v3156
    %v3557 = vpack.c.b16 %v3161, %v3157
    %v3558 = vpack.c.b16 %v3166, %v3162
    %v3559 = vpack.c.b16 %v3167, %v3163
    %v3560 = vpack.c.b16 %v3168, %v3164
    %v3561 = vpack.c.b16 %v3169, %v3165
    %v3562 = vpack.c.b16 %v3174, %v3170
    %v3563 = vpack.c.b16 %v3175, %v3171
    %v3564 = vpack.c.b16 %v3176, %v3172
    %v3565 = vpack.c.b16 %v3177, %v3173
    %v3566 = vpack.c.b16 %v3182, %v3178
    %v3567 = vpack.c.b16 %v3183, %v3179
    %v3568 = vpack.c.b16 %v3184, %v3180
    %v3569 = vpack.c.b16 %v3185, %v3181
    %v3570 = vpack.c.b16 %v3190, %v3186
    %v3571 = vpack.c.b16 %v3191, %v3187
    %v3572 = vpack.c.b16 %v3192, %v3188
    %v3573 = vpack.c.b16 %v3193, %v3189
    %v3574 = vpack.c.b16 %v3198, %v3194
    %v3575 = vpack.c.b16 %v3199, %v3195
    %v3576 = vpack.c.b16 %v3200, %v3196
    %v3577 = vpack.c.b16 %v3201, %v3197
    %v3578 = vpack.c.b16 %v3206, %v3202
    %v3579 = vpack.c.b16 %v3207, %v3203
    %v3580 = vpack.c.b16 %v3208, %v3204
    %v3581 = vpack.c.b16 %v3209, %v3205
    %v3582 = vpack.c.b16 %v3214, %v3210
    %v3583 = vpack.c.b16 %v3215, %v3211
    %v3584 = vpack.c.b16 %v3216, %v3212
    %v3585 = vpack.c.b16 %v3217, %v3213
    %v3586 = vpack.c.b16 %v3222, %v3218
    %v3587 = vpack.c.b16 %v3223, %v3219
    %v3588 = vpack.c.b16 %v3224, %v3220
    %v3589 = vpack.c.b16 %v3225, %v3221
    %v3590 = vpack.c.b16 %v3230, %v3226
    %v3591 = vpack.c.b16 %v3231, %v3227
    %v3592 = vpack.c.b16 %v3232, %v3228
    %v3593 = vpack.c.b16 %v3233, %v3229
    %v3594 = vpack.c.b16 %v3238, %v3234
    %v3595 = vpack.c.b16 %v3239, %v3235
    %v3596 = vpack.c.b16 %v3240, %v3236
    %v3597 = vpack.c.b16 %v3241, %v3237
    %v3598 = vpack.c.b16 %v3246, %v3242
    %v3599 = vpack.c.b16 %v3247, %v3243
    %v3600 = vpack.c.b16 %v3248, %v3244
    %v3601 = vpack.c.b16 %v3249, %v3245
    %v3602 = vpack.c.b16 %v3254, %v3250
    %v3603 = vpack.c.b16 %v3255, %v3251
    %v3604 = vpack.c.b16 %v3256, %v3252
    %v3605 = vpack.c.b16 %v3257, %v3253
    %v3606 = vpack.c.b16 %v3262, %v3258
    %v3607 = vpack.c.b16 %v3263, %v3259
    %v3608 = vpack.c.b16 %v3264, %v3260
    %v3609 = vpack.c.b16 %v3265, %v3261
    %v3610 = vpack.c.b16 %v3270, %v3266
    %v3611 = vpack.c.b16 %v3271, %v3267
    %v3612 = vpack.c.b16 %v3272, %v3268
    %v3613 = vpack.c.b16 %v3273, %v3269
    %v3614 = vpack.c.b16 %v3278, %v3274
    %v3615 = vpack.c.b16 %v3279, %v3275
    %v3616 = vpack.c.b16 %v3280, %v3276
    %v3617 = vpack.c.b16 %v3281, %v3277
    %v3618 = vpack.c.b16 %v3286, %v3282
    %v3619 = vpack.c.b16 %v3287, %v3283
    %v3620 = vpack.c.b16 %v3288, %v3284
    %v3621 = vpack.c.b16 %v3289, %v3285
    %v3622 = vpack.c.b16 %v3294, %v3290
    %v3623 = vpack.c.b16 %v3295, %v3291
    %v3624 = vpack.c.b16 %v3296, %v3292
    %v3625 = vpack.c.b16 %v3297, %v3293
    %v3626 = vpack.c.b16 %v3302, %v3298
    %v3627 = vpack.c.b16 %v3303, %v3299
    %v3628 = vpack.c.b16 %v3304, %v3300
    %v3629 = vpack.c.b16 %v3305, %v3301
    %v3630 = vpack.c.b16 %v3310, %v3306
    %v3631 = vpack.c.b16 %v3311, %v3307
    %v3632 = vpack.c.b16 %v3312, %v3308
    %v3633 = vpack.c.b16 %v3313, %v3309
    %v3634 = vpack.c.b16 %v3318, %v3314
    %v3635 = vpack.c.b16 %v3319, %v3315
    %v3636 = vpack.c.b16 %v3320, %v3316
    %v3637 = vpack.c.b16 %v3321, %v3317
    %v3638 = vpack.c.b16 %v3326, %v3322
    %v3639 = vpack.c.b16 %v3327, %v3323
    %v3640 = vpack.c.b16 %v3328, %v3324
    %v3641 = vpack.c.b16 %v3329, %v3325
    %v3642 = vpack.c.b16 %v3334, %v3330
    %v3643 = vpack.c.b16 %v3335, %v3331
    %v3644 = vpack.c.b16 %v3336, %v3332
    %v3645 = vpack.c.b16 %v3337, %v3333
    %v3646 = vpack.c.b16 %v3342, %v3338
    %v3647 = vpack.c.b16 %v3343, %v3339
    %v3648 = vpack.c.b16 %v3344, %v3340
    %v3649 = vpack.c.b16 %v3345, %v3341
    %v3650 = vpack.c.b16 %v3350, %v3346
    %v3651 = vpack.c.b16 %v3351, %v3347
    %v3652 = vpack.c.b16 %v3352, %v3348
    %v3653 = vpack.c.b16 %v3353, %v3349
    %v3654 = vpack.c.b16 %v3358, %v3354
    %v3655 = vpack.c.b16 %v3359, %v3355
    %v3656 = vpack.c.b16 %v3360, %v3356
    %v3657 = vpack.c.b16 %v3361, %v3357
    %v3658 = vpack.c.b16 %v3366, %v3362
    %v3659 = vpack.c.b16 %v3367, %v3363
    %v3660 = vpack.c.b16 %v3368, %v3364
    %v3661 = vpack.c.b16 %v3369, %v3365
    %v3662 = vpack.c.b16 %v3374, %v3370
    %v3663 = vpack.c.b16 %v3375, %v3371
    %v3664 = vpack.c.b16 %v3376, %v3372
    %v3665 = vpack.c.b16 %v3377, %v3373
    %v3666 = vpack.c.b16 %v3382, %v3378
    %v3667 = vpack.c.b16 %v3383, %v3379
    %v3668 = vpack.c.b16 %v3384, %v3380
    %v3669 = vpack.c.b16 %v3385, %v3381
    %v3670 = vpack.c.b16 %v3390, %v3386
    %v3671 = vpack.c.b16 %v3391, %v3387
    %v3672 = vpack.c.b16 %v3392, %v3388
    %v3673 = vpack.c.b16 %v3393, %v3389
    %v3674 = vpack.c.b16 %v3398, %v3394
    %v3675 = vpack.c.b16 %v3399, %v3395
    %v3676 = vpack.c.b16 %v3400, %v3396
    %v3677 = vpack.c.b16 %v3401, %v3397
    %v3678 = vpack.c.b16 %v3406, %v3402
    %v3679 = vpack.c.b16 %v3407, %v3403
    %v3680 = vpack.c.b16 %v3408, %v3404
    %v3681 = vpack.c.b16 %v3409, %v3405
    %v3682 = vpack.c.b16 %v3414, %v3410
    %v3683 = vpack.c.b16 %v3415, %v3411
    %v3684 = vpack.c.b16 %v3416, %v3412
    %v3685 = vpack.c.b16 %v3417, %v3413
    %v3686 = vpack.c.b16 %v3422, %v3418
    %v3687 = vpack.c.b16 %v3423, %v3419
    %v3688 = vpack.c.b16 %v3424, %v3420
    %v3689 = vpack.c.b16 %v3425, %v3421
    %v3690 = vpack.c.b16 %v3430, %v3426
    %v3691 = vpack.c.b16 %v3431, %v3427
    %v3692 = vpack.c.b16 %v3432, %v3428
    %v3693 = vpack.c.b16 %v3433, %v3429
    %v3694 = vpack.c.b16 %v3438, %v3434
    %v3695 = vpack.c.b16 %v3439, %v3435
    %v3696 = vpack.c.b16 %v3440, %v3436
    %v3697 = vpack.c.b16 %v3441, %v3437
    %3954 = vmatpush.bf16.msra.mxu0 %v3470
    %3955 = vmatpush.bf16.msra.mxu0 %v3466
    %3956 = vmatpush.bf16.msra.mxu0 %v3462
    %3957 = vmatpush.bf16.msra.mxu0 %v3458
    %3958 = vmatpush.bf16.msra.mxu0 %v3454
    %3959 = vmatpush.bf16.msra.mxu0 %v3450
    %3960 = vmatpush.bf16.msra.mxu0 %v3446
    %3961 = vmatpush.bf16.msra.mxu0 %v3442
    %3962 = vmatmul.bf16.gmra.mxu0 %v2658
    %v3963 = vpop.f32.mrf.mxu0
    %v3964 = vadd.f32 %v2609, %v3963
    %v3965 = vpop.f32.mrf.mxu0
    %3966 = vdwg.mxu0
    %3967 = vmatpush.bf16.msra.mxu0 %v3502
    %3968 = vmatpush.bf16.msra.mxu0 %v3498
    %3969 = vmatpush.bf16.msra.mxu0 %v3494
    %3970 = vmatpush.bf16.msra.mxu0 %v3490
    %3971 = vmatpush.bf16.msra.mxu0 %v3486
    %3972 = vmatpush.bf16.msra.mxu0 %v3482
    %3973 = vmatpush.bf16.msra.mxu0 %v3478
    %3974 = vmatpush.bf16.msra.mxu0 %v3474
    %3975 = vmatmul.bf16.gmra.mxu0 %v2659
    %v3976 = vpop.f32.mrf.mxu0
    %v3977 = vadd.f32 %v3964, %v3976
    %v3978 = vpop.f32.mrf.mxu0
    %3979 = vdwg.mxu0
    %3980 = vmatpush.bf16.msra.mxu0 %v3534
    %3981 = vmatpush.bf16.msra.mxu0 %v3530
    %3982 = vmatpush.bf16.msra.mxu0 %v3526
    %3983 = vmatpush.bf16.msra.mxu0 %v3522
    %3984 = vmatpush.bf16.msra.mxu0 %v3518
    %3985 = vmatpush.bf16.msra.mxu0 %v3514
    %3986 = vmatpush.bf16.msra.mxu0 %v3510
    %3987 = vmatpush.bf16.msra.mxu0 %v3506
    %3988 = vmatmul.bf16.gmra.mxu0 %v2660
    %v3989 = vpop.f32.mrf.mxu0
    %v3990 = vadd.f32 %v3977, %v3989
    %v3991 = vpop.f32.mrf.mxu0
    %3992 = vdwg.mxu0
    %3993 = vmatpush.bf16.msra.mxu0 %v3566
    %3994 = vmatpush.bf16.msra.mxu0 %v3562
    %3995 = vmatpush.bf16.msra.mxu0 %v3558
    %3996 = vmatpush.bf16.msra.mxu0 %v3554
    %3997 = vmatpush.bf16.msra.mxu0 %v3550
    %3998 = vmatpush.bf16.msra.mxu0 %v3546
    %3999 = vmatpush.bf16.msra.mxu0 %v3542
    %4000 = vmatpush.bf16.msra.mxu0 %v3538
    %4001 = vmatmul.bf16.gmra.mxu0 %v2661
    %v4002 = vpop.f32.mrf.mxu0
    %v4003 = vadd.f32 %v3990, %v4002
    %v4004 = vpop.f32.mrf.mxu0
    %4005 = vdwg.mxu0
    %4006 = vmatpush.bf16.msra.mxu0 %v3598
    %4007 = vmatpush.bf16.msra.mxu0 %v3594
    %4008 = vmatpush.bf16.msra.mxu0 %v3590
    %4009 = vmatpush.bf16.msra.mxu0 %v3586
    %4010 = vmatpush.bf16.msra.mxu0 %v3582
    %4011 = vmatpush.bf16.msra.mxu0 %v3578
    %4012 = vmatpush.bf16.msra.mxu0 %v3574
    %4013 = vmatpush.bf16.msra.mxu0 %v3570
    %4014 = vmatmul.bf16.gmra.mxu0 %v2662
    %v4015 = vpop.f32.mrf.mxu0
    %v4016 = vadd.f32 %v4003, %v4015
    %v4017 = vpop.f32.mrf.mxu0
    %4018 = vdwg.mxu0
    %4019 = vmatpush.bf16.msra.mxu0 %v3630
    %4020 = vmatpush.bf16.msra.mxu0 %v3626
    %4021 = vmatpush.bf16.msra.mxu0 %v3622
    %4022 = vmatpush.bf16.msra.mxu0 %v3618
    %4023 = vmatpush.bf16.msra.mxu0 %v3614
    %4024 = vmatpush.bf16.msra.mxu0 %v3610
    %4025 = vmatpush.bf16.msra.mxu0 %v3606
    %4026 = vmatpush.bf16.msra.mxu0 %v3602
    %4027 = vmatmul.bf16.gmra.mxu0 %v2663
    %v4028 = vpop.f32.mrf.mxu0
    %v4029 = vadd.f32 %v4016, %v4028
    %v4030 = vpop.f32.mrf.mxu0
    %4031 = vdwg.mxu0
    %4032 = vmatpush.bf16.msra.mxu0 %v3662
    %4033 = vmatpush.bf16.msra.mxu0 %v3658
    %4034 = vmatpush.bf16.msra.mxu0 %v3654
    %4035 = vmatpush.bf16.msra.mxu0 %v3650
    %4036 = vmatpush.bf16.msra.mxu0 %v3646
    %4037 = vmatpush.bf16.msra.mxu0 %v3642
    %4038 = vmatpush.bf16.msra.mxu0 %v3638
    %4039 = vmatpush.bf16.msra.mxu0 %v3634
    %4040 = vmatmul.bf16.gmra.mxu0 %v2664
    %v4041 = vpop.f32.mrf.mxu0
    %v4042 = vadd.f32 %v4029, %v4041
    %v4043 = vpop.f32.mrf.mxu0
    %4044 = vdwg.mxu0
    %4045 = vmatpush.bf16.msra.mxu0 %v3694
    %4046 = vmatpush.bf16.msra.mxu0 %v3690
    %4047 = vmatpush.bf16.msra.mxu0 %v3686
    %4048 = vmatpush.bf16.msra.mxu0 %v3682
    %4049 = vmatpush.bf16.msra.mxu0 %v3678
    %4050 = vmatpush.bf16.msra.mxu0 %v3674
    %4051 = vmatpush.bf16.msra.mxu0 %v3670
    %4052 = vmatpush.bf16.msra.mxu0 %v3666
    %4053 = vmatmul.bf16.gmra.mxu0 %v2665
    %v4054 = vpop.f32.mrf.mxu0
    %v4055 = vadd.f32 %v4042, %v4054
    %v4056 = vpop.f32.mrf.mxu0
    %4057 = vdwg.mxu0
    %4058 = vmatpush.bf16.msra.mxu0 %v3471
    %4059 = vmatpush.bf16.msra.mxu0 %v3467
    %4060 = vmatpush.bf16.msra.mxu0 %v3463
    %4061 = vmatpush.bf16.msra.mxu0 %v3459
    %4062 = vmatpush.bf16.msra.mxu0 %v3455
    %4063 = vmatpush.bf16.msra.mxu0 %v3451
    %4064 = vmatpush.bf16.msra.mxu0 %v3447
    %4065 = vmatpush.bf16.msra.mxu0 %v3443
    %4066 = vmatmul.bf16.gmra.mxu0 %v2658
    %v4067 = vpop.f32.mrf.mxu0
    %v4068 = vadd.f32 %v2610, %v4067
    %v4069 = vpop.f32.mrf.mxu0
    %4070 = vdwg.mxu0
    %4071 = vmatpush.bf16.msra.mxu0 %v3503
    %4072 = vmatpush.bf16.msra.mxu0 %v3499
    %4073 = vmatpush.bf16.msra.mxu0 %v3495
    %4074 = vmatpush.bf16.msra.mxu0 %v3491
    %4075 = vmatpush.bf16.msra.mxu0 %v3487
    %4076 = vmatpush.bf16.msra.mxu0 %v3483
    %4077 = vmatpush.bf16.msra.mxu0 %v3479
    %4078 = vmatpush.bf16.msra.mxu0 %v3475
    %4079 = vmatmul.bf16.gmra.mxu0 %v2659
    %v4080 = vpop.f32.mrf.mxu0
    %v4081 = vadd.f32 %v4068, %v4080
    %v4082 = vpop.f32.mrf.mxu0
    %4083 = vdwg.mxu0
    %4084 = vmatpush.bf16.msra.mxu0 %v3535
    %4085 = vmatpush.bf16.msra.mxu0 %v3531
    %4086 = vmatpush.bf16.msra.mxu0 %v3527
    %4087 = vmatpush.bf16.msra.mxu0 %v3523
    %4088 = vmatpush.bf16.msra.mxu0 %v3519
    %4089 = vmatpush.bf16.msra.mxu0 %v3515
    %4090 = vmatpush.bf16.msra.mxu0 %v3511
    %4091 = vmatpush.bf16.msra.mxu0 %v3507
    %4092 = vmatmul.bf16.gmra.mxu0 %v2660
    %v4093 = vpop.f32.mrf.mxu0
    %v4094 = vadd.f32 %v4081, %v4093
    %v4095 = vpop.f32.mrf.mxu0
    %4096 = vdwg.mxu0
    %4097 = vmatpush.bf16.msra.mxu0 %v3567
    %4098 = vmatpush.bf16.msra.mxu0 %v3563
    %4099 = vmatpush.bf16.msra.mxu0 %v3559
    %4100 = vmatpush.bf16.msra.mxu0 %v3555
    %4101 = vmatpush.bf16.msra.mxu0 %v3551
    %4102 = vmatpush.bf16.msra.mxu0 %v3547
    %4103 = vmatpush.bf16.msra.mxu0 %v3543
    %4104 = vmatpush.bf16.msra.mxu0 %v3539
    %4105 = vmatmul.bf16.gmra.mxu0 %v2661
    %v4106 = vpop.f32.mrf.mxu0
    %v4107 = vadd.f32 %v4094, %v4106
    %v4108 = vpop.f32.mrf.mxu0
    %4109 = vdwg.mxu0
    %4110 = vmatpush.bf16.msra.mxu0 %v3599
    %4111 = vmatpush.bf16.msra.mxu0 %v3595
    %4112 = vmatpush.bf16.msra.mxu0 %v3591
    %4113 = vmatpush.bf16.msra.mxu0 %v3587
    %4114 = vmatpush.bf16.msra.mxu0 %v3583
    %4115 = vmatpush.bf16.msra.mxu0 %v3579
    %4116 = vmatpush.bf16.msra.mxu0 %v3575
    %4117 = vmatpush.bf16.msra.mxu0 %v3571
    %4118 = vmatmul.bf16.gmra.mxu0 %v2662
    %v4119 = vpop.f32.mrf.mxu0
    %v4120 = vadd.f32 %v4107, %v4119
    %v4121 = vpop.f32.mrf.mxu0
    %4122 = vdwg.mxu0
    %4123 = vmatpush.bf16.msra.mxu0 %v3631
    %4124 = vmatpush.bf16.msra.mxu0 %v3627
    %4125 = vmatpush.bf16.msra.mxu0 %v3623
    %4126 = vmatpush.bf16.msra.mxu0 %v3619
    %4127 = vmatpush.bf16.msra.mxu0 %v3615
    %4128 = vmatpush.bf16.msra.mxu0 %v3611
    %4129 = vmatpush.bf16.msra.mxu0 %v3607
    %4130 = vmatpush.bf16.msra.mxu0 %v3603
    %4131 = vmatmul.bf16.gmra.mxu0 %v2663
    %v4132 = vpop.f32.mrf.mxu0
    %v4133 = vadd.f32 %v4120, %v4132
    %v4134 = vpop.f32.mrf.mxu0
    %4135 = vdwg.mxu0
    %4136 = vmatpush.bf16.msra.mxu0 %v3663
    %4137 = vmatpush.bf16.msra.mxu0 %v3659
    %4138 = vmatpush.bf16.msra.mxu0 %v3655
    %4139 = vmatpush.bf16.msra.mxu0 %v3651
    %4140 = vmatpush.bf16.msra.mxu0 %v3647
    %4141 = vmatpush.bf16.msra.mxu0 %v3643
    %4142 = vmatpush.bf16.msra.mxu0 %v3639
    %4143 = vmatpush.bf16.msra.mxu0 %v3635
    %4144 = vmatmul.bf16.gmra.mxu0 %v2664
    %v4145 = vpop.f32.mrf.mxu0
    %v4146 = vadd.f32 %v4133, %v4145
    %v4147 = vpop.f32.mrf.mxu0
    %4148 = vdwg.mxu0
    %4149 = vmatpush.bf16.msra.mxu0 %v3695
    %4150 = vmatpush.bf16.msra.mxu0 %v3691
    %4151 = vmatpush.bf16.msra.mxu0 %v3687
    %4152 = vmatpush.bf16.msra.mxu0 %v3683
    %4153 = vmatpush.bf16.msra.mxu0 %v3679
    %4154 = vmatpush.bf16.msra.mxu0 %v3675
    %4155 = vmatpush.bf16.msra.mxu0 %v3671
    %4156 = vmatpush.bf16.msra.mxu0 %v3667
    %4157 = vmatmul.bf16.gmra.mxu0 %v2665
    %v4158 = vpop.f32.mrf.mxu0
    %v4159 = vadd.f32 %v4146, %v4158
    %v4160 = vpop.f32.mrf.mxu0
    %4161 = vdwg.mxu0
    %4162 = vmatpush.bf16.msra.mxu0 %v3472
    %4163 = vmatpush.bf16.msra.mxu0 %v3468
    %4164 = vmatpush.bf16.msra.mxu0 %v3464
    %4165 = vmatpush.bf16.msra.mxu0 %v3460
    %4166 = vmatpush.bf16.msra.mxu0 %v3456
    %4167 = vmatpush.bf16.msra.mxu0 %v3452
    %4168 = vmatpush.bf16.msra.mxu0 %v3448
    %4169 = vmatpush.bf16.msra.mxu0 %v3444
    %4170 = vmatmul.bf16.gmra.mxu0 %v2658
    %v4171 = vpop.f32.mrf.mxu0
    %v4172 = vadd.f32 %v2611, %v4171
    %v4173 = vpop.f32.mrf.mxu0
    %4174 = vdwg.mxu0
    %4175 = vmatpush.bf16.msra.mxu0 %v3504
    %4176 = vmatpush.bf16.msra.mxu0 %v3500
    %4177 = vmatpush.bf16.msra.mxu0 %v3496
    %4178 = vmatpush.bf16.msra.mxu0 %v3492
    %4179 = vmatpush.bf16.msra.mxu0 %v3488
    %4180 = vmatpush.bf16.msra.mxu0 %v3484
    %4181 = vmatpush.bf16.msra.mxu0 %v3480
    %4182 = vmatpush.bf16.msra.mxu0 %v3476
    %4183 = vmatmul.bf16.gmra.mxu0 %v2659
    %v4184 = vpop.f32.mrf.mxu0
    %v4185 = vadd.f32 %v4172, %v4184
    %v4186 = vpop.f32.mrf.mxu0
    %4187 = vdwg.mxu0
    %4188 = vmatpush.bf16.msra.mxu0 %v3536
    %4189 = vmatpush.bf16.msra.mxu0 %v3532
    %4190 = vmatpush.bf16.msra.mxu0 %v3528
    %4191 = vmatpush.bf16.msra.mxu0 %v3524
    %4192 = vmatpush.bf16.msra.mxu0 %v3520
    %4193 = vmatpush.bf16.msra.mxu0 %v3516
    %4194 = vmatpush.bf16.msra.mxu0 %v3512
    %4195 = vmatpush.bf16.msra.mxu0 %v3508
    %4196 = vmatmul.bf16.gmra.mxu0 %v2660
    %v4197 = vpop.f32.mrf.mxu0
    %v4198 = vadd.f32 %v4185, %v4197
    %v4199 = vpop.f32.mrf.mxu0
    %4200 = vdwg.mxu0
    %4201 = vmatpush.bf16.msra.mxu0 %v3568
    %4202 = vmatpush.bf16.msra.mxu0 %v3564
    %4203 = vmatpush.bf16.msra.mxu0 %v3560
    %4204 = vmatpush.bf16.msra.mxu0 %v3556
    %4205 = vmatpush.bf16.msra.mxu0 %v3552
    %4206 = vmatpush.bf16.msra.mxu0 %v3548
    %4207 = vmatpush.bf16.msra.mxu0 %v3544
    %4208 = vmatpush.bf16.msra.mxu0 %v3540
    %4209 = vmatmul.bf16.gmra.mxu0 %v2661
    %v4210 = vpop.f32.mrf.mxu0
    %v4211 = vadd.f32 %v4198, %v4210
    %v4212 = vpop.f32.mrf.mxu0
    %4213 = vdwg.mxu0
    %4214 = vmatpush.bf16.msra.mxu0 %v3600
    %4215 = vmatpush.bf16.msra.mxu0 %v3596
    %4216 = vmatpush.bf16.msra.mxu0 %v3592
    %4217 = vmatpush.bf16.msra.mxu0 %v3588
    %4218 = vmatpush.bf16.msra.mxu0 %v3584
    %4219 = vmatpush.bf16.msra.mxu0 %v3580
    %4220 = vmatpush.bf16.msra.mxu0 %v3576
    %4221 = vmatpush.bf16.msra.mxu0 %v3572
    %4222 = vmatmul.bf16.gmra.mxu0 %v2662
    %v4223 = vpop.f32.mrf.mxu0
    %v4224 = vadd.f32 %v4211, %v4223
    %v4225 = vpop.f32.mrf.mxu0
    %4226 = vdwg.mxu0
    %4227 = vmatpush.bf16.msra.mxu0 %v3632
    %4228 = vmatpush.bf16.msra.mxu0 %v3628
    %4229 = vmatpush.bf16.msra.mxu0 %v3624
    %4230 = vmatpush.bf16.msra.mxu0 %v3620
    %4231 = vmatpush.bf16.msra.mxu0 %v3616
    %4232 = vmatpush.bf16.msra.mxu0 %v3612
    %4233 = vmatpush.bf16.msra.mxu0 %v3608
    %4234 = vmatpush.bf16.msra.mxu0 %v3604
    %4235 = vmatmul.bf16.gmra.mxu0 %v2663
    %v4236 = vpop.f32.mrf.mxu0
    %v4237 = vadd.f32 %v4224, %v4236
    %v4238 = vpop.f32.mrf.mxu0
    %4239 = vdwg.mxu0
    %4240 = vmatpush.bf16.msra.mxu0 %v3664
    %4241 = vmatpush.bf16.msra.mxu0 %v3660
    %4242 = vmatpush.bf16.msra.mxu0 %v3656
    %4243 = vmatpush.bf16.msra.mxu0 %v3652
    %4244 = vmatpush.bf16.msra.mxu0 %v3648
    %4245 = vmatpush.bf16.msra.mxu0 %v3644
    %4246 = vmatpush.bf16.msra.mxu0 %v3640
    %4247 = vmatpush.bf16.msra.mxu0 %v3636
    %4248 = vmatmul.bf16.gmra.mxu0 %v2664
    %v4249 = vpop.f32.mrf.mxu0
    %v4250 = vadd.f32 %v4237, %v4249
    %v4251 = vpop.f32.mrf.mxu0
    %4252 = vdwg.mxu0
    %4253 = vmatpush.bf16.msra.mxu0 %v3696
    %4254 = vmatpush.bf16.msra.mxu0 %v3692
    %4255 = vmatpush.bf16.msra.mxu0 %v3688
    %4256 = vmatpush.bf16.msra.mxu0 %v3684
    %4257 = vmatpush.bf16.msra.mxu0 %v3680
    %4258 = vmatpush.bf16.msra.mxu0 %v3676
    %4259 = vmatpush.bf16.msra.mxu0 %v3672
    %4260 = vmatpush.bf16.msra.mxu0 %v3668
    %4261 = vmatmul.bf16.gmra.mxu0 %v2665
    %v4262 = vpop.f32.mrf.mxu0
    %v4263 = vadd.f32 %v4250, %v4262
    %v4264 = vpop.f32.mrf.mxu0
    %4265 = vdwg.mxu0
    %4266 = vmatpush.bf16.msra.mxu0 %v3473
    %4267 = vmatpush.bf16.msra.mxu0 %v3469
    %4268 = vmatpush.bf16.msra.mxu0 %v3465
    %4269 = vmatpush.bf16.msra.mxu0 %v3461
    %4270 = vmatpush.bf16.msra.mxu0 %v3457
    %4271 = vmatpush.bf16.msra.mxu0 %v3453
    %4272 = vmatpush.bf16.msra.mxu0 %v3449
    %4273 = vmatpush.bf16.msra.mxu0 %v3445
    %4274 = vmatmul.bf16.gmra.mxu0 %v2658
    %v4275 = vpop.f32.mrf.mxu0
    %v4276 = vadd.f32 %v2612, %v4275
    %v4277 = vpop.f32.mrf.mxu0
    %4278 = vdwg.mxu0
    %4279 = vmatpush.bf16.msra.mxu0 %v3505
    %4280 = vmatpush.bf16.msra.mxu0 %v3501
    %4281 = vmatpush.bf16.msra.mxu0 %v3497
    %4282 = vmatpush.bf16.msra.mxu0 %v3493
    %4283 = vmatpush.bf16.msra.mxu0 %v3489
    %4284 = vmatpush.bf16.msra.mxu0 %v3485
    %4285 = vmatpush.bf16.msra.mxu0 %v3481
    %4286 = vmatpush.bf16.msra.mxu0 %v3477
    %4287 = vmatmul.bf16.gmra.mxu0 %v2659
    %v4288 = vpop.f32.mrf.mxu0
    %v4289 = vadd.f32 %v4276, %v4288
    %v4290 = vpop.f32.mrf.mxu0
    %4291 = vdwg.mxu0
    %4292 = vmatpush.bf16.msra.mxu0 %v3537
    %4293 = vmatpush.bf16.msra.mxu0 %v3533
    %4294 = vmatpush.bf16.msra.mxu0 %v3529
    %4295 = vmatpush.bf16.msra.mxu0 %v3525
    %4296 = vmatpush.bf16.msra.mxu0 %v3521
    %4297 = vmatpush.bf16.msra.mxu0 %v3517
    %4298 = vmatpush.bf16.msra.mxu0 %v3513
    %4299 = vmatpush.bf16.msra.mxu0 %v3509
    %4300 = vmatmul.bf16.gmra.mxu0 %v2660
    %v4301 = vpop.f32.mrf.mxu0
    %v4302 = vadd.f32 %v4289, %v4301
    %v4303 = vpop.f32.mrf.mxu0
    %4304 = vdwg.mxu0
    %4305 = vmatpush.bf16.msra.mxu0 %v3569
    %4306 = vmatpush.bf16.msra.mxu0 %v3565
    %4307 = vmatpush.bf16.msra.mxu0 %v3561
    %4308 = vmatpush.bf16.msra.mxu0 %v3557
    %4309 = vmatpush.bf16.msra.mxu0 %v3553
    %4310 = vmatpush.bf16.msra.mxu0 %v3549
    %4311 = vmatpush.bf16.msra.mxu0 %v3545
    %4312 = vmatpush.bf16.msra.mxu0 %v3541
    %4313 = vmatmul.bf16.gmra.mxu0 %v2661
    %v4314 = vpop.f32.mrf.mxu0
    %v4315 = vadd.f32 %v4302, %v4314
    %v4316 = vpop.f32.mrf.mxu0
    %4317 = vdwg.mxu0
    %4318 = vmatpush.bf16.msra.mxu0 %v3601
    %4319 = vmatpush.bf16.msra.mxu0 %v3597
    %4320 = vmatpush.bf16.msra.mxu0 %v3593
    %4321 = vmatpush.bf16.msra.mxu0 %v3589
    %4322 = vmatpush.bf16.msra.mxu0 %v3585
    %4323 = vmatpush.bf16.msra.mxu0 %v3581
    %4324 = vmatpush.bf16.msra.mxu0 %v3577
    %4325 = vmatpush.bf16.msra.mxu0 %v3573
    %4326 = vmatmul.bf16.gmra.mxu0 %v2662
    %v4327 = vpop.f32.mrf.mxu0
    %v4328 = vadd.f32 %v4315, %v4327
    %v4329 = vpop.f32.mrf.mxu0
    %4330 = vdwg.mxu0
    %4331 = vmatpush.bf16.msra.mxu0 %v3633
    %4332 = vmatpush.bf16.msra.mxu0 %v3629
    %4333 = vmatpush.bf16.msra.mxu0 %v3625
    %4334 = vmatpush.bf16.msra.mxu0 %v3621
    %4335 = vmatpush.bf16.msra.mxu0 %v3617
    %4336 = vmatpush.bf16.msra.mxu0 %v3613
    %4337 = vmatpush.bf16.msra.mxu0 %v3609
    %4338 = vmatpush.bf16.msra.mxu0 %v3605
    %4339 = vmatmul.bf16.gmra.mxu0 %v2663
    %v4340 = vpop.f32.mrf.mxu0
    %v4341 = vadd.f32 %v4328, %v4340
    %v4342 = vpop.f32.mrf.mxu0
    %4343 = vdwg.mxu0
    %4344 = vmatpush.bf16.msra.mxu0 %v3665
    %4345 = vmatpush.bf16.msra.mxu0 %v3661
    %4346 = vmatpush.bf16.msra.mxu0 %v3657
    %4347 = vmatpush.bf16.msra.mxu0 %v3653
    %4348 = vmatpush.bf16.msra.mxu0 %v3649
    %4349 = vmatpush.bf16.msra.mxu0 %v3645
    %4350 = vmatpush.bf16.msra.mxu0 %v3641
    %4351 = vmatpush.bf16.msra.mxu0 %v3637
    %4352 = vmatmul.bf16.gmra.mxu0 %v2664
    %v4353 = vpop.f32.mrf.mxu0
    %v4354 = vadd.f32 %v4341, %v4353
    %v4355 = vpop.f32.mrf.mxu0
    %4356 = vdwg.mxu0
    %4357 = vmatpush.bf16.msra.mxu0 %v3697
    %4358 = vmatpush.bf16.msra.mxu0 %v3693
    %4359 = vmatpush.bf16.msra.mxu0 %v3689
    %4360 = vmatpush.bf16.msra.mxu0 %v3685
    %4361 = vmatpush.bf16.msra.mxu0 %v3681
    %4362 = vmatpush.bf16.msra.mxu0 %v3677
    %4363 = vmatpush.bf16.msra.mxu0 %v3673
    %4364 = vmatpush.bf16.msra.mxu0 %v3669
    %4365 = vmatmul.bf16.gmra.mxu0 %v2665
    %v4366 = vpop.f32.mrf.mxu0
    %v4367 = vadd.f32 %v4354, %v4366
    %v4368 = vpop.f32.mrf.mxu0
    %4369 = vdwg.mxu0
    %v4370 = vmax.f32 %v4055, 0.0
    %v4371 = vmax.f32 %v4159, 0.0
    %v4372 = vmax.f32 %v4263, 0.0
    %v4373 = vmax.f32 %v4367, 0.0
    %v4374 = vpack.c.bf16 %v4370, %v4370
    %v4375 = vpack.c.bf16 %v4371, %v4371
    %v4376 = vpack.c.bf16 %v4372, %v4372
    %v4377 = vpack.c.bf16 %v4373, %v4373
    %v4378 = vld [vmem:[#allocation7] sm:$0xff]
    %v4379 = vld [vmem:[#allocation7 + $0x8] sm:$0xff]
    %v4380 = vld [vmem:[#allocation7 + $0x10] sm:$0xff]
    %v4381 = vld [vmem:[#allocation7 + $0x18] sm:$0xff]
    %v4382 = vld [vmem:[#allocation7 + $0x20] sm:$0xff]
    %v4383 = vld [vmem:[#allocation7 + $0x28] sm:$0xff]
    %v4384 = vld [vmem:[#allocation7 + $0x30] sm:$0xff]
    %v4385 = vld [vmem:[#allocation7 + $0x38] sm:$0xff]
    %v4386 = vld [vmem:[#allocation7 + $0x40] sm:$0xff]
    %v4387 = vld [vmem:[#allocation7 + $0x48] sm:$0xff]
    %v4388 = vld [vmem:[#allocation7 + $0x50] sm:$0xff]
    %v4389 = vld [vmem:[#allocation7 + $0x58] sm:$0xff]
    %v4390 = vld [vmem:[#allocation7 + $0x60] sm:$0xff]
    %v4391 = vld [vmem:[#allocation7 + $0x68] sm:$0xff]
    %v4392 = vld [vmem:[#allocation7 + $0x70] sm:$0xff]
    %v4393 = vld [vmem:[#allocation7 + $0x78] sm:$0xff]
    %v4394 = vld [vmem:[#allocation7 + $0x80] sm:$0xff]
    %v4395 = vld [vmem:[#allocation7 + $0x88] sm:$0xff]
    %v4396 = vld [vmem:[#allocation7 + $0x90] sm:$0xff]
    %v4397 = vld [vmem:[#allocation7 + $0x98] sm:$0xff]
    %v4398 = vld [vmem:[#allocation7 + $0xa0] sm:$0xff]
    %v4399 = vld [vmem:[#allocation7 + $0xa8] sm:$0xff]
    %v4400 = vld [vmem:[#allocation7 + $0xb0] sm:$0xff]
    %v4401 = vld [vmem:[#allocation7 + $0xb8] sm:$0xff]
    %v4402 = vld [vmem:[#allocation7 + $0xc0] sm:$0xff]
    %v4403 = vld [vmem:[#allocation7 + $0xc8] sm:$0xff]
    %v4404 = vld [vmem:[#allocation7 + $0xd0] sm:$0xff]
    %v4405 = vld [vmem:[#allocation7 + $0xd8] sm:$0xff]
    %v4406 = vld [vmem:[#allocation7 + $0xe0] sm:$0xff]
    %v4407 = vld [vmem:[#allocation7 + $0xe8] sm:$0xff]
    %v4408 = vld [vmem:[#allocation7 + $0xf0] sm:$0xff]
    %v4409 = vld [vmem:[#allocation7 + $0xf8] sm:$0xff]
    %v4410 = vld [vmem:[#allocation7 + $0x100] sm:$0xff]
    %v4411 = vld [vmem:[#allocation7 + $0x108] sm:$0xff]
    %v4412 = vld [vmem:[#allocation7 + $0x110] sm:$0xff]
    %v4413 = vld [vmem:[#allocation7 + $0x118] sm:$0xff]
    %v4414 = vld [vmem:[#allocation7 + $0x120] sm:$0xff]
    %v4415 = vld [vmem:[#allocation7 + $0x128] sm:$0xff]
    %v4416 = vld [vmem:[#allocation7 + $0x130] sm:$0xff]
    %v4417 = vld [vmem:[#allocation7 + $0x138] sm:$0xff]
    %v4418 = vld [vmem:[#allocation7 + $0x140] sm:$0xff]
    %v4419 = vld [vmem:[#allocation7 + $0x148] sm:$0xff]
    %v4420 = vld [vmem:[#allocation7 + $0x150] sm:$0xff]
    %v4421 = vld [vmem:[#allocation7 + $0x158] sm:$0xff]
    %v4422 = vld [vmem:[#allocation7 + $0x160] sm:$0xff]
    %v4423 = vld [vmem:[#allocation7 + $0x168] sm:$0xff]
    %v4424 = vld [vmem:[#allocation7 + $0x170] sm:$0xff]
    %v4425 = vld [vmem:[#allocation7 + $0x178] sm:$0xff]
    %v4426 = vld [vmem:[#allocation7 + $0x180] sm:$0xff]
    %v4427 = vld [vmem:[#allocation7 + $0x188] sm:$0xff]
    %v4428 = vld [vmem:[#allocation7 + $0x190] sm:$0xff]
    %v4429 = vld [vmem:[#allocation7 + $0x198] sm:$0xff]
    %v4430 = vld [vmem:[#allocation7 + $0x1a0] sm:$0xff]
    %v4431 = vld [vmem:[#allocation7 + $0x1a8] sm:$0xff]
    %v4432 = vld [vmem:[#allocation7 + $0x1b0] sm:$0xff]
    %v4433 = vld [vmem:[#allocation7 + $0x1b8] sm:$0xff]
    %v4434 = vld [vmem:[#allocation7 + $0x1c0] sm:$0xff]
    %v4435 = vld [vmem:[#allocation7 + $0x1c8] sm:$0xff]
    %v4436 = vld [vmem:[#allocation7 + $0x1d0] sm:$0xff]
    %v4437 = vld [vmem:[#allocation7 + $0x1d8] sm:$0xff]
    %v4438 = vld [vmem:[#allocation7 + $0x1e0] sm:$0xff]
    %v4439 = vld [vmem:[#allocation7 + $0x1e8] sm:$0xff]
    %v4440 = vld [vmem:[#allocation7 + $0x1f0] sm:$0xff]
    %v4441 = vld [vmem:[#allocation7 + $0x1f8] sm:$0xff]
    %v4442 = vld [vmem:[%s10] sm:$0x3]
    %v4444 = vperm.slane %v4442, 0
    %v4445 = vperm.slane %v4442, 1
    %v4512 = vunpack.c.l.b16 %v4378
    %v4513 = vunpack.c.h.b16 %v4378
    %v4514 = vunpack.c.l.b16 %v4379
    %v4515 = vunpack.c.h.b16 %v4379
    %v4516 = vunpack.c.l.b16 %v4380
    %v4517 = vunpack.c.h.b16 %v4380
    %v4518 = vunpack.c.l.b16 %v4381
    %v4519 = vunpack.c.h.b16 %v4381
    %v4520 = vunpack.c.l.b16 %v4382
    %v4521 = vunpack.c.h.b16 %v4382
    %v4522 = vunpack.c.l.b16 %v4383
    %v4523 = vunpack.c.h.b16 %v4383
    %v4524 = vunpack.c.l.b16 %v4384
    %v4525 = vunpack.c.h.b16 %v4384
    %v4526 = vunpack.c.l.b16 %v4385
    %v4527 = vunpack.c.h.b16 %v4385
    %v4528 = vunpack.c.l.b16 %v4386
    %v4529 = vunpack.c.h.b16 %v4386
    %v4530 = vunpack.c.l.b16 %v4387
    %v4531 = vunpack.c.h.b16 %v4387
    %v4532 = vunpack.c.l.b16 %v4388
    %v4533 = vunpack.c.h.b16 %v4388
    %v4534 = vunpack.c.l.b16 %v4389
    %v4535 = vunpack.c.h.b16 %v4389
    %v4536 = vunpack.c.l.b16 %v4390
    %v4537 = vunpack.c.h.b16 %v4390
    %v4538 = vunpack.c.l.b16 %v4391
    %v4539 = vunpack.c.h.b16 %v4391
    %v4540 = vunpack.c.l.b16 %v4392
    %v4541 = vunpack.c.h.b16 %v4392
    %v4542 = vunpack.c.l.b16 %v4393
    %v4543 = vunpack.c.h.b16 %v4393
    %v4544 = vunpack.c.l.b16 %v4394
    %v4545 = vunpack.c.h.b16 %v4394
    %v4546 = vunpack.c.l.b16 %v4395
    %v4547 = vunpack.c.h.b16 %v4395
    %v4548 = vunpack.c.l.b16 %v4396
    %v4549 = vunpack.c.h.b16 %v4396
    %v4550 = vunpack.c.l.b16 %v4397
    %v4551 = vunpack.c.h.b16 %v4397
    %v4552 = vunpack.c.l.b16 %v4398
    %v4553 = vunpack.c.h.b16 %v4398
    %v4554 = vunpack.c.l.b16 %v4399
    %v4555 = vunpack.c.h.b16 %v4399
    %v4556 = vunpack.c.l.b16 %v4400
    %v4557 = vunpack.c.h.b16 %v4400
    %v4558 = vunpack.c.l.b16 %v4401
    %v4559 = vunpack.c.h.b16 %v4401
    %v4560 = vunpack.c.l.b16 %v4402
    %v4561 = vunpack.c.h.b16 %v4402
    %v4562 = vunpack.c.l.b16 %v4403
    %v4563 = vunpack.c.h.b16 %v4403
    %v4564 = vunpack.c.l.b16 %v4404
    %v4565 = vunpack.c.h.b16 %v4404
    %v4566 = vunpack.c.l.b16 %v4405
    %v4567 = vunpack.c.h.b16 %v4405
    %v4568 = vunpack.c.l.b16 %v4406
    %v4569 = vunpack.c.h.b16 %v4406
    %v4570 = vunpack.c.l.b16 %v4407
    %v4571 = vunpack.c.h.b16 %v4407
    %v4572 = vunpack.c.l.b16 %v4408
    %v4573 = vunpack.c.h.b16 %v4408
    %v4574 = vunpack.c.l.b16 %v4409
    %v4575 = vunpack.c.h.b16 %v4409
    %v4576 = vunpack.c.l.b16 %v4410
    %v4577 = vunpack.c.h.b16 %v4410
    %v4578 = vunpack.c.l.b16 %v4411
    %v4579 = vunpack.c.h.b16 %v4411
    %v4580 = vunpack.c.l.b16 %v4412
    %v4581 = vunpack.c.h.b16 %v4412
    %v4582 = vunpack.c.l.b16 %v4413
    %v4583 = vunpack.c.h.b16 %v4413
    %v4584 = vunpack.c.l.b16 %v4414
    %v4585 = vunpack.c.h.b16 %v4414
    %v4586 = vunpack.c.l.b16 %v4415
    %v4587 = vunpack.c.h.b16 %v4415
    %v4588 = vunpack.c.l.b16 %v4416
    %v4589 = vunpack.c.h.b16 %v4416
    %v4590 = vunpack.c.l.b16 %v4417
    %v4591 = vunpack.c.h.b16 %v4417
    %v4592 = vunpack.c.l.b16 %v4418
    %v4593 = vunpack.c.h.b16 %v4418
    %v4594 = vunpack.c.l.b16 %v4419
    %v4595 = vunpack.c.h.b16 %v4419
    %v4596 = vunpack.c.l.b16 %v4420
    %v4597 = vunpack.c.h.b16 %v4420
    %v4598 = vunpack.c.l.b16 %v4421
    %v4599 = vunpack.c.h.b16 %v4421
    %v4600 = vunpack.c.l.b16 %v4422
    %v4601 = vunpack.c.h.b16 %v4422
    %v4602 = vunpack.c.l.b16 %v4423
    %v4603 = vunpack.c.h.b16 %v4423
    %v4604 = vunpack.c.l.b16 %v4424
    %v4605 = vunpack.c.h.b16 %v4424
    %v4606 = vunpack.c.l.b16 %v4425
    %v4607 = vunpack.c.h.b16 %v4425
    %v4608 = vunpack.c.l.b16 %v4426
    %v4609 = vunpack.c.h.b16 %v4426
    %v4610 = vunpack.c.l.b16 %v4427
    %v4611 = vunpack.c.h.b16 %v4427
    %v4612 = vunpack.c.l.b16 %v4428
    %v4613 = vunpack.c.h.b16 %v4428
    %v4614 = vunpack.c.l.b16 %v4429
    %v4615 = vunpack.c.h.b16 %v4429
    %v4616 = vunpack.c.l.b16 %v4430
    %v4617 = vunpack.c.h.b16 %v4430
    %v4618 = vunpack.c.l.b16 %v4431
    %v4619 = vunpack.c.h.b16 %v4431
    %v4620 = vunpack.c.l.b16 %v4432
    %v4621 = vunpack.c.h.b16 %v4432
    %v4622 = vunpack.c.l.b16 %v4433
    %v4623 = vunpack.c.h.b16 %v4433
    %v4624 = vunpack.c.l.b16 %v4434
    %v4625 = vunpack.c.h.b16 %v4434
    %v4626 = vunpack.c.l.b16 %v4435
    %v4627 = vunpack.c.h.b16 %v4435
    %v4628 = vunpack.c.l.b16 %v4436
    %v4629 = vunpack.c.h.b16 %v4436
    %v4630 = vunpack.c.l.b16 %v4437
    %v4631 = vunpack.c.h.b16 %v4437
    %v4632 = vunpack.c.l.b16 %v4438
    %v4633 = vunpack.c.h.b16 %v4438
    %v4634 = vunpack.c.l.b16 %v4439
    %v4635 = vunpack.c.h.b16 %v4439
    %v4636 = vunpack.c.l.b16 %v4440
    %v4637 = vunpack.c.h.b16 %v4440
    %v4638 = vunpack.c.l.b16 %v4441
    %v4639 = vunpack.c.h.b16 %v4441
    %v4640 = vpack.c.b16 %v4514, %v4512
    %v4641 = vpack.c.b16 %v4515, %v4513
    %v4642 = vpack.c.b16 %v4518, %v4516
    %v4643 = vpack.c.b16 %v4519, %v4517
    %v4644 = vpack.c.b16 %v4522, %v4520
    %v4645 = vpack.c.b16 %v4523, %v4521
    %v4646 = vpack.c.b16 %v4526, %v4524
    %v4647 = vpack.c.b16 %v4527, %v4525
    %v4648 = vpack.c.b16 %v4530, %v4528
    %v4649 = vpack.c.b16 %v4531, %v4529
    %v4650 = vpack.c.b16 %v4534, %v4532
    %v4651 = vpack.c.b16 %v4535, %v4533
    %v4652 = vpack.c.b16 %v4538, %v4536
    %v4653 = vpack.c.b16 %v4539, %v4537
    %v4654 = vpack.c.b16 %v4542, %v4540
    %v4655 = vpack.c.b16 %v4543, %v4541
    %v4656 = vpack.c.b16 %v4546, %v4544
    %v4657 = vpack.c.b16 %v4547, %v4545
    %v4658 = vpack.c.b16 %v4550, %v4548
    %v4659 = vpack.c.b16 %v4551, %v4549
    %v4660 = vpack.c.b16 %v4554, %v4552
    %v4661 = vpack.c.b16 %v4555, %v4553
    %v4662 = vpack.c.b16 %v4558, %v4556
    %v4663 = vpack.c.b16 %v4559, %v4557
    %v4664 = vpack.c.b16 %v4562, %v4560
    %v4665 = vpack.c.b16 %v4563, %v4561
    %v4666 = vpack.c.b16 %v4566, %v4564
    %v4667 = vpack.c.b16 %v4567, %v4565
    %v4668 = vpack.c.b16 %v4570, %v4568
    %v4669 = vpack.c.b16 %v4571, %v4569
    %v4670 = vpack.c.b16 %v4574, %v4572
    %v4671 = vpack.c.b16 %v4575, %v4573
    %v4672 = vpack.c.b16 %v4578, %v4576
    %v4673 = vpack.c.b16 %v4579, %v4577
    %v4674 = vpack.c.b16 %v4582, %v4580
    %v4675 = vpack.c.b16 %v4583, %v4581
    %v4676 = vpack.c.b16 %v4586, %v4584
    %v4677 = vpack.c.b16 %v4587, %v4585
    %v4678 = vpack.c.b16 %v4590, %v4588
    %v4679 = vpack.c.b16 %v4591, %v4589
    %v4680 = vpack.c.b16 %v4594, %v4592
    %v4681 = vpack.c.b16 %v4595, %v4593
    %v4682 = vpack.c.b16 %v4598, %v4596
    %v4683 = vpack.c.b16 %v4599, %v4597
    %v4684 = vpack.c.b16 %v4602, %v4600
    %v4685 = vpack.c.b16 %v4603, %v4601
    %v4686 = vpack.c.b16 %v4606, %v4604
    %v4687 = vpack.c.b16 %v4607, %v4605
    %v4688 = vpack.c.b16 %v4610, %v4608
    %v4689 = vpack.c.b16 %v4611, %v4609
    %v4690 = vpack.c.b16 %v4614, %v4612
    %v4691 = vpack.c.b16 %v4615, %v4613
    %v4692 = vpack.c.b16 %v4618, %v4616
    %v4693 = vpack.c.b16 %v4619, %v4617
    %v4694 = vpack.c.b16 %v4622, %v4620
    %v4695 = vpack.c.b16 %v4623, %v4621
    %v4696 = vpack.c.b16 %v4626, %v4624
    %v4697 = vpack.c.b16 %v4627, %v4625
    %v4698 = vpack.c.b16 %v4630, %v4628
    %v4699 = vpack.c.b16 %v4631, %v4629
    %v4700 = vpack.c.b16 %v4634, %v4632
    %v4701 = vpack.c.b16 %v4635, %v4633
    %v4702 = vpack.c.b16 %v4638, %v4636
    %v4703 = vpack.c.b16 %v4639, %v4637
    %4768 = vmatpush.bf16.msra.mxu0 %v4654
    %4769 = vmatpush.bf16.msra.mxu0 %v4652
    %4770 = vmatpush.bf16.msra.mxu0 %v4650
    %4771 = vmatpush.bf16.msra.mxu0 %v4648
    %4772 = vmatpush.bf16.msra.mxu0 %v4646
    %4773 = vmatpush.bf16.msra.mxu0 %v4644
    %4774 = vmatpush.bf16.msra.mxu0 %v4642
    %4775 = vmatpush.bf16.msra.mxu0 %v4640
    %4776 = vmatmul.bf16.gmra.mxu0 %v4374
    %v4777 = vpop.f32.mrf.mxu0
    %v4778 = vadd.f32 %v4444, %v4777
    %v4779 = vpop.f32.mrf.mxu0
    %4780 = vdwg.mxu0
    %4781 = vmatpush.bf16.msra.mxu0 %v4670
    %4782 = vmatpush.bf16.msra.mxu0 %v4668
    %4783 = vmatpush.bf16.msra.mxu0 %v4666
    %4784 = vmatpush.bf16.msra.mxu0 %v4664
    %4785 = vmatpush.bf16.msra.mxu0 %v4662
    %4786 = vmatpush.bf16.msra.mxu0 %v4660
    %4787 = vmatpush.bf16.msra.mxu0 %v4658
    %4788 = vmatpush.bf16.msra.mxu0 %v4656
    %4789 = vmatmul.bf16.gmra.mxu0 %v4375
    %v4790 = vpop.f32.mrf.mxu0
    %v4791 = vadd.f32 %v4778, %v4790
    %v4792 = vpop.f32.mrf.mxu0
    %4793 = vdwg.mxu0
    %4794 = vmatpush.bf16.msra.mxu0 %v4686
    %4795 = vmatpush.bf16.msra.mxu0 %v4684
    %4796 = vmatpush.bf16.msra.mxu0 %v4682
    %4797 = vmatpush.bf16.msra.mxu0 %v4680
    %4798 = vmatpush.bf16.msra.mxu0 %v4678
    %4799 = vmatpush.bf16.msra.mxu0 %v4676
    %4800 = vmatpush.bf16.msra.mxu0 %v4674
    %4801 = vmatpush.bf16.msra.mxu0 %v4672
    %4802 = vmatmul.bf16.gmra.mxu0 %v4376
    %v4803 = vpop.f32.mrf.mxu0
    %v4804 = vadd.f32 %v4791, %v4803
    %v4805 = vpop.f32.mrf.mxu0
    %4806 = vdwg.mxu0
    %4807 = vmatpush.bf16.msra.mxu0 %v4702
    %4808 = vmatpush.bf16.msra.mxu0 %v4700
    %4809 = vmatpush.bf16.msra.mxu0 %v4698
    %4810 = vmatpush.bf16.msra.mxu0 %v4696
    %4811 = vmatpush.bf16.msra.mxu0 %v4694
    %4812 = vmatpush.bf16.msra.mxu0 %v4692
    %4813 = vmatpush.bf16.msra.mxu0 %v4690
    %4814 = vmatpush.bf16.msra.mxu0 %v4688
    %4815 = vmatmul.bf16.gmra.mxu0 %v4377
    %v4816 = vpop.f32.mrf.mxu0
    %v4817 = vadd.f32 %v4804, %v4816
    %v4818 = vpop.f32.mrf.mxu0
    %4819 = vdwg.mxu0
    %4820 = vmatpush.bf16.msra.mxu0 %v4655
    %4821 = vmatpush.bf16.msra.mxu0 %v4653
    %4822 = vmatpush.bf16.msra.mxu0 %v4651
    %4823 = vmatpush.bf16.msra.mxu0 %v4649
    %4824 = vmatpush.bf16.msra.mxu0 %v4647
    %4825 = vmatpush.bf16.msra.mxu0 %v4645
    %4826 = vmatpush.bf16.msra.mxu0 %v4643
    %4827 = vmatpush.bf16.msra.mxu0 %v4641
    %4828 = vmatmul.bf16.gmra.mxu0 %v4374
    %v4829 = vpop.f32.mrf.mxu0
    %v4830 = vadd.f32 %v4445, %v4829
    %v4831 = vpop.f32.mrf.mxu0
    %4832 = vdwg.mxu0
    %4833 = vmatpush.bf16.msra.mxu0 %v4671
    %4834 = vmatpush.bf16.msra.mxu0 %v4669
    %4835 = vmatpush.bf16.msra.mxu0 %v4667
    %4836 = vmatpush.bf16.msra.mxu0 %v4665
    %4837 = vmatpush.bf16.msra.mxu0 %v4663
    %4838 = vmatpush.bf16.msra.mxu0 %v4661
    %4839 = vmatpush.bf16.msra.mxu0 %v4659
    %4840 = vmatpush.bf16.msra.mxu0 %v4657
    %4841 = vmatmul.bf16.gmra.mxu0 %v4375
    %v4842 = vpop.f32.mrf.mxu0
    %v4843 = vadd.f32 %v4830, %v4842
    %v4844 = vpop.f32.mrf.mxu0
    %4845 = vdwg.mxu0
    %4846 = vmatpush.bf16.msra.mxu0 %v4687
    %4847 = vmatpush.bf16.msra.mxu0 %v4685
    %4848 = vmatpush.bf16.msra.mxu0 %v4683
    %4849 = vmatpush.bf16.msra.mxu0 %v4681
    %4850 = vmatpush.bf16.msra.mxu0 %v4679
    %4851 = vmatpush.bf16.msra.mxu0 %v4677
    %4852 = vmatpush.bf16.msra.mxu0 %v4675
    %4853 = vmatpush.bf16.msra.mxu0 %v4673
    %4854 = vmatmul.bf16.gmra.mxu0 %v4376
    %v4855 = vpop.f32.mrf.mxu0
    %v4856 = vadd.f32 %v4843, %v4855
    %v4857 = vpop.f32.mrf.mxu0
    %4858 = vdwg.mxu0
    %4859 = vmatpush.bf16.msra.mxu0 %v4703
    %4860 = vmatpush.bf16.msra.mxu0 %v4701
    %4861 = vmatpush.bf16.msra.mxu0 %v4699
    %4862 = vmatpush.bf16.msra.mxu0 %v4697
    %4863 = vmatpush.bf16.msra.mxu0 %v4695
    %4864 = vmatpush.bf16.msra.mxu0 %v4693
    %4865 = vmatpush.bf16.msra.mxu0 %v4691
    %4866 = vmatpush.bf16.msra.mxu0 %v4689
    %4867 = vmatmul.bf16.gmra.mxu0 %v4377
    %v4868 = vpop.f32.mrf.mxu0
    %v4869 = vadd.f32 %v4856, %v4868
    %v4870 = vpop.f32.mrf.mxu0
    %4871 = vdwg.mxu0
    %v4872 = vmax.f32 %v4817, 0.0
    %v4873 = vmax.f32 %v4869, 0.0
    %v4874 = vpack.c.bf16 %v4872, %v4872
    %v4875 = vpack.c.bf16 %v4873, %v4873
    %v4876 = vld [vmem:[%s11] sm:$0xf]
    %v4877 = vld [vmem:[%s11 + $0x4] sm:$0xf]
    %v4878 = vld [vmem:[%s11 + $0x8] sm:$0xf]
    %v4879 = vld [vmem:[%s11 + $0xc] sm:$0xf]
    %v4880 = vld [vmem:[%s11 + $0x10] sm:$0xf]
    %v4881 = vld [vmem:[%s11 + $0x14] sm:$0xf]
    %v4882 = vld [vmem:[%s11 + $0x18] sm:$0xf]
    %v4883 = vld [vmem:[%s11 + $0x1c] sm:$0xf]
    %v4884 = vld [vmem:[%s11 + $0x20] sm:$0xf]
    %v4885 = vld [vmem:[%s11 + $0x24] sm:$0xf]
    %v4886 = vld [vmem:[%s11 + $0x28] sm:$0xf]
    %v4887 = vld [vmem:[%s11 + $0x2c] sm:$0xf]
    %v4888 = vld [vmem:[%s11 + $0x30] sm:$0xf]
    %v4889 = vld [vmem:[%s11 + $0x34] sm:$0xf]
    %v4890 = vld [vmem:[%s11 + $0x38] sm:$0xf]
    %v4891 = vld [vmem:[%s11 + $0x3c] sm:$0xf]
    %v4892 = vld [vmem:[%s11 + $0x40] sm:$0xf]
    %v4893 = vld [vmem:[%s11 + $0x44] sm:$0xf]
    %v4894 = vld [vmem:[%s11 + $0x48] sm:$0xf]
    %v4895 = vld [vmem:[%s11 + $0x4c] sm:$0xf]
    %v4896 = vld [vmem:[%s11 + $0x50] sm:$0xf]
    %v4897 = vld [vmem:[%s11 + $0x54] sm:$0xf]
    %v4898 = vld [vmem:[%s11 + $0x58] sm:$0xf]
    %v4899 = vld [vmem:[%s11 + $0x5c] sm:$0xf]
    %v4900 = vld [vmem:[%s11 + $0x60] sm:$0xf]
    %v4901 = vld [vmem:[%s11 + $0x64] sm:$0xf]
    %v4902 = vld [vmem:[%s11 + $0x68] sm:$0xf]
    %v4903 = vld [vmem:[%s11 + $0x6c] sm:$0xf]
    %v4904 = vld [vmem:[%s11 + $0x70] sm:$0xf]
    %v4905 = vld [vmem:[%s11 + $0x74] sm:$0xf]
    %v4906 = vld [vmem:[%s11 + $0x78] sm:$0xf]
    %v4907 = vld [vmem:[%s11 + $0x7c] sm:$0xf]
    %v4908 = vld [vmem:[%s12] sm:$0x1]
    %v4910 = vperm.slane %v4908, 0
    %v4944 = vunpack.c.l.b16 %v4876
    %v4945 = vunpack.c.l.b16 %v4877
    %v4946 = vunpack.c.l.b16 %v4878
    %v4947 = vunpack.c.l.b16 %v4879
    %v4948 = vunpack.c.l.b16 %v4880
    %v4949 = vunpack.c.l.b16 %v4881
    %v4950 = vunpack.c.l.b16 %v4882
    %v4951 = vunpack.c.l.b16 %v4883
    %v4952 = vunpack.c.l.b16 %v4884
    %v4953 = vunpack.c.l.b16 %v4885
    %v4954 = vunpack.c.l.b16 %v4886
    %v4955 = vunpack.c.l.b16 %v4887
    %v4956 = vunpack.c.l.b16 %v4888
    %v4957 = vunpack.c.l.b16 %v4889
    %v4958 = vunpack.c.l.b16 %v4890
    %v4959 = vunpack.c.l.b16 %v4891
    %v4960 = vunpack.c.l.b16 %v4892
    %v4961 = vunpack.c.l.b16 %v4893
    %v4962 = vunpack.c.l.b16 %v4894
    %v4963 = vunpack.c.l.b16 %v4895
    %v4964 = vunpack.c.l.b16 %v4896
    %v4965 = vunpack.c.l.b16 %v4897
    %v4966 = vunpack.c.l.b16 %v4898
    %v4967 = vunpack.c.l.b16 %v4899
    %v4968 = vunpack.c.l.b16 %v4900
    %v4969 = vunpack.c.l.b16 %v4901
    %v4970 = vunpack.c.l.b16 %v4902
    %v4971 = vunpack.c.l.b16 %v4903
    %v4972 = vunpack.c.l.b16 %v4904
    %v4973 = vunpack.c.l.b16 %v4905
    %v4974 = vunpack.c.l.b16 %v4906
    %v4975 = vunpack.c.l.b16 %v4907
    %v4976 = vpack.c.b16 %v4945, %v4944
    %v4977 = vpack.c.b16 %v4947, %v4946
    %v4978 = vpack.c.b16 %v4949, %v4948
    %v4979 = vpack.c.b16 %v4951, %v4950
    %v4980 = vpack.c.b16 %v4953, %v4952
    %v4981 = vpack.c.b16 %v4955, %v4954
    %v4982 = vpack.c.b16 %v4957, %v4956
    %v4983 = vpack.c.b16 %v4959, %v4958
    %v4984 = vpack.c.b16 %v4961, %v4960
    %v4985 = vpack.c.b16 %v4963, %v4962
    %v4986 = vpack.c.b16 %v4965, %v4964
    %v4987 = vpack.c.b16 %v4967, %v4966
    %v4988 = vpack.c.b16 %v4969, %v4968
    %v4989 = vpack.c.b16 %v4971, %v4970
    %v4990 = vpack.c.b16 %v4973, %v4972
    %v4991 = vpack.c.b16 %v4975, %v4974
    %5008 = vmatpush.bf16.msra.mxu0 %v4983
    %5009 = vmatpush.bf16.msra.mxu0 %v4982
    %5010 = vmatpush.bf16.msra.mxu0 %v4981
    %5011 = vmatpush.bf16.msra.mxu0 %v4980
    %5012 = vmatpush.bf16.msra.mxu0 %v4979
    %5013 = vmatpush.bf16.msra.mxu0 %v4978
    %5014 = vmatpush.bf16.msra.mxu0 %v4977
    %5015 = vmatpush.bf16.msra.mxu0 %v4976
    %5016 = vmatmul.bf16.gmra.mxu0 %v4874
    %v5017 = vpop.f32.mrf.mxu0
    %v5018 = vadd.f32 %v4910, %v5017
    %v5019 = vpop.f32.mrf.mxu0
    %5020 = vdwg.mxu0
    %5021 = vmatpush.bf16.msra.mxu0 %v4991
    %5022 = vmatpush.bf16.msra.mxu0 %v4990
    %5023 = vmatpush.bf16.msra.mxu0 %v4989
    %5024 = vmatpush.bf16.msra.mxu0 %v4988
    %5025 = vmatpush.bf16.msra.mxu0 %v4987
    %5026 = vmatpush.bf16.msra.mxu0 %v4986
    %5027 = vmatpush.bf16.msra.mxu0 %v4985
    %5028 = vmatpush.bf16.msra.mxu0 %v4984
    %5029 = vmatmul.bf16.gmra.mxu0 %v4875
    %v5030 = vpop.f32.mrf.mxu0
    %v5031 = vadd.f32 %v5018, %v5030
    %v5032 = vpop.f32.mrf.mxu0
    %5033 = vdwg.mxu0
    %v5034 = vlaneseq
    %v5035 = vand.u32 %v5034, 127
    %vm5036 = vcmp.lt.s32.totalorder %v5035, 0
    %v5037 = vsub.s32 0, %v5035
    %v5038 = vsel %vm5036, %v5037, %v5035
    %v5039 = vshrl.u32 %v5038, 2
    %v5040 = vand.u32 %v5038, 3
    %v5041 = vsub.s32 0, %v5040
    %v5042 = vsel %vm5036, %v5041, %v5040
    %vm5043 = vcmp.ne.s32.totalorder %v5042, 0
    %vm5044 = vcmp.lt.s32.totalorder %v5042, 0
    %vm5045 = vmand %vm5044, %vm5043
    %v5046 = vadd.s32 %v5042, 4
    %v5047 = vsel %vm5045, %v5046, %v5042
    %vm5048 = vcmp.eq.s32.totalorder %v5047, 0
    %v5049 = vsel %vm5048, 1.0, 0.0
    %v5050 = vadd.f32 %v5031, %v5049
    %vm5051 = vcmask 66560
    %5052 = vst.msk [vmem:[%s19] sm:$0x3] %vm5051, %v5050
    %5069 = vrot.lane.b32.xlu0 %v244, 64
    %v5070 = vpop.permute.xlu0 %5069
    %5071 = vrot.lane.b32.xlu0 %v246, 64
    %v5072 = vpop.permute.xlu0 %5071
    %5073 = vrot.lane.b32.xlu0 %v249, 64
    %v5074 = vpop.permute.xlu0 %5073
    %5075 = vrot.lane.b32.xlu0 %v251, 64
    %v5076 = vpop.permute.xlu0 %5075
    %5077 = vrot.lane.b32.xlu0 %v254, 64
    %v5078 = vpop.permute.xlu0 %5077
    %5079 = vrot.lane.b32.xlu0 %v256, 64
    %v5080 = vpop.permute.xlu0 %5079
    %5081 = vrot.lane.b32.xlu0 %v259, 64
    %v5082 = vpop.permute.xlu0 %5081
    %5083 = vrot.lane.b32.xlu0 %v261, 64
    %v5084 = vpop.permute.xlu0 %5083
    %5085 = vrot.lane.b32.xlu0 %v264, 64
    %v5086 = vpop.permute.xlu0 %5085
    %5087 = vrot.lane.b32.xlu0 %v266, 64
    %v5088 = vpop.permute.xlu0 %5087
    %5089 = vrot.lane.b32.xlu0 %v269, 64
    %v5090 = vpop.permute.xlu0 %5089
    %5091 = vrot.lane.b32.xlu0 %v271, 64
    %v5092 = vpop.permute.xlu0 %5091
    %5093 = vrot.lane.b32.xlu0 %v274, 64
    %v5094 = vpop.permute.xlu0 %5093
    %5095 = vrot.lane.b32.xlu0 %v276, 64
    %v5096 = vpop.permute.xlu0 %5095
    %5097 = vrot.lane.b32.xlu0 %v279, 64
    %v5098 = vpop.permute.xlu0 %5097
    %5099 = vrot.lane.b32.xlu0 %v281, 64
    %v5100 = vpop.permute.xlu0 %5099
    %5101 = vrot.lane.b32.xlu0 %v244, 61
    %v5102 = vpop.permute.xlu0 %5101
    %5103 = vrot.lane.b32.xlu0 %v246, 61
    %v5104 = vpop.permute.xlu0 %5103
    %5105 = vrot.lane.b32.xlu0 %v249, 61
    %v5106 = vpop.permute.xlu0 %5105
    %5107 = vrot.lane.b32.xlu0 %v251, 61
    %v5108 = vpop.permute.xlu0 %5107
    %5109 = vrot.lane.b32.xlu0 %v254, 61
    %v5110 = vpop.permute.xlu0 %5109
    %5111 = vrot.lane.b32.xlu0 %v256, 61
    %v5112 = vpop.permute.xlu0 %5111
    %5113 = vrot.lane.b32.xlu0 %v259, 61
    %v5114 = vpop.permute.xlu0 %5113
    %5115 = vrot.lane.b32.xlu0 %v261, 61
    %v5116 = vpop.permute.xlu0 %5115
    %5117 = vrot.lane.b32.xlu0 %v264, 61
    %v5118 = vpop.permute.xlu0 %5117
    %5119 = vrot.lane.b32.xlu0 %v266, 61
    %v5120 = vpop.permute.xlu0 %5119
    %5121 = vrot.lane.b32.xlu0 %v269, 61
    %v5122 = vpop.permute.xlu0 %5121
    %5123 = vrot.lane.b32.xlu0 %v271, 61
    %v5124 = vpop.permute.xlu0 %5123
    %5125 = vrot.lane.b32.xlu0 %v274, 61
    %v5126 = vpop.permute.xlu0 %5125
    %5127 = vrot.lane.b32.xlu0 %v276, 61
    %v5128 = vpop.permute.xlu0 %5127
    %5129 = vrot.lane.b32.xlu0 %v279, 61
    %v5130 = vpop.permute.xlu0 %5129
    %5131 = vrot.lane.b32.xlu0 %v281, 61
    %v5132 = vpop.permute.xlu0 %5131
    %v5133 = vsel %vm178, %v5070, 0
    %v5135 = vsel %vm178, %v5072, 0
    %v5137 = vsel %vm178, %v5074, 0
    %v5139 = vsel %vm178, %v5076, 0
    %v5141 = vsel %vm178, %v5078, 0
    %v5143 = vsel %vm178, %v5080, 0
    %v5145 = vsel %vm178, %v5082, 0
    %v5147 = vsel %vm178, %v5084, 0
    %v5149 = vsel %vm178, %v5086, 0
    %v5151 = vsel %vm178, %v5088, 0
    %v5153 = vsel %vm178, %v5090, 0
    %v5155 = vsel %vm178, %v5092, 0
    %v5157 = vsel %vm178, %v5094, 0
    %v5159 = vsel %vm178, %v5096, 0
    %v5161 = vsel %vm178, %v5098, 0
    %v5163 = vsel %vm178, %v5100, 0
    %v5165 = vsel %vm178, %v5102, 0
    %v5167 = vsel %vm178, %v5104, 0
    %v5169 = vsel %vm178, %v5106, 0
    %v5171 = vsel %vm178, %v5108, 0
    %v5173 = vsel %vm178, %v5110, 0
    %v5175 = vsel %vm178, %v5112, 0
    %v5177 = vsel %vm178, %v5114, 0
    %v5179 = vsel %vm178, %v5116, 0
    %v5181 = vsel %vm178, %v5118, 0
    %v5183 = vsel %vm178, %v5120, 0
    %v5185 = vsel %vm178, %v5122, 0
    %v5187 = vsel %vm178, %v5124, 0
    %v5189 = vsel %vm178, %v5126, 0
    %v5191 = vsel %vm178, %v5128, 0
    %v5193 = vsel %vm178, %v5130, 0
    %v5195 = vsel %vm178, %v5132, 0
    %5197 = vmatpush.xpose.msra.mxu0 %v5195
    %5198 = vmatpush.xpose.msra.mxu0 %v5193
    %5199 = vmatpush.xpose.msra.mxu0 %v5191
    %5200 = vmatpush.xpose.msra.mxu0 %v5189
    %5201 = vmatpush.xpose.msra.mxu0 %v5187
    %5202 = vmatpush.xpose.msra.mxu0 %v5185
    %5203 = vmatpush.xpose.msra.mxu0 %v5183
    %5204 = vmatpush.xpose.msra.mxu0 %v5181
    %5205 = vmatpush.xpose.msra.mxu0 %v5179
    %5206 = vmatpush.xpose.msra.mxu0 %v5177
    %5207 = vmatpush.xpose.msra.mxu0 %v5175
    %5208 = vmatpush.xpose.msra.mxu0 %v5173
    %5209 = vmatpush.xpose.msra.mxu0 %v5171
    %5210 = vmatpush.xpose.msra.mxu0 %v5169
    %5211 = vmatpush.xpose.msra.mxu0 %v5167
    %5212 = vmatpush.xpose.msra.mxu0 %v5165
    %5213 = vmatmul.f32.gmra.mxu0 %v5133
    %v5214 = vpop.f32.mrf.mxu0
    %v5215 = vadd.f32 0.0, %v5214
    %5216 = vmatmul.f32.gmra.mxu0 %v5135
    %v5217 = vpop.f32.mrf.mxu0
    %v5218 = vadd.f32 0.0, %v5217
    %5219 = vmatmul.f32.gmra.mxu0 %v5137
    %v5220 = vpop.f32.mrf.mxu0
    %v5221 = vadd.f32 0.0, %v5220
    %5222 = vmatmul.f32.gmra.mxu0 %v5139
    %v5223 = vpop.f32.mrf.mxu0
    %v5224 = vadd.f32 0.0, %v5223
    %5225 = vmatmul.f32.gmra.mxu0 %v5141
    %v5226 = vpop.f32.mrf.mxu0
    %v5227 = vadd.f32 0.0, %v5226
    %5228 = vmatmul.f32.gmra.mxu0 %v5143
    %v5229 = vpop.f32.mrf.mxu0
    %v5230 = vadd.f32 0.0, %v5229
    %5231 = vmatmul.f32.gmra.mxu0 %v5145
    %v5232 = vpop.f32.mrf.mxu0
    %v5233 = vadd.f32 0.0, %v5232
    %5234 = vmatmul.f32.gmra.mxu0 %v5147
    %v5235 = vpop.f32.mrf.mxu0
    %v5236 = vadd.f32 0.0, %v5235
    %5237 = vmatmul.f32.gmra.mxu0 %v5149
    %v5238 = vpop.f32.mrf.mxu0
    %v5239 = vadd.f32 0.0, %v5238
    %5240 = vmatmul.f32.gmra.mxu0 %v5151
    %v5241 = vpop.f32.mrf.mxu0
    %v5242 = vadd.f32 0.0, %v5241
    %5243 = vmatmul.f32.gmra.mxu0 %v5153
    %v5244 = vpop.f32.mrf.mxu0
    %v5245 = vadd.f32 0.0, %v5244
    %5246 = vmatmul.f32.gmra.mxu0 %v5155
    %v5247 = vpop.f32.mrf.mxu0
    %v5248 = vadd.f32 0.0, %v5247
    %5249 = vmatmul.f32.gmra.mxu0 %v5157
    %v5250 = vpop.f32.mrf.mxu0
    %v5251 = vadd.f32 0.0, %v5250
    %5252 = vmatmul.f32.gmra.mxu0 %v5159
    %v5253 = vpop.f32.mrf.mxu0
    %v5254 = vadd.f32 0.0, %v5253
    %5255 = vmatmul.f32.gmra.mxu0 %v5161
    %v5256 = vpop.f32.mrf.mxu0
    %v5257 = vadd.f32 0.0, %v5256
    %5258 = vmatmul.f32.gmra.mxu0 %v5163
    %v5259 = vpop.f32.mrf.mxu0
    %v5260 = vadd.f32 0.0, %v5259
    %5261 = vdwg.mxu0
    %5278 = vrot.lane.b32.xlu0 %v284, 64
    %v5279 = vpop.permute.xlu0 %5278
    %5280 = vrot.lane.b32.xlu0 %v286, 64
    %v5281 = vpop.permute.xlu0 %5280
    %5282 = vrot.lane.b32.xlu0 %v289, 64
    %v5283 = vpop.permute.xlu0 %5282
    %5284 = vrot.lane.b32.xlu0 %v291, 64
    %v5285 = vpop.permute.xlu0 %5284
    %5286 = vrot.lane.b32.xlu0 %v294, 64
    %v5287 = vpop.permute.xlu0 %5286
    %5288 = vrot.lane.b32.xlu0 %v296, 64
    %v5289 = vpop.permute.xlu0 %5288
    %5290 = vrot.lane.b32.xlu0 %v299, 64
    %v5291 = vpop.permute.xlu0 %5290
    %5292 = vrot.lane.b32.xlu0 %v301, 64
    %v5293 = vpop.permute.xlu0 %5292
    %5294 = vrot.lane.b32.xlu0 %v304, 64
    %v5295 = vpop.permute.xlu0 %5294
    %5296 = vrot.lane.b32.xlu0 %v306, 64
    %v5297 = vpop.permute.xlu0 %5296
    %5298 = vrot.lane.b32.xlu0 %v309, 64
    %v5299 = vpop.permute.xlu0 %5298
    %5300 = vrot.lane.b32.xlu0 %v311, 64
    %v5301 = vpop.permute.xlu0 %5300
    %5302 = vrot.lane.b32.xlu0 %v314, 64
    %v5303 = vpop.permute.xlu0 %5302
    %5304 = vrot.lane.b32.xlu0 %v316, 64
    %v5305 = vpop.permute.xlu0 %5304
    %5306 = vrot.lane.b32.xlu0 %v319, 64
    %v5307 = vpop.permute.xlu0 %5306
    %5308 = vrot.lane.b32.xlu0 %v321, 64
    %v5309 = vpop.permute.xlu0 %5308
    %5310 = vrot.lane.b32.xlu0 %v284, 61
    %v5311 = vpop.permute.xlu0 %5310
    %5312 = vrot.lane.b32.xlu0 %v286, 61
    %v5313 = vpop.permute.xlu0 %5312
    %5314 = vrot.lane.b32.xlu0 %v289, 61
    %v5315 = vpop.permute.xlu0 %5314
    %5316 = vrot.lane.b32.xlu0 %v291, 61
    %v5317 = vpop.permute.xlu0 %5316
    %5318 = vrot.lane.b32.xlu0 %v294, 61
    %v5319 = vpop.permute.xlu0 %5318
    %5320 = vrot.lane.b32.xlu0 %v296, 61
    %v5321 = vpop.permute.xlu0 %5320
    %5322 = vrot.lane.b32.xlu0 %v299, 61
    %v5323 = vpop.permute.xlu0 %5322
    %5324 = vrot.lane.b32.xlu0 %v301, 61
    %v5325 = vpop.permute.xlu0 %5324
    %5326 = vrot.lane.b32.xlu0 %v304, 61
    %v5327 = vpop.permute.xlu0 %5326
    %5328 = vrot.lane.b32.xlu0 %v306, 61
    %v5329 = vpop.permute.xlu0 %5328
    %5330 = vrot.lane.b32.xlu0 %v309, 61
    %v5331 = vpop.permute.xlu0 %5330
    %5332 = vrot.lane.b32.xlu0 %v311, 61
    %v5333 = vpop.permute.xlu0 %5332
    %5334 = vrot.lane.b32.xlu0 %v314, 61
    %v5335 = vpop.permute.xlu0 %5334
    %5336 = vrot.lane.b32.xlu0 %v316, 61
    %v5337 = vpop.permute.xlu0 %5336
    %5338 = vrot.lane.b32.xlu0 %v319, 61
    %v5339 = vpop.permute.xlu0 %5338
    %5340 = vrot.lane.b32.xlu0 %v321, 61
    %v5341 = vpop.permute.xlu0 %5340
    %v5342 = vsel %vm178, %v5279, 0
    %v5344 = vsel %vm178, %v5281, 0
    %v5346 = vsel %vm178, %v5283, 0
    %v5348 = vsel %vm178, %v5285, 0
    %v5350 = vsel %vm178, %v5287, 0
    %v5352 = vsel %vm178, %v5289, 0
    %v5354 = vsel %vm178, %v5291, 0
    %v5356 = vsel %vm178, %v5293, 0
    %v5358 = vsel %vm178, %v5295, 0
    %v5360 = vsel %vm178, %v5297, 0
    %v5362 = vsel %vm178, %v5299, 0
    %v5364 = vsel %vm178, %v5301, 0
    %v5366 = vsel %vm178, %v5303, 0
    %v5368 = vsel %vm178, %v5305, 0
    %v5370 = vsel %vm178, %v5307, 0
    %v5372 = vsel %vm178, %v5309, 0
    %v5374 = vsel %vm178, %v5311, 0
    %v5376 = vsel %vm178, %v5313, 0
    %v5378 = vsel %vm178, %v5315, 0
    %v5380 = vsel %vm178, %v5317, 0
    %v5382 = vsel %vm178, %v5319, 0
    %v5384 = vsel %vm178, %v5321, 0
    %v5386 = vsel %vm178, %v5323, 0
    %v5388 = vsel %vm178, %v5325, 0
    %v5390 = vsel %vm178, %v5327, 0
    %v5392 = vsel %vm178, %v5329, 0
    %v5394 = vsel %vm178, %v5331, 0
    %v5396 = vsel %vm178, %v5333, 0
    %v5398 = vsel %vm178, %v5335, 0
    %v5400 = vsel %vm178, %v5337, 0
    %v5402 = vsel %vm178, %v5339, 0
    %v5404 = vsel %vm178, %v5341, 0
    %5406 = vmatpush.xpose.msra.mxu0 %v5404
    %5407 = vmatpush.xpose.msra.mxu0 %v5402
    %5408 = vmatpush.xpose.msra.mxu0 %v5400
    %5409 = vmatpush.xpose.msra.mxu0 %v5398
    %5410 = vmatpush.xpose.msra.mxu0 %v5396
    %5411 = vmatpush.xpose.msra.mxu0 %v5394
    %5412 = vmatpush.xpose.msra.mxu0 %v5392
    %5413 = vmatpush.xpose.msra.mxu0 %v5390
    %5414 = vmatpush.xpose.msra.mxu0 %v5388
    %5415 = vmatpush.xpose.msra.mxu0 %v5386
    %5416 = vmatpush.xpose.msra.mxu0 %v5384
    %5417 = vmatpush.xpose.msra.mxu0 %v5382
    %5418 = vmatpush.xpose.msra.mxu0 %v5380
    %5419 = vmatpush.xpose.msra.mxu0 %v5378
    %5420 = vmatpush.xpose.msra.mxu0 %v5376
    %5421 = vmatpush.xpose.msra.mxu0 %v5374
    %5422 = vmatmul.f32.gmra.mxu0 %v5342
    %v5423 = vpop.f32.mrf.mxu0
    %v5424 = vadd.f32 0.0, %v5423
    %5425 = vmatmul.f32.gmra.mxu0 %v5344
    %v5426 = vpop.f32.mrf.mxu0
    %v5427 = vadd.f32 0.0, %v5426
    %5428 = vmatmul.f32.gmra.mxu0 %v5346
    %v5429 = vpop.f32.mrf.mxu0
    %v5430 = vadd.f32 0.0, %v5429
    %5431 = vmatmul.f32.gmra.mxu0 %v5348
    %v5432 = vpop.f32.mrf.mxu0
    %v5433 = vadd.f32 0.0, %v5432
    %5434 = vmatmul.f32.gmra.mxu0 %v5350
    %v5435 = vpop.f32.mrf.mxu0
    %v5436 = vadd.f32 0.0, %v5435
    %5437 = vmatmul.f32.gmra.mxu0 %v5352
    %v5438 = vpop.f32.mrf.mxu0
    %v5439 = vadd.f32 0.0, %v5438
    %5440 = vmatmul.f32.gmra.mxu0 %v5354
    %v5441 = vpop.f32.mrf.mxu0
    %v5442 = vadd.f32 0.0, %v5441
    %5443 = vmatmul.f32.gmra.mxu0 %v5356
    %v5444 = vpop.f32.mrf.mxu0
    %v5445 = vadd.f32 0.0, %v5444
    %5446 = vmatmul.f32.gmra.mxu0 %v5358
    %v5447 = vpop.f32.mrf.mxu0
    %v5448 = vadd.f32 0.0, %v5447
    %5449 = vmatmul.f32.gmra.mxu0 %v5360
    %v5450 = vpop.f32.mrf.mxu0
    %v5451 = vadd.f32 0.0, %v5450
    %5452 = vmatmul.f32.gmra.mxu0 %v5362
    %v5453 = vpop.f32.mrf.mxu0
    %v5454 = vadd.f32 0.0, %v5453
    %5455 = vmatmul.f32.gmra.mxu0 %v5364
    %v5456 = vpop.f32.mrf.mxu0
    %v5457 = vadd.f32 0.0, %v5456
    %5458 = vmatmul.f32.gmra.mxu0 %v5366
    %v5459 = vpop.f32.mrf.mxu0
    %v5460 = vadd.f32 0.0, %v5459
    %5461 = vmatmul.f32.gmra.mxu0 %v5368
    %v5462 = vpop.f32.mrf.mxu0
    %v5463 = vadd.f32 0.0, %v5462
    %5464 = vmatmul.f32.gmra.mxu0 %v5370
    %v5465 = vpop.f32.mrf.mxu0
    %v5466 = vadd.f32 0.0, %v5465
    %5467 = vmatmul.f32.gmra.mxu0 %v5372
    %v5468 = vpop.f32.mrf.mxu0
    %v5469 = vadd.f32 0.0, %v5468
    %5470 = vdwg.mxu0
    %5471 = vmax.xlane.f32.xlu0 %v5215
    %v5472 = vpop.xlane.xlu0 %5471
    %5473 = vmax.xlane.f32.xlu0 %v5218
    %v5474 = vpop.xlane.xlu0 %5473
    %5475 = vmax.xlane.f32.xlu0 %v5221
    %v5476 = vpop.xlane.xlu0 %5475
    %5477 = vmax.xlane.f32.xlu0 %v5224
    %v5478 = vpop.xlane.xlu0 %5477
    %5479 = vmax.xlane.f32.xlu0 %v5227
    %v5480 = vpop.xlane.xlu0 %5479
    %5481 = vmax.xlane.f32.xlu0 %v5230
    %v5482 = vpop.xlane.xlu0 %5481
    %5483 = vmax.xlane.f32.xlu0 %v5233
    %v5484 = vpop.xlane.xlu0 %5483
    %5485 = vmax.xlane.f32.xlu0 %v5236
    %v5486 = vpop.xlane.xlu0 %5485
    %5487 = vmax.xlane.f32.xlu0 %v5239
    %v5488 = vpop.xlane.xlu0 %5487
    %5489 = vmax.xlane.f32.xlu0 %v5242
    %v5490 = vpop.xlane.xlu0 %5489
    %5491 = vmax.xlane.f32.xlu0 %v5245
    %v5492 = vpop.xlane.xlu0 %5491
    %5493 = vmax.xlane.f32.xlu0 %v5248
    %v5494 = vpop.xlane.xlu0 %5493
    %5495 = vmax.xlane.f32.xlu0 %v5251
    %v5496 = vpop.xlane.xlu0 %5495
    %5497 = vmax.xlane.f32.xlu0 %v5254
    %v5498 = vpop.xlane.xlu0 %5497
    %5499 = vmax.xlane.f32.xlu0 %v5257
    %v5500 = vpop.xlane.xlu0 %5499
    %5501 = vmax.xlane.f32.xlu0 %v5260
    %v5502 = vpop.xlane.xlu0 %5501
    %5503 = vmax.xlane.f32.xlu0 %v5424
    %v5504 = vpop.xlane.xlu0 %5503
    %5505 = vmax.xlane.f32.xlu0 %v5427
    %v5506 = vpop.xlane.xlu0 %5505
    %5507 = vmax.xlane.f32.xlu0 %v5430
    %v5508 = vpop.xlane.xlu0 %5507
    %5509 = vmax.xlane.f32.xlu0 %v5433
    %v5510 = vpop.xlane.xlu0 %5509
    %5511 = vmax.xlane.f32.xlu0 %v5436
    %v5512 = vpop.xlane.xlu0 %5511
    %5513 = vmax.xlane.f32.xlu0 %v5439
    %v5514 = vpop.xlane.xlu0 %5513
    %5515 = vmax.xlane.f32.xlu0 %v5442
    %v5516 = vpop.xlane.xlu0 %5515
    %5517 = vmax.xlane.f32.xlu0 %v5445
    %v5518 = vpop.xlane.xlu0 %5517
    %5519 = vmax.xlane.f32.xlu0 %v5448
    %v5520 = vpop.xlane.xlu0 %5519
    %5521 = vmax.xlane.f32.xlu0 %v5451
    %v5522 = vpop.xlane.xlu0 %5521
    %5523 = vmax.xlane.f32.xlu0 %v5454
    %v5524 = vpop.xlane.xlu0 %5523
    %5525 = vmax.xlane.f32.xlu0 %v5457
    %v5526 = vpop.xlane.xlu0 %5525
    %5527 = vmax.xlane.f32.xlu0 %v5460
    %v5528 = vpop.xlane.xlu0 %5527
    %5529 = vmax.xlane.f32.xlu0 %v5463
    %v5530 = vpop.xlane.xlu0 %5529
    %5531 = vmax.xlane.f32.xlu0 %v5466
    %v5532 = vpop.xlane.xlu0 %5531
    %5533 = vmax.xlane.f32.xlu0 %v5469
    %v5534 = vpop.xlane.xlu0 %5533
    %v5535 = vsub.f32 %v5215, %v5472
    %v5536 = vsub.f32 %v5218, %v5474
    %v5537 = vsub.f32 %v5221, %v5476
    %v5538 = vsub.f32 %v5224, %v5478
    %v5539 = vsub.f32 %v5227, %v5480
    %v5540 = vsub.f32 %v5230, %v5482
    %v5541 = vsub.f32 %v5233, %v5484
    %v5542 = vsub.f32 %v5236, %v5486
    %v5543 = vsub.f32 %v5239, %v5488
    %v5544 = vsub.f32 %v5242, %v5490
    %v5545 = vsub.f32 %v5245, %v5492
    %v5546 = vsub.f32 %v5248, %v5494
    %v5547 = vsub.f32 %v5251, %v5496
    %v5548 = vsub.f32 %v5254, %v5498
    %v5549 = vsub.f32 %v5257, %v5500
    %v5550 = vsub.f32 %v5260, %v5502
    %v5551 = vsub.f32 %v5424, %v5504
    %v5552 = vsub.f32 %v5427, %v5506
    %v5553 = vsub.f32 %v5430, %v5508
    %v5554 = vsub.f32 %v5433, %v5510
    %v5555 = vsub.f32 %v5436, %v5512
    %v5556 = vsub.f32 %v5439, %v5514
    %v5557 = vsub.f32 %v5442, %v5516
    %v5558 = vsub.f32 %v5445, %v5518
    %v5559 = vsub.f32 %v5448, %v5520
    %v5560 = vsub.f32 %v5451, %v5522
    %v5561 = vsub.f32 %v5454, %v5524
    %v5562 = vsub.f32 %v5457, %v5526
    %v5563 = vsub.f32 %v5460, %v5528
    %v5564 = vsub.f32 %v5463, %v5530
    %v5565 = vsub.f32 %v5466, %v5532
    %v5566 = vsub.f32 %v5469, %v5534
    %v5567 = vmul.f32 %v5535, 1.442695
    %v5568 = vpow.pop %v5567
    %v5569 = vmul.f32 %v5536, 1.442695
    %v5570 = vpow.pop %v5569
    %v5571 = vmul.f32 %v5537, 1.442695
    %v5572 = vpow.pop %v5571
    %v5573 = vmul.f32 %v5538, 1.442695
    %v5574 = vpow.pop %v5573
    %v5575 = vmul.f32 %v5539, 1.442695
    %v5576 = vpow.pop %v5575
    %v5577 = vmul.f32 %v5540, 1.442695
    %v5578 = vpow.pop %v5577
    %v5579 = vmul.f32 %v5541, 1.442695
    %v5580 = vpow.pop %v5579
    %v5581 = vmul.f32 %v5542, 1.442695
    %v5582 = vpow.pop %v5581
    %v5583 = vmul.f32 %v5543, 1.442695
    %v5584 = vpow.pop %v5583
    %v5585 = vmul.f32 %v5544, 1.442695
    %v5586 = vpow.pop %v5585
    %v5587 = vmul.f32 %v5545, 1.442695
    %v5588 = vpow.pop %v5587
    %v5589 = vmul.f32 %v5546, 1.442695
    %v5590 = vpow.pop %v5589
    %v5591 = vmul.f32 %v5547, 1.442695
    %v5592 = vpow.pop %v5591
    %v5593 = vmul.f32 %v5548, 1.442695
    %v5594 = vpow.pop %v5593
    %v5595 = vmul.f32 %v5549, 1.442695
    %v5596 = vpow.pop %v5595
    %v5597 = vmul.f32 %v5550, 1.442695
    %v5598 = vpow.pop %v5597
    %v5599 = vmul.f32 %v5551, 1.442695
    %v5600 = vpow.pop %v5599
    %v5601 = vmul.f32 %v5552, 1.442695
    %v5602 = vpow.pop %v5601
    %v5603 = vmul.f32 %v5553, 1.442695
    %v5604 = vpow.pop %v5603
    %v5605 = vmul.f32 %v5554, 1.442695
    %v5606 = vpow.pop %v5605
    %v5607 = vmul.f32 %v5555, 1.442695
    %v5608 = vpow.pop %v5607
    %v5609 = vmul.f32 %v5556, 1.442695
    %v5610 = vpow.pop %v5609
    %v5611 = vmul.f32 %v5557, 1.442695
    %v5612 = vpow.pop %v5611
    %v5613 = vmul.f32 %v5558, 1.442695
    %v5614 = vpow.pop %v5613
    %v5615 = vmul.f32 %v5559, 1.442695
    %v5616 = vpow.pop %v5615
    %v5617 = vmul.f32 %v5560, 1.442695
    %v5618 = vpow.pop %v5617
    %v5619 = vmul.f32 %v5561, 1.442695
    %v5620 = vpow.pop %v5619
    %v5621 = vmul.f32 %v5562, 1.442695
    %v5622 = vpow.pop %v5621
    %v5623 = vmul.f32 %v5563, 1.442695
    %v5624 = vpow.pop %v5623
    %v5625 = vmul.f32 %v5564, 1.442695
    %v5626 = vpow.pop %v5625
    %v5627 = vmul.f32 %v5565, 1.442695
    %v5628 = vpow.pop %v5627
    %v5629 = vmul.f32 %v5566, 1.442695
    %v5630 = vpow.pop %v5629
    %5631 = vadd.xlane.f32.xlu0 %v5568
    %v5632 = vpop.xlane.xlu0 %5631
    %5633 = vadd.xlane.f32.xlu0 %v5570
    %v5634 = vpop.xlane.xlu0 %5633
    %5635 = vadd.xlane.f32.xlu0 %v5572
    %v5636 = vpop.xlane.xlu0 %5635
    %5637 = vadd.xlane.f32.xlu0 %v5574
    %v5638 = vpop.xlane.xlu0 %5637
    %5639 = vadd.xlane.f32.xlu0 %v5576
    %v5640 = vpop.xlane.xlu0 %5639
    %5641 = vadd.xlane.f32.xlu0 %v5578
    %v5642 = vpop.xlane.xlu0 %5641
    %5643 = vadd.xlane.f32.xlu0 %v5580
    %v5644 = vpop.xlane.xlu0 %5643
    %5645 = vadd.xlane.f32.xlu0 %v5582
    %v5646 = vpop.xlane.xlu0 %5645
    %5647 = vadd.xlane.f32.xlu0 %v5584
    %v5648 = vpop.xlane.xlu0 %5647
    %5649 = vadd.xlane.f32.xlu0 %v5586
    %v5650 = vpop.xlane.xlu0 %5649
    %5651 = vadd.xlane.f32.xlu0 %v5588
    %v5652 = vpop.xlane.xlu0 %5651
    %5653 = vadd.xlane.f32.xlu0 %v5590
    %v5654 = vpop.xlane.xlu0 %5653
    %5655 = vadd.xlane.f32.xlu0 %v5592
    %v5656 = vpop.xlane.xlu0 %5655
    %5657 = vadd.xlane.f32.xlu0 %v5594
    %v5658 = vpop.xlane.xlu0 %5657
    %5659 = vadd.xlane.f32.xlu0 %v5596
    %v5660 = vpop.xlane.xlu0 %5659
    %5661 = vadd.xlane.f32.xlu0 %v5598
    %v5662 = vpop.xlane.xlu0 %5661
    %5663 = vadd.xlane.f32.xlu0 %v5600
    %v5664 = vpop.xlane.xlu0 %5663
    %5665 = vadd.xlane.f32.xlu0 %v5602
    %v5666 = vpop.xlane.xlu0 %5665
    %5667 = vadd.xlane.f32.xlu0 %v5604
    %v5668 = vpop.xlane.xlu0 %5667
    %5669 = vadd.xlane.f32.xlu0 %v5606
    %v5670 = vpop.xlane.xlu0 %5669
    %5671 = vadd.xlane.f32.xlu0 %v5608
    %v5672 = vpop.xlane.xlu0 %5671
    %5673 = vadd.xlane.f32.xlu0 %v5610
    %v5674 = vpop.xlane.xlu0 %5673
    %5675 = vadd.xlane.f32.xlu0 %v5612
    %v5676 = vpop.xlane.xlu0 %5675
    %5677 = vadd.xlane.f32.xlu0 %v5614
    %v5678 = vpop.xlane.xlu0 %5677
    %5679 = vadd.xlane.f32.xlu0 %v5616
    %v5680 = vpop.xlane.xlu0 %5679
    %5681 = vadd.xlane.f32.xlu0 %v5618
    %v5682 = vpop.xlane.xlu0 %5681
    %5683 = vadd.xlane.f32.xlu0 %v5620
    %v5684 = vpop.xlane.xlu0 %5683
    %5685 = vadd.xlane.f32.xlu0 %v5622
    %v5686 = vpop.xlane.xlu0 %5685
    %5687 = vadd.xlane.f32.xlu0 %v5624
    %v5688 = vpop.xlane.xlu0 %5687
    %5689 = vadd.xlane.f32.xlu0 %v5626
    %v5690 = vpop.xlane.xlu0 %5689
    %5691 = vadd.xlane.f32.xlu0 %v5628
    %v5692 = vpop.xlane.xlu0 %5691
    %5693 = vadd.xlane.f32.xlu0 %v5630
    %v5694 = vpop.xlane.xlu0 %5693
    %v5695 = vrcp.pop %v5632
    %v5696 = vrcp.pop %v5634
    %v5697 = vrcp.pop %v5636
    %v5698 = vrcp.pop %v5638
    %v5699 = vrcp.pop %v5640
    %v5700 = vrcp.pop %v5642
    %v5701 = vrcp.pop %v5644
    %v5702 = vrcp.pop %v5646
    %v5703 = vrcp.pop %v5648
    %v5704 = vrcp.pop %v5650
    %v5705 = vrcp.pop %v5652
    %v5706 = vrcp.pop %v5654
    %v5707 = vrcp.pop %v5656
    %v5708 = vrcp.pop %v5658
    %v5709 = vrcp.pop %v5660
    %v5710 = vrcp.pop %v5662
    %v5711 = vrcp.pop %v5664
    %v5712 = vrcp.pop %v5666
    %v5713 = vrcp.pop %v5668
    %v5714 = vrcp.pop %v5670
    %v5715 = vrcp.pop %v5672
    %v5716 = vrcp.pop %v5674
    %v5717 = vrcp.pop %v5676
    %v5718 = vrcp.pop %v5678
    %v5719 = vrcp.pop %v5680
    %v5720 = vrcp.pop %v5682
    %v5721 = vrcp.pop %v5684
    %v5722 = vrcp.pop %v5686
    %v5723 = vrcp.pop %v5688
    %v5724 = vrcp.pop %v5690
    %v5725 = vrcp.pop %v5692
    %v5726 = vrcp.pop %v5694
    %v5727 = vmul.f32 %v5568, %v5695
    %v5728 = vmul.f32 %v5570, %v5696
    %v5729 = vmul.f32 %v5572, %v5697
    %v5730 = vmul.f32 %v5574, %v5698
    %v5731 = vmul.f32 %v5576, %v5699
    %v5732 = vmul.f32 %v5578, %v5700
    %v5733 = vmul.f32 %v5580, %v5701
    %v5734 = vmul.f32 %v5582, %v5702
    %v5735 = vmul.f32 %v5584, %v5703
    %v5736 = vmul.f32 %v5586, %v5704
    %v5737 = vmul.f32 %v5588, %v5705
    %v5738 = vmul.f32 %v5590, %v5706
    %v5739 = vmul.f32 %v5592, %v5707
    %v5740 = vmul.f32 %v5594, %v5708
    %v5741 = vmul.f32 %v5596, %v5709
    %v5742 = vmul.f32 %v5598, %v5710
    %v5743 = vmul.f32 %v5600, %v5711
    %v5744 = vmul.f32 %v5602, %v5712
    %v5745 = vmul.f32 %v5604, %v5713
    %v5746 = vmul.f32 %v5606, %v5714
    %v5747 = vmul.f32 %v5608, %v5715
    %v5748 = vmul.f32 %v5610, %v5716
    %v5749 = vmul.f32 %v5612, %v5717
    %v5750 = vmul.f32 %v5614, %v5718
    %v5751 = vmul.f32 %v5616, %v5719
    %v5752 = vmul.f32 %v5618, %v5720
    %v5753 = vmul.f32 %v5620, %v5721
    %v5754 = vmul.f32 %v5622, %v5722
    %v5755 = vmul.f32 %v5624, %v5723
    %v5756 = vmul.f32 %v5626, %v5724
    %v5757 = vmul.f32 %v5628, %v5725
    %v5758 = vmul.f32 %v5630, %v5726
    %v5759 = vpack.c.bf16 %v5727, %v5727
    %v5760 = vpack.c.bf16 %v5728, %v5728
    %v5761 = vpack.c.bf16 %v5729, %v5729
    %v5762 = vpack.c.bf16 %v5730, %v5730
    %v5763 = vpack.c.bf16 %v5731, %v5731
    %v5764 = vpack.c.bf16 %v5732, %v5732
    %v5765 = vpack.c.bf16 %v5733, %v5733
    %v5766 = vpack.c.bf16 %v5734, %v5734
    %v5767 = vpack.c.bf16 %v5735, %v5735
    %v5768 = vpack.c.bf16 %v5736, %v5736
    %v5769 = vpack.c.bf16 %v5737, %v5737
    %v5770 = vpack.c.bf16 %v5738, %v5738
    %v5771 = vpack.c.bf16 %v5739, %v5739
    %v5772 = vpack.c.bf16 %v5740, %v5740
    %v5773 = vpack.c.bf16 %v5741, %v5741
    %v5774 = vpack.c.bf16 %v5742, %v5742
    %v5775 = vpack.c.bf16 %v5743, %v5743
    %v5776 = vpack.c.bf16 %v5744, %v5744
    %v5777 = vpack.c.bf16 %v5745, %v5745
    %v5778 = vpack.c.bf16 %v5746, %v5746
    %v5779 = vpack.c.bf16 %v5747, %v5747
    %v5780 = vpack.c.bf16 %v5748, %v5748
    %v5781 = vpack.c.bf16 %v5749, %v5749
    %v5782 = vpack.c.bf16 %v5750, %v5750
    %v5783 = vpack.c.bf16 %v5751, %v5751
    %v5784 = vpack.c.bf16 %v5752, %v5752
    %v5785 = vpack.c.bf16 %v5753, %v5753
    %v5786 = vpack.c.bf16 %v5754, %v5754
    %v5787 = vpack.c.bf16 %v5755, %v5755
    %v5788 = vpack.c.bf16 %v5756, %v5756
    %v5789 = vpack.c.bf16 %v5757, %v5757
    %v5790 = vpack.c.bf16 %v5758, %v5758
    %v5791 = vpack.c.bf16 %v244, %v244
    %v5792 = vpack.c.bf16 %v246, %v246
    %v5793 = vpack.c.bf16 %v249, %v249
    %v5794 = vpack.c.bf16 %v251, %v251
    %v5795 = vpack.c.bf16 %v254, %v254
    %v5796 = vpack.c.bf16 %v256, %v256
    %v5797 = vpack.c.bf16 %v259, %v259
    %v5798 = vpack.c.bf16 %v261, %v261
    %v5799 = vpack.c.bf16 %v264, %v264
    %v5800 = vpack.c.bf16 %v266, %v266
    %v5801 = vpack.c.bf16 %v269, %v269
    %v5802 = vpack.c.bf16 %v271, %v271
    %v5803 = vpack.c.bf16 %v274, %v274
    %v5804 = vpack.c.bf16 %v276, %v276
    %v5805 = vpack.c.bf16 %v279, %v279
    %v5806 = vpack.c.bf16 %v281, %v281
    %v5807 = vpack.c.bf16 %v284, %v284
    %v5808 = vpack.c.bf16 %v286, %v286
    %v5809 = vpack.c.bf16 %v289, %v289
    %v5810 = vpack.c.bf16 %v291, %v291
    %v5811 = vpack.c.bf16 %v294, %v294
    %v5812 = vpack.c.bf16 %v296, %v296
    %v5813 = vpack.c.bf16 %v299, %v299
    %v5814 = vpack.c.bf16 %v301, %v301
    %v5815 = vpack.c.bf16 %v304, %v304
    %v5816 = vpack.c.bf16 %v306, %v306
    %v5817 = vpack.c.bf16 %v309, %v309
    %v5818 = vpack.c.bf16 %v311, %v311
    %v5819 = vpack.c.bf16 %v314, %v314
    %v5820 = vpack.c.bf16 %v316, %v316
    %v5821 = vpack.c.bf16 %v319, %v319
    %v5822 = vpack.c.bf16 %v321, %v321
    %v5839 = vunpack.c.l.b16 %v5759
    %v5840 = vunpack.c.l.b16 %v5760
    %v5841 = vunpack.c.l.b16 %v5761
    %v5842 = vunpack.c.l.b16 %v5762
    %v5843 = vunpack.c.l.b16 %v5763
    %v5844 = vunpack.c.l.b16 %v5764
    %v5845 = vunpack.c.l.b16 %v5765
    %v5846 = vunpack.c.l.b16 %v5766
    %v5847 = vunpack.c.l.b16 %v5767
    %v5848 = vunpack.c.l.b16 %v5768
    %v5849 = vunpack.c.l.b16 %v5769
    %v5850 = vunpack.c.l.b16 %v5770
    %v5851 = vunpack.c.l.b16 %v5771
    %v5852 = vunpack.c.l.b16 %v5772
    %v5853 = vunpack.c.l.b16 %v5773
    %v5854 = vunpack.c.l.b16 %v5774
    %v5855 = vpack.c.b16 %v5840, %v5839
    %v5856 = vpack.c.b16 %v5842, %v5841
    %v5857 = vpack.c.b16 %v5844, %v5843
    %v5858 = vpack.c.b16 %v5846, %v5845
    %v5859 = vpack.c.b16 %v5848, %v5847
    %v5860 = vpack.c.b16 %v5850, %v5849
    %v5861 = vpack.c.b16 %v5852, %v5851
    %v5862 = vpack.c.b16 %v5854, %v5853
    %v5887 = vunpack.c.l.b16 %v5791
    %v5888 = vunpack.c.l.b16 %v5792
    %v5889 = vunpack.c.l.b16 %v5793
    %v5890 = vunpack.c.l.b16 %v5794
    %v5891 = vunpack.c.l.b16 %v5795
    %v5892 = vunpack.c.l.b16 %v5796
    %v5893 = vunpack.c.l.b16 %v5797
    %v5894 = vunpack.c.l.b16 %v5798
    %v5895 = vunpack.c.l.b16 %v5799
    %v5896 = vunpack.c.l.b16 %v5800
    %v5897 = vunpack.c.l.b16 %v5801
    %v5898 = vunpack.c.l.b16 %v5802
    %v5899 = vunpack.c.l.b16 %v5803
    %v5900 = vunpack.c.l.b16 %v5804
    %v5901 = vunpack.c.l.b16 %v5805
    %v5902 = vunpack.c.l.b16 %v5806
    %v5903 = vpack.c.b16 %v5888, %v5887
    %v5904 = vpack.c.b16 %v5890, %v5889
    %v5905 = vpack.c.b16 %v5892, %v5891
    %v5906 = vpack.c.b16 %v5894, %v5893
    %v5907 = vpack.c.b16 %v5896, %v5895
    %v5908 = vpack.c.b16 %v5898, %v5897
    %v5909 = vpack.c.b16 %v5900, %v5899
    %v5910 = vpack.c.b16 %v5902, %v5901
    %5911 = vrot.lane.b32.xlu0 %v5903, 58
    %v5912 = vpop.permute.xlu0 %5911
    %5913 = vrot.lane.b32.xlu0 %v5904, 58
    %v5914 = vpop.permute.xlu0 %5913
    %5915 = vrot.lane.b32.xlu0 %v5905, 58
    %v5916 = vpop.permute.xlu0 %5915
    %5917 = vrot.lane.b32.xlu0 %v5906, 58
    %v5918 = vpop.permute.xlu0 %5917
    %5919 = vrot.lane.b32.xlu0 %v5907, 58
    %v5920 = vpop.permute.xlu0 %5919
    %5921 = vrot.lane.b32.xlu0 %v5908, 58
    %v5922 = vpop.permute.xlu0 %5921
    %5923 = vrot.lane.b32.xlu0 %v5909, 58
    %v5924 = vpop.permute.xlu0 %5923
    %5925 = vrot.lane.b32.xlu0 %v5910, 58
    %v5926 = vpop.permute.xlu0 %5925
    %5935 = vmatpush.bf16.msra.mxu0 %v5926
    %5936 = vmatpush.bf16.msra.mxu0 %v5924
    %5937 = vmatpush.bf16.msra.mxu0 %v5922
    %5938 = vmatpush.bf16.msra.mxu0 %v5920
    %5939 = vmatpush.bf16.msra.mxu0 %v5918
    %5940 = vmatpush.bf16.msra.mxu0 %v5916
    %5941 = vmatpush.bf16.msra.mxu0 %v5914
    %5942 = vmatpush.bf16.msra.mxu0 %v5912
    %5943 = vmatmul.bf16.gmra.mxu0 %v5855
    %v5944 = vpop.f32.mrf.mxu0
    %v5945 = vadd.f32 0.0, %v5944
    %v5946 = vpop.f32.mrf.mxu0
    %v5947 = vadd.f32 0.0, %v5946
    %5948 = vmatmul.bf16.gmra.mxu0 %v5856
    %v5949 = vpop.f32.mrf.mxu0
    %v5950 = vadd.f32 0.0, %v5949
    %v5951 = vpop.f32.mrf.mxu0
    %v5952 = vadd.f32 0.0, %v5951
    %5953 = vmatmul.bf16.gmra.mxu0 %v5857
    %v5954 = vpop.f32.mrf.mxu0
    %v5955 = vadd.f32 0.0, %v5954
    %v5956 = vpop.f32.mrf.mxu0
    %v5957 = vadd.f32 0.0, %v5956
    %5958 = vmatmul.bf16.gmra.mxu0 %v5858
    %v5959 = vpop.f32.mrf.mxu0
    %v5960 = vadd.f32 0.0, %v5959
    %v5961 = vpop.f32.mrf.mxu0
    %v5962 = vadd.f32 0.0, %v5961
    %5963 = vmatmul.bf16.gmra.mxu0 %v5859
    %v5964 = vpop.f32.mrf.mxu0
    %v5965 = vadd.f32 0.0, %v5964
    %v5966 = vpop.f32.mrf.mxu0
    %v5967 = vadd.f32 0.0, %v5966
    %5968 = vmatmul.bf16.gmra.mxu0 %v5860
    %v5969 = vpop.f32.mrf.mxu0
    %v5970 = vadd.f32 0.0, %v5969
    %v5971 = vpop.f32.mrf.mxu0
    %v5972 = vadd.f32 0.0, %v5971
    %5973 = vmatmul.bf16.gmra.mxu0 %v5861
    %v5974 = vpop.f32.mrf.mxu0
    %v5975 = vadd.f32 0.0, %v5974
    %v5976 = vpop.f32.mrf.mxu0
    %v5977 = vadd.f32 0.0, %v5976
    %5978 = vmatmul.bf16.gmra.mxu0 %v5862
    %v5979 = vpop.f32.mrf.mxu0
    %v5980 = vadd.f32 0.0, %v5979
    %v5981 = vpop.f32.mrf.mxu0
    %v5982 = vadd.f32 0.0, %v5981
    %5983 = vdwg.mxu0
    %v6000 = vunpack.c.l.b16 %v5775
    %v6001 = vunpack.c.l.b16 %v5776
    %v6002 = vunpack.c.l.b16 %v5777
    %v6003 = vunpack.c.l.b16 %v5778
    %v6004 = vunpack.c.l.b16 %v5779
    %v6005 = vunpack.c.l.b16 %v5780
    %v6006 = vunpack.c.l.b16 %v5781
    %v6007 = vunpack.c.l.b16 %v5782
    %v6008 = vunpack.c.l.b16 %v5783
    %v6009 = vunpack.c.l.b16 %v5784
    %v6010 = vunpack.c.l.b16 %v5785
    %v6011 = vunpack.c.l.b16 %v5786
    %v6012 = vunpack.c.l.b16 %v5787
    %v6013 = vunpack.c.l.b16 %v5788
    %v6014 = vunpack.c.l.b16 %v5789
    %v6015 = vunpack.c.l.b16 %v5790
    %v6016 = vpack.c.b16 %v6001, %v6000
    %v6017 = vpack.c.b16 %v6003, %v6002
    %v6018 = vpack.c.b16 %v6005, %v6004
    %v6019 = vpack.c.b16 %v6007, %v6006
    %v6020 = vpack.c.b16 %v6009, %v6008
    %v6021 = vpack.c.b16 %v6011, %v6010
    %v6022 = vpack.c.b16 %v6013, %v6012
    %v6023 = vpack.c.b16 %v6015, %v6014
    %v6048 = vunpack.c.l.b16 %v5807
    %v6049 = vunpack.c.l.b16 %v5808
    %v6050 = vunpack.c.l.b16 %v5809
    %v6051 = vunpack.c.l.b16 %v5810
    %v6052 = vunpack.c.l.b16 %v5811
    %v6053 = vunpack.c.l.b16 %v5812
    %v6054 = vunpack.c.l.b16 %v5813
    %v6055 = vunpack.c.l.b16 %v5814
    %v6056 = vunpack.c.l.b16 %v5815
    %v6057 = vunpack.c.l.b16 %v5816
    %v6058 = vunpack.c.l.b16 %v5817
    %v6059 = vunpack.c.l.b16 %v5818
    %v6060 = vunpack.c.l.b16 %v5819
    %v6061 = vunpack.c.l.b16 %v5820
    %v6062 = vunpack.c.l.b16 %v5821
    %v6063 = vunpack.c.l.b16 %v5822
    %v6064 = vpack.c.b16 %v6049, %v6048
    %v6065 = vpack.c.b16 %v6051, %v6050
    %v6066 = vpack.c.b16 %v6053, %v6052
    %v6067 = vpack.c.b16 %v6055, %v6054
    %v6068 = vpack.c.b16 %v6057, %v6056
    %v6069 = vpack.c.b16 %v6059, %v6058
    %v6070 = vpack.c.b16 %v6061, %v6060
    %v6071 = vpack.c.b16 %v6063, %v6062
    %6072 = vrot.lane.b32.xlu0 %v6064, 58
    %v6073 = vpop.permute.xlu0 %6072
    %6074 = vrot.lane.b32.xlu0 %v6065, 58
    %v6075 = vpop.permute.xlu0 %6074
    %6076 = vrot.lane.b32.xlu0 %v6066, 58
    %v6077 = vpop.permute.xlu0 %6076
    %6078 = vrot.lane.b32.xlu0 %v6067, 58
    %v6079 = vpop.permute.xlu0 %6078
    %6080 = vrot.lane.b32.xlu0 %v6068, 58
    %v6081 = vpop.permute.xlu0 %6080
    %6082 = vrot.lane.b32.xlu0 %v6069, 58
    %v6083 = vpop.permute.xlu0 %6082
    %6084 = vrot.lane.b32.xlu0 %v6070, 58
    %v6085 = vpop.permute.xlu0 %6084
    %6086 = vrot.lane.b32.xlu0 %v6071, 58
    %v6087 = vpop.permute.xlu0 %6086
    %6096 = vmatpush.bf16.msra.mxu0 %v6087
    %6097 = vmatpush.bf16.msra.mxu0 %v6085
    %6098 = vmatpush.bf16.msra.mxu0 %v6083
    %6099 = vmatpush.bf16.msra.mxu0 %v6081
    %6100 = vmatpush.bf16.msra.mxu0 %v6079
    %6101 = vmatpush.bf16.msra.mxu0 %v6077
    %6102 = vmatpush.bf16.msra.mxu0 %v6075
    %6103 = vmatpush.bf16.msra.mxu0 %v6073
    %6104 = vmatmul.bf16.gmra.mxu0 %v6016
    %v6105 = vpop.f32.mrf.mxu0
    %v6106 = vadd.f32 0.0, %v6105
    %v6107 = vpop.f32.mrf.mxu0
    %v6108 = vadd.f32 0.0, %v6107
    %6109 = vmatmul.bf16.gmra.mxu0 %v6017
    %v6110 = vpop.f32.mrf.mxu0
    %v6111 = vadd.f32 0.0, %v6110
    %v6112 = vpop.f32.mrf.mxu0
    %v6113 = vadd.f32 0.0, %v6112
    %6114 = vmatmul.bf16.gmra.mxu0 %v6018
    %v6115 = vpop.f32.mrf.mxu0
    %v6116 = vadd.f32 0.0, %v6115
    %v6117 = vpop.f32.mrf.mxu0
    %v6118 = vadd.f32 0.0, %v6117
    %6119 = vmatmul.bf16.gmra.mxu0 %v6019
    %v6120 = vpop.f32.mrf.mxu0
    %v6121 = vadd.f32 0.0, %v6120
    %v6122 = vpop.f32.mrf.mxu0
    %v6123 = vadd.f32 0.0, %v6122
    %6124 = vmatmul.bf16.gmra.mxu0 %v6020
    %v6125 = vpop.f32.mrf.mxu0
    %v6126 = vadd.f32 0.0, %v6125
    %v6127 = vpop.f32.mrf.mxu0
    %v6128 = vadd.f32 0.0, %v6127
    %6129 = vmatmul.bf16.gmra.mxu0 %v6021
    %v6130 = vpop.f32.mrf.mxu0
    %v6131 = vadd.f32 0.0, %v6130
    %v6132 = vpop.f32.mrf.mxu0
    %v6133 = vadd.f32 0.0, %v6132
    %6134 = vmatmul.bf16.gmra.mxu0 %v6022
    %v6135 = vpop.f32.mrf.mxu0
    %v6136 = vadd.f32 0.0, %v6135
    %v6137 = vpop.f32.mrf.mxu0
    %v6138 = vadd.f32 0.0, %v6137
    %6139 = vmatmul.bf16.gmra.mxu0 %v6023
    %v6140 = vpop.f32.mrf.mxu0
    %v6141 = vadd.f32 0.0, %v6140
    %v6142 = vpop.f32.mrf.mxu0
    %v6143 = vadd.f32 0.0, %v6142
    %6144 = vdwg.mxu0
    %v6145 = vpack.c.bf16 %v5947, %v5945
    %v6146 = vpack.c.bf16 %v5952, %v5950
    %v6147 = vpack.c.bf16 %v5957, %v5955
    %v6148 = vpack.c.bf16 %v5962, %v5960
    %v6149 = vpack.c.bf16 %v5967, %v5965
    %v6150 = vpack.c.bf16 %v5972, %v5970
    %v6151 = vpack.c.bf16 %v5977, %v5975
    %v6152 = vpack.c.bf16 %v5982, %v5980
    %v6153 = vpack.c.bf16 %v6108, %v6106
    %v6154 = vpack.c.bf16 %v6113, %v6111
    %v6155 = vpack.c.bf16 %v6118, %v6116
    %v6156 = vpack.c.bf16 %v6123, %v6121
    %v6157 = vpack.c.bf16 %v6128, %v6126
    %v6158 = vpack.c.bf16 %v6133, %v6131
    %v6159 = vpack.c.bf16 %v6138, %v6136
    %v6160 = vpack.c.bf16 %v6143, %v6141
    %v6161 = vld [vmem:[%s13] sm:$0x3]
    %v6162 = vld [vmem:[%s14] sm:$0x1]
    %v6164 = vperm.slane %v6162, 0
    %v6167 = vsel %vm178, %v6145, 0
    %v6170 = vsel %vm178, %v6146, 0
    %v6173 = vsel %vm178, %v6147, 0
    %v6176 = vsel %vm178, %v6148, 0
    %v6179 = vsel %vm178, %v6149, 0
    %v6182 = vsel %vm178, %v6150, 0
    %v6185 = vsel %vm178, %v6151, 0
    %v6188 = vsel %vm178, %v6152, 0
    %v6191 = vsel %vm178, %v6153, 0
    %v6194 = vsel %vm178, %v6154, 0
    %v6197 = vsel %vm178, %v6155, 0
    %v6200 = vsel %vm178, %v6156, 0
    %v6203 = vsel %vm178, %v6157, 0
    %v6206 = vsel %vm178, %v6158, 0
    %v6209 = vsel %vm178, %v6159, 0
    %v6212 = vsel %vm178, %v6160, 0
    %v6215 = vand.u32 %v6161, %v230
    %6217 = vmatpush.bf16.msra.mxu0 0
    %6218 = vmatpush.bf16.msra.mxu0 0
    %6219 = vmatpush.bf16.msra.mxu0 0
    %6220 = vmatpush.bf16.msra.mxu0 0
    %6221 = vmatpush.bf16.msra.mxu0 0
    %6222 = vmatpush.bf16.msra.mxu0 0
    %6223 = vmatpush.bf16.msra.mxu0 0
    %6224 = vmatpush.bf16.msra.mxu0 %v6215
    %6225 = vmatmul.bf16.gmra.mxu0 %v6167
    %v6226 = vpop.f32.mrf.mxu0
    %v6227 = vadd.f32 %v6164, %v6226
    %v6228 = vpop.f32.mrf.mxu0
    %v6229 = vadd.f32 %v6164, %v6228
    %6230 = vmatmul.bf16.gmra.mxu0 %v6170
    %v6231 = vpop.f32.mrf.mxu0
    %v6232 = vadd.f32 %v6164, %v6231
    %v6233 = vpop.f32.mrf.mxu0
    %v6234 = vadd.f32 %v6164, %v6233
    %6235 = vmatmul.bf16.gmra.mxu0 %v6173
    %v6236 = vpop.f32.mrf.mxu0
    %v6237 = vadd.f32 %v6164, %v6236
    %v6238 = vpop.f32.mrf.mxu0
    %v6239 = vadd.f32 %v6164, %v6238
    %6240 = vmatmul.bf16.gmra.mxu0 %v6176
    %v6241 = vpop.f32.mrf.mxu0
    %v6242 = vadd.f32 %v6164, %v6241
    %v6243 = vpop.f32.mrf.mxu0
    %v6244 = vadd.f32 %v6164, %v6243
    %6245 = vmatmul.bf16.gmra.mxu0 %v6179
    %v6246 = vpop.f32.mrf.mxu0
    %v6247 = vadd.f32 %v6164, %v6246
    %v6248 = vpop.f32.mrf.mxu0
    %v6249 = vadd.f32 %v6164, %v6248
    %6250 = vmatmul.bf16.gmra.mxu0 %v6182
    %v6251 = vpop.f32.mrf.mxu0
    %v6252 = vadd.f32 %v6164, %v6251
    %v6253 = vpop.f32.mrf.mxu0
    %v6254 = vadd.f32 %v6164, %v6253
    %6255 = vmatmul.bf16.gmra.mxu0 %v6185
    %v6256 = vpop.f32.mrf.mxu0
    %v6257 = vadd.f32 %v6164, %v6256
    %v6258 = vpop.f32.mrf.mxu0
    %v6259 = vadd.f32 %v6164, %v6258
    %6260 = vmatmul.bf16.gmra.mxu0 %v6188
    %v6261 = vpop.f32.mrf.mxu0
    %v6262 = vadd.f32 %v6164, %v6261
    %v6263 = vpop.f32.mrf.mxu0
    %v6264 = vadd.f32 %v6164, %v6263
    %6265 = vmatmul.bf16.gmra.mxu0 %v6191
    %v6266 = vpop.f32.mrf.mxu0
    %v6267 = vadd.f32 %v6164, %v6266
    %v6268 = vpop.f32.mrf.mxu0
    %v6269 = vadd.f32 %v6164, %v6268
    %6270 = vmatmul.bf16.gmra.mxu0 %v6194
    %v6271 = vpop.f32.mrf.mxu0
    %v6272 = vadd.f32 %v6164, %v6271
    %v6273 = vpop.f32.mrf.mxu0
    %v6274 = vadd.f32 %v6164, %v6273
    %6275 = vmatmul.bf16.gmra.mxu0 %v6197
    %v6276 = vpop.f32.mrf.mxu0
    %v6277 = vadd.f32 %v6164, %v6276
    %v6278 = vpop.f32.mrf.mxu0
    %v6279 = vadd.f32 %v6164, %v6278
    %6280 = vmatmul.bf16.gmra.mxu0 %v6200
    %v6281 = vpop.f32.mrf.mxu0
    %v6282 = vadd.f32 %v6164, %v6281
    %v6283 = vpop.f32.mrf.mxu0
    %v6284 = vadd.f32 %v6164, %v6283
    %6285 = vmatmul.bf16.gmra.mxu0 %v6203
    %v6286 = vpop.f32.mrf.mxu0
    %v6287 = vadd.f32 %v6164, %v6286
    %v6288 = vpop.f32.mrf.mxu0
    %v6289 = vadd.f32 %v6164, %v6288
    %6290 = vmatmul.bf16.gmra.mxu0 %v6206
    %v6291 = vpop.f32.mrf.mxu0
    %v6292 = vadd.f32 %v6164, %v6291
    %v6293 = vpop.f32.mrf.mxu0
    %v6294 = vadd.f32 %v6164, %v6293
    %6295 = vmatmul.bf16.gmra.mxu0 %v6209
    %v6296 = vpop.f32.mrf.mxu0
    %v6297 = vadd.f32 %v6164, %v6296
    %v6298 = vpop.f32.mrf.mxu0
    %v6299 = vadd.f32 %v6164, %v6298
    %6300 = vmatmul.bf16.gmra.mxu0 %v6212
    %v6301 = vpop.f32.mrf.mxu0
    %v6302 = vadd.f32 %v6164, %v6301
    %v6303 = vpop.f32.mrf.mxu0
    %v6304 = vadd.f32 %v6164, %v6303
    %6305 = vdwg.mxu0
    %v6306 = vmax.f32 %v6227, 0.0
    %v6307 = vmax.f32 %v6229, 0.0
    %v6308 = vmax.f32 %v6232, 0.0
    %v6309 = vmax.f32 %v6234, 0.0
    %v6310 = vmax.f32 %v6237, 0.0
    %v6311 = vmax.f32 %v6239, 0.0
    %v6312 = vmax.f32 %v6242, 0.0
    %v6313 = vmax.f32 %v6244, 0.0
    %v6314 = vmax.f32 %v6247, 0.0
    %v6315 = vmax.f32 %v6249, 0.0
    %v6316 = vmax.f32 %v6252, 0.0
    %v6317 = vmax.f32 %v6254, 0.0
    %v6318 = vmax.f32 %v6257, 0.0
    %v6319 = vmax.f32 %v6259, 0.0
    %v6320 = vmax.f32 %v6262, 0.0
    %v6321 = vmax.f32 %v6264, 0.0
    %v6322 = vmax.f32 %v6267, 0.0
    %v6323 = vmax.f32 %v6269, 0.0
    %v6324 = vmax.f32 %v6272, 0.0
    %v6325 = vmax.f32 %v6274, 0.0
    %v6326 = vmax.f32 %v6277, 0.0
    %v6327 = vmax.f32 %v6279, 0.0
    %v6328 = vmax.f32 %v6282, 0.0
    %v6329 = vmax.f32 %v6284, 0.0
    %v6330 = vmax.f32 %v6287, 0.0
    %v6331 = vmax.f32 %v6289, 0.0
    %v6332 = vmax.f32 %v6292, 0.0
    %v6333 = vmax.f32 %v6294, 0.0
    %v6334 = vmax.f32 %v6297, 0.0
    %v6335 = vmax.f32 %v6299, 0.0
    %v6336 = vmax.f32 %v6302, 0.0
    %v6337 = vmax.f32 %v6304, 0.0
    %v6338 = vpack.c.bf16 %v6307, %v6306
    %v6339 = vpack.c.bf16 %v6309, %v6308
    %v6340 = vpack.c.bf16 %v6311, %v6310
    %v6341 = vpack.c.bf16 %v6313, %v6312
    %v6342 = vpack.c.bf16 %v6315, %v6314
    %v6343 = vpack.c.bf16 %v6317, %v6316
    %v6344 = vpack.c.bf16 %v6319, %v6318
    %v6345 = vpack.c.bf16 %v6321, %v6320
    %v6346 = vpack.c.bf16 %v6323, %v6322
    %v6347 = vpack.c.bf16 %v6325, %v6324
    %v6348 = vpack.c.bf16 %v6327, %v6326
    %v6349 = vpack.c.bf16 %v6329, %v6328
    %v6350 = vpack.c.bf16 %v6331, %v6330
    %v6351 = vpack.c.bf16 %v6333, %v6332
    %v6352 = vpack.c.bf16 %v6335, %v6334
    %v6353 = vpack.c.bf16 %v6337, %v6336
    %v6354 = vld [vmem:[%s15] sm:$0xf]
    %v6355 = vld [vmem:[%s15 + $0x4] sm:$0xf]
    %v6356 = vld [vmem:[%s15 + $0x8] sm:$0xf]
    %v6357 = vld [vmem:[%s15 + $0xc] sm:$0xf]
    %v6358 = vld [vmem:[%s15 + $0x10] sm:$0xf]
    %v6359 = vld [vmem:[%s15 + $0x14] sm:$0xf]
    %v6360 = vld [vmem:[%s15 + $0x18] sm:$0xf]
    %v6361 = vld [vmem:[%s15 + $0x1c] sm:$0xf]
    %v6362 = vld [vmem:[%s16] sm:$0x1]
    %v6364 = vperm.slane %v6362, 0
    %v6374 = vunpack.c.l.b16 %v6354
    %v6375 = vunpack.c.l.b16 %v6355
    %v6376 = vunpack.c.l.b16 %v6356
    %v6377 = vunpack.c.l.b16 %v6357
    %v6378 = vunpack.c.l.b16 %v6358
    %v6379 = vunpack.c.l.b16 %v6359
    %v6380 = vunpack.c.l.b16 %v6360
    %v6381 = vunpack.c.l.b16 %v6361
    %v6382 = vpack.c.b16 %v6375, %v6374
    %v6383 = vpack.c.b16 %v6377, %v6376
    %v6384 = vpack.c.b16 %v6379, %v6378
    %v6385 = vpack.c.b16 %v6381, %v6380
    %v6391 = vsel %vm443, %v6338, 0
    %v6394 = vsel %vm443, %v6339, 0
    %v6397 = vsel %vm443, %v6340, 0
    %v6400 = vsel %vm443, %v6341, 0
    %v6403 = vsel %vm443, %v6342, 0
    %v6406 = vsel %vm443, %v6343, 0
    %v6409 = vsel %vm443, %v6344, 0
    %v6412 = vsel %vm443, %v6345, 0
    %v6415 = vsel %vm443, %v6346, 0
    %v6418 = vsel %vm443, %v6347, 0
    %v6421 = vsel %vm443, %v6348, 0
    %v6424 = vsel %vm443, %v6349, 0
    %v6427 = vsel %vm443, %v6350, 0
    %v6430 = vsel %vm443, %v6351, 0
    %v6433 = vsel %vm443, %v6352, 0
    %v6436 = vsel %vm443, %v6353, 0
    %6438 = vmatpush.bf16.msra.mxu0 0
    %6439 = vmatpush.bf16.msra.mxu0 0
    %6440 = vmatpush.bf16.msra.mxu0 0
    %6441 = vmatpush.bf16.msra.mxu0 0
    %6442 = vmatpush.bf16.msra.mxu0 %v6385
    %6443 = vmatpush.bf16.msra.mxu0 %v6384
    %6444 = vmatpush.bf16.msra.mxu0 %v6383
    %6445 = vmatpush.bf16.msra.mxu0 %v6382
    %6446 = vmatmul.bf16.gmra.mxu0 %v6391
    %v6447 = vpop.f32.mrf.mxu0
    %v6448 = vadd.f32 %v6364, %v6447
    %v6449 = vpop.f32.mrf.mxu0
    %v6450 = vadd.f32 %v6364, %v6449
    %6451 = vmatmul.bf16.gmra.mxu0 %v6394
    %v6452 = vpop.f32.mrf.mxu0
    %v6453 = vadd.f32 %v6364, %v6452
    %v6454 = vpop.f32.mrf.mxu0
    %v6455 = vadd.f32 %v6364, %v6454
    %6456 = vmatmul.bf16.gmra.mxu0 %v6397
    %v6457 = vpop.f32.mrf.mxu0
    %v6458 = vadd.f32 %v6364, %v6457
    %v6459 = vpop.f32.mrf.mxu0
    %v6460 = vadd.f32 %v6364, %v6459
    %6461 = vmatmul.bf16.gmra.mxu0 %v6400
    %v6462 = vpop.f32.mrf.mxu0
    %v6463 = vadd.f32 %v6364, %v6462
    %v6464 = vpop.f32.mrf.mxu0
    %v6465 = vadd.f32 %v6364, %v6464
    %6466 = vmatmul.bf16.gmra.mxu0 %v6403
    %v6467 = vpop.f32.mrf.mxu0
    %v6468 = vadd.f32 %v6364, %v6467
    %v6469 = vpop.f32.mrf.mxu0
    %v6470 = vadd.f32 %v6364, %v6469
    %6471 = vmatmul.bf16.gmra.mxu0 %v6406
    %v6472 = vpop.f32.mrf.mxu0
    %v6473 = vadd.f32 %v6364, %v6472
    %v6474 = vpop.f32.mrf.mxu0
    %v6475 = vadd.f32 %v6364, %v6474
    %6476 = vmatmul.bf16.gmra.mxu0 %v6409
    %v6477 = vpop.f32.mrf.mxu0
    %v6478 = vadd.f32 %v6364, %v6477
    %v6479 = vpop.f32.mrf.mxu0
    %v6480 = vadd.f32 %v6364, %v6479
    %6481 = vmatmul.bf16.gmra.mxu0 %v6412
    %v6482 = vpop.f32.mrf.mxu0
    %v6483 = vadd.f32 %v6364, %v6482
    %v6484 = vpop.f32.mrf.mxu0
    %v6485 = vadd.f32 %v6364, %v6484
    %6486 = vmatmul.bf16.gmra.mxu0 %v6415
    %v6487 = vpop.f32.mrf.mxu0
    %v6488 = vadd.f32 %v6364, %v6487
    %v6489 = vpop.f32.mrf.mxu0
    %v6490 = vadd.f32 %v6364, %v6489
    %6491 = vmatmul.bf16.gmra.mxu0 %v6418
    %v6492 = vpop.f32.mrf.mxu0
    %v6493 = vadd.f32 %v6364, %v6492
    %v6494 = vpop.f32.mrf.mxu0
    %v6495 = vadd.f32 %v6364, %v6494
    %6496 = vmatmul.bf16.gmra.mxu0 %v6421
    %v6497 = vpop.f32.mrf.mxu0
    %v6498 = vadd.f32 %v6364, %v6497
    %v6499 = vpop.f32.mrf.mxu0
    %v6500 = vadd.f32 %v6364, %v6499
    %6501 = vmatmul.bf16.gmra.mxu0 %v6424
    %v6502 = vpop.f32.mrf.mxu0
    %v6503 = vadd.f32 %v6364, %v6502
    %v6504 = vpop.f32.mrf.mxu0
    %v6505 = vadd.f32 %v6364, %v6504
    %6506 = vmatmul.bf16.gmra.mxu0 %v6427
    %v6507 = vpop.f32.mrf.mxu0
    %v6508 = vadd.f32 %v6364, %v6507
    %v6509 = vpop.f32.mrf.mxu0
    %v6510 = vadd.f32 %v6364, %v6509
    %6511 = vmatmul.bf16.gmra.mxu0 %v6430
    %v6512 = vpop.f32.mrf.mxu0
    %v6513 = vadd.f32 %v6364, %v6512
    %v6514 = vpop.f32.mrf.mxu0
    %v6515 = vadd.f32 %v6364, %v6514
    %6516 = vmatmul.bf16.gmra.mxu0 %v6433
    %v6517 = vpop.f32.mrf.mxu0
    %v6518 = vadd.f32 %v6364, %v6517
    %v6519 = vpop.f32.mrf.mxu0
    %v6520 = vadd.f32 %v6364, %v6519
    %6521 = vmatmul.bf16.gmra.mxu0 %v6436
    %v6522 = vpop.f32.mrf.mxu0
    %v6523 = vadd.f32 %v6364, %v6522
    %v6524 = vpop.f32.mrf.mxu0
    %v6525 = vadd.f32 %v6364, %v6524
    %6526 = vdwg.mxu0
    %v6527 = vmax.f32 %v6448, 0.0
    %v6528 = vmax.f32 %v6450, 0.0
    %v6529 = vmax.f32 %v6453, 0.0
    %v6530 = vmax.f32 %v6455, 0.0
    %v6531 = vmax.f32 %v6458, 0.0
    %v6532 = vmax.f32 %v6460, 0.0
    %v6533 = vmax.f32 %v6463, 0.0
    %v6534 = vmax.f32 %v6465, 0.0
    %v6535 = vmax.f32 %v6468, 0.0
    %v6536 = vmax.f32 %v6470, 0.0
    %v6537 = vmax.f32 %v6473, 0.0
    %v6538 = vmax.f32 %v6475, 0.0
    %v6539 = vmax.f32 %v6478, 0.0
    %v6540 = vmax.f32 %v6480, 0.0
    %v6541 = vmax.f32 %v6483, 0.0
    %v6542 = vmax.f32 %v6485, 0.0
    %v6543 = vmax.f32 %v6488, 0.0
    %v6544 = vmax.f32 %v6490, 0.0
    %v6545 = vmax.f32 %v6493, 0.0
    %v6546 = vmax.f32 %v6495, 0.0
    %v6547 = vmax.f32 %v6498, 0.0
    %v6548 = vmax.f32 %v6500, 0.0
    %v6549 = vmax.f32 %v6503, 0.0
    %v6550 = vmax.f32 %v6505, 0.0
    %v6551 = vmax.f32 %v6508, 0.0
    %v6552 = vmax.f32 %v6510, 0.0
    %v6553 = vmax.f32 %v6513, 0.0
    %v6554 = vmax.f32 %v6515, 0.0
    %v6555 = vmax.f32 %v6518, 0.0
    %v6556 = vmax.f32 %v6520, 0.0
    %v6557 = vmax.f32 %v6523, 0.0
    %v6558 = vmax.f32 %v6525, 0.0
    %v6559 = vpack.c.bf16 %v6528, %v6527
    %v6560 = vpack.c.bf16 %v6530, %v6529
    %v6561 = vpack.c.bf16 %v6532, %v6531
    %v6562 = vpack.c.bf16 %v6534, %v6533
    %v6563 = vpack.c.bf16 %v6536, %v6535
    %v6564 = vpack.c.bf16 %v6538, %v6537
    %v6565 = vpack.c.bf16 %v6540, %v6539
    %v6566 = vpack.c.bf16 %v6542, %v6541
    %v6567 = vpack.c.bf16 %v6544, %v6543
    %v6568 = vpack.c.bf16 %v6546, %v6545
    %v6569 = vpack.c.bf16 %v6548, %v6547
    %v6570 = vpack.c.bf16 %v6550, %v6549
    %v6571 = vpack.c.bf16 %v6552, %v6551
    %v6572 = vpack.c.bf16 %v6554, %v6553
    %v6573 = vpack.c.bf16 %v6556, %v6555
    %v6574 = vpack.c.bf16 %v6558, %v6557
    %v6575 = vld [vmem:[#allocation8] sm:$0xff]
    %v6576 = vld [vmem:[#allocation8 + $0x8] sm:$0xff]
    %v6577 = vld [vmem:[#allocation8 + $0x10] sm:$0xff]
    %v6578 = vld [vmem:[#allocation8 + $0x18] sm:$0xff]
    %v6579 = vld [vmem:[#allocation8 + $0x20] sm:$0xff]
    %v6580 = vld [vmem:[#allocation8 + $0x28] sm:$0xff]
    %v6581 = vld [vmem:[#allocation8 + $0x30] sm:$0xff]
    %v6582 = vld [vmem:[#allocation8 + $0x38] sm:$0xff]
    %v6583 = vld [vmem:[#allocation8 + $0x40] sm:$0xff]
    %v6584 = vld [vmem:[#allocation8 + $0x48] sm:$0xff]
    %v6585 = vld [vmem:[#allocation8 + $0x50] sm:$0xff]
    %v6586 = vld [vmem:[#allocation8 + $0x58] sm:$0xff]
    %v6587 = vld [vmem:[#allocation8 + $0x60] sm:$0xff]
    %v6588 = vld [vmem:[#allocation8 + $0x68] sm:$0xff]
    %v6589 = vld [vmem:[#allocation8 + $0x70] sm:$0xff]
    %v6590 = vld [vmem:[#allocation8 + $0x78] sm:$0xff]
    %v6591 = vld [vmem:[#allocation8 + $0x80] sm:$0xff]
    %v6592 = vld [vmem:[#allocation8 + $0x88] sm:$0xff]
    %v6593 = vld [vmem:[#allocation8 + $0x90] sm:$0xff]
    %v6594 = vld [vmem:[#allocation8 + $0x98] sm:$0xff]
    %v6595 = vld [vmem:[#allocation8 + $0xa0] sm:$0xff]
    %v6596 = vld [vmem:[#allocation8 + $0xa8] sm:$0xff]
    %v6597 = vld [vmem:[#allocation8 + $0xb0] sm:$0xff]
    %v6598 = vld [vmem:[#allocation8 + $0xb8] sm:$0xff]
    %v6599 = vld [vmem:[#allocation8 + $0xc0] sm:$0xff]
    %v6600 = vld [vmem:[#allocation8 + $0xc8] sm:$0xff]
    %v6601 = vld [vmem:[#allocation8 + $0xd0] sm:$0xff]
    %v6602 = vld [vmem:[#allocation8 + $0xd8] sm:$0xff]
    %v6603 = vld [vmem:[#allocation8 + $0xe0] sm:$0xff]
    %v6604 = vld [vmem:[#allocation8 + $0xe8] sm:$0xff]
    %v6605 = vld [vmem:[#allocation8 + $0xf0] sm:$0xff]
    %v6606 = vld [vmem:[#allocation8 + $0xf8] sm:$0xff]
    %v6607 = vld [vmem:[#allocation8 + $0x100] sm:$0xff]
    %v6608 = vld [vmem:[#allocation8 + $0x108] sm:$0xff]
    %v6609 = vld [vmem:[#allocation8 + $0x110] sm:$0xff]
    %v6610 = vld [vmem:[#allocation8 + $0x118] sm:$0xff]
    %v6611 = vld [vmem:[#allocation8 + $0x120] sm:$0xff]
    %v6612 = vld [vmem:[#allocation8 + $0x128] sm:$0xff]
    %v6613 = vld [vmem:[#allocation8 + $0x130] sm:$0xff]
    %v6614 = vld [vmem:[#allocation8 + $0x138] sm:$0xff]
    %v6615 = vld [vmem:[#allocation8 + $0x140] sm:$0xff]
    %v6616 = vld [vmem:[#allocation8 + $0x148] sm:$0xff]
    %v6617 = vld [vmem:[#allocation8 + $0x150] sm:$0xff]
    %v6618 = vld [vmem:[#allocation8 + $0x158] sm:$0xff]
    %v6619 = vld [vmem:[#allocation8 + $0x160] sm:$0xff]
    %v6620 = vld [vmem:[#allocation8 + $0x168] sm:$0xff]
    %v6621 = vld [vmem:[#allocation8 + $0x170] sm:$0xff]
    %v6622 = vld [vmem:[#allocation8 + $0x178] sm:$0xff]
    %v6623 = vld [vmem:[#allocation8 + $0x180] sm:$0xff]
    %v6624 = vld [vmem:[#allocation8 + $0x188] sm:$0xff]
    %v6625 = vld [vmem:[#allocation8 + $0x190] sm:$0xff]
    %v6626 = vld [vmem:[#allocation8 + $0x198] sm:$0xff]
    %v6627 = vld [vmem:[#allocation8 + $0x1a0] sm:$0xff]
    %v6628 = vld [vmem:[#allocation8 + $0x1a8] sm:$0xff]
    %v6629 = vld [vmem:[#allocation8 + $0x1b0] sm:$0xff]
    %v6630 = vld [vmem:[#allocation8 + $0x1b8] sm:$0xff]
    %v6631 = vld [vmem:[#allocation8 + $0x1c0] sm:$0xff]
    %v6632 = vld [vmem:[#allocation8 + $0x1c8] sm:$0xff]
    %v6633 = vld [vmem:[#allocation8 + $0x1d0] sm:$0xff]
    %v6634 = vld [vmem:[#allocation8 + $0x1d8] sm:$0xff]
    %v6635 = vld [vmem:[#allocation8 + $0x1e0] sm:$0xff]
    %v6636 = vld [vmem:[#allocation8 + $0x1e8] sm:$0xff]
    %v6637 = vld [vmem:[#allocation8 + $0x1f0] sm:$0xff]
    %v6638 = vld [vmem:[#allocation8 + $0x1f8] sm:$0xff]
    %v6639 = vld [vmem:[%s18] sm:$0xff]
    %v6641 = vperm.slane %v6639, 0
    %v6642 = vperm.slane %v6639, 1
    %v6643 = vperm.slane %v6639, 2
    %v6644 = vperm.slane %v6639, 3
    %v6645 = vperm.slane %v6639, 4
    %v6646 = vperm.slane %v6639, 5
    %v6647 = vperm.slane %v6639, 6
    %v6648 = vperm.slane %v6639, 7
    %v6721 = vunpack.c.l.b16 %v6575
    %v6722 = vunpack.c.h.b16 %v6575
    %v6723 = vunpack.c.l.b16 %v6576
    %v6724 = vunpack.c.h.b16 %v6576
    %v6725 = vunpack.c.l.b16 %v6577
    %v6726 = vunpack.c.h.b16 %v6577
    %v6727 = vunpack.c.l.b16 %v6578
    %v6728 = vunpack.c.h.b16 %v6578
    %v6729 = vunpack.c.l.b16 %v6579
    %v6730 = vunpack.c.h.b16 %v6579
    %v6731 = vunpack.c.l.b16 %v6580
    %v6732 = vunpack.c.h.b16 %v6580
    %v6733 = vunpack.c.l.b16 %v6581
    %v6734 = vunpack.c.h.b16 %v6581
    %v6735 = vunpack.c.l.b16 %v6582
    %v6736 = vunpack.c.h.b16 %v6582
    %v6737 = vunpack.c.l.b16 %v6583
    %v6738 = vunpack.c.h.b16 %v6583
    %v6739 = vunpack.c.l.b16 %v6584
    %v6740 = vunpack.c.h.b16 %v6584
    %v6741 = vunpack.c.l.b16 %v6585
    %v6742 = vunpack.c.h.b16 %v6585
    %v6743 = vunpack.c.l.b16 %v6586
    %v6744 = vunpack.c.h.b16 %v6586
    %v6745 = vunpack.c.l.b16 %v6587
    %v6746 = vunpack.c.h.b16 %v6587
    %v6747 = vunpack.c.l.b16 %v6588
    %v6748 = vunpack.c.h.b16 %v6588
    %v6749 = vunpack.c.l.b16 %v6589
    %v6750 = vunpack.c.h.b16 %v6589
    %v6751 = vunpack.c.l.b16 %v6590
    %v6752 = vunpack.c.h.b16 %v6590
    %v6753 = vunpack.c.l.b16 %v6591
    %v6754 = vunpack.c.h.b16 %v6591
    %v6755 = vunpack.c.l.b16 %v6592
    %v6756 = vunpack.c.h.b16 %v6592
    %v6757 = vunpack.c.l.b16 %v6593
    %v6758 = vunpack.c.h.b16 %v6593
    %v6759 = vunpack.c.l.b16 %v6594
    %v6760 = vunpack.c.h.b16 %v6594
    %v6761 = vunpack.c.l.b16 %v6595
    %v6762 = vunpack.c.h.b16 %v6595
    %v6763 = vunpack.c.l.b16 %v6596
    %v6764 = vunpack.c.h.b16 %v6596
    %v6765 = vunpack.c.l.b16 %v6597
    %v6766 = vunpack.c.h.b16 %v6597
    %v6767 = vunpack.c.l.b16 %v6598
    %v6768 = vunpack.c.h.b16 %v6598
    %v6769 = vunpack.c.l.b16 %v6599
    %v6770 = vunpack.c.h.b16 %v6599
    %v6771 = vunpack.c.l.b16 %v6600
    %v6772 = vunpack.c.h.b16 %v6600
    %v6773 = vunpack.c.l.b16 %v6601
    %v6774 = vunpack.c.h.b16 %v6601
    %v6775 = vunpack.c.l.b16 %v6602
    %v6776 = vunpack.c.h.b16 %v6602
    %v6777 = vunpack.c.l.b16 %v6603
    %v6778 = vunpack.c.h.b16 %v6603
    %v6779 = vunpack.c.l.b16 %v6604
    %v6780 = vunpack.c.h.b16 %v6604
    %v6781 = vunpack.c.l.b16 %v6605
    %v6782 = vunpack.c.h.b16 %v6605
    %v6783 = vunpack.c.l.b16 %v6606
    %v6784 = vunpack.c.h.b16 %v6606
    %v6785 = vunpack.c.l.b16 %v6607
    %v6786 = vunpack.c.h.b16 %v6607
    %v6787 = vunpack.c.l.b16 %v6608
    %v6788 = vunpack.c.h.b16 %v6608
    %v6789 = vunpack.c.l.b16 %v6609
    %v6790 = vunpack.c.h.b16 %v6609
    %v6791 = vunpack.c.l.b16 %v6610
    %v6792 = vunpack.c.h.b16 %v6610
    %v6793 = vunpack.c.l.b16 %v6611
    %v6794 = vunpack.c.h.b16 %v6611
    %v6795 = vunpack.c.l.b16 %v6612
    %v6796 = vunpack.c.h.b16 %v6612
    %v6797 = vunpack.c.l.b16 %v6613
    %v6798 = vunpack.c.h.b16 %v6613
    %v6799 = vunpack.c.l.b16 %v6614
    %v6800 = vunpack.c.h.b16 %v6614
    %v6801 = vunpack.c.l.b16 %v6615
    %v6802 = vunpack.c.h.b16 %v6615
    %v6803 = vunpack.c.l.b16 %v6616
    %v6804 = vunpack.c.h.b16 %v6616
    %v6805 = vunpack.c.l.b16 %v6617
    %v6806 = vunpack.c.h.b16 %v6617
    %v6807 = vunpack.c.l.b16 %v6618
    %v6808 = vunpack.c.h.b16 %v6618
    %v6809 = vunpack.c.l.b16 %v6619
    %v6810 = vunpack.c.h.b16 %v6619
    %v6811 = vunpack.c.l.b16 %v6620
    %v6812 = vunpack.c.h.b16 %v6620
    %v6813 = vunpack.c.l.b16 %v6621
    %v6814 = vunpack.c.h.b16 %v6621
    %v6815 = vunpack.c.l.b16 %v6622
    %v6816 = vunpack.c.h.b16 %v6622
    %v6817 = vunpack.c.l.b16 %v6623
    %v6818 = vunpack.c.h.b16 %v6623
    %v6819 = vunpack.c.l.b16 %v6624
    %v6820 = vunpack.c.h.b16 %v6624
    %v6821 = vunpack.c.l.b16 %v6625
    %v6822 = vunpack.c.h.b16 %v6625
    %v6823 = vunpack.c.l.b16 %v6626
    %v6824 = vunpack.c.h.b16 %v6626
    %v6825 = vunpack.c.l.b16 %v6627
    %v6826 = vunpack.c.h.b16 %v6627
    %v6827 = vunpack.c.l.b16 %v6628
    %v6828 = vunpack.c.h.b16 %v6628
    %v6829 = vunpack.c.l.b16 %v6629
    %v6830 = vunpack.c.h.b16 %v6629
    %v6831 = vunpack.c.l.b16 %v6630
    %v6832 = vunpack.c.h.b16 %v6630
    %v6833 = vunpack.c.l.b16 %v6631
    %v6834 = vunpack.c.h.b16 %v6631
    %v6835 = vunpack.c.l.b16 %v6632
    %v6836 = vunpack.c.h.b16 %v6632
    %v6837 = vunpack.c.l.b16 %v6633
    %v6838 = vunpack.c.h.b16 %v6633
    %v6839 = vunpack.c.l.b16 %v6634
    %v6840 = vunpack.c.h.b16 %v6634
    %v6841 = vunpack.c.l.b16 %v6635
    %v6842 = vunpack.c.h.b16 %v6635
    %v6843 = vunpack.c.l.b16 %v6636
    %v6844 = vunpack.c.h.b16 %v6636
    %v6845 = vunpack.c.l.b16 %v6637
    %v6846 = vunpack.c.h.b16 %v6637
    %v6847 = vunpack.c.l.b16 %v6638
    %v6848 = vunpack.c.h.b16 %v6638
    %v6849 = vpack.c.b16 %v6729, %v6721
    %v6850 = vpack.c.b16 %v6730, %v6722
    %v6851 = vpack.c.b16 %v6731, %v6723
    %v6852 = vpack.c.b16 %v6732, %v6724
    %v6853 = vpack.c.b16 %v6733, %v6725
    %v6854 = vpack.c.b16 %v6734, %v6726
    %v6855 = vpack.c.b16 %v6735, %v6727
    %v6856 = vpack.c.b16 %v6736, %v6728
    %v6857 = vpack.c.b16 %v6745, %v6737
    %v6858 = vpack.c.b16 %v6746, %v6738
    %v6859 = vpack.c.b16 %v6747, %v6739
    %v6860 = vpack.c.b16 %v6748, %v6740
    %v6861 = vpack.c.b16 %v6749, %v6741
    %v6862 = vpack.c.b16 %v6750, %v6742
    %v6863 = vpack.c.b16 %v6751, %v6743
    %v6864 = vpack.c.b16 %v6752, %v6744
    %v6865 = vpack.c.b16 %v6761, %v6753
    %v6866 = vpack.c.b16 %v6762, %v6754
    %v6867 = vpack.c.b16 %v6763, %v6755
    %v6868 = vpack.c.b16 %v6764, %v6756
    %v6869 = vpack.c.b16 %v6765, %v6757
    %v6870 = vpack.c.b16 %v6766, %v6758
    %v6871 = vpack.c.b16 %v6767, %v6759
    %v6872 = vpack.c.b16 %v6768, %v6760
    %v6873 = vpack.c.b16 %v6777, %v6769
    %v6874 = vpack.c.b16 %v6778, %v6770
    %v6875 = vpack.c.b16 %v6779, %v6771
    %v6876 = vpack.c.b16 %v6780, %v6772
    %v6877 = vpack.c.b16 %v6781, %v6773
    %v6878 = vpack.c.b16 %v6782, %v6774
    %v6879 = vpack.c.b16 %v6783, %v6775
    %v6880 = vpack.c.b16 %v6784, %v6776
    %v6881 = vpack.c.b16 %v6793, %v6785
    %v6882 = vpack.c.b16 %v6794, %v6786
    %v6883 = vpack.c.b16 %v6795, %v6787
    %v6884 = vpack.c.b16 %v6796, %v6788
    %v6885 = vpack.c.b16 %v6797, %v6789
    %v6886 = vpack.c.b16 %v6798, %v6790
    %v6887 = vpack.c.b16 %v6799, %v6791
    %v6888 = vpack.c.b16 %v6800, %v6792
    %v6889 = vpack.c.b16 %v6809, %v6801
    %v6890 = vpack.c.b16 %v6810, %v6802
    %v6891 = vpack.c.b16 %v6811, %v6803
    %v6892 = vpack.c.b16 %v6812, %v6804
    %v6893 = vpack.c.b16 %v6813, %v6805
    %v6894 = vpack.c.b16 %v6814, %v6806
    %v6895 = vpack.c.b16 %v6815, %v6807
    %v6896 = vpack.c.b16 %v6816, %v6808
    %v6897 = vpack.c.b16 %v6825, %v6817
    %v6898 = vpack.c.b16 %v6826, %v6818
    %v6899 = vpack.c.b16 %v6827, %v6819
    %v6900 = vpack.c.b16 %v6828, %v6820
    %v6901 = vpack.c.b16 %v6829, %v6821
    %v6902 = vpack.c.b16 %v6830, %v6822
    %v6903 = vpack.c.b16 %v6831, %v6823
    %v6904 = vpack.c.b16 %v6832, %v6824
    %v6905 = vpack.c.b16 %v6841, %v6833
    %v6906 = vpack.c.b16 %v6842, %v6834
    %v6907 = vpack.c.b16 %v6843, %v6835
    %v6908 = vpack.c.b16 %v6844, %v6836
    %v6909 = vpack.c.b16 %v6845, %v6837
    %v6910 = vpack.c.b16 %v6846, %v6838
    %v6911 = vpack.c.b16 %v6847, %v6839
    %v6912 = vpack.c.b16 %v6848, %v6840
    %6977 = vmatpush.bf16.msra.mxu0 %v6905
    %6978 = vmatpush.bf16.msra.mxu0 %v6897
    %6979 = vmatpush.bf16.msra.mxu0 %v6889
    %6980 = vmatpush.bf16.msra.mxu0 %v6881
    %6981 = vmatpush.bf16.msra.mxu0 %v6873
    %6982 = vmatpush.bf16.msra.mxu0 %v6865
    %6983 = vmatpush.bf16.msra.mxu0 %v6857
    %6984 = vmatpush.bf16.msra.mxu0 %v6849
    %6985 = vmatmul.bf16.gmra.mxu0 %v6559
    %v6986 = vpop.f32.mrf.mxu0
    %v6987 = vadd.f32 %v6641, %v6986
    %v6988 = vpop.f32.mrf.mxu0
    %v6989 = vadd.f32 %v6641, %v6988
    %6990 = vmatmul.bf16.gmra.mxu0 %v6560
    %v6991 = vpop.f32.mrf.mxu0
    %v6992 = vadd.f32 %v6641, %v6991
    %v6993 = vpop.f32.mrf.mxu0
    %v6994 = vadd.f32 %v6641, %v6993
    %6995 = vmatmul.bf16.gmra.mxu0 %v6561
    %v6996 = vpop.f32.mrf.mxu0
    %v6997 = vadd.f32 %v6641, %v6996
    %v6998 = vpop.f32.mrf.mxu0
    %v6999 = vadd.f32 %v6641, %v6998
    %7000 = vmatmul.bf16.gmra.mxu0 %v6562
    %v7001 = vpop.f32.mrf.mxu0
    %v7002 = vadd.f32 %v6641, %v7001
    %v7003 = vpop.f32.mrf.mxu0
    %v7004 = vadd.f32 %v6641, %v7003
    %7005 = vmatmul.bf16.gmra.mxu0 %v6563
    %v7006 = vpop.f32.mrf.mxu0
    %v7007 = vadd.f32 %v6641, %v7006
    %v7008 = vpop.f32.mrf.mxu0
    %v7009 = vadd.f32 %v6641, %v7008
    %7010 = vmatmul.bf16.gmra.mxu0 %v6564
    %v7011 = vpop.f32.mrf.mxu0
    %v7012 = vadd.f32 %v6641, %v7011
    %v7013 = vpop.f32.mrf.mxu0
    %v7014 = vadd.f32 %v6641, %v7013
    %7015 = vmatmul.bf16.gmra.mxu0 %v6565
    %v7016 = vpop.f32.mrf.mxu0
    %v7017 = vadd.f32 %v6641, %v7016
    %v7018 = vpop.f32.mrf.mxu0
    %v7019 = vadd.f32 %v6641, %v7018
    %7020 = vmatmul.bf16.gmra.mxu0 %v6566
    %v7021 = vpop.f32.mrf.mxu0
    %v7022 = vadd.f32 %v6641, %v7021
    %v7023 = vpop.f32.mrf.mxu0
    %v7024 = vadd.f32 %v6641, %v7023
    %7025 = vmatmul.bf16.gmra.mxu0 %v6567
    %v7026 = vpop.f32.mrf.mxu0
    %v7027 = vadd.f32 %v6641, %v7026
    %v7028 = vpop.f32.mrf.mxu0
    %v7029 = vadd.f32 %v6641, %v7028
    %7030 = vmatmul.bf16.gmra.mxu0 %v6568
    %v7031 = vpop.f32.mrf.mxu0
    %v7032 = vadd.f32 %v6641, %v7031
    %v7033 = vpop.f32.mrf.mxu0
    %v7034 = vadd.f32 %v6641, %v7033
    %7035 = vmatmul.bf16.gmra.mxu0 %v6569
    %v7036 = vpop.f32.mrf.mxu0
    %v7037 = vadd.f32 %v6641, %v7036
    %v7038 = vpop.f32.mrf.mxu0
    %v7039 = vadd.f32 %v6641, %v7038
    %7040 = vmatmul.bf16.gmra.mxu0 %v6570
    %v7041 = vpop.f32.mrf.mxu0
    %v7042 = vadd.f32 %v6641, %v7041
    %v7043 = vpop.f32.mrf.mxu0
    %v7044 = vadd.f32 %v6641, %v7043
    %7045 = vmatmul.bf16.gmra.mxu0 %v6571
    %v7046 = vpop.f32.mrf.mxu0
    %v7047 = vadd.f32 %v6641, %v7046
    %v7048 = vpop.f32.mrf.mxu0
    %v7049 = vadd.f32 %v6641, %v7048
    %7050 = vmatmul.bf16.gmra.mxu0 %v6572
    %v7051 = vpop.f32.mrf.mxu0
    %v7052 = vadd.f32 %v6641, %v7051
    %v7053 = vpop.f32.mrf.mxu0
    %v7054 = vadd.f32 %v6641, %v7053
    %7055 = vmatmul.bf16.gmra.mxu0 %v6573
    %v7056 = vpop.f32.mrf.mxu0
    %v7057 = vadd.f32 %v6641, %v7056
    %v7058 = vpop.f32.mrf.mxu0
    %v7059 = vadd.f32 %v6641, %v7058
    %7060 = vmatmul.bf16.gmra.mxu0 %v6574
    %v7061 = vpop.f32.mrf.mxu0
    %v7062 = vadd.f32 %v6641, %v7061
    %v7063 = vpop.f32.mrf.mxu0
    %v7064 = vadd.f32 %v6641, %v7063
    %7065 = vdwg.mxu0
    %7066 = vmatpush.bf16.msra.mxu0 %v6906
    %7067 = vmatpush.bf16.msra.mxu0 %v6898
    %7068 = vmatpush.bf16.msra.mxu0 %v6890
    %7069 = vmatpush.bf16.msra.mxu0 %v6882
    %7070 = vmatpush.bf16.msra.mxu0 %v6874
    %7071 = vmatpush.bf16.msra.mxu0 %v6866
    %7072 = vmatpush.bf16.msra.mxu0 %v6858
    %7073 = vmatpush.bf16.msra.mxu0 %v6850
    %7074 = vmatmul.bf16.gmra.mxu0 %v6559
    %v7075 = vpop.f32.mrf.mxu0
    %v7076 = vadd.f32 %v6642, %v7075
    %v7077 = vpop.f32.mrf.mxu0
    %v7078 = vadd.f32 %v6642, %v7077
    %7079 = vmatmul.bf16.gmra.mxu0 %v6560
    %v7080 = vpop.f32.mrf.mxu0
    %v7081 = vadd.f32 %v6642, %v7080
    %v7082 = vpop.f32.mrf.mxu0
    %v7083 = vadd.f32 %v6642, %v7082
    %7084 = vmatmul.bf16.gmra.mxu0 %v6561
    %v7085 = vpop.f32.mrf.mxu0
    %v7086 = vadd.f32 %v6642, %v7085
    %v7087 = vpop.f32.mrf.mxu0
    %v7088 = vadd.f32 %v6642, %v7087
    %7089 = vmatmul.bf16.gmra.mxu0 %v6562
    %v7090 = vpop.f32.mrf.mxu0
    %v7091 = vadd.f32 %v6642, %v7090
    %v7092 = vpop.f32.mrf.mxu0
    %v7093 = vadd.f32 %v6642, %v7092
    %7094 = vmatmul.bf16.gmra.mxu0 %v6563
    %v7095 = vpop.f32.mrf.mxu0
    %v7096 = vadd.f32 %v6642, %v7095
    %v7097 = vpop.f32.mrf.mxu0
    %v7098 = vadd.f32 %v6642, %v7097
    %7099 = vmatmul.bf16.gmra.mxu0 %v6564
    %v7100 = vpop.f32.mrf.mxu0
    %v7101 = vadd.f32 %v6642, %v7100
    %v7102 = vpop.f32.mrf.mxu0
    %v7103 = vadd.f32 %v6642, %v7102
    %7104 = vmatmul.bf16.gmra.mxu0 %v6565
    %v7105 = vpop.f32.mrf.mxu0
    %v7106 = vadd.f32 %v6642, %v7105
    %v7107 = vpop.f32.mrf.mxu0
    %v7108 = vadd.f32 %v6642, %v7107
    %7109 = vmatmul.bf16.gmra.mxu0 %v6566
    %v7110 = vpop.f32.mrf.mxu0
    %v7111 = vadd.f32 %v6642, %v7110
    %v7112 = vpop.f32.mrf.mxu0
    %v7113 = vadd.f32 %v6642, %v7112
    %7114 = vmatmul.bf16.gmra.mxu0 %v6567
    %v7115 = vpop.f32.mrf.mxu0
    %v7116 = vadd.f32 %v6642, %v7115
    %v7117 = vpop.f32.mrf.mxu0
    %v7118 = vadd.f32 %v6642, %v7117
    %7119 = vmatmul.bf16.gmra.mxu0 %v6568
    %v7120 = vpop.f32.mrf.mxu0
    %v7121 = vadd.f32 %v6642, %v7120
    %v7122 = vpop.f32.mrf.mxu0
    %v7123 = vadd.f32 %v6642, %v7122
    %7124 = vmatmul.bf16.gmra.mxu0 %v6569
    %v7125 = vpop.f32.mrf.mxu0
    %v7126 = vadd.f32 %v6642, %v7125
    %v7127 = vpop.f32.mrf.mxu0
    %v7128 = vadd.f32 %v6642, %v7127
    %7129 = vmatmul.bf16.gmra.mxu0 %v6570
    %v7130 = vpop.f32.mrf.mxu0
    %v7131 = vadd.f32 %v6642, %v7130
    %v7132 = vpop.f32.mrf.mxu0
    %v7133 = vadd.f32 %v6642, %v7132
    %7134 = vmatmul.bf16.gmra.mxu0 %v6571
    %v7135 = vpop.f32.mrf.mxu0
    %v7136 = vadd.f32 %v6642, %v7135
    %v7137 = vpop.f32.mrf.mxu0
    %v7138 = vadd.f32 %v6642, %v7137
    %7139 = vmatmul.bf16.gmra.mxu0 %v6572
    %v7140 = vpop.f32.mrf.mxu0
    %v7141 = vadd.f32 %v6642, %v7140
    %v7142 = vpop.f32.mrf.mxu0
    %v7143 = vadd.f32 %v6642, %v7142
    %7144 = vmatmul.bf16.gmra.mxu0 %v6573
    %v7145 = vpop.f32.mrf.mxu0
    %v7146 = vadd.f32 %v6642, %v7145
    %v7147 = vpop.f32.mrf.mxu0
    %v7148 = vadd.f32 %v6642, %v7147
    %7149 = vmatmul.bf16.gmra.mxu0 %v6574
    %v7150 = vpop.f32.mrf.mxu0
    %v7151 = vadd.f32 %v6642, %v7150
    %v7152 = vpop.f32.mrf.mxu0
    %v7153 = vadd.f32 %v6642, %v7152
    %7154 = vdwg.mxu0
    %7155 = vmatpush.bf16.msra.mxu0 %v6907
    %7156 = vmatpush.bf16.msra.mxu0 %v6899
    %7157 = vmatpush.bf16.msra.mxu0 %v6891
    %7158 = vmatpush.bf16.msra.mxu0 %v6883
    %7159 = vmatpush.bf16.msra.mxu0 %v6875
    %7160 = vmatpush.bf16.msra.mxu0 %v6867
    %7161 = vmatpush.bf16.msra.mxu0 %v6859
    %7162 = vmatpush.bf16.msra.mxu0 %v6851
    %7163 = vmatmul.bf16.gmra.mxu0 %v6559
    %v7164 = vpop.f32.mrf.mxu0
    %v7165 = vadd.f32 %v6643, %v7164
    %v7166 = vpop.f32.mrf.mxu0
    %v7167 = vadd.f32 %v6643, %v7166
    %7168 = vmatmul.bf16.gmra.mxu0 %v6560
    %v7169 = vpop.f32.mrf.mxu0
    %v7170 = vadd.f32 %v6643, %v7169
    %v7171 = vpop.f32.mrf.mxu0
    %v7172 = vadd.f32 %v6643, %v7171
    %7173 = vmatmul.bf16.gmra.mxu0 %v6561
    %v7174 = vpop.f32.mrf.mxu0
    %v7175 = vadd.f32 %v6643, %v7174
    %v7176 = vpop.f32.mrf.mxu0
    %v7177 = vadd.f32 %v6643, %v7176
    %7178 = vmatmul.bf16.gmra.mxu0 %v6562
    %v7179 = vpop.f32.mrf.mxu0
    %v7180 = vadd.f32 %v6643, %v7179
    %v7181 = vpop.f32.mrf.mxu0
    %v7182 = vadd.f32 %v6643, %v7181
    %7183 = vmatmul.bf16.gmra.mxu0 %v6563
    %v7184 = vpop.f32.mrf.mxu0
    %v7185 = vadd.f32 %v6643, %v7184
    %v7186 = vpop.f32.mrf.mxu0
    %v7187 = vadd.f32 %v6643, %v7186
    %7188 = vmatmul.bf16.gmra.mxu0 %v6564
    %v7189 = vpop.f32.mrf.mxu0
    %v7190 = vadd.f32 %v6643, %v7189
    %v7191 = vpop.f32.mrf.mxu0
    %v7192 = vadd.f32 %v6643, %v7191
    %7193 = vmatmul.bf16.gmra.mxu0 %v6565
    %v7194 = vpop.f32.mrf.mxu0
    %v7195 = vadd.f32 %v6643, %v7194
    %v7196 = vpop.f32.mrf.mxu0
    %v7197 = vadd.f32 %v6643, %v7196
    %7198 = vmatmul.bf16.gmra.mxu0 %v6566
    %v7199 = vpop.f32.mrf.mxu0
    %v7200 = vadd.f32 %v6643, %v7199
    %v7201 = vpop.f32.mrf.mxu0
    %v7202 = vadd.f32 %v6643, %v7201
    %7203 = vmatmul.bf16.gmra.mxu0 %v6567
    %v7204 = vpop.f32.mrf.mxu0
    %v7205 = vadd.f32 %v6643, %v7204
    %v7206 = vpop.f32.mrf.mxu0
    %v7207 = vadd.f32 %v6643, %v7206
    %7208 = vmatmul.bf16.gmra.mxu0 %v6568
    %v7209 = vpop.f32.mrf.mxu0
    %v7210 = vadd.f32 %v6643, %v7209
    %v7211 = vpop.f32.mrf.mxu0
    %v7212 = vadd.f32 %v6643, %v7211
    %7213 = vmatmul.bf16.gmra.mxu0 %v6569
    %v7214 = vpop.f32.mrf.mxu0
    %v7215 = vadd.f32 %v6643, %v7214
    %v7216 = vpop.f32.mrf.mxu0
    %v7217 = vadd.f32 %v6643, %v7216
    %7218 = vmatmul.bf16.gmra.mxu0 %v6570
    %v7219 = vpop.f32.mrf.mxu0
    %v7220 = vadd.f32 %v6643, %v7219
    %v7221 = vpop.f32.mrf.mxu0
    %v7222 = vadd.f32 %v6643, %v7221
    %7223 = vmatmul.bf16.gmra.mxu0 %v6571
    %v7224 = vpop.f32.mrf.mxu0
    %v7225 = vadd.f32 %v6643, %v7224
    %v7226 = vpop.f32.mrf.mxu0
    %v7227 = vadd.f32 %v6643, %v7226
    %7228 = vmatmul.bf16.gmra.mxu0 %v6572
    %v7229 = vpop.f32.mrf.mxu0
    %v7230 = vadd.f32 %v6643, %v7229
    %v7231 = vpop.f32.mrf.mxu0
    %v7232 = vadd.f32 %v6643, %v7231
    %7233 = vmatmul.bf16.gmra.mxu0 %v6573
    %v7234 = vpop.f32.mrf.mxu0
    %v7235 = vadd.f32 %v6643, %v7234
    %v7236 = vpop.f32.mrf.mxu0
    %v7237 = vadd.f32 %v6643, %v7236
    %7238 = vmatmul.bf16.gmra.mxu0 %v6574
    %v7239 = vpop.f32.mrf.mxu0
    %v7240 = vadd.f32 %v6643, %v7239
    %v7241 = vpop.f32.mrf.mxu0
    %v7242 = vadd.f32 %v6643, %v7241
    %7243 = vdwg.mxu0
    %7244 = vmatpush.bf16.msra.mxu0 %v6908
    %7245 = vmatpush.bf16.msra.mxu0 %v6900
    %7246 = vmatpush.bf16.msra.mxu0 %v6892
    %7247 = vmatpush.bf16.msra.mxu0 %v6884
    %7248 = vmatpush.bf16.msra.mxu0 %v6876
    %7249 = vmatpush.bf16.msra.mxu0 %v6868
    %7250 = vmatpush.bf16.msra.mxu0 %v6860
    %7251 = vmatpush.bf16.msra.mxu0 %v6852
    %7252 = vmatmul.bf16.gmra.mxu0 %v6559
    %v7253 = vpop.f32.mrf.mxu0
    %v7254 = vadd.f32 %v6644, %v7253
    %v7255 = vpop.f32.mrf.mxu0
    %v7256 = vadd.f32 %v6644, %v7255
    %7257 = vmatmul.bf16.gmra.mxu0 %v6560
    %v7258 = vpop.f32.mrf.mxu0
    %v7259 = vadd.f32 %v6644, %v7258
    %v7260 = vpop.f32.mrf.mxu0
    %v7261 = vadd.f32 %v6644, %v7260
    %7262 = vmatmul.bf16.gmra.mxu0 %v6561
    %v7263 = vpop.f32.mrf.mxu0
    %v7264 = vadd.f32 %v6644, %v7263
    %v7265 = vpop.f32.mrf.mxu0
    %v7266 = vadd.f32 %v6644, %v7265
    %7267 = vmatmul.bf16.gmra.mxu0 %v6562
    %v7268 = vpop.f32.mrf.mxu0
    %v7269 = vadd.f32 %v6644, %v7268
    %v7270 = vpop.f32.mrf.mxu0
    %v7271 = vadd.f32 %v6644, %v7270
    %7272 = vmatmul.bf16.gmra.mxu0 %v6563
    %v7273 = vpop.f32.mrf.mxu0
    %v7274 = vadd.f32 %v6644, %v7273
    %v7275 = vpop.f32.mrf.mxu0
    %v7276 = vadd.f32 %v6644, %v7275
    %7277 = vmatmul.bf16.gmra.mxu0 %v6564
    %v7278 = vpop.f32.mrf.mxu0
    %v7279 = vadd.f32 %v6644, %v7278
    %v7280 = vpop.f32.mrf.mxu0
    %v7281 = vadd.f32 %v6644, %v7280
    %7282 = vmatmul.bf16.gmra.mxu0 %v6565
    %v7283 = vpop.f32.mrf.mxu0
    %v7284 = vadd.f32 %v6644, %v7283
    %v7285 = vpop.f32.mrf.mxu0
    %v7286 = vadd.f32 %v6644, %v7285
    %7287 = vmatmul.bf16.gmra.mxu0 %v6566
    %v7288 = vpop.f32.mrf.mxu0
    %v7289 = vadd.f32 %v6644, %v7288
    %v7290 = vpop.f32.mrf.mxu0
    %v7291 = vadd.f32 %v6644, %v7290
    %7292 = vmatmul.bf16.gmra.mxu0 %v6567
    %v7293 = vpop.f32.mrf.mxu0
    %v7294 = vadd.f32 %v6644, %v7293
    %v7295 = vpop.f32.mrf.mxu0
    %v7296 = vadd.f32 %v6644, %v7295
    %7297 = vmatmul.bf16.gmra.mxu0 %v6568
    %v7298 = vpop.f32.mrf.mxu0
    %v7299 = vadd.f32 %v6644, %v7298
    %v7300 = vpop.f32.mrf.mxu0
    %v7301 = vadd.f32 %v6644, %v7300
    %7302 = vmatmul.bf16.gmra.mxu0 %v6569
    %v7303 = vpop.f32.mrf.mxu0
    %v7304 = vadd.f32 %v6644, %v7303
    %v7305 = vpop.f32.mrf.mxu0
    %v7306 = vadd.f32 %v6644, %v7305
    %7307 = vmatmul.bf16.gmra.mxu0 %v6570
    %v7308 = vpop.f32.mrf.mxu0
    %v7309 = vadd.f32 %v6644, %v7308
    %v7310 = vpop.f32.mrf.mxu0
    %v7311 = vadd.f32 %v6644, %v7310
    %7312 = vmatmul.bf16.gmra.mxu0 %v6571
    %v7313 = vpop.f32.mrf.mxu0
    %v7314 = vadd.f32 %v6644, %v7313
    %v7315 = vpop.f32.mrf.mxu0
    %v7316 = vadd.f32 %v6644, %v7315
    %7317 = vmatmul.bf16.gmra.mxu0 %v6572
    %v7318 = vpop.f32.mrf.mxu0
    %v7319 = vadd.f32 %v6644, %v7318
    %v7320 = vpop.f32.mrf.mxu0
    %v7321 = vadd.f32 %v6644, %v7320
    %7322 = vmatmul.bf16.gmra.mxu0 %v6573
    %v7323 = vpop.f32.mrf.mxu0
    %v7324 = vadd.f32 %v6644, %v7323
    %v7325 = vpop.f32.mrf.mxu0
    %v7326 = vadd.f32 %v6644, %v7325
    %7327 = vmatmul.bf16.gmra.mxu0 %v6574
    %v7328 = vpop.f32.mrf.mxu0
    %v7329 = vadd.f32 %v6644, %v7328
    %v7330 = vpop.f32.mrf.mxu0
    %v7331 = vadd.f32 %v6644, %v7330
    %7332 = vdwg.mxu0
    %7333 = vmatpush.bf16.msra.mxu0 %v6909
    %7334 = vmatpush.bf16.msra.mxu0 %v6901
    %7335 = vmatpush.bf16.msra.mxu0 %v6893
    %7336 = vmatpush.bf16.msra.mxu0 %v6885
    %7337 = vmatpush.bf16.msra.mxu0 %v6877
    %7338 = vmatpush.bf16.msra.mxu0 %v6869
    %7339 = vmatpush.bf16.msra.mxu0 %v6861
    %7340 = vmatpush.bf16.msra.mxu0 %v6853
    %7341 = vmatmul.bf16.gmra.mxu0 %v6559
    %v7342 = vpop.f32.mrf.mxu0
    %v7343 = vadd.f32 %v6645, %v7342
    %v7344 = vpop.f32.mrf.mxu0
    %v7345 = vadd.f32 %v6645, %v7344
    %7346 = vmatmul.bf16.gmra.mxu0 %v6560
    %v7347 = vpop.f32.mrf.mxu0
    %v7348 = vadd.f32 %v6645, %v7347
    %v7349 = vpop.f32.mrf.mxu0
    %v7350 = vadd.f32 %v6645, %v7349
    %7351 = vmatmul.bf16.gmra.mxu0 %v6561
    %v7352 = vpop.f32.mrf.mxu0
    %v7353 = vadd.f32 %v6645, %v7352
    %v7354 = vpop.f32.mrf.mxu0
    %v7355 = vadd.f32 %v6645, %v7354
    %7356 = vmatmul.bf16.gmra.mxu0 %v6562
    %v7357 = vpop.f32.mrf.mxu0
    %v7358 = vadd.f32 %v6645, %v7357
    %v7359 = vpop.f32.mrf.mxu0
    %v7360 = vadd.f32 %v6645, %v7359
    %7361 = vmatmul.bf16.gmra.mxu0 %v6563
    %v7362 = vpop.f32.mrf.mxu0
    %v7363 = vadd.f32 %v6645, %v7362
    %v7364 = vpop.f32.mrf.mxu0
    %v7365 = vadd.f32 %v6645, %v7364
    %7366 = vmatmul.bf16.gmra.mxu0 %v6564
    %v7367 = vpop.f32.mrf.mxu0
    %v7368 = vadd.f32 %v6645, %v7367
    %v7369 = vpop.f32.mrf.mxu0
    %v7370 = vadd.f32 %v6645, %v7369
    %7371 = vmatmul.bf16.gmra.mxu0 %v6565
    %v7372 = vpop.f32.mrf.mxu0
    %v7373 = vadd.f32 %v6645, %v7372
    %v7374 = vpop.f32.mrf.mxu0
    %v7375 = vadd.f32 %v6645, %v7374
    %7376 = vmatmul.bf16.gmra.mxu0 %v6566
    %v7377 = vpop.f32.mrf.mxu0
    %v7378 = vadd.f32 %v6645, %v7377
    %v7379 = vpop.f32.mrf.mxu0
    %v7380 = vadd.f32 %v6645, %v7379
    %7381 = vmatmul.bf16.gmra.mxu0 %v6567
    %v7382 = vpop.f32.mrf.mxu0
    %v7383 = vadd.f32 %v6645, %v7382
    %v7384 = vpop.f32.mrf.mxu0
    %v7385 = vadd.f32 %v6645, %v7384
    %7386 = vmatmul.bf16.gmra.mxu0 %v6568
    %v7387 = vpop.f32.mrf.mxu0
    %v7388 = vadd.f32 %v6645, %v7387
    %v7389 = vpop.f32.mrf.mxu0
    %v7390 = vadd.f32 %v6645, %v7389
    %7391 = vmatmul.bf16.gmra.mxu0 %v6569
    %v7392 = vpop.f32.mrf.mxu0
    %v7393 = vadd.f32 %v6645, %v7392
    %v7394 = vpop.f32.mrf.mxu0
    %v7395 = vadd.f32 %v6645, %v7394
    %7396 = vmatmul.bf16.gmra.mxu0 %v6570
    %v7397 = vpop.f32.mrf.mxu0
    %v7398 = vadd.f32 %v6645, %v7397
    %v7399 = vpop.f32.mrf.mxu0
    %v7400 = vadd.f32 %v6645, %v7399
    %7401 = vmatmul.bf16.gmra.mxu0 %v6571
    %v7402 = vpop.f32.mrf.mxu0
    %v7403 = vadd.f32 %v6645, %v7402
    %v7404 = vpop.f32.mrf.mxu0
    %v7405 = vadd.f32 %v6645, %v7404
    %7406 = vmatmul.bf16.gmra.mxu0 %v6572
    %v7407 = vpop.f32.mrf.mxu0
    %v7408 = vadd.f32 %v6645, %v7407
    %v7409 = vpop.f32.mrf.mxu0
    %v7410 = vadd.f32 %v6645, %v7409
    %7411 = vmatmul.bf16.gmra.mxu0 %v6573
    %v7412 = vpop.f32.mrf.mxu0
    %v7413 = vadd.f32 %v6645, %v7412
    %v7414 = vpop.f32.mrf.mxu0
    %v7415 = vadd.f32 %v6645, %v7414
    %7416 = vmatmul.bf16.gmra.mxu0 %v6574
    %v7417 = vpop.f32.mrf.mxu0
    %v7418 = vadd.f32 %v6645, %v7417
    %v7419 = vpop.f32.mrf.mxu0
    %v7420 = vadd.f32 %v6645, %v7419
    %7421 = vdwg.mxu0
    %7422 = vmatpush.bf16.msra.mxu0 %v6910
    %7423 = vmatpush.bf16.msra.mxu0 %v6902
    %7424 = vmatpush.bf16.msra.mxu0 %v6894
    %7425 = vmatpush.bf16.msra.mxu0 %v6886
    %7426 = vmatpush.bf16.msra.mxu0 %v6878
    %7427 = vmatpush.bf16.msra.mxu0 %v6870
    %7428 = vmatpush.bf16.msra.mxu0 %v6862
    %7429 = vmatpush.bf16.msra.mxu0 %v6854
    %7430 = vmatmul.bf16.gmra.mxu0 %v6559
    %v7431 = vpop.f32.mrf.mxu0
    %v7432 = vadd.f32 %v6646, %v7431
    %v7433 = vpop.f32.mrf.mxu0
    %v7434 = vadd.f32 %v6646, %v7433
    %7435 = vmatmul.bf16.gmra.mxu0 %v6560
    %v7436 = vpop.f32.mrf.mxu0
    %v7437 = vadd.f32 %v6646, %v7436
    %v7438 = vpop.f32.mrf.mxu0
    %v7439 = vadd.f32 %v6646, %v7438
    %7440 = vmatmul.bf16.gmra.mxu0 %v6561
    %v7441 = vpop.f32.mrf.mxu0
    %v7442 = vadd.f32 %v6646, %v7441
    %v7443 = vpop.f32.mrf.mxu0
    %v7444 = vadd.f32 %v6646, %v7443
    %7445 = vmatmul.bf16.gmra.mxu0 %v6562
    %v7446 = vpop.f32.mrf.mxu0
    %v7447 = vadd.f32 %v6646, %v7446
    %v7448 = vpop.f32.mrf.mxu0
    %v7449 = vadd.f32 %v6646, %v7448
    %7450 = vmatmul.bf16.gmra.mxu0 %v6563
    %v7451 = vpop.f32.mrf.mxu0
    %v7452 = vadd.f32 %v6646, %v7451
    %v7453 = vpop.f32.mrf.mxu0
    %v7454 = vadd.f32 %v6646, %v7453
    %7455 = vmatmul.bf16.gmra.mxu0 %v6564
    %v7456 = vpop.f32.mrf.mxu0
    %v7457 = vadd.f32 %v6646, %v7456
    %v7458 = vpop.f32.mrf.mxu0
    %v7459 = vadd.f32 %v6646, %v7458
    %7460 = vmatmul.bf16.gmra.mxu0 %v6565
    %v7461 = vpop.f32.mrf.mxu0
    %v7462 = vadd.f32 %v6646, %v7461
    %v7463 = vpop.f32.mrf.mxu0
    %v7464 = vadd.f32 %v6646, %v7463
    %7465 = vmatmul.bf16.gmra.mxu0 %v6566
    %v7466 = vpop.f32.mrf.mxu0
    %v7467 = vadd.f32 %v6646, %v7466
    %v7468 = vpop.f32.mrf.mxu0
    %v7469 = vadd.f32 %v6646, %v7468
    %7470 = vmatmul.bf16.gmra.mxu0 %v6567
    %v7471 = vpop.f32.mrf.mxu0
    %v7472 = vadd.f32 %v6646, %v7471
    %v7473 = vpop.f32.mrf.mxu0
    %v7474 = vadd.f32 %v6646, %v7473
    %7475 = vmatmul.bf16.gmra.mxu0 %v6568
    %v7476 = vpop.f32.mrf.mxu0
    %v7477 = vadd.f32 %v6646, %v7476
    %v7478 = vpop.f32.mrf.mxu0
    %v7479 = vadd.f32 %v6646, %v7478
    %7480 = vmatmul.bf16.gmra.mxu0 %v6569
    %v7481 = vpop.f32.mrf.mxu0
    %v7482 = vadd.f32 %v6646, %v7481
    %v7483 = vpop.f32.mrf.mxu0
    %v7484 = vadd.f32 %v6646, %v7483
    %7485 = vmatmul.bf16.gmra.mxu0 %v6570
    %v7486 = vpop.f32.mrf.mxu0
    %v7487 = vadd.f32 %v6646, %v7486
    %v7488 = vpop.f32.mrf.mxu0
    %v7489 = vadd.f32 %v6646, %v7488
    %7490 = vmatmul.bf16.gmra.mxu0 %v6571
    %v7491 = vpop.f32.mrf.mxu0
    %v7492 = vadd.f32 %v6646, %v7491
    %v7493 = vpop.f32.mrf.mxu0
    %v7494 = vadd.f32 %v6646, %v7493
    %7495 = vmatmul.bf16.gmra.mxu0 %v6572
    %v7496 = vpop.f32.mrf.mxu0
    %v7497 = vadd.f32 %v6646, %v7496
    %v7498 = vpop.f32.mrf.mxu0
    %v7499 = vadd.f32 %v6646, %v7498
    %7500 = vmatmul.bf16.gmra.mxu0 %v6573
    %v7501 = vpop.f32.mrf.mxu0
    %v7502 = vadd.f32 %v6646, %v7501
    %v7503 = vpop.f32.mrf.mxu0
    %v7504 = vadd.f32 %v6646, %v7503
    %7505 = vmatmul.bf16.gmra.mxu0 %v6574
    %v7506 = vpop.f32.mrf.mxu0
    %v7507 = vadd.f32 %v6646, %v7506
    %v7508 = vpop.f32.mrf.mxu0
    %v7509 = vadd.f32 %v6646, %v7508
    %7510 = vdwg.mxu0
    %7511 = vmatpush.bf16.msra.mxu0 %v6911
    %7512 = vmatpush.bf16.msra.mxu0 %v6903
    %7513 = vmatpush.bf16.msra.mxu0 %v6895
    %7514 = vmatpush.bf16.msra.mxu0 %v6887
    %7515 = vmatpush.bf16.msra.mxu0 %v6879
    %7516 = vmatpush.bf16.msra.mxu0 %v6871
    %7517 = vmatpush.bf16.msra.mxu0 %v6863
    %7518 = vmatpush.bf16.msra.mxu0 %v6855
    %7519 = vmatmul.bf16.gmra.mxu0 %v6559
    %v7520 = vpop.f32.mrf.mxu0
    %v7521 = vadd.f32 %v6647, %v7520
    %v7522 = vpop.f32.mrf.mxu0
    %v7523 = vadd.f32 %v6647, %v7522
    %7524 = vmatmul.bf16.gmra.mxu0 %v6560
    %v7525 = vpop.f32.mrf.mxu0
    %v7526 = vadd.f32 %v6647, %v7525
    %v7527 = vpop.f32.mrf.mxu0
    %v7528 = vadd.f32 %v6647, %v7527
    %7529 = vmatmul.bf16.gmra.mxu0 %v6561
    %v7530 = vpop.f32.mrf.mxu0
    %v7531 = vadd.f32 %v6647, %v7530
    %v7532 = vpop.f32.mrf.mxu0
    %v7533 = vadd.f32 %v6647, %v7532
    %7534 = vmatmul.bf16.gmra.mxu0 %v6562
    %v7535 = vpop.f32.mrf.mxu0
    %v7536 = vadd.f32 %v6647, %v7535
    %v7537 = vpop.f32.mrf.mxu0
    %v7538 = vadd.f32 %v6647, %v7537
    %7539 = vmatmul.bf16.gmra.mxu0 %v6563
    %v7540 = vpop.f32.mrf.mxu0
    %v7541 = vadd.f32 %v6647, %v7540
    %v7542 = vpop.f32.mrf.mxu0
    %v7543 = vadd.f32 %v6647, %v7542
    %7544 = vmatmul.bf16.gmra.mxu0 %v6564
    %v7545 = vpop.f32.mrf.mxu0
    %v7546 = vadd.f32 %v6647, %v7545
    %v7547 = vpop.f32.mrf.mxu0
    %v7548 = vadd.f32 %v6647, %v7547
    %7549 = vmatmul.bf16.gmra.mxu0 %v6565
    %v7550 = vpop.f32.mrf.mxu0
    %v7551 = vadd.f32 %v6647, %v7550
    %v7552 = vpop.f32.mrf.mxu0
    %v7553 = vadd.f32 %v6647, %v7552
    %7554 = vmatmul.bf16.gmra.mxu0 %v6566
    %v7555 = vpop.f32.mrf.mxu0
    %v7556 = vadd.f32 %v6647, %v7555
    %v7557 = vpop.f32.mrf.mxu0
    %v7558 = vadd.f32 %v6647, %v7557
    %7559 = vmatmul.bf16.gmra.mxu0 %v6567
    %v7560 = vpop.f32.mrf.mxu0
    %v7561 = vadd.f32 %v6647, %v7560
    %v7562 = vpop.f32.mrf.mxu0
    %v7563 = vadd.f32 %v6647, %v7562
    %7564 = vmatmul.bf16.gmra.mxu0 %v6568
    %v7565 = vpop.f32.mrf.mxu0
    %v7566 = vadd.f32 %v6647, %v7565
    %v7567 = vpop.f32.mrf.mxu0
    %v7568 = vadd.f32 %v6647, %v7567
    %7569 = vmatmul.bf16.gmra.mxu0 %v6569
    %v7570 = vpop.f32.mrf.mxu0
    %v7571 = vadd.f32 %v6647, %v7570
    %v7572 = vpop.f32.mrf.mxu0
    %v7573 = vadd.f32 %v6647, %v7572
    %7574 = vmatmul.bf16.gmra.mxu0 %v6570
    %v7575 = vpop.f32.mrf.mxu0
    %v7576 = vadd.f32 %v6647, %v7575
    %v7577 = vpop.f32.mrf.mxu0
    %v7578 = vadd.f32 %v6647, %v7577
    %7579 = vmatmul.bf16.gmra.mxu0 %v6571
    %v7580 = vpop.f32.mrf.mxu0
    %v7581 = vadd.f32 %v6647, %v7580
    %v7582 = vpop.f32.mrf.mxu0
    %v7583 = vadd.f32 %v6647, %v7582
    %7584 = vmatmul.bf16.gmra.mxu0 %v6572
    %v7585 = vpop.f32.mrf.mxu0
    %v7586 = vadd.f32 %v6647, %v7585
    %v7587 = vpop.f32.mrf.mxu0
    %v7588 = vadd.f32 %v6647, %v7587
    %7589 = vmatmul.bf16.gmra.mxu0 %v6573
    %v7590 = vpop.f32.mrf.mxu0
    %v7591 = vadd.f32 %v6647, %v7590
    %v7592 = vpop.f32.mrf.mxu0
    %v7593 = vadd.f32 %v6647, %v7592
    %7594 = vmatmul.bf16.gmra.mxu0 %v6574
    %v7595 = vpop.f32.mrf.mxu0
    %v7596 = vadd.f32 %v6647, %v7595
    %v7597 = vpop.f32.mrf.mxu0
    %v7598 = vadd.f32 %v6647, %v7597
    %7599 = vdwg.mxu0
    %7600 = vmatpush.bf16.msra.mxu0 %v6912
    %7601 = vmatpush.bf16.msra.mxu0 %v6904
    %7602 = vmatpush.bf16.msra.mxu0 %v6896
    %7603 = vmatpush.bf16.msra.mxu0 %v6888
    %7604 = vmatpush.bf16.msra.mxu0 %v6880
    %7605 = vmatpush.bf16.msra.mxu0 %v6872
    %7606 = vmatpush.bf16.msra.mxu0 %v6864
    %7607 = vmatpush.bf16.msra.mxu0 %v6856
    %7608 = vmatmul.bf16.gmra.mxu0 %v6559
    %v7609 = vpop.f32.mrf.mxu0
    %v7610 = vadd.f32 %v6648, %v7609
    %v7611 = vpop.f32.mrf.mxu0
    %v7612 = vadd.f32 %v6648, %v7611
    %7613 = vmatmul.bf16.gmra.mxu0 %v6560
    %v7614 = vpop.f32.mrf.mxu0
    %v7615 = vadd.f32 %v6648, %v7614
    %v7616 = vpop.f32.mrf.mxu0
    %v7617 = vadd.f32 %v6648, %v7616
    %7618 = vmatmul.bf16.gmra.mxu0 %v6561
    %v7619 = vpop.f32.mrf.mxu0
    %v7620 = vadd.f32 %v6648, %v7619
    %v7621 = vpop.f32.mrf.mxu0
    %v7622 = vadd.f32 %v6648, %v7621
    %7623 = vmatmul.bf16.gmra.mxu0 %v6562
    %v7624 = vpop.f32.mrf.mxu0
    %v7625 = vadd.f32 %v6648, %v7624
    %v7626 = vpop.f32.mrf.mxu0
    %v7627 = vadd.f32 %v6648, %v7626
    %7628 = vmatmul.bf16.gmra.mxu0 %v6563
    %v7629 = vpop.f32.mrf.mxu0
    %v7630 = vadd.f32 %v6648, %v7629
    %v7631 = vpop.f32.mrf.mxu0
    %v7632 = vadd.f32 %v6648, %v7631
    %7633 = vmatmul.bf16.gmra.mxu0 %v6564
    %v7634 = vpop.f32.mrf.mxu0
    %v7635 = vadd.f32 %v6648, %v7634
    %v7636 = vpop.f32.mrf.mxu0
    %v7637 = vadd.f32 %v6648, %v7636
    %7638 = vmatmul.bf16.gmra.mxu0 %v6565
    %v7639 = vpop.f32.mrf.mxu0
    %v7640 = vadd.f32 %v6648, %v7639
    %v7641 = vpop.f32.mrf.mxu0
    %v7642 = vadd.f32 %v6648, %v7641
    %7643 = vmatmul.bf16.gmra.mxu0 %v6566
    %v7644 = vpop.f32.mrf.mxu0
    %v7645 = vadd.f32 %v6648, %v7644
    %v7646 = vpop.f32.mrf.mxu0
    %v7647 = vadd.f32 %v6648, %v7646
    %7648 = vmatmul.bf16.gmra.mxu0 %v6567
    %v7649 = vpop.f32.mrf.mxu0
    %v7650 = vadd.f32 %v6648, %v7649
    %v7651 = vpop.f32.mrf.mxu0
    %v7652 = vadd.f32 %v6648, %v7651
    %7653 = vmatmul.bf16.gmra.mxu0 %v6568
    %v7654 = vpop.f32.mrf.mxu0
    %v7655 = vadd.f32 %v6648, %v7654
    %v7656 = vpop.f32.mrf.mxu0
    %v7657 = vadd.f32 %v6648, %v7656
    %7658 = vmatmul.bf16.gmra.mxu0 %v6569
    %v7659 = vpop.f32.mrf.mxu0
    %v7660 = vadd.f32 %v6648, %v7659
    %v7661 = vpop.f32.mrf.mxu0
    %v7662 = vadd.f32 %v6648, %v7661
    %7663 = vmatmul.bf16.gmra.mxu0 %v6570
    %v7664 = vpop.f32.mrf.mxu0
    %v7665 = vadd.f32 %v6648, %v7664
    %v7666 = vpop.f32.mrf.mxu0
    %v7667 = vadd.f32 %v6648, %v7666
    %7668 = vmatmul.bf16.gmra.mxu0 %v6571
    %v7669 = vpop.f32.mrf.mxu0
    %v7670 = vadd.f32 %v6648, %v7669
    %v7671 = vpop.f32.mrf.mxu0
    %v7672 = vadd.f32 %v6648, %v7671
    %7673 = vmatmul.bf16.gmra.mxu0 %v6572
    %v7674 = vpop.f32.mrf.mxu0
    %v7675 = vadd.f32 %v6648, %v7674
    %v7676 = vpop.f32.mrf.mxu0
    %v7677 = vadd.f32 %v6648, %v7676
    %7678 = vmatmul.bf16.gmra.mxu0 %v6573
    %v7679 = vpop.f32.mrf.mxu0
    %v7680 = vadd.f32 %v6648, %v7679
    %v7681 = vpop.f32.mrf.mxu0
    %v7682 = vadd.f32 %v6648, %v7681
    %7683 = vmatmul.bf16.gmra.mxu0 %v6574
    %v7684 = vpop.f32.mrf.mxu0
    %v7685 = vadd.f32 %v6648, %v7684
    %v7686 = vpop.f32.mrf.mxu0
    %v7687 = vadd.f32 %v6648, %v7686
    %7688 = vdwg.mxu0
    %v7689 = vmax.f32 %v6987, %v6989
    %v7690 = vmax.f32 %v7689, %v6992
    %v7691 = vmax.f32 %v7690, %v6994
    %v7692 = vmax.f32 %v7691, %v6997
    %v7693 = vmax.f32 %v7692, %v6999
    %v7694 = vmax.f32 %v7693, %v7002
    %v7695 = vmax.f32 %v7694, %v7004
    %v7696 = vmax.f32 %v7695, %v7007
    %v7697 = vmax.f32 %v7696, %v7009
    %v7698 = vmax.f32 %v7697, %v7012
    %v7699 = vmax.f32 %v7698, %v7014
    %v7700 = vmax.f32 %v7699, %v7017
    %v7701 = vmax.f32 %v7700, %v7019
    %v7702 = vmax.f32 %v7701, %v7022
    %v7703 = vmax.f32 %v7702, %v7024
    %v7704 = vrot.slane %v7703, 4
    %v7705 = vmax.f32 %v7703, %v7704
    %v7706 = vrot.slane %v7705, 2
    %v7707 = vmax.f32 %v7705, %v7706
    %v7708 = vrot.slane %v7707, 1
    %v7709 = vmax.f32 %v7707, %v7708
    %v7710 = vmax.f32 %v7076, %v7078
    %v7711 = vmax.f32 %v7710, %v7081
    %v7712 = vmax.f32 %v7711, %v7083
    %v7713 = vmax.f32 %v7712, %v7086
    %v7714 = vmax.f32 %v7713, %v7088
    %v7715 = vmax.f32 %v7714, %v7091
    %v7716 = vmax.f32 %v7715, %v7093
    %v7717 = vmax.f32 %v7716, %v7096
    %v7718 = vmax.f32 %v7717, %v7098
    %v7719 = vmax.f32 %v7718, %v7101
    %v7720 = vmax.f32 %v7719, %v7103
    %v7721 = vmax.f32 %v7720, %v7106
    %v7722 = vmax.f32 %v7721, %v7108
    %v7723 = vmax.f32 %v7722, %v7111
    %v7724 = vmax.f32 %v7723, %v7113
    %v7725 = vrot.slane %v7724, 4
    %v7726 = vmax.f32 %v7724, %v7725
    %v7727 = vrot.slane %v7726, 2
    %v7728 = vmax.f32 %v7726, %v7727
    %v7729 = vrot.slane %v7728, 1
    %v7730 = vmax.f32 %v7728, %v7729
    %v7731 = vmax.f32 %v7165, %v7167
    %v7732 = vmax.f32 %v7731, %v7170
    %v7733 = vmax.f32 %v7732, %v7172
    %v7734 = vmax.f32 %v7733, %v7175
    %v7735 = vmax.f32 %v7734, %v7177
    %v7736 = vmax.f32 %v7735, %v7180
    %v7737 = vmax.f32 %v7736, %v7182
    %v7738 = vmax.f32 %v7737, %v7185
    %v7739 = vmax.f32 %v7738, %v7187
    %v7740 = vmax.f32 %v7739, %v7190
    %v7741 = vmax.f32 %v7740, %v7192
    %v7742 = vmax.f32 %v7741, %v7195
    %v7743 = vmax.f32 %v7742, %v7197
    %v7744 = vmax.f32 %v7743, %v7200
    %v7745 = vmax.f32 %v7744, %v7202
    %v7746 = vrot.slane %v7745, 4
    %v7747 = vmax.f32 %v7745, %v7746
    %v7748 = vrot.slane %v7747, 2
    %v7749 = vmax.f32 %v7747, %v7748
    %v7750 = vrot.slane %v7749, 1
    %v7751 = vmax.f32 %v7749, %v7750
    %v7752 = vmax.f32 %v7254, %v7256
    %v7753 = vmax.f32 %v7752, %v7259
    %v7754 = vmax.f32 %v7753, %v7261
    %v7755 = vmax.f32 %v7754, %v7264
    %v7756 = vmax.f32 %v7755, %v7266
    %v7757 = vmax.f32 %v7756, %v7269
    %v7758 = vmax.f32 %v7757, %v7271
    %v7759 = vmax.f32 %v7758, %v7274
    %v7760 = vmax.f32 %v7759, %v7276
    %v7761 = vmax.f32 %v7760, %v7279
    %v7762 = vmax.f32 %v7761, %v7281
    %v7763 = vmax.f32 %v7762, %v7284
    %v7764 = vmax.f32 %v7763, %v7286
    %v7765 = vmax.f32 %v7764, %v7289
    %v7766 = vmax.f32 %v7765, %v7291
    %v7767 = vrot.slane %v7766, 4
    %v7768 = vmax.f32 %v7766, %v7767
    %v7769 = vrot.slane %v7768, 2
    %v7770 = vmax.f32 %v7768, %v7769
    %v7771 = vrot.slane %v7770, 1
    %v7772 = vmax.f32 %v7770, %v7771
    %v7773 = vmax.f32 %v7343, %v7345
    %v7774 = vmax.f32 %v7773, %v7348
    %v7775 = vmax.f32 %v7774, %v7350
    %v7776 = vmax.f32 %v7775, %v7353
    %v7777 = vmax.f32 %v7776, %v7355
    %v7778 = vmax.f32 %v7777, %v7358
    %v7779 = vmax.f32 %v7778, %v7360
    %v7780 = vmax.f32 %v7779, %v7363
    %v7781 = vmax.f32 %v7780, %v7365
    %v7782 = vmax.f32 %v7781, %v7368
    %v7783 = vmax.f32 %v7782, %v7370
    %v7784 = vmax.f32 %v7783, %v7373
    %v7785 = vmax.f32 %v7784, %v7375
    %v7786 = vmax.f32 %v7785, %v7378
    %v7787 = vmax.f32 %v7786, %v7380
    %v7788 = vrot.slane %v7787, 4
    %v7789 = vmax.f32 %v7787, %v7788
    %v7790 = vrot.slane %v7789, 2
    %v7791 = vmax.f32 %v7789, %v7790
    %v7792 = vrot.slane %v7791, 1
    %v7793 = vmax.f32 %v7791, %v7792
    %v7794 = vmax.f32 %v7432, %v7434
    %v7795 = vmax.f32 %v7794, %v7437
    %v7796 = vmax.f32 %v7795, %v7439
    %v7797 = vmax.f32 %v7796, %v7442
    %v7798 = vmax.f32 %v7797, %v7444
    %v7799 = vmax.f32 %v7798, %v7447
    %v7800 = vmax.f32 %v7799, %v7449
    %v7801 = vmax.f32 %v7800, %v7452
    %v7802 = vmax.f32 %v7801, %v7454
    %v7803 = vmax.f32 %v7802, %v7457
    %v7804 = vmax.f32 %v7803, %v7459
    %v7805 = vmax.f32 %v7804, %v7462
    %v7806 = vmax.f32 %v7805, %v7464
    %v7807 = vmax.f32 %v7806, %v7467
    %v7808 = vmax.f32 %v7807, %v7469
    %v7809 = vrot.slane %v7808, 4
    %v7810 = vmax.f32 %v7808, %v7809
    %v7811 = vrot.slane %v7810, 2
    %v7812 = vmax.f32 %v7810, %v7811
    %v7813 = vrot.slane %v7812, 1
    %v7814 = vmax.f32 %v7812, %v7813
    %v7815 = vmax.f32 %v7521, %v7523
    %v7816 = vmax.f32 %v7815, %v7526
    %v7817 = vmax.f32 %v7816, %v7528
    %v7818 = vmax.f32 %v7817, %v7531
    %v7819 = vmax.f32 %v7818, %v7533
    %v7820 = vmax.f32 %v7819, %v7536
    %v7821 = vmax.f32 %v7820, %v7538
    %v7822 = vmax.f32 %v7821, %v7541
    %v7823 = vmax.f32 %v7822, %v7543
    %v7824 = vmax.f32 %v7823, %v7546
    %v7825 = vmax.f32 %v7824, %v7548
    %v7826 = vmax.f32 %v7825, %v7551
    %v7827 = vmax.f32 %v7826, %v7553
    %v7828 = vmax.f32 %v7827, %v7556
    %v7829 = vmax.f32 %v7828, %v7558
    %v7830 = vrot.slane %v7829, 4
    %v7831 = vmax.f32 %v7829, %v7830
    %v7832 = vrot.slane %v7831, 2
    %v7833 = vmax.f32 %v7831, %v7832
    %v7834 = vrot.slane %v7833, 1
    %v7835 = vmax.f32 %v7833, %v7834
    %v7836 = vmax.f32 %v7610, %v7612
    %v7837 = vmax.f32 %v7836, %v7615
    %v7838 = vmax.f32 %v7837, %v7617
    %v7839 = vmax.f32 %v7838, %v7620
    %v7840 = vmax.f32 %v7839, %v7622
    %v7841 = vmax.f32 %v7840, %v7625
    %v7842 = vmax.f32 %v7841, %v7627
    %v7843 = vmax.f32 %v7842, %v7630
    %v7844 = vmax.f32 %v7843, %v7632
    %v7845 = vmax.f32 %v7844, %v7635
    %v7846 = vmax.f32 %v7845, %v7637
    %v7847 = vmax.f32 %v7846, %v7640
    %v7848 = vmax.f32 %v7847, %v7642
    %v7849 = vmax.f32 %v7848, %v7645
    %v7850 = vmax.f32 %v7849, %v7647
    %v7851 = vrot.slane %v7850, 4
    %v7852 = vmax.f32 %v7850, %v7851
    %v7853 = vrot.slane %v7852, 2
    %v7854 = vmax.f32 %v7852, %v7853
    %v7855 = vrot.slane %v7854, 1
    %v7856 = vmax.f32 %v7854, %v7855
    %v7857 = vmax.f32 %v7027, %v7029
    %v7858 = vmax.f32 %v7857, %v7032
    %v7859 = vmax.f32 %v7858, %v7034
    %v7860 = vmax.f32 %v7859, %v7037
    %v7861 = vmax.f32 %v7860, %v7039
    %v7862 = vmax.f32 %v7861, %v7042
    %v7863 = vmax.f32 %v7862, %v7044
    %v7864 = vmax.f32 %v7863, %v7047
    %v7865 = vmax.f32 %v7864, %v7049
    %v7866 = vmax.f32 %v7865, %v7052
    %v7867 = vmax.f32 %v7866, %v7054
    %v7868 = vmax.f32 %v7867, %v7057
    %v7869 = vmax.f32 %v7868, %v7059
    %v7870 = vmax.f32 %v7869, %v7062
    %v7871 = vmax.f32 %v7870, %v7064
    %v7872 = vrot.slane %v7871, 4
    %v7873 = vmax.f32 %v7871, %v7872
    %v7874 = vrot.slane %v7873, 2
    %v7875 = vmax.f32 %v7873, %v7874
    %v7876 = vrot.slane %v7875, 1
    %v7877 = vmax.f32 %v7875, %v7876
    %v7878 = vmax.f32 %v7116, %v7118
    %v7879 = vmax.f32 %v7878, %v7121
    %v7880 = vmax.f32 %v7879, %v7123
    %v7881 = vmax.f32 %v7880, %v7126
    %v7882 = vmax.f32 %v7881, %v7128
    %v7883 = vmax.f32 %v7882, %v7131
    %v7884 = vmax.f32 %v7883, %v7133
    %v7885 = vmax.f32 %v7884, %v7136
    %v7886 = vmax.f32 %v7885, %v7138
    %v7887 = vmax.f32 %v7886, %v7141
    %v7888 = vmax.f32 %v7887, %v7143
    %v7889 = vmax.f32 %v7888, %v7146
    %v7890 = vmax.f32 %v7889, %v7148
    %v7891 = vmax.f32 %v7890, %v7151
    %v7892 = vmax.f32 %v7891, %v7153
    %v7893 = vrot.slane %v7892, 4
    %v7894 = vmax.f32 %v7892, %v7893
    %v7895 = vrot.slane %v7894, 2
    %v7896 = vmax.f32 %v7894, %v7895
    %v7897 = vrot.slane %v7896, 1
    %v7898 = vmax.f32 %v7896, %v7897
    %v7899 = vmax.f32 %v7205, %v7207
    %v7900 = vmax.f32 %v7899, %v7210
    %v7901 = vmax.f32 %v7900, %v7212
    %v7902 = vmax.f32 %v7901, %v7215
    %v7903 = vmax.f32 %v7902, %v7217
    %v7904 = vmax.f32 %v7903, %v7220
    %v7905 = vmax.f32 %v7904, %v7222
    %v7906 = vmax.f32 %v7905, %v7225
    %v7907 = vmax.f32 %v7906, %v7227
    %v7908 = vmax.f32 %v7907, %v7230
    %v7909 = vmax.f32 %v7908, %v7232
    %v7910 = vmax.f32 %v7909, %v7235
    %v7911 = vmax.f32 %v7910, %v7237
    %v7912 = vmax.f32 %v7911, %v7240
    %v7913 = vmax.f32 %v7912, %v7242
    %v7914 = vrot.slane %v7913, 4
    %v7915 = vmax.f32 %v7913, %v7914
    %v7916 = vrot.slane %v7915, 2
    %v7917 = vmax.f32 %v7915, %v7916
    %v7918 = vrot.slane %v7917, 1
    %v7919 = vmax.f32 %v7917, %v7918
    %v7920 = vmax.f32 %v7294, %v7296
    %v7921 = vmax.f32 %v7920, %v7299
    %v7922 = vmax.f32 %v7921, %v7301
    %v7923 = vmax.f32 %v7922, %v7304
    %v7924 = vmax.f32 %v7923, %v7306
    %v7925 = vmax.f32 %v7924, %v7309
    %v7926 = vmax.f32 %v7925, %v7311
    %v7927 = vmax.f32 %v7926, %v7314
    %v7928 = vmax.f32 %v7927, %v7316
    %v7929 = vmax.f32 %v7928, %v7319
    %v7930 = vmax.f32 %v7929, %v7321
    %v7931 = vmax.f32 %v7930, %v7324
    %v7932 = vmax.f32 %v7931, %v7326
    %v7933 = vmax.f32 %v7932, %v7329
    %v7934 = vmax.f32 %v7933, %v7331
    %v7935 = vrot.slane %v7934, 4
    %v7936 = vmax.f32 %v7934, %v7935
    %v7937 = vrot.slane %v7936, 2
    %v7938 = vmax.f32 %v7936, %v7937
    %v7939 = vrot.slane %v7938, 1
    %v7940 = vmax.f32 %v7938, %v7939
    %v7941 = vmax.f32 %v7383, %v7385
    %v7942 = vmax.f32 %v7941, %v7388
    %v7943 = vmax.f32 %v7942, %v7390
    %v7944 = vmax.f32 %v7943, %v7393
    %v7945 = vmax.f32 %v7944, %v7395
    %v7946 = vmax.f32 %v7945, %v7398
    %v7947 = vmax.f32 %v7946, %v7400
    %v7948 = vmax.f32 %v7947, %v7403
    %v7949 = vmax.f32 %v7948, %v7405
    %v7950 = vmax.f32 %v7949, %v7408
    %v7951 = vmax.f32 %v7950, %v7410
    %v7952 = vmax.f32 %v7951, %v7413
    %v7953 = vmax.f32 %v7952, %v7415
    %v7954 = vmax.f32 %v7953, %v7418
    %v7955 = vmax.f32 %v7954, %v7420
    %v7956 = vrot.slane %v7955, 4
    %v7957 = vmax.f32 %v7955, %v7956
    %v7958 = vrot.slane %v7957, 2
    %v7959 = vmax.f32 %v7957, %v7958
    %v7960 = vrot.slane %v7959, 1
    %v7961 = vmax.f32 %v7959, %v7960
    %v7962 = vmax.f32 %v7472, %v7474
    %v7963 = vmax.f32 %v7962, %v7477
    %v7964 = vmax.f32 %v7963, %v7479
    %v7965 = vmax.f32 %v7964, %v7482
    %v7966 = vmax.f32 %v7965, %v7484
    %v7967 = vmax.f32 %v7966, %v7487
    %v7968 = vmax.f32 %v7967, %v7489
    %v7969 = vmax.f32 %v7968, %v7492
    %v7970 = vmax.f32 %v7969, %v7494
    %v7971 = vmax.f32 %v7970, %v7497
    %v7972 = vmax.f32 %v7971, %v7499
    %v7973 = vmax.f32 %v7972, %v7502
    %v7974 = vmax.f32 %v7973, %v7504
    %v7975 = vmax.f32 %v7974, %v7507
    %v7976 = vmax.f32 %v7975, %v7509
    %v7977 = vrot.slane %v7976, 4
    %v7978 = vmax.f32 %v7976, %v7977
    %v7979 = vrot.slane %v7978, 2
    %v7980 = vmax.f32 %v7978, %v7979
    %v7981 = vrot.slane %v7980, 1
    %v7982 = vmax.f32 %v7980, %v7981
    %v7983 = vmax.f32 %v7561, %v7563
    %v7984 = vmax.f32 %v7983, %v7566
    %v7985 = vmax.f32 %v7984, %v7568
    %v7986 = vmax.f32 %v7985, %v7571
    %v7987 = vmax.f32 %v7986, %v7573
    %v7988 = vmax.f32 %v7987, %v7576
    %v7989 = vmax.f32 %v7988, %v7578
    %v7990 = vmax.f32 %v7989, %v7581
    %v7991 = vmax.f32 %v7990, %v7583
    %v7992 = vmax.f32 %v7991, %v7586
    %v7993 = vmax.f32 %v7992, %v7588
    %v7994 = vmax.f32 %v7993, %v7591
    %v7995 = vmax.f32 %v7994, %v7593
    %v7996 = vmax.f32 %v7995, %v7596
    %v7997 = vmax.f32 %v7996, %v7598
    %v7998 = vrot.slane %v7997, 4
    %v7999 = vmax.f32 %v7997, %v7998
    %v8000 = vrot.slane %v7999, 2
    %v8001 = vmax.f32 %v7999, %v8000
    %v8002 = vrot.slane %v8001, 1
    %v8003 = vmax.f32 %v8001, %v8002
    %v8004 = vmax.f32 %v7650, %v7652
    %v8005 = vmax.f32 %v8004, %v7655
    %v8006 = vmax.f32 %v8005, %v7657
    %v8007 = vmax.f32 %v8006, %v7660
    %v8008 = vmax.f32 %v8007, %v7662
    %v8009 = vmax.f32 %v8008, %v7665
    %v8010 = vmax.f32 %v8009, %v7667
    %v8011 = vmax.f32 %v8010, %v7670
    %v8012 = vmax.f32 %v8011, %v7672
    %v8013 = vmax.f32 %v8012, %v7675
    %v8014 = vmax.f32 %v8013, %v7677
    %v8015 = vmax.f32 %v8014, %v7680
    %v8016 = vmax.f32 %v8015, %v7682
    %v8017 = vmax.f32 %v8016, %v7685
    %v8018 = vmax.f32 %v8017, %v7687
    %v8019 = vrot.slane %v8018, 4
    %v8020 = vmax.f32 %v8018, %v8019
    %v8021 = vrot.slane %v8020, 2
    %v8022 = vmax.f32 %v8020, %v8021
    %v8023 = vrot.slane %v8022, 1
    %v8024 = vmax.f32 %v8022, %v8023
    %v8041 = vrot.slane %v7730, 6
    %v8042 = vrot.slane %v7751, 4
    %v8043 = vrot.slane %v7772, 2
    %v8044 = vrot.slane %v7814, 6
    %v8045 = vrot.slane %v7835, 4
    %v8046 = vrot.slane %v7856, 2
    %v8047 = vrot.slane %v7898, 6
    %v8048 = vrot.slane %v7919, 4
    %v8049 = vrot.slane %v7940, 2
    %v8050 = vrot.slane %v7982, 6
    %v8051 = vrot.slane %v8003, 4
    %v8052 = vrot.slane %v8024, 2
    %v8053 = vsel %vm228, %v7709, %v8041
    %vm8054 = vcmask 1045508
    %v8055 = vsel %vm8054, %v8042, %v8043
    %vm8056 = vcmask 1043456
    %v8057 = vsel %vm8056, %v8053, %v8055
    %v8058 = vsel %vm228, %v7793, %v8044
    %v8059 = vsel %vm8054, %v8045, %v8046
    %v8060 = vsel %vm8056, %v8058, %v8059
    %v8061 = vsel %vm228, %v7877, %v8047
    %v8062 = vsel %vm8054, %v8048, %v8049
    %v8063 = vsel %vm8056, %v8061, %v8062
    %v8064 = vsel %vm228, %v7961, %v8050
    %v8065 = vsel %vm8054, %v8051, %v8052
    %v8066 = vsel %vm8056, %v8064, %v8065
    %vm8067 = vcmask 1044484
    %v8068 = vsel %vm8067, %v8057, %v8057
    %vm8069 = vcmask 1046534
    %v8070 = vsel %vm8069, %v8057, %v8068
    %v8071 = vrot.slane %v8063, 7
    %v8072 = vsel %vm2649, %v8071, %v8070
    %vm8073 = vcmask 1043459
    %v8074 = vsel %vm8073, %v8071, %v8072
    %vm8075 = vcmask 1045509
    %v8076 = vsel %vm8075, %v8071, %v8074
    %vm8077 = vcmask 1047559
    %v8078 = vsel %vm8077, %v8071, %v8076
    %v8079 = vsel %vm8067, %v8060, %v8060
    %v8080 = vsel %vm8069, %v8060, %v8079
    %v8081 = vrot.slane %v8066, 7
    %v8082 = vsel %vm2649, %v8081, %v8080
    %v8083 = vsel %vm8073, %v8081, %v8082
    %v8084 = vsel %vm8075, %v8081, %v8083
    %v8085 = vsel %vm8077, %v8081, %v8084
    %8088 = vst [vmem:[#allocation10] sm:$0xff] %v8078
    %8089 = vst [vmem:[#allocation10 + $0x8] sm:$0xff] %v8085
    // Predicated region
    $region94: #{pointnetfeat_forward.1} parent=1 // pred_check
      _
    $region95: #{pointnetfeat_forward.1} parent=1 // pred_check_branch
      %8091 = sbr.rel (0) target = $region97
    $region96: #{pointnetfeat_forward.1} parent=1 // pred_region
      _
    $region97: #{pointnetfeat_forward.1} parent=1 // pred_fallthru
      _
    // Predicated region
    $region98: #{pointnetfeat_forward.1} parent=1 // pred_check
      _
    $region99: #{pointnetfeat_forward.1} parent=1 // pred_check_branch
      %8093 = sbr.rel (0) target = $region101
    $region100: #{pointnetfeat_forward.1} parent=1 // pred_region
      %8095 = vsyncadd [#allocation4], 0
      %s8097 = sshll.u32 [#allocation10], 4
      %s8098 = int_to_ptr.vmem [resolvable:$true] %s8097
      %s8099 = sshll.u32 %s20, 4
      %s8100 = int_to_ptr.hbm [resolvable:$true] %s8099
      %8102 = dma.vmem_to_hbm [thread:$0]  %s8098, 256, %s8100, [#allocation4]
    $region101: #{pointnetfeat_forward.1} parent=1 // pred_fallthru
      _
    // Predicated region
    $region102: #{pointnetfeat_forward.1} parent=1 // pred_check
      _
    $region103: #{pointnetfeat_forward.1} parent=1 // pred_check_branch
      %8104 = sbr.rel (0) target = $region105
    $region104: #{pointnetfeat_forward.1} parent=1 // pred_region
      _
    $region105: #{pointnetfeat_forward.1} parent=1 // pred_fallthru
      _
    // Predicated region
    $region106: #{pointnetfeat_forward.1} parent=1 // pred_check
      _
    $region107: #{pointnetfeat_forward.1} parent=1 // pred_check_branch
      %8106 = sbr.rel (0) target = $region109
    $region108: #{pointnetfeat_forward.1} parent=1 // pred_region
      %8108 = dma.done [#allocation4], 256
    $region109: #{pointnetfeat_forward.1} parent=1 // pred_fallthru
      _
    %8109 = vsyncpa [#allocation3], 1
    %8110 = vsyncpa [#allocation6], 1
    %8111 = vsyncpa [#allocation9], 1
    %8112 = vsyncpa [#allocation4], 1

</llo_original>
